<compile_context>
chip_gen: v7x
topology: tpu7x:2x2x1
jax: 0.10.0
libtpu: 0.0.40
codegen_flags: <defaults>
</compile_context>

<pallas_src>
import functools

import jax
import jax.numpy as jnp
from jax.experimental import pallas as pl
from jax.experimental.pallas import tpu as pltpu

BN_EPS = 1e-5
LANE = 128


# ----------------------------- small helpers --------------------------------


def _cpad(c):
    return ((c + LANE - 1) // LANE) * LANE


def _pad_axis(a, axis, target):
    pad = target - a.shape[axis]
    if pad == 0:
        return a
    widths = [(0, 0)] * a.ndim
    widths[axis] = (0, pad)
    return jnp.pad(a, widths)


def _fold_bn(w_oik, bn):
    """Fold inference-form BN into the conv weight; return (scaled_w, shift)."""
    gamma, beta, mean, var = bn
    scale = gamma / jnp.sqrt(var + BN_EPS)
    shift = beta - mean * scale
    return w_oik * scale[:, None, None], shift


# --------------------------- in-kernel building blocks ------------------------


def _shift_mats(length, dtype):
    """One-hot (L, L) matrices selecting x[l-1] / x[l+1] (zero at the border)."""
    r = jax.lax.broadcasted_iota(jnp.int32, (length, length), 0)
    c = jax.lax.broadcasted_iota(jnp.int32, (length, length), 1)
    s_prev = jnp.where(c == r - 1, 1.0, 0.0).astype(dtype)
    s_next = jnp.where(c == r + 1, 1.0, 0.0).astype(dtype)
    return s_prev, s_next


def _conv3_operand(x):
    """(L, 3C) operand [x[l-1] | x[l] | x[l+1]] for a k=3, pad=1 conv.

    Shifted windows are built with tiny exact one-hot matmuls (MXU has huge
    slack here), so the activation never round-trips through VMEM scratch and
    there are no sublane-unaligned stores between conv1 and conv2.
    """
    s_prev, s_next = _shift_mats(x.shape[0], x.dtype)
    prev = jnp.dot(s_prev, x, preferred_element_type=jnp.float32).astype(x.dtype)
    nxt = jnp.dot(s_next, x, preferred_element_type=jnp.float32).astype(x.dtype)
    return jnp.concatenate([prev, x, nxt], axis=-1)


def _downsample_mat(l_in, stride, dtype):
    """One-hot (l_out, l_in) row-selection matrix: out[l] = in[stride * l]."""
    l_out = (l_in - 1) // stride + 1
    r = jax.lax.broadcasted_iota(jnp.int32, (l_out, l_in), 0)
    c = jax.lax.broadcasted_iota(jnp.int32, (l_out, l_in), 1)
    return jnp.where(c == r * stride, 1.0, 0.0).astype(dtype)


# ------------------------------- fused kernel ---------------------------------


def _fused_resnet_kernel(*refs, block_meta):
    """Stem + all BasicBlocks + avg-pool for one batch element.

    refs = (patches, stem_w, stem_b, [per block: w1, b1, w2, b2, (wsc, bsc)],
            out_ref).  All weights are VMEM-resident across the whole grid.
    """
    out_ref = refs[-1]
    it = iter(refs[:-1])
    p_ref, ws_ref, bs_ref = next(it), next(it), next(it)

    # ---- stem: im2col patches @ (folded conv1+bn1) + ReLU ----
    y = jnp.dot(p_ref[0], ws_ref[...], preferred_element_type=jnp.float32)
    y = jnp.maximum(y + bs_ref[...], 0.0)                 # (l_stem, C) f32
    x = y.astype(jnp.bfloat16)

    # ---- BasicBlocks (BN folded; activations stay in registers) ----
    for stride, has_sc in block_meta:
        w1_ref, b1_ref, w2_ref, b2_ref = next(it), next(it), next(it), next(it)
        if has_sc:
            wsc_ref, bsc_ref = next(it), next(it)
        length = x.shape[0]

        # conv1 + bn1 + relu.  Stride-2 is computed at stride 1 and then row
        # selected with a one-hot matmul (MXU slack >> extra flops here).
        h = jnp.dot(_conv3_operand(x), w1_ref[...],
                    preferred_element_type=jnp.float32)
        h = jnp.maximum(h + b1_ref[...], 0.0)
        if stride != 1:
            h = jnp.dot(_downsample_mat(length, stride, jnp.float32), h,
                        preferred_element_type=jnp.float32)
        h = h.astype(jnp.bfloat16)

        # shortcut branch (1x1 conv + bn, or identity)
        if has_sc:
            xs = x
            if stride != 1:
                xs = jnp.dot(_downsample_mat(length, stride, jnp.bfloat16), x,
                             preferred_element_type=jnp.float32
                             ).astype(jnp.bfloat16)
            sc = jnp.dot(xs, wsc_ref[...],
                         preferred_element_type=jnp.float32) + bsc_ref[...]
        else:
            sc = x.astype(jnp.float32)                    # stride==1, cin==cout

        # conv2 + bn2 + residual add + relu (f32 epilogue)
        y = jnp.dot(_conv3_operand(h), w2_ref[...],
                    preferred_element_type=jnp.float32)
        y = jnp.maximum(y + b2_ref[...] + sc, 0.0)
        x = y.astype(jnp.bfloat16)

    # ---- AdaptiveAvgPool1d(1) + flatten (reciprocal multiply, not divide) ----
    inv_l = 1.0 / y.shape[0]
    out_ref[0] = (jnp.sum(y, axis=0, keepdims=True) * inv_l).astype(out_ref.dtype)


# ----------------------------- parameter prep ---------------------------------


def _prep_stem(conv1_w, bn1, *, stride=2, pad=3):
    w, b = _fold_bn(conv1_w, bn1)                        # (Cout, Cin, K)
    cout, cin, k = w.shape
    cin_k_pad, cout_pad = _cpad(cin * k), _cpad(cout)
    w_mat = w.reshape(cout, cin * k).T                   # row index = c*K + kk
    w_mat = _pad_axis(_pad_axis(w_mat, 0, cin_k_pad), 1, cout_pad)
    b_row = _pad_axis(b.reshape(1, -1), 1, cout_pad).astype(jnp.float32)
    cfg = dict(k=k, stride=stride, pad=pad, cin_k_pad=cin_k_pad)
    return w_mat.astype(jnp.bfloat16), b_row, cfg


def _prep_block(blk):
    w1, b1 = _fold_bn(blk["conv1_w"], blk["bn1"])
    w2, b2 = _fold_bn(blk["conv2_w"], blk["bn2"])
    cout, cin, _ = w1.shape
    cin_p, cout_p = _cpad(cin), _cpad(cout)

    def conv_mat(w, cinp, coutp):
        w = jnp.transpose(w, (2, 1, 0))                  # (K, Cin, Cout)
        w = _pad_axis(_pad_axis(w, 1, cinp), 2, coutp)
        # Row kk*cinp + c matches the [prev | x | next] lane-concat operand.
        return w.reshape(w.shape[0] * cinp, coutp).astype(jnp.bfloat16)

    def bias_row(b, coutp):
        return _pad_axis(b.reshape(1, -1), 1, coutp).astype(jnp.float32)

    arrs = [conv_mat(w1, cin_p, cout_p), bias_row(b1, cout_p),
            conv_mat(w2, cout_p, cout_p), bias_row(b2, cout_p)]
    has_sc = "sc_w" in blk
    if has_sc:
        wsc, bsc = _fold_bn(blk["sc_w"], blk["sc_bn"])
        wsc = jnp.transpose(wsc, (2, 1, 0))[0]           # (Cin, Cout), K = 1
        wsc = _pad_axis(_pad_axis(wsc, 0, cin_p), 1, cout_p).astype(jnp.bfloat16)
        arrs += [wsc, bias_row(bsc, cout_p)]
    return arrs, has_sc, cout_p


def prepare_params(params):
    """One-time prep (hoisted out of forward): fold BN, pad + flatten weights."""
    ws, bs, stem_cfg = _prep_stem(params["conv1_w"], params["bn1"])
    weights = [ws, bs]
    block_meta = []
    c_final = ws.shape[1]
    for layer in params["layers"]:
        for blk, stride in layer:
            arrs, has_sc, cout_p = _prep_block(blk)
            weights += arrs
            block_meta.append((stride, has_sc))
            c_final = cout_p
    cfg = dict(stem=stem_cfg, blocks=tuple(block_meta), c_final=c_final)
    return weights, cfg


# --------------------------------- forward ------------------------------------


def make_forward(cfg):
    stem = cfg["stem"]
    block_meta = cfg["blocks"]
    c_final = cfg["c_final"]

    @jax.jit
    def forward(x_ncl, weights):
        n, c_in, l0 = x_ncl.shape
        k, s, p = stem["k"], stem["stride"], stem["pad"]
        l1 = (l0 + 2 * p - k) // s + 1

        # Stem im2col (input formatting only; everything downstream runs in a
        # single fused pallas_call with all weights resident in VMEM).
        x = jnp.transpose(x_ncl, (0, 2, 1)).astype(jnp.float32)      # NCL -> NLC
        xp = jnp.pad(x, ((0, 0), (p, p), (0, 0)))
        cols = [xp[:, kk:kk + s * l1:s, :] for kk in range(k)]
        patches = jnp.stack(cols, axis=-1).reshape(n, l1, c_in * k)   # col = c*K + kk
        patches = _pad_axis(patches, 2, stem["cin_k_pad"]).astype(jnp.bfloat16)

        kernel = functools.partial(_fused_resnet_kernel, block_meta=block_meta)
        in_specs = [pl.BlockSpec((1, l1, stem["cin_k_pad"]), lambda i: (i, 0, 0))]
        in_specs += [pl.BlockSpec(w.shape, lambda i: (0, 0)) for w in weights]

        out = pl.pallas_call(
            kernel,
            grid=(n,),
            in_specs=in_specs,
            out_specs=pl.BlockSpec((1, 1, c_final), lambda i: (i, 0, 0)),
            out_shape=jax.ShapeDtypeStruct((n, 1, c_final), jnp.float32),
            compiler_params=pltpu.CompilerParams(
                dimension_semantics=("parallel",),
                vmem_limit_bytes=32 * 1024 * 1024),
        )(patches, *weights)
        return out.reshape(n, c_final)

    return forward


# --------------------------- parameter init -----------------------------------


def _init_conv(key, cout, cin, k):
    return jax.random.normal(key, (cout, cin, k), jnp.float32) / jnp.sqrt(cin * k)


def _init_bn(c):
    return (jnp.ones((c,), jnp.float32), jnp.zeros((c,), jnp.float32),
            jnp.zeros((c,), jnp.float32), jnp.ones((c,), jnp.float32))


def build_params(key, num_blocks=(1, 1, 1, 1)):
    keys = iter(jax.random.split(key, 64))
    params = {"conv1_w": _init_conv(next(keys), 64, 8, 7), "bn1": _init_bn(64)}
    in_planes = 64
    layers = []
    for planes, stride0, nb in zip((64, 128, 256, 512), (1, 2, 2, 2), num_blocks):
        layer = []
        for s in [stride0] + [1] * (nb - 1):
            blk = {
                "conv1_w": _init_conv(next(keys), planes, in_planes, 3),
                "bn1": _init_bn(planes),
                "conv2_w": _init_conv(next(keys), planes, planes, 3),
                "bn2": _init_bn(planes),
            }
            if s != 1 or in_planes != planes:            # BasicBlock.expansion == 1
                blk["sc_w"] = _init_conv(next(keys), planes, in_planes, 1)
                blk["sc_bn"] = _init_bn(planes)
            layer.append((blk, s))
            in_planes = planes
        layers.append(layer)
    params["layers"] = layers
    return params


# ------------------------------- main -----------------------------------------

if __name__ == "__main__":
    key = jax.random.PRNGKey(0)
    k_x, k_p = jax.random.split(key)

    # Input consistent with Conv1d(8, 64, k=7, stride=2, pad=3):
    # (batch=2, channels=8, length=128).
    x = jax.random.normal(k_x, (2, 8, 128), jnp.float32)
    params = build_params(k_p, num_blocks=(1, 1, 1, 1))

    weights, cfg = prepare_params(params)       # one-time prep, hoisted out of forward
    weights = jax.block_until_ready(weights)
    forward = make_forward(cfg)

    out = forward(x, weights)
    out = jax.block_until_ready(out)
    assert out.shape == (2, 512), out.shape
    print("KERNEL_OK")
</pallas_src>

<mosaic_0001>
module attributes {stable_mosaic.version = 11 : i64} {
  func.func @_fused_resnet_kernel(%arg0: i32, %arg1: memref<1x64x128xbf16, #tpu.memory_space<vmem>>, %arg2: memref<128x128xbf16, #tpu.memory_space<vmem>>, %arg3: memref<1x128xf32, #tpu.memory_space<vmem>>, %arg4: memref<384x128xbf16, #tpu.memory_space<vmem>>, %arg5: memref<1x128xf32, #tpu.memory_space<vmem>>, %arg6: memref<384x128xbf16, #tpu.memory_space<vmem>>, %arg7: memref<1x128xf32, #tpu.memory_space<vmem>>, %arg8: memref<384x128xbf16, #tpu.memory_space<vmem>>, %arg9: memref<1x128xf32, #tpu.memory_space<vmem>>, %arg10: memref<384x128xbf16, #tpu.memory_space<vmem>>, %arg11: memref<1x128xf32, #tpu.memory_space<vmem>>, %arg12: memref<128x128xbf16, #tpu.memory_space<vmem>>, %arg13: memref<1x128xf32, #tpu.memory_space<vmem>>, %arg14: memref<384x256xbf16, #tpu.memory_space<vmem>>, %arg15: memref<1x256xf32, #tpu.memory_space<vmem>>, %arg16: memref<768x256xbf16, #tpu.memory_space<vmem>>, %arg17: memref<1x256xf32, #tpu.memory_space<vmem>>, %arg18: memref<128x256xbf16, #tpu.memory_space<vmem>>, %arg19: memref<1x256xf32, #tpu.memory_space<vmem>>, %arg20: memref<768x512xbf16, #tpu.memory_space<vmem>>, %arg21: memref<1x512xf32, #tpu.memory_space<vmem>>, %arg22: memref<1536x512xbf16, #tpu.memory_space<vmem>>, %arg23: memref<1x512xf32, #tpu.memory_space<vmem>>, %arg24: memref<256x512xbf16, #tpu.memory_space<vmem>>, %arg25: memref<1x512xf32, #tpu.memory_space<vmem>>, %arg26: memref<1x1x512xf32, #tpu.memory_space<vmem>>) attributes {dimension_semantics = [#tpu.dimension_semantics<parallel>], iteration_bounds = array<i64: 2>, scalar_prefetch = 0 : i64, scratch_operands = 0 : i64, tpu.core_type = #tpu.core_type<tc>, window_params = [{transform_indices = @transform_0, window_bounds = array<i64: 1, 64, 128>}, {pipeline_mode = #tpu.pipeline_mode<synchronous>, transform_indices = @transform_1, window_bounds = array<i64: 128, 128>}, {pipeline_mode = #tpu.pipeline_mode<synchronous>, transform_indices = @transform_2, window_bounds = array<i64: 1, 128>}, {pipeline_mode = #tpu.pipeline_mode<synchronous>, transform_indices = @transform_3, window_bounds = array<i64: 384, 128>}, {pipeline_mode = #tpu.pipeline_mode<synchronous>, transform_indices = @transform_4, window_bounds = array<i64: 1, 128>}, {pipeline_mode = #tpu.pipeline_mode<synchronous>, transform_indices = @transform_5, window_bounds = array<i64: 384, 128>}, {pipeline_mode = #tpu.pipeline_mode<synchronous>, transform_indices = @transform_6, window_bounds = array<i64: 1, 128>}, {pipeline_mode = #tpu.pipeline_mode<synchronous>, transform_indices = @transform_7, window_bounds = array<i64: 384, 128>}, {pipeline_mode = #tpu.pipeline_mode<synchronous>, transform_indices = @transform_8, window_bounds = array<i64: 1, 128>}, {pipeline_mode = #tpu.pipeline_mode<synchronous>, transform_indices = @transform_9, window_bounds = array<i64: 384, 128>}, {pipeline_mode = #tpu.pipeline_mode<synchronous>, transform_indices = @transform_10, window_bounds = array<i64: 1, 128>}, {pipeline_mode = #tpu.pipeline_mode<synchronous>, transform_indices = @transform_11, window_bounds = array<i64: 128, 128>}, {pipeline_mode = #tpu.pipeline_mode<synchronous>, transform_indices = @transform_12, window_bounds = array<i64: 1, 128>}, {pipeline_mode = #tpu.pipeline_mode<synchronous>, transform_indices = @transform_13, window_bounds = array<i64: 384, 256>}, {pipeline_mode = #tpu.pipeline_mode<synchronous>, transform_indices = @transform_14, window_bounds = array<i64: 1, 256>}, {pipeline_mode = #tpu.pipeline_mode<synchronous>, transform_indices = @transform_15, window_bounds = array<i64: 768, 256>}, {pipeline_mode = #tpu.pipeline_mode<synchronous>, transform_indices = @transform_16, window_bounds = array<i64: 1, 256>}, {pipeline_mode = #tpu.pipeline_mode<synchronous>, transform_indices = @transform_17, window_bounds = array<i64: 128, 256>}, {pipeline_mode = #tpu.pipeline_mode<synchronous>, transform_indices = @transform_18, window_bounds = array<i64: 1, 256>}, {pipeline_mode = #tpu.pipeline_mode<synchronous>, transform_indices = @transform_19, window_bounds = array<i64: 768, 512>}, {pipeline_mode = #tpu.pipeline_mode<synchronous>, transform_indices = @transform_20, window_bounds = array<i64: 1, 512>}, {pipeline_mode = #tpu.pipeline_mode<synchronous>, transform_indices = @transform_21, window_bounds = array<i64: 1536, 512>}, {pipeline_mode = #tpu.pipeline_mode<synchronous>, transform_indices = @transform_22, window_bounds = array<i64: 1, 512>}, {pipeline_mode = #tpu.pipeline_mode<synchronous>, transform_indices = @transform_23, window_bounds = array<i64: 256, 512>}, {pipeline_mode = #tpu.pipeline_mode<synchronous>, transform_indices = @transform_24, window_bounds = array<i64: 1, 512>}, {transform_indices = @transform_25, window_bounds = array<i64: 1, 1, 512>}]} {
    %c0 = arith.constant 0 : index
    %c0_0 = arith.constant 0 : index
    %c0_1 = arith.constant 0 : index
    %0 = vector.load %arg1[%c0, %c0_0, %c0_1] : memref<1x64x128xbf16, #tpu.memory_space<vmem>>, vector<1x64x128xbf16>
    %1 = vector.shape_cast %0 : vector<1x64x128xbf16> to vector<64x128xbf16>
    %c0_2 = arith.constant 0 : index
    %c0_3 = arith.constant 0 : index
    %2 = vector.load %arg2[%c0_2, %c0_3] : memref<128x128xbf16, #tpu.memory_space<vmem>>, vector<128x128xbf16>
    %cst = arith.constant dense<0.000000e+00> : vector<64x128xf32>
    %3 = tpu.matmul %1, %2, %cst {dimension_numbers = #tpu.dot_dimension_numbers<[1], [0], [0], [1], [0, 0, 1, 1], [], []>} : vector<64x128xbf16>, vector<128x128xbf16>, vector<64x128xf32> -> vector<64x128xf32>
    %c0_4 = arith.constant 0 : index
    %c0_5 = arith.constant 0 : index
    %4 = vector.load %arg3[%c0_4, %c0_5] : memref<1x128xf32, #tpu.memory_space<vmem>>, vector<1x128xf32>
    %5 = vector.broadcast %4 : vector<1x128xf32> to vector<64x128xf32>
    %6 = arith.addf %3, %5 : vector<64x128xf32>
    %cst_6 = arith.constant 0.000000e+00 : f32
    %7 = vector.broadcast %cst_6 : f32 to vector<64x128xf32>
    %8 = arith.maximumf %6, %7 : vector<64x128xf32>
    %9 = arith.truncf %8 : vector<64x128xf32> to vector<64x128xbf16>
    %10 = tpu.iota {dimensions = array<i32: 0>} : vector<64x64xi32>
    %11 = tpu.iota {dimensions = array<i32: 1>} : vector<64x64xi32>
    %c1_i32 = arith.constant 1 : i32
    %12 = vector.broadcast %c1_i32 : i32 to vector<64x64xi32>
    %13 = arith.subi %10, %12 : vector<64x64xi32>
    %14 = arith.cmpi eq, %11, %13 : vector<64x64xi32>
    %cst_7 = arith.constant 1.000000e+00 : f32
    %cst_8 = arith.constant 0.000000e+00 : f32
    %15 = vector.broadcast %cst_7 : f32 to vector<64x64xf32>
    %16 = vector.broadcast %cst_8 : f32 to vector<64x64xf32>
    %17 = arith.select %14, %15, %16 : vector<64x64xi1>, vector<64x64xf32>
    %18 = arith.truncf %17 : vector<64x64xf32> to vector<64x64xbf16>
    %c1_i32_9 = arith.constant 1 : i32
    %19 = vector.broadcast %c1_i32_9 : i32 to vector<64x64xi32>
    %20 = arith.addi %10, %19 : vector<64x64xi32>
    %21 = arith.cmpi eq, %11, %20 : vector<64x64xi32>
    %cst_10 = arith.constant 1.000000e+00 : f32
    %cst_11 = arith.constant 0.000000e+00 : f32
    %22 = vector.broadcast %cst_10 : f32 to vector<64x64xf32>
    %23 = vector.broadcast %cst_11 : f32 to vector<64x64xf32>
    %24 = arith.select %21, %22, %23 : vector<64x64xi1>, vector<64x64xf32>
    %25 = arith.truncf %24 : vector<64x64xf32> to vector<64x64xbf16>
    %cst_12 = arith.constant dense<0.000000e+00> : vector<64x128xf32>
    %26 = tpu.matmul %18, %9, %cst_12 {dimension_numbers = #tpu.dot_dimension_numbers<[1], [0], [0], [1], [0, 0, 1, 1], [], []>} : vector<64x64xbf16>, vector<64x128xbf16>, vector<64x128xf32> -> vector<64x128xf32>
    %27 = arith.truncf %26 : vector<64x128xf32> to vector<64x128xbf16>
    %cst_13 = arith.constant dense<0.000000e+00> : vector<64x128xf32>
    %28 = tpu.matmul %25, %9, %cst_13 {dimension_numbers = #tpu.dot_dimension_numbers<[1], [0], [0], [1], [0, 0, 1, 1], [], []>} : vector<64x64xbf16>, vector<64x128xbf16>, vector<64x128xf32> -> vector<64x128xf32>
    %29 = arith.truncf %28 : vector<64x128xf32> to vector<64x128xbf16>
    %30 = tpu.concatenate %27, %9, %29 in 1 : vector<64x128xbf16>, vector<64x128xbf16>, vector<64x128xbf16> -> vector<64x384xbf16>
    %c0_14 = arith.constant 0 : index
    %c0_15 = arith.constant 0 : index
    %31 = vector.load %arg4[%c0_14, %c0_15] : memref<384x128xbf16, #tpu.memory_space<vmem>>, vector<384x128xbf16>
    %cst_16 = arith.constant dense<0.000000e+00> : vector<64x128xf32>
    %32 = tpu.matmul %30, %31, %cst_16 {dimension_numbers = #tpu.dot_dimension_numbers<[1], [0], [0], [1], [0, 0, 1, 1], [], []>} : vector<64x384xbf16>, vector<384x128xbf16>, vector<64x128xf32> -> vector<64x128xf32>
    %c0_17 = arith.constant 0 : index
    %c0_18 = arith.constant 0 : index
    %33 = vector.load %arg5[%c0_17, %c0_18] : memref<1x128xf32, #tpu.memory_space<vmem>>, vector<1x128xf32>
    %34 = vector.broadcast %33 : vector<1x128xf32> to vector<64x128xf32>
    %35 = arith.addf %32, %34 : vector<64x128xf32>
    %cst_19 = arith.constant 0.000000e+00 : f32
    %36 = vector.broadcast %cst_19 : f32 to vector<64x128xf32>
    %37 = arith.maximumf %35, %36 : vector<64x128xf32>
    %38 = arith.truncf %37 : vector<64x128xf32> to vector<64x128xbf16>
    %39 = arith.extf %9 : vector<64x128xbf16> to vector<64x128xf32>
    %40 = tpu.iota {dimensions = array<i32: 0>} : vector<64x64xi32>
    %41 = tpu.iota {dimensions = array<i32: 1>} : vector<64x64xi32>
    %c1_i32_20 = arith.constant 1 : i32
    %42 = vector.broadcast %c1_i32_20 : i32 to vector<64x64xi32>
    %43 = arith.subi %40, %42 : vector<64x64xi32>
    %44 = arith.cmpi eq, %41, %43 : vector<64x64xi32>
    %cst_21 = arith.constant 1.000000e+00 : f32
    %cst_22 = arith.constant 0.000000e+00 : f32
    %45 = vector.broadcast %cst_21 : f32 to vector<64x64xf32>
    %46 = vector.broadcast %cst_22 : f32 to vector<64x64xf32>
    %47 = arith.select %44, %45, %46 : vector<64x64xi1>, vector<64x64xf32>
    %48 = arith.truncf %47 : vector<64x64xf32> to vector<64x64xbf16>
    %c1_i32_23 = arith.constant 1 : i32
    %49 = vector.broadcast %c1_i32_23 : i32 to vector<64x64xi32>
    %50 = arith.addi %40, %49 : vector<64x64xi32>
    %51 = arith.cmpi eq, %41, %50 : vector<64x64xi32>
    %cst_24 = arith.constant 1.000000e+00 : f32
    %cst_25 = arith.constant 0.000000e+00 : f32
    %52 = vector.broadcast %cst_24 : f32 to vector<64x64xf32>
    %53 = vector.broadcast %cst_25 : f32 to vector<64x64xf32>
    %54 = arith.select %51, %52, %53 : vector<64x64xi1>, vector<64x64xf32>
    %55 = arith.truncf %54 : vector<64x64xf32> to vector<64x64xbf16>
    %cst_26 = arith.constant dense<0.000000e+00> : vector<64x128xf32>
    %56 = tpu.matmul %48, %38, %cst_26 {dimension_numbers = #tpu.dot_dimension_numbers<[1], [0], [0], [1], [0, 0, 1, 1], [], []>} : vector<64x64xbf16>, vector<64x128xbf16>, vector<64x128xf32> -> vector<64x128xf32>
    %57 = arith.truncf %56 : vector<64x128xf32> to vector<64x128xbf16>
    %cst_27 = arith.constant dense<0.000000e+00> : vector<64x128xf32>
    %58 = tpu.matmul %55, %38, %cst_27 {dimension_numbers = #tpu.dot_dimension_numbers<[1], [0], [0], [1], [0, 0, 1, 1], [], []>} : vector<64x64xbf16>, vector<64x128xbf16>, vector<64x128xf32> -> vector<64x128xf32>
    %59 = arith.truncf %58 : vector<64x128xf32> to vector<64x128xbf16>
    %60 = tpu.concatenate %57, %38, %59 in 1 : vector<64x128xbf16>, vector<64x128xbf16>, vector<64x128xbf16> -> vector<64x384xbf16>
    %c0_28 = arith.constant 0 : index
    %c0_29 = arith.constant 0 : index
    %61 = vector.load %arg6[%c0_28, %c0_29] : memref<384x128xbf16, #tpu.memory_space<vmem>>, vector<384x128xbf16>
    %cst_30 = arith.constant dense<0.000000e+00> : vector<64x128xf32>
    %62 = tpu.matmul %60, %61, %cst_30 {dimension_numbers = #tpu.dot_dimension_numbers<[1], [0], [0], [1], [0, 0, 1, 1], [], []>} : vector<64x384xbf16>, vector<384x128xbf16>, vector<64x128xf32> -> vector<64x128xf32>
    %c0_31 = arith.constant 0 : index
    %c0_32 = arith.constant 0 : index
    %63 = vector.load %arg7[%c0_31, %c0_32] : memref<1x128xf32, #tpu.memory_space<vmem>>, vector<1x128xf32>
    %64 = vector.broadcast %63 : vector<1x128xf32> to vector<64x128xf32>
    %65 = arith.addf %62, %64 : vector<64x128xf32>
    %66 = arith.addf %65, %39 : vector<64x128xf32>
    %cst_33 = arith.constant 0.000000e+00 : f32
    %67 = vector.broadcast %cst_33 : f32 to vector<64x128xf32>
    %68 = arith.maximumf %66, %67 : vector<64x128xf32>
    %69 = arith.truncf %68 : vector<64x128xf32> to vector<64x128xbf16>
    %70 = tpu.iota {dimensions = array<i32: 0>} : vector<64x64xi32>
    %71 = tpu.iota {dimensions = array<i32: 1>} : vector<64x64xi32>
    %c1_i32_34 = arith.constant 1 : i32
    %72 = vector.broadcast %c1_i32_34 : i32 to vector<64x64xi32>
    %73 = arith.subi %70, %72 : vector<64x64xi32>
    %74 = arith.cmpi eq, %71, %73 : vector<64x64xi32>
    %cst_35 = arith.constant 1.000000e+00 : f32
    %cst_36 = arith.constant 0.000000e+00 : f32
    %75 = vector.broadcast %cst_35 : f32 to vector<64x64xf32>
    %76 = vector.broadcast %cst_36 : f32 to vector<64x64xf32>
    %77 = arith.select %74, %75, %76 : vector<64x64xi1>, vector<64x64xf32>
    %78 = arith.truncf %77 : vector<64x64xf32> to vector<64x64xbf16>
    %c1_i32_37 = arith.constant 1 : i32
    %79 = vector.broadcast %c1_i32_37 : i32 to vector<64x64xi32>
    %80 = arith.addi %70, %79 : vector<64x64xi32>
    %81 = arith.cmpi eq, %71, %80 : vector<64x64xi32>
    %cst_38 = arith.constant 1.000000e+00 : f32
    %cst_39 = arith.constant 0.000000e+00 : f32
    %82 = vector.broadcast %cst_38 : f32 to vector<64x64xf32>
    %83 = vector.broadcast %cst_39 : f32 to vector<64x64xf32>
    %84 = arith.select %81, %82, %83 : vector<64x64xi1>, vector<64x64xf32>
    %85 = arith.truncf %84 : vector<64x64xf32> to vector<64x64xbf16>
    %cst_40 = arith.constant dense<0.000000e+00> : vector<64x128xf32>
    %86 = tpu.matmul %78, %69, %cst_40 {dimension_numbers = #tpu.dot_dimension_numbers<[1], [0], [0], [1], [0, 0, 1, 1], [], []>} : vector<64x64xbf16>, vector<64x128xbf16>, vector<64x128xf32> -> vector<64x128xf32>
    %87 = arith.truncf %86 : vector<64x128xf32> to vector<64x128xbf16>
    %cst_41 = arith.constant dense<0.000000e+00> : vector<64x128xf32>
    %88 = tpu.matmul %85, %69, %cst_41 {dimension_numbers = #tpu.dot_dimension_numbers<[1], [0], [0], [1], [0, 0, 1, 1], [], []>} : vector<64x64xbf16>, vector<64x128xbf16>, vector<64x128xf32> -> vector<64x128xf32>
    %89 = arith.truncf %88 : vector<64x128xf32> to vector<64x128xbf16>
    %90 = tpu.concatenate %87, %69, %89 in 1 : vector<64x128xbf16>, vector<64x128xbf16>, vector<64x128xbf16> -> vector<64x384xbf16>
    %c0_42 = arith.constant 0 : index
    %c0_43 = arith.constant 0 : index
    %91 = vector.load %arg8[%c0_42, %c0_43] : memref<384x128xbf16, #tpu.memory_space<vmem>>, vector<384x128xbf16>
    %cst_44 = arith.constant dense<0.000000e+00> : vector<64x128xf32>
    %92 = tpu.matmul %90, %91, %cst_44 {dimension_numbers = #tpu.dot_dimension_numbers<[1], [0], [0], [1], [0, 0, 1, 1], [], []>} : vector<64x384xbf16>, vector<384x128xbf16>, vector<64x128xf32> -> vector<64x128xf32>
    %c0_45 = arith.constant 0 : index
    %c0_46 = arith.constant 0 : index
    %93 = vector.load %arg9[%c0_45, %c0_46] : memref<1x128xf32, #tpu.memory_space<vmem>>, vector<1x128xf32>
    %94 = vector.broadcast %93 : vector<1x128xf32> to vector<64x128xf32>
    %95 = arith.addf %92, %94 : vector<64x128xf32>
    %cst_47 = arith.constant 0.000000e+00 : f32
    %96 = vector.broadcast %cst_47 : f32 to vector<64x128xf32>
    %97 = arith.maximumf %95, %96 : vector<64x128xf32>
    %98 = tpu.iota {dimensions = array<i32: 0>} : vector<32x64xi32>
    %99 = tpu.iota {dimensions = array<i32: 1>} : vector<32x64xi32>
    %c2_i32 = arith.constant 2 : i32
    %100 = vector.broadcast %c2_i32 : i32 to vector<32x64xi32>
    %101 = arith.muli %98, %100 : vector<32x64xi32>
    %102 = arith.cmpi eq, %99, %101 : vector<32x64xi32>
    %cst_48 = arith.constant 1.000000e+00 : f32
    %cst_49 = arith.constant 0.000000e+00 : f32
    %103 = vector.broadcast %cst_48 : f32 to vector<32x64xf32>
    %104 = vector.broadcast %cst_49 : f32 to vector<32x64xf32>
    %105 = arith.select %102, %103, %104 : vector<32x64xi1>, vector<32x64xf32>
    %cst_50 = arith.constant dense<0.000000e+00> : vector<32x128xf32>
    %106 = tpu.matmul %105, %97, %cst_50 {dimension_numbers = #tpu.dot_dimension_numbers<[1], [0], [0], [1], [0, 0, 1, 1], [], []>} : vector<32x64xf32>, vector<64x128xf32>, vector<32x128xf32> -> vector<32x128xf32>
    %107 = arith.truncf %106 : vector<32x128xf32> to vector<32x128xbf16>
    %108 = tpu.iota {dimensions = array<i32: 0>} : vector<32x64xi32>
    %109 = tpu.iota {dimensions = array<i32: 1>} : vector<32x64xi32>
    %c2_i32_51 = arith.constant 2 : i32
    %110 = vector.broadcast %c2_i32_51 : i32 to vector<32x64xi32>
    %111 = arith.muli %108, %110 : vector<32x64xi32>
    %112 = arith.cmpi eq, %109, %111 : vector<32x64xi32>
    %cst_52 = arith.constant 1.000000e+00 : f32
    %cst_53 = arith.constant 0.000000e+00 : f32
    %113 = vector.broadcast %cst_52 : f32 to vector<32x64xf32>
    %114 = vector.broadcast %cst_53 : f32 to vector<32x64xf32>
    %115 = arith.select %112, %113, %114 : vector<32x64xi1>, vector<32x64xf32>
    %116 = arith.truncf %115 : vector<32x64xf32> to vector<32x64xbf16>
    %cst_54 = arith.constant dense<0.000000e+00> : vector<32x128xf32>
    %117 = tpu.matmul %116, %69, %cst_54 {dimension_numbers = #tpu.dot_dimension_numbers<[1], [0], [0], [1], [0, 0, 1, 1], [], []>} : vector<32x64xbf16>, vector<64x128xbf16>, vector<32x128xf32> -> vector<32x128xf32>
    %118 = arith.truncf %117 : vector<32x128xf32> to vector<32x128xbf16>
    %c0_55 = arith.constant 0 : index
    %c0_56 = arith.constant 0 : index
    %119 = vector.load %arg12[%c0_55, %c0_56] : memref<128x128xbf16, #tpu.memory_space<vmem>>, vector<128x128xbf16>
    %cst_57 = arith.constant dense<0.000000e+00> : vector<32x128xf32>
    %120 = tpu.matmul %118, %119, %cst_57 {dimension_numbers = #tpu.dot_dimension_numbers<[1], [0], [0], [1], [0, 0, 1, 1], [], []>} : vector<32x128xbf16>, vector<128x128xbf16>, vector<32x128xf32> -> vector<32x128xf32>
    %c0_58 = arith.constant 0 : index
    %c0_59 = arith.constant 0 : index
    %121 = vector.load %arg13[%c0_58, %c0_59] : memref<1x128xf32, #tpu.memory_space<vmem>>, vector<1x128xf32>
    %122 = vector.broadcast %121 : vector<1x128xf32> to vector<32x128xf32>
    %123 = arith.addf %120, %122 : vector<32x128xf32>
    %124 = tpu.iota {dimensions = array<i32: 0>} : vector<32x32xi32>
    %125 = tpu.iota {dimensions = array<i32: 1>} : vector<32x32xi32>
    %c1_i32_60 = arith.constant 1 : i32
    %126 = vector.broadcast %c1_i32_60 : i32 to vector<32x32xi32>
    %127 = arith.subi %124, %126 : vector<32x32xi32>
    %128 = arith.cmpi eq, %125, %127 : vector<32x32xi32>
    %cst_61 = arith.constant 1.000000e+00 : f32
    %cst_62 = arith.constant 0.000000e+00 : f32
    %129 = vector.broadcast %cst_61 : f32 to vector<32x32xf32>
    %130 = vector.broadcast %cst_62 : f32 to vector<32x32xf32>
    %131 = arith.select %128, %129, %130 : vector<32x32xi1>, vector<32x32xf32>
    %132 = arith.truncf %131 : vector<32x32xf32> to vector<32x32xbf16>
    %c1_i32_63 = arith.constant 1 : i32
    %133 = vector.broadcast %c1_i32_63 : i32 to vector<32x32xi32>
    %134 = arith.addi %124, %133 : vector<32x32xi32>
    %135 = arith.cmpi eq, %125, %134 : vector<32x32xi32>
    %cst_64 = arith.constant 1.000000e+00 : f32
    %cst_65 = arith.constant 0.000000e+00 : f32
    %136 = vector.broadcast %cst_64 : f32 to vector<32x32xf32>
    %137 = vector.broadcast %cst_65 : f32 to vector<32x32xf32>
    %138 = arith.select %135, %136, %137 : vector<32x32xi1>, vector<32x32xf32>
    %139 = arith.truncf %138 : vector<32x32xf32> to vector<32x32xbf16>
    %cst_66 = arith.constant dense<0.000000e+00> : vector<32x128xf32>
    %140 = tpu.matmul %132, %107, %cst_66 {dimension_numbers = #tpu.dot_dimension_numbers<[1], [0], [0], [1], [0, 0, 1, 1], [], []>} : vector<32x32xbf16>, vector<32x128xbf16>, vector<32x128xf32> -> vector<32x128xf32>
    %141 = arith.truncf %140 : vector<32x128xf32> to vector<32x128xbf16>
    %cst_67 = arith.constant dense<0.000000e+00> : vector<32x128xf32>
    %142 = tpu.matmul %139, %107, %cst_67 {dimension_numbers = #tpu.dot_dimension_numbers<[1], [0], [0], [1], [0, 0, 1, 1], [], []>} : vector<32x32xbf16>, vector<32x128xbf16>, vector<32x128xf32> -> vector<32x128xf32>
    %143 = arith.truncf %142 : vector<32x128xf32> to vector<32x128xbf16>
    %144 = tpu.concatenate %141, %107, %143 in 1 : vector<32x128xbf16>, vector<32x128xbf16>, vector<32x128xbf16> -> vector<32x384xbf16>
    %c0_68 = arith.constant 0 : index
    %c0_69 = arith.constant 0 : index
    %145 = vector.load %arg10[%c0_68, %c0_69] : memref<384x128xbf16, #tpu.memory_space<vmem>>, vector<384x128xbf16>
    %cst_70 = arith.constant dense<0.000000e+00> : vector<32x128xf32>
    %146 = tpu.matmul %144, %145, %cst_70 {dimension_numbers = #tpu.dot_dimension_numbers<[1], [0], [0], [1], [0, 0, 1, 1], [], []>} : vector<32x384xbf16>, vector<384x128xbf16>, vector<32x128xf32> -> vector<32x128xf32>
    %c0_71 = arith.constant 0 : index
    %c0_72 = arith.constant 0 : index
    %147 = vector.load %arg11[%c0_71, %c0_72] : memref<1x128xf32, #tpu.memory_space<vmem>>, vector<1x128xf32>
    %148 = vector.broadcast %147 : vector<1x128xf32> to vector<32x128xf32>
    %149 = arith.addf %146, %148 : vector<32x128xf32>
    %150 = arith.addf %149, %123 : vector<32x128xf32>
    %cst_73 = arith.constant 0.000000e+00 : f32
    %151 = vector.broadcast %cst_73 : f32 to vector<32x128xf32>
    %152 = arith.maximumf %150, %151 : vector<32x128xf32>
    %153 = arith.truncf %152 : vector<32x128xf32> to vector<32x128xbf16>
    %154 = tpu.iota {dimensions = array<i32: 0>} : vector<32x32xi32>
    %155 = tpu.iota {dimensions = array<i32: 1>} : vector<32x32xi32>
    %c1_i32_74 = arith.constant 1 : i32
    %156 = vector.broadcast %c1_i32_74 : i32 to vector<32x32xi32>
    %157 = arith.subi %154, %156 : vector<32x32xi32>
    %158 = arith.cmpi eq, %155, %157 : vector<32x32xi32>
    %cst_75 = arith.constant 1.000000e+00 : f32
    %cst_76 = arith.constant 0.000000e+00 : f32
    %159 = vector.broadcast %cst_75 : f32 to vector<32x32xf32>
    %160 = vector.broadcast %cst_76 : f32 to vector<32x32xf32>
    %161 = arith.select %158, %159, %160 : vector<32x32xi1>, vector<32x32xf32>
    %162 = arith.truncf %161 : vector<32x32xf32> to vector<32x32xbf16>
    %c1_i32_77 = arith.constant 1 : i32
    %163 = vector.broadcast %c1_i32_77 : i32 to vector<32x32xi32>
    %164 = arith.addi %154, %163 : vector<32x32xi32>
    %165 = arith.cmpi eq, %155, %164 : vector<32x32xi32>
    %cst_78 = arith.constant 1.000000e+00 : f32
    %cst_79 = arith.constant 0.000000e+00 : f32
    %166 = vector.broadcast %cst_78 : f32 to vector<32x32xf32>
    %167 = vector.broadcast %cst_79 : f32 to vector<32x32xf32>
    %168 = arith.select %165, %166, %167 : vector<32x32xi1>, vector<32x32xf32>
    %169 = arith.truncf %168 : vector<32x32xf32> to vector<32x32xbf16>
    %cst_80 = arith.constant dense<0.000000e+00> : vector<32x128xf32>
    %170 = tpu.matmul %162, %153, %cst_80 {dimension_numbers = #tpu.dot_dimension_numbers<[1], [0], [0], [1], [0, 0, 1, 1], [], []>} : vector<32x32xbf16>, vector<32x128xbf16>, vector<32x128xf32> -> vector<32x128xf32>
    %171 = arith.truncf %170 : vector<32x128xf32> to vector<32x128xbf16>
    %cst_81 = arith.constant dense<0.000000e+00> : vector<32x128xf32>
    %172 = tpu.matmul %169, %153, %cst_81 {dimension_numbers = #tpu.dot_dimension_numbers<[1], [0], [0], [1], [0, 0, 1, 1], [], []>} : vector<32x32xbf16>, vector<32x128xbf16>, vector<32x128xf32> -> vector<32x128xf32>
    %173 = arith.truncf %172 : vector<32x128xf32> to vector<32x128xbf16>
    %174 = tpu.concatenate %171, %153, %173 in 1 : vector<32x128xbf16>, vector<32x128xbf16>, vector<32x128xbf16> -> vector<32x384xbf16>
    %c0_82 = arith.constant 0 : index
    %c0_83 = arith.constant 0 : index
    %175 = vector.load %arg14[%c0_82, %c0_83] : memref<384x256xbf16, #tpu.memory_space<vmem>>, vector<384x256xbf16>
    %cst_84 = arith.constant dense<0.000000e+00> : vector<32x256xf32>
    %176 = tpu.matmul %174, %175, %cst_84 {dimension_numbers = #tpu.dot_dimension_numbers<[1], [0], [0], [1], [0, 0, 1, 1], [], []>} : vector<32x384xbf16>, vector<384x256xbf16>, vector<32x256xf32> -> vector<32x256xf32>
    %c0_85 = arith.constant 0 : index
    %c0_86 = arith.constant 0 : index
    %177 = vector.load %arg15[%c0_85, %c0_86] : memref<1x256xf32, #tpu.memory_space<vmem>>, vector<1x256xf32>
    %178 = vector.broadcast %177 : vector<1x256xf32> to vector<32x256xf32>
    %179 = arith.addf %176, %178 : vector<32x256xf32>
    %cst_87 = arith.constant 0.000000e+00 : f32
    %180 = vector.broadcast %cst_87 : f32 to vector<32x256xf32>
    %181 = arith.maximumf %179, %180 : vector<32x256xf32>
    %182 = tpu.iota {dimensions = array<i32: 0>} : vector<16x32xi32>
    %183 = tpu.iota {dimensions = array<i32: 1>} : vector<16x32xi32>
    %c2_i32_88 = arith.constant 2 : i32
    %184 = vector.broadcast %c2_i32_88 : i32 to vector<16x32xi32>
    %185 = arith.muli %182, %184 : vector<16x32xi32>
    %186 = arith.cmpi eq, %183, %185 : vector<16x32xi32>
    %cst_89 = arith.constant 1.000000e+00 : f32
    %cst_90 = arith.constant 0.000000e+00 : f32
    %187 = vector.broadcast %cst_89 : f32 to vector<16x32xf32>
    %188 = vector.broadcast %cst_90 : f32 to vector<16x32xf32>
    %189 = arith.select %186, %187, %188 : vector<16x32xi1>, vector<16x32xf32>
    %cst_91 = arith.constant dense<0.000000e+00> : vector<16x256xf32>
    %190 = tpu.matmul %189, %181, %cst_91 {dimension_numbers = #tpu.dot_dimension_numbers<[1], [0], [0], [1], [0, 0, 1, 1], [], []>} : vector<16x32xf32>, vector<32x256xf32>, vector<16x256xf32> -> vector<16x256xf32>
    %191 = arith.truncf %190 : vector<16x256xf32> to vector<16x256xbf16>
    %192 = tpu.iota {dimensions = array<i32: 0>} : vector<16x32xi32>
    %193 = tpu.iota {dimensions = array<i32: 1>} : vector<16x32xi32>
    %c2_i32_92 = arith.constant 2 : i32
    %194 = vector.broadcast %c2_i32_92 : i32 to vector<16x32xi32>
    %195 = arith.muli %192, %194 : vector<16x32xi32>
    %196 = arith.cmpi eq, %193, %195 : vector<16x32xi32>
    %cst_93 = arith.constant 1.000000e+00 : f32
    %cst_94 = arith.constant 0.000000e+00 : f32
    %197 = vector.broadcast %cst_93 : f32 to vector<16x32xf32>
    %198 = vector.broadcast %cst_94 : f32 to vector<16x32xf32>
    %199 = arith.select %196, %197, %198 : vector<16x32xi1>, vector<16x32xf32>
    %200 = arith.truncf %199 : vector<16x32xf32> to vector<16x32xbf16>
    %cst_95 = arith.constant dense<0.000000e+00> : vector<16x128xf32>
    %201 = tpu.matmul %200, %153, %cst_95 {dimension_numbers = #tpu.dot_dimension_numbers<[1], [0], [0], [1], [0, 0, 1, 1], [], []>} : vector<16x32xbf16>, vector<32x128xbf16>, vector<16x128xf32> -> vector<16x128xf32>
    %202 = arith.truncf %201 : vector<16x128xf32> to vector<16x128xbf16>
    %c0_96 = arith.constant 0 : index
    %c0_97 = arith.constant 0 : index
    %203 = vector.load %arg18[%c0_96, %c0_97] : memref<128x256xbf16, #tpu.memory_space<vmem>>, vector<128x256xbf16>
    %cst_98 = arith.constant dense<0.000000e+00> : vector<16x256xf32>
    %204 = tpu.matmul %202, %203, %cst_98 {dimension_numbers = #tpu.dot_dimension_numbers<[1], [0], [0], [1], [0, 0, 1, 1], [], []>} : vector<16x128xbf16>, vector<128x256xbf16>, vector<16x256xf32> -> vector<16x256xf32>
    %c0_99 = arith.constant 0 : index
    %c0_100 = arith.constant 0 : index
    %205 = vector.load %arg19[%c0_99, %c0_100] : memref<1x256xf32, #tpu.memory_space<vmem>>, vector<1x256xf32>
    %206 = vector.broadcast %205 : vector<1x256xf32> to vector<16x256xf32>
    %207 = arith.addf %204, %206 : vector<16x256xf32>
    %208 = tpu.iota {dimensions = array<i32: 0>} : vector<16x16xi32>
    %209 = tpu.iota {dimensions = array<i32: 1>} : vector<16x16xi32>
    %c1_i32_101 = arith.constant 1 : i32
    %210 = vector.broadcast %c1_i32_101 : i32 to vector<16x16xi32>
    %211 = arith.subi %208, %210 : vector<16x16xi32>
    %212 = arith.cmpi eq, %209, %211 : vector<16x16xi32>
    %cst_102 = arith.constant 1.000000e+00 : f32
    %cst_103 = arith.constant 0.000000e+00 : f32
    %213 = vector.broadcast %cst_102 : f32 to vector<16x16xf32>
    %214 = vector.broadcast %cst_103 : f32 to vector<16x16xf32>
    %215 = arith.select %212, %213, %214 : vector<16x16xi1>, vector<16x16xf32>
    %216 = arith.truncf %215 : vector<16x16xf32> to vector<16x16xbf16>
    %c1_i32_104 = arith.constant 1 : i32
    %217 = vector.broadcast %c1_i32_104 : i32 to vector<16x16xi32>
    %218 = arith.addi %208, %217 : vector<16x16xi32>
    %219 = arith.cmpi eq, %209, %218 : vector<16x16xi32>
    %cst_105 = arith.constant 1.000000e+00 : f32
    %cst_106 = arith.constant 0.000000e+00 : f32
    %220 = vector.broadcast %cst_105 : f32 to vector<16x16xf32>
    %221 = vector.broadcast %cst_106 : f32 to vector<16x16xf32>
    %222 = arith.select %219, %220, %221 : vector<16x16xi1>, vector<16x16xf32>
    %223 = arith.truncf %222 : vector<16x16xf32> to vector<16x16xbf16>
    %cst_107 = arith.constant dense<0.000000e+00> : vector<16x256xf32>
    %224 = tpu.matmul %216, %191, %cst_107 {dimension_numbers = #tpu.dot_dimension_numbers<[1], [0], [0], [1], [0, 0, 1, 1], [], []>} : vector<16x16xbf16>, vector<16x256xbf16>, vector<16x256xf32> -> vector<16x256xf32>
    %225 = arith.truncf %224 : vector<16x256xf32> to vector<16x256xbf16>
    %cst_108 = arith.constant dense<0.000000e+00> : vector<16x256xf32>
    %226 = tpu.matmul %223, %191, %cst_108 {dimension_numbers = #tpu.dot_dimension_numbers<[1], [0], [0], [1], [0, 0, 1, 1], [], []>} : vector<16x16xbf16>, vector<16x256xbf16>, vector<16x256xf32> -> vector<16x256xf32>
    %227 = arith.truncf %226 : vector<16x256xf32> to vector<16x256xbf16>
    %228 = tpu.concatenate %225, %191, %227 in 1 : vector<16x256xbf16>, vector<16x256xbf16>, vector<16x256xbf16> -> vector<16x768xbf16>
    %c0_109 = arith.constant 0 : index
    %c0_110 = arith.constant 0 : index
    %229 = vector.load %arg16[%c0_109, %c0_110] : memref<768x256xbf16, #tpu.memory_space<vmem>>, vector<768x256xbf16>
    %cst_111 = arith.constant dense<0.000000e+00> : vector<16x256xf32>
    %230 = tpu.matmul %228, %229, %cst_111 {dimension_numbers = #tpu.dot_dimension_numbers<[1], [0], [0], [1], [0, 0, 1, 1], [], []>} : vector<16x768xbf16>, vector<768x256xbf16>, vector<16x256xf32> -> vector<16x256xf32>
    %c0_112 = arith.constant 0 : index
    %c0_113 = arith.constant 0 : index
    %231 = vector.load %arg17[%c0_112, %c0_113] : memref<1x256xf32, #tpu.memory_space<vmem>>, vector<1x256xf32>
    %232 = vector.broadcast %231 : vector<1x256xf32> to vector<16x256xf32>
    %233 = arith.addf %230, %232 : vector<16x256xf32>
    %234 = arith.addf %233, %207 : vector<16x256xf32>
    %cst_114 = arith.constant 0.000000e+00 : f32
    %235 = vector.broadcast %cst_114 : f32 to vector<16x256xf32>
    %236 = arith.maximumf %234, %235 : vector<16x256xf32>
    %237 = arith.truncf %236 : vector<16x256xf32> to vector<16x256xbf16>
    %238 = tpu.iota {dimensions = array<i32: 0>} : vector<16x16xi32>
    %239 = tpu.iota {dimensions = array<i32: 1>} : vector<16x16xi32>
    %c1_i32_115 = arith.constant 1 : i32
    %240 = vector.broadcast %c1_i32_115 : i32 to vector<16x16xi32>
    %241 = arith.subi %238, %240 : vector<16x16xi32>
    %242 = arith.cmpi eq, %239, %241 : vector<16x16xi32>
    %cst_116 = arith.constant 1.000000e+00 : f32
    %cst_117 = arith.constant 0.000000e+00 : f32
    %243 = vector.broadcast %cst_116 : f32 to vector<16x16xf32>
    %244 = vector.broadcast %cst_117 : f32 to vector<16x16xf32>
    %245 = arith.select %242, %243, %244 : vector<16x16xi1>, vector<16x16xf32>
    %246 = arith.truncf %245 : vector<16x16xf32> to vector<16x16xbf16>
    %c1_i32_118 = arith.constant 1 : i32
    %247 = vector.broadcast %c1_i32_118 : i32 to vector<16x16xi32>
    %248 = arith.addi %238, %247 : vector<16x16xi32>
    %249 = arith.cmpi eq, %239, %248 : vector<16x16xi32>
    %cst_119 = arith.constant 1.000000e+00 : f32
    %cst_120 = arith.constant 0.000000e+00 : f32
    %250 = vector.broadcast %cst_119 : f32 to vector<16x16xf32>
    %251 = vector.broadcast %cst_120 : f32 to vector<16x16xf32>
    %252 = arith.select %249, %250, %251 : vector<16x16xi1>, vector<16x16xf32>
    %253 = arith.truncf %252 : vector<16x16xf32> to vector<16x16xbf16>
    %cst_121 = arith.constant dense<0.000000e+00> : vector<16x256xf32>
    %254 = tpu.matmul %246, %237, %cst_121 {dimension_numbers = #tpu.dot_dimension_numbers<[1], [0], [0], [1], [0, 0, 1, 1], [], []>} : vector<16x16xbf16>, vector<16x256xbf16>, vector<16x256xf32> -> vector<16x256xf32>
    %255 = arith.truncf %254 : vector<16x256xf32> to vector<16x256xbf16>
    %cst_122 = arith.constant dense<0.000000e+00> : vector<16x256xf32>
    %256 = tpu.matmul %253, %237, %cst_122 {dimension_numbers = #tpu.dot_dimension_numbers<[1], [0], [0], [1], [0, 0, 1, 1], [], []>} : vector<16x16xbf16>, vector<16x256xbf16>, vector<16x256xf32> -> vector<16x256xf32>
    %257 = arith.truncf %256 : vector<16x256xf32> to vector<16x256xbf16>
    %258 = tpu.concatenate %255, %237, %257 in 1 : vector<16x256xbf16>, vector<16x256xbf16>, vector<16x256xbf16> -> vector<16x768xbf16>
    %c0_123 = arith.constant 0 : index
    %c0_124 = arith.constant 0 : index
    %259 = vector.load %arg20[%c0_123, %c0_124] : memref<768x512xbf16, #tpu.memory_space<vmem>>, vector<768x512xbf16>
    %cst_125 = arith.constant dense<0.000000e+00> : vector<16x512xf32>
    %260 = tpu.matmul %258, %259, %cst_125 {dimension_numbers = #tpu.dot_dimension_numbers<[1], [0], [0], [1], [0, 0, 1, 1], [], []>} : vector<16x768xbf16>, vector<768x512xbf16>, vector<16x512xf32> -> vector<16x512xf32>
    %c0_126 = arith.constant 0 : index
    %c0_127 = arith.constant 0 : index
    %261 = vector.load %arg21[%c0_126, %c0_127] : memref<1x512xf32, #tpu.memory_space<vmem>>, vector<1x512xf32>
    %262 = vector.broadcast %261 : vector<1x512xf32> to vector<16x512xf32>
    %263 = arith.addf %260, %262 : vector<16x512xf32>
    %cst_128 = arith.constant 0.000000e+00 : f32
    %264 = vector.broadcast %cst_128 : f32 to vector<16x512xf32>
    %265 = arith.maximumf %263, %264 : vector<16x512xf32>
    %266 = tpu.iota {dimensions = array<i32: 0>} : vector<8x16xi32>
    %267 = tpu.iota {dimensions = array<i32: 1>} : vector<8x16xi32>
    %c2_i32_129 = arith.constant 2 : i32
    %268 = vector.broadcast %c2_i32_129 : i32 to vector<8x16xi32>
    %269 = arith.muli %266, %268 : vector<8x16xi32>
    %270 = arith.cmpi eq, %267, %269 : vector<8x16xi32>
    %cst_130 = arith.constant 1.000000e+00 : f32
    %cst_131 = arith.constant 0.000000e+00 : f32
    %271 = vector.broadcast %cst_130 : f32 to vector<8x16xf32>
    %272 = vector.broadcast %cst_131 : f32 to vector<8x16xf32>
    %273 = arith.select %270, %271, %272 : vector<8x16xi1>, vector<8x16xf32>
    %cst_132 = arith.constant dense<0.000000e+00> : vector<8x512xf32>
    %274 = tpu.matmul %273, %265, %cst_132 {dimension_numbers = #tpu.dot_dimension_numbers<[1], [0], [0], [1], [0, 0, 1, 1], [], []>} : vector<8x16xf32>, vector<16x512xf32>, vector<8x512xf32> -> vector<8x512xf32>
    %275 = arith.truncf %274 : vector<8x512xf32> to vector<8x512xbf16>
    %276 = tpu.iota {dimensions = array<i32: 0>} : vector<8x16xi32>
    %277 = tpu.iota {dimensions = array<i32: 1>} : vector<8x16xi32>
    %c2_i32_133 = arith.constant 2 : i32
    %278 = vector.broadcast %c2_i32_133 : i32 to vector<8x16xi32>
    %279 = arith.muli %276, %278 : vector<8x16xi32>
    %280 = arith.cmpi eq, %277, %279 : vector<8x16xi32>
    %cst_134 = arith.constant 1.000000e+00 : f32
    %cst_135 = arith.constant 0.000000e+00 : f32
    %281 = vector.broadcast %cst_134 : f32 to vector<8x16xf32>
    %282 = vector.broadcast %cst_135 : f32 to vector<8x16xf32>
    %283 = arith.select %280, %281, %282 : vector<8x16xi1>, vector<8x16xf32>
    %284 = arith.truncf %283 : vector<8x16xf32> to vector<8x16xbf16>
    %cst_136 = arith.constant dense<0.000000e+00> : vector<8x256xf32>
    %285 = tpu.matmul %284, %237, %cst_136 {dimension_numbers = #tpu.dot_dimension_numbers<[1], [0], [0], [1], [0, 0, 1, 1], [], []>} : vector<8x16xbf16>, vector<16x256xbf16>, vector<8x256xf32> -> vector<8x256xf32>
    %286 = arith.truncf %285 : vector<8x256xf32> to vector<8x256xbf16>
    %c0_137 = arith.constant 0 : index
    %c0_138 = arith.constant 0 : index
    %287 = vector.load %arg24[%c0_137, %c0_138] : memref<256x512xbf16, #tpu.memory_space<vmem>>, vector<256x512xbf16>
    %cst_139 = arith.constant dense<0.000000e+00> : vector<8x512xf32>
    %288 = tpu.matmul %286, %287, %cst_139 {dimension_numbers = #tpu.dot_dimension_numbers<[1], [0], [0], [1], [0, 0, 1, 1], [], []>} : vector<8x256xbf16>, vector<256x512xbf16>, vector<8x512xf32> -> vector<8x512xf32>
    %c0_140 = arith.constant 0 : index
    %c0_141 = arith.constant 0 : index
    %289 = vector.load %arg25[%c0_140, %c0_141] : memref<1x512xf32, #tpu.memory_space<vmem>>, vector<1x512xf32>
    %290 = vector.broadcast %289 : vector<1x512xf32> to vector<8x512xf32>
    %291 = arith.addf %288, %290 : vector<8x512xf32>
    %292 = tpu.iota {dimensions = array<i32: 0>} : vector<8x8xi32>
    %293 = tpu.iota {dimensions = array<i32: 1>} : vector<8x8xi32>
    %c1_i32_142 = arith.constant 1 : i32
    %294 = vector.broadcast %c1_i32_142 : i32 to vector<8x8xi32>
    %295 = arith.subi %292, %294 : vector<8x8xi32>
    %296 = arith.cmpi eq, %293, %295 : vector<8x8xi32>
    %cst_143 = arith.constant 1.000000e+00 : f32
    %cst_144 = arith.constant 0.000000e+00 : f32
    %297 = vector.broadcast %cst_143 : f32 to vector<8x8xf32>
    %298 = vector.broadcast %cst_144 : f32 to vector<8x8xf32>
    %299 = arith.select %296, %297, %298 : vector<8x8xi1>, vector<8x8xf32>
    %300 = arith.truncf %299 : vector<8x8xf32> to vector<8x8xbf16>
    %c1_i32_145 = arith.constant 1 : i32
    %301 = vector.broadcast %c1_i32_145 : i32 to vector<8x8xi32>
    %302 = arith.addi %292, %301 : vector<8x8xi32>
    %303 = arith.cmpi eq, %293, %302 : vector<8x8xi32>
    %cst_146 = arith.constant 1.000000e+00 : f32
    %cst_147 = arith.constant 0.000000e+00 : f32
    %304 = vector.broadcast %cst_146 : f32 to vector<8x8xf32>
    %305 = vector.broadcast %cst_147 : f32 to vector<8x8xf32>
    %306 = arith.select %303, %304, %305 : vector<8x8xi1>, vector<8x8xf32>
    %307 = arith.truncf %306 : vector<8x8xf32> to vector<8x8xbf16>
    %cst_148 = arith.constant dense<0.000000e+00> : vector<8x512xf32>
    %308 = tpu.matmul %300, %275, %cst_148 {dimension_numbers = #tpu.dot_dimension_numbers<[1], [0], [0], [1], [0, 0, 1, 1], [], []>} : vector<8x8xbf16>, vector<8x512xbf16>, vector<8x512xf32> -> vector<8x512xf32>
    %309 = arith.truncf %308 : vector<8x512xf32> to vector<8x512xbf16>
    %cst_149 = arith.constant dense<0.000000e+00> : vector<8x512xf32>
    %310 = tpu.matmul %307, %275, %cst_149 {dimension_numbers = #tpu.dot_dimension_numbers<[1], [0], [0], [1], [0, 0, 1, 1], [], []>} : vector<8x8xbf16>, vector<8x512xbf16>, vector<8x512xf32> -> vector<8x512xf32>
    %311 = arith.truncf %310 : vector<8x512xf32> to vector<8x512xbf16>
    %312 = tpu.concatenate %309, %275, %311 in 1 : vector<8x512xbf16>, vector<8x512xbf16>, vector<8x512xbf16> -> vector<8x1536xbf16>
    %c0_150 = arith.constant 0 : index
    %c0_151 = arith.constant 0 : index
    %313 = vector.load %arg22[%c0_150, %c0_151] : memref<1536x512xbf16, #tpu.memory_space<vmem>>, vector<1536x512xbf16>
    %cst_152 = arith.constant dense<0.000000e+00> : vector<8x512xf32>
    %314 = tpu.matmul %312, %313, %cst_152 {dimension_numbers = #tpu.dot_dimension_numbers<[1], [0], [0], [1], [0, 0, 1, 1], [], []>} : vector<8x1536xbf16>, vector<1536x512xbf16>, vector<8x512xf32> -> vector<8x512xf32>
    %c0_153 = arith.constant 0 : index
    %c0_154 = arith.constant 0 : index
    %315 = vector.load %arg23[%c0_153, %c0_154] : memref<1x512xf32, #tpu.memory_space<vmem>>, vector<1x512xf32>
    %316 = vector.broadcast %315 : vector<1x512xf32> to vector<8x512xf32>
    %317 = arith.addf %314, %316 : vector<8x512xf32>
    %318 = arith.addf %317, %291 : vector<8x512xf32>
    %cst_155 = arith.constant 0.000000e+00 : f32
    %319 = vector.broadcast %cst_155 : f32 to vector<8x512xf32>
    %320 = arith.maximumf %318, %319 : vector<8x512xf32>
    %cst_156 = arith.constant dense<0.000000e+00> : vector<512xf32>
    %321 = vector.multi_reduction <add>, %320, %cst_156 [0] : vector<8x512xf32> to vector<512xf32>
    %322 = vector.shape_cast %321 : vector<512xf32> to vector<1x512xf32>
    %cst_157 = arith.constant 1.250000e-01 : f32
    %323 = vector.broadcast %cst_157 : f32 to vector<1x512xf32>
    %324 = arith.mulf %322, %323 : vector<1x512xf32>
    %c0_158 = arith.constant 0 : index
    %c0_159 = arith.constant 0 : index
    %c0_160 = arith.constant 0 : index
    %325 = vector.load %arg26[%c0_158, %c0_159, %c0_160] : memref<1x1x512xf32, #tpu.memory_space<vmem>>, vector<1x1x512xf32>
    %326 = vector.shape_cast %325 : vector<1x1x512xf32> to vector<1x512xf32>
    %327 = vector.shape_cast %324 : vector<1x512xf32> to vector<1x1x512xf32>
    tpu.vector_store %arg26[%c0_158, %c0_159, %c0_160], %327 {strides = array<i32>} : memref<1x1x512xf32, #tpu.memory_space<vmem>>, vector<1x1x512xf32>,
    return
  }
  func.func @transform_0(%arg0: i32) -> (i32, i32, i32) {
    %c0_i32 = arith.constant 0 : i32
    %c0_i32_0 = arith.constant 0 : i32
    %c0_i32_1 = arith.constant 0 : i32
    return %arg0, %c0_i32, %c0_i32_0 : i32, i32, i32
  }
  func.func @transform_1(%arg0: i32) -> (i32, i32) {
    %c0_i32 = arith.constant 0 : i32
    %c0_i32_0 = arith.constant 0 : i32
    %c0_i32_1 = arith.constant 0 : i32
    return %c0_i32, %c0_i32_0 : i32, i32
  }
  func.func @transform_2(%arg0: i32) -> (i32, i32) {
    %c0_i32 = arith.constant 0 : i32
    %c0_i32_0 = arith.constant 0 : i32
    %c0_i32_1 = arith.constant 0 : i32
    return %c0_i32, %c0_i32_0 : i32, i32
  }
  func.func @transform_3(%arg0: i32) -> (i32, i32) {
    %c0_i32 = arith.constant 0 : i32
    %c0_i32_0 = arith.constant 0 : i32
    %c0_i32_1 = arith.constant 0 : i32
    return %c0_i32, %c0_i32_0 : i32, i32
  }
  func.func @transform_4(%arg0: i32) -> (i32, i32) {
    %c0_i32 = arith.constant 0 : i32
    %c0_i32_0 = arith.constant 0 : i32
    %c0_i32_1 = arith.constant 0 : i32
    return %c0_i32, %c0_i32_0 : i32, i32
  }
  func.func @transform_5(%arg0: i32) -> (i32, i32) {
    %c0_i32 = arith.constant 0 : i32
    %c0_i32_0 = arith.constant 0 : i32
    %c0_i32_1 = arith.constant 0 : i32
    return %c0_i32, %c0_i32_0 : i32, i32
  }
  func.func @transform_6(%arg0: i32) -> (i32, i32) {
    %c0_i32 = arith.constant 0 : i32
    %c0_i32_0 = arith.constant 0 : i32
    %c0_i32_1 = arith.constant 0 : i32
    return %c0_i32, %c0_i32_0 : i32, i32
  }
  func.func @transform_7(%arg0: i32) -> (i32, i32) {
    %c0_i32 = arith.constant 0 : i32
    %c0_i32_0 = arith.constant 0 : i32
    %c0_i32_1 = arith.constant 0 : i32
    return %c0_i32, %c0_i32_0 : i32, i32
  }
  func.func @transform_8(%arg0: i32) -> (i32, i32) {
    %c0_i32 = arith.constant 0 : i32
    %c0_i32_0 = arith.constant 0 : i32
    %c0_i32_1 = arith.constant 0 : i32
    return %c0_i32, %c0_i32_0 : i32, i32
  }
  func.func @transform_9(%arg0: i32) -> (i32, i32) {
    %c0_i32 = arith.constant 0 : i32
    %c0_i32_0 = arith.constant 0 : i32
    %c0_i32_1 = arith.constant 0 : i32
    return %c0_i32, %c0_i32_0 : i32, i32
  }
  func.func @transform_10(%arg0: i32) -> (i32, i32) {
    %c0_i32 = arith.constant 0 : i32
    %c0_i32_0 = arith.constant 0 : i32
    %c0_i32_1 = arith.constant 0 : i32
    return %c0_i32, %c0_i32_0 : i32, i32
  }
  func.func @transform_11(%arg0: i32) -> (i32, i32) {
    %c0_i32 = arith.constant 0 : i32
    %c0_i32_0 = arith.constant 0 : i32
    %c0_i32_1 = arith.constant 0 : i32
    return %c0_i32, %c0_i32_0 : i32, i32
  }
  func.func @transform_12(%arg0: i32) -> (i32, i32) {
    %c0_i32 = arith.constant 0 : i32
    %c0_i32_0 = arith.constant 0 : i32
    %c0_i32_1 = arith.constant 0 : i32
    return %c0_i32, %c0_i32_0 : i32, i32
  }
  func.func @transform_13(%arg0: i32) -> (i32, i32) {
    %c0_i32 = arith.constant 0 : i32
    %c0_i32_0 = arith.constant 0 : i32
    %c0_i32_1 = arith.constant 0 : i32
    return %c0_i32, %c0_i32_0 : i32, i32
  }
  func.func @transform_14(%arg0: i32) -> (i32, i32) {
    %c0_i32 = arith.constant 0 : i32
    %c0_i32_0 = arith.constant 0 : i32
    %c0_i32_1 = arith.constant 0 : i32
    return %c0_i32, %c0_i32_0 : i32, i32
  }
  func.func @transform_15(%arg0: i32) -> (i32, i32) {
    %c0_i32 = arith.constant 0 : i32
    %c0_i32_0 = arith.constant 0 : i32
    %c0_i32_1 = arith.constant 0 : i32
    return %c0_i32, %c0_i32_0 : i32, i32
  }
  func.func @transform_16(%arg0: i32) -> (i32, i32) {
    %c0_i32 = arith.constant 0 : i32
    %c0_i32_0 = arith.constant 0 : i32
    %c0_i32_1 = arith.constant 0 : i32
    return %c0_i32, %c0_i32_0 : i32, i32
  }
  func.func @transform_17(%arg0: i32) -> (i32, i32) {
    %c0_i32 = arith.constant 0 : i32
    %c0_i32_0 = arith.constant 0 : i32
    %c0_i32_1 = arith.constant 0 : i32
    return %c0_i32, %c0_i32_0 : i32, i32
  }
  func.func @transform_18(%arg0: i32) -> (i32, i32) {
    %c0_i32 = arith.constant 0 : i32
    %c0_i32_0 = arith.constant 0 : i32
    %c0_i32_1 = arith.constant 0 : i32
    return %c0_i32, %c0_i32_0 : i32, i32
  }
  func.func @transform_19(%arg0: i32) -> (i32, i32) {
    %c0_i32 = arith.constant 0 : i32
    %c0_i32_0 = arith.constant 0 : i32
    %c0_i32_1 = arith.constant 0 : i32
    return %c0_i32, %c0_i32_0 : i32, i32
  }
  func.func @transform_20(%arg0: i32) -> (i32, i32) {
    %c0_i32 = arith.constant 0 : i32
    %c0_i32_0 = arith.constant 0 : i32
    %c0_i32_1 = arith.constant 0 : i32
    return %c0_i32, %c0_i32_0 : i32, i32
  }
  func.func @transform_21(%arg0: i32) -> (i32, i32) {
    %c0_i32 = arith.constant 0 : i32
    %c0_i32_0 = arith.constant 0 : i32
    %c0_i32_1 = arith.constant 0 : i32
    return %c0_i32, %c0_i32_0 : i32, i32
  }
  func.func @transform_22(%arg0: i32) -> (i32, i32) {
    %c0_i32 = arith.constant 0 : i32
    %c0_i32_0 = arith.constant 0 : i32
    %c0_i32_1 = arith.constant 0 : i32
    return %c0_i32, %c0_i32_0 : i32, i32
  }
  func.func @transform_23(%arg0: i32) -> (i32, i32) {
    %c0_i32 = arith.constant 0 : i32
    %c0_i32_0 = arith.constant 0 : i32
    %c0_i32_1 = arith.constant 0 : i32
    return %c0_i32, %c0_i32_0 : i32, i32
  }
  func.func @transform_24(%arg0: i32) -> (i32, i32) {
    %c0_i32 = arith.constant 0 : i32
    %c0_i32_0 = arith.constant 0 : i32
    %c0_i32_1 = arith.constant 0 : i32
    return %c0_i32, %c0_i32_0 : i32, i32
  }
  func.func @transform_25(%arg0: i32) -> (i32, i32, i32) {
    %c0_i32 = arith.constant 0 : i32
    %c0_i32_0 = arith.constant 0 : i32
    %c0_i32_1 = arith.constant 0 : i32
    return %arg0, %c0_i32, %c0_i32_0 : i32, i32, i32
  }
}

</mosaic_0001>

<llo_original>
// kernel: forward.1
$region0: #{forward.1}
  #allocation0 [shape = 'u32[]', space=smem, size = 0x4, offset = 0x4, fixed_abs, tag = 'smem constant byte address 0x4 - core index']
  #allocation1 [shape = 'u32[144,128]{1,0:T(1,128)}', space=vmem, size = 0x12000, scoped, tag = 'internal scratch']
  %s0 = inlined_call_operand.vmem [shape: bf16[2,64,128], index: 0, kind: input, shape index: {}]
  %s1 = inlined_call_operand.hbm [shape: bf16[128,128], index: 1, kind: input, shape index: {}]
  %s2 = inlined_call_operand.hbm [shape: f32[1,128], index: 2, kind: input, shape index: {}]
  %s3 = inlined_call_operand.hbm [shape: bf16[384,128], index: 3, kind: input, shape index: {}]
  %s4 = inlined_call_operand.hbm [shape: f32[1,128], index: 4, kind: input, shape index: {}]
  %s5 = inlined_call_operand.hbm [shape: bf16[384,128], index: 5, kind: input, shape index: {}]
  %s6 = inlined_call_operand.hbm [shape: f32[1,128], index: 6, kind: input, shape index: {}]
  %s7 = inlined_call_operand.hbm [shape: bf16[384,128], index: 7, kind: input, shape index: {}]
  %s8 = inlined_call_operand.hbm [shape: f32[1,128], index: 8, kind: input, shape index: {}]
  %s9 = inlined_call_operand.hbm [shape: bf16[384,128], index: 9, kind: input, shape index: {}]
  %s10 = inlined_call_operand.hbm [shape: f32[1,128], index: 10, kind: input, shape index: {}]
  %s11 = inlined_call_operand.hbm [shape: bf16[128,128], index: 11, kind: input, shape index: {}]
  %s12 = inlined_call_operand.hbm [shape: f32[1,128], index: 12, kind: input, shape index: {}]
  %s13 = inlined_call_operand.hbm [shape: bf16[384,256], index: 13, kind: input, shape index: {}]
  %s14 = inlined_call_operand.hbm [shape: f32[1,256], index: 14, kind: input, shape index: {}]
  %s15 = inlined_call_operand.hbm [shape: bf16[768,256], index: 15, kind: input, shape index: {}]
  %s16 = inlined_call_operand.hbm [shape: f32[1,256], index: 16, kind: input, shape index: {}]
  %s17 = inlined_call_operand.hbm [shape: bf16[128,256], index: 17, kind: input, shape index: {}]
  %s18 = inlined_call_operand.hbm [shape: f32[1,256], index: 18, kind: input, shape index: {}]
  %s19 = inlined_call_operand.hbm [shape: bf16[768,512], index: 19, kind: input, shape index: {}]
  %s20 = inlined_call_operand.hbm [shape: f32[1,512], index: 20, kind: input, shape index: {}]
  %s21 = inlined_call_operand.hbm [shape: bf16[1536,512], index: 21, kind: input, shape index: {}]
  %s22 = inlined_call_operand.hbm [shape: f32[1,512], index: 22, kind: input, shape index: {}]
  %s23 = inlined_call_operand.hbm [shape: bf16[256,512], index: 23, kind: input, shape index: {}]
  %s24 = inlined_call_operand.hbm [shape: f32[1,512], index: 24, kind: input, shape index: {}]
  %s25 = inlined_call_operand.vmem [shape: f32[2,1,512], index: 25, kind: output, shape index: {}]
  %s26 = sld [smem:[#allocation0]]
  $region229: #{forward.1} parent=0
    _
  %s28 = ssub.s32 1, %s26
  %s29 = scalar_select 0, %s28, %s26
  $region1: #{forward.1} parent=0
    #allocation2 [shape = 'u8[32768]{0}', space=vmem, size = 0x8000, scoped, tag = 'input window, operand 1, single buffered']
    #allocation3 [shape = 's32[2]{0}', space=sflag, size = 0x8, scoped, tag = 'scoped memory for forward.1']
    #allocation4 [shape = 'u8[512]{0}', space=vmem, size = 0x400, scoped, tag = 'input window, operand 2, single buffered']
    #allocation5 [shape = 's32[1]{0}', space=sflag, size = 0x4, scoped, tag = 'scoped memory for forward.1']
    #allocation6 [shape = 'u8[98304]{0}', space=vmem, size = 0x18000, scoped, tag = 'input window, operand 3, single buffered']
    #allocation7 [shape = 'u8[512]{0}', space=vmem, size = 0x400, scoped, tag = 'input window, operand 4, single buffered']
    #allocation8 [shape = 's32[1]{0}', space=sflag, size = 0x4, scoped, tag = 'scoped memory for forward.1']
    #allocation9 [shape = 'u8[98304]{0}', space=vmem, size = 0x18000, scoped, tag = 'input window, operand 5, single buffered']
    #allocation10 [shape = 'u8[512]{0}', space=vmem, size = 0x400, scoped, tag = 'input window, operand 6, single buffered']
    #allocation11 [shape = 's32[1]{0}', space=sflag, size = 0x4, scoped, tag = 'scoped memory for forward.1']
    #allocation12 [shape = 'u8[98304]{0}', space=vmem, size = 0x18000, scoped, tag = 'input window, operand 7, single buffered']
    #allocation13 [shape = 'u8[512]{0}', space=vmem, size = 0x400, scoped, tag = 'input window, operand 8, single buffered']
    #allocation14 [shape = 's32[1]{0}', space=sflag, size = 0x4, scoped, tag = 'scoped memory for forward.1']
    #allocation15 [shape = 'u8[98304]{0}', space=vmem, size = 0x18000, scoped, tag = 'input window, operand 9, single buffered']
    #allocation16 [shape = 'u8[512]{0}', space=vmem, size = 0x400, scoped, tag = 'input window, operand 10, single buffered']
    #allocation17 [shape = 's32[1]{0}', space=sflag, size = 0x4, scoped, tag = 'scoped memory for forward.1']
    #allocation18 [shape = 'u8[32768]{0}', space=vmem, size = 0x8000, scoped, tag = 'input window, operand 11, single buffered']
    #allocation19 [shape = 'u8[512]{0}', space=vmem, size = 0x400, scoped, tag = 'input window, operand 12, single buffered']
    #allocation20 [shape = 's32[1]{0}', space=sflag, size = 0x4, scoped, tag = 'scoped memory for forward.1']
    #allocation21 [shape = 'u8[196608]{0}', space=vmem, size = 0x30000, scoped, tag = 'input window, operand 13, single buffered']
    #allocation22 [shape = 'u8[1024]{0}', space=vmem, size = 0x400, scoped, tag = 'input window, operand 14, single buffered']
    #allocation23 [shape = 's32[1]{0}', space=sflag, size = 0x4, scoped, tag = 'scoped memory for forward.1']
    #allocation24 [shape = 'u8[393216]{0}', space=vmem, size = 0x60000, scoped, tag = 'input window, operand 15, single buffered']
    #allocation25 [shape = 'u8[1024]{0}', space=vmem, size = 0x400, scoped, tag = 'input window, operand 16, single buffered']
    #allocation26 [shape = 's32[1]{0}', space=sflag, size = 0x4, scoped, tag = 'scoped memory for forward.1']
    #allocation27 [shape = 'u8[65536]{0}', space=vmem, size = 0x10000, scoped, tag = 'input window, operand 17, single buffered']
    #allocation28 [shape = 'u8[1024]{0}', space=vmem, size = 0x400, scoped, tag = 'input window, operand 18, single buffered']
    #allocation29 [shape = 's32[1]{0}', space=sflag, size = 0x4, scoped, tag = 'scoped memory for forward.1']
    #allocation30 [shape = 'u8[786432]{0}', space=vmem, size = 0xc0000, scoped, tag = 'input window, operand 19, single buffered']
    #allocation31 [shape = 'u8[2048]{0}', space=vmem, size = 0x800, scoped, tag = 'input window, operand 20, single buffered']
    #allocation32 [shape = 's32[1]{0}', space=sflag, size = 0x4, scoped, tag = 'scoped memory for forward.1']
    #allocation33 [shape = 'u8[1572864]{0}', space=vmem, size = 0x180000, scoped, tag = 'input window, operand 21, single buffered']
    #allocation34 [shape = 'u8[2048]{0}', space=vmem, size = 0x800, scoped, tag = 'input window, operand 22, single buffered']
    #allocation35 [shape = 's32[1]{0}', space=sflag, size = 0x4, scoped, tag = 'scoped memory for forward.1']
    #allocation36 [shape = 'u8[262144]{0}', space=vmem, size = 0x40000, scoped, tag = 'input window, operand 23, single buffered']
    #allocation37 [shape = 'u8[2048]{0}', space=vmem, size = 0x800, scoped, tag = 'input window, operand 24, single buffered']
    #allocation38 [shape = 's32[1]{0}', space=sflag, size = 0x4, scoped, tag = 'scoped memory for forward.1']
    %30 = vsyncpa [#allocation3], 0
    %31 = vsyncpa [#allocation5], 0
    %32 = vsyncpa [#allocation8], 0
    %33 = vsyncpa [#allocation11], 0
    %34 = vsyncpa [#allocation14], 0
    %35 = vsyncpa [#allocation17], 0
    %36 = vsyncpa [#allocation20], 0
    %37 = vsyncpa [#allocation23], 0
    %38 = vsyncpa [#allocation26], 0
    %39 = vsyncpa [#allocation29], 0
    %40 = vsyncpa [#allocation32], 0
    %41 = vsyncpa [#allocation35], 0
    %42 = vsyncpa [#allocation38], 0
    loop: start=0, step=1, limit=4
    $region2: #{forward.1} parent=1 // loop_pre_header
      _
    $region3: #{forward.1} parent=1 // loop_header
      %s44 = sphi 0, %s48
      %p45 = scmp.ge.s32.totalorder %s44, 4
      %s54 = sphi 0, %s56
      %s57 = sphi 0, %s54
      %s58 = sphi 0, %s57
      %s74 = sphi 0, %s58
      %s78 = sphi 0, %s78
      %s80 = sphi 0, %s78
      %s81 = sphi 0, %s80
      %s95 = sphi 0, %s81
      %s99 = sphi 0, %s99
      %s101 = sphi 0, %s99
      %s102 = sphi 0, %s101
      %s116 = sphi 0, %s102
      %s120 = sphi 0, %s120
      %s122 = sphi 0, %s120
      %s123 = sphi 0, %s122
      %s137 = sphi 0, %s123
      %s141 = sphi 0, %s141
      %s143 = sphi 0, %s141
      %s144 = sphi 0, %s143
      %s158 = sphi 0, %s144
      %s162 = sphi 0, %s162
      %s164 = sphi 0, %s162
      %s165 = sphi 0, %s164
      %s179 = sphi 0, %s165
      %s183 = sphi 0, %s183
      %s185 = sphi 0, %s183
      %s186 = sphi 0, %s185
      %s200 = sphi 0, %s186
      %s204 = sphi 0, %s204
      %s206 = sphi 0, %s204
      %s207 = sphi 0, %s206
      %s221 = sphi 0, %s207
      %s225 = sphi 0, %s225
      %s227 = sphi 0, %s225
      %s228 = sphi 0, %s227
      %s242 = sphi 0, %s228
      %s246 = sphi 0, %s246
      %s248 = sphi 0, %s246
      %s249 = sphi 0, %s248
      %s263 = sphi 0, %s249
      %s267 = sphi 0, %s267
      %s269 = sphi 0, %s267
      %s270 = sphi 0, %s269
      %s284 = sphi 0, %s270
      %s288 = sphi 0, %s288
      %s290 = sphi 0, %s288
      %s291 = sphi 0, %s290
      %s305 = sphi 0, %s291
      %s309 = sphi 0, %s309
      %s311 = sphi 0, %s309
      %s312 = sphi 0, %s311
      %s326 = sphi 0, %s312
      %s330 = sphi 0, %s330
      %s332 = sphi 0, %s330
      %s333 = sphi 0, %s332
      %s347 = sphi 0, %s333
      %s351 = sphi 0, %s351
      %s353 = sphi 0, %s351
      %s354 = sphi 0, %s353
      %s368 = sphi 0, %s354
      %s372 = sphi 0, %s372
      %s374 = sphi 0, %s372
      %s375 = sphi 0, %s374
      %s389 = sphi 0, %s375
      %s393 = sphi 0, %s393
      %s395 = sphi 0, %s393
      %s396 = sphi 0, %s395
      %s410 = sphi 0, %s396
      %s414 = sphi 0, %s414
      %s416 = sphi 0, %s414
      %s417 = sphi 0, %s416
      %s431 = sphi 0, %s417
      %s435 = sphi 0, %s435
      %s437 = sphi 0, %s435
      %s438 = sphi 0, %s437
      %s452 = sphi 0, %s438
      %s456 = sphi 0, %s456
      %s458 = sphi 0, %s456
      %s459 = sphi 0, %s458
      %s473 = sphi 0, %s459
      %s477 = sphi 0, %s477
      %s479 = sphi 0, %s477
      %s480 = sphi 0, %s479
      %s494 = sphi 0, %s480
      %s498 = sphi 0, %s498
      %s500 = sphi 0, %s498
      %s501 = sphi 0, %s500
      %s515 = sphi 0, %s501
      %s519 = sphi 0, %s519
      %s521 = sphi 0, %s519
      %s522 = sphi 0, %s521
      %s536 = sphi 0, %s522
      %s540 = sphi 0, %s540
      %s542 = sphi 0, %s540
      %s543 = sphi 0, %s542
      %s557 = sphi 0, %s543
      %s561 = sphi 0, %s561
      %s563 = sphi 0, %s561
      %s564 = sphi 0, %s563
      %s578 = sphi 0, %s564
      %s584 = sphi 0, %s586
      %s587 = sphi 0, %s584
      %s588 = sphi 0, %s587
      %s604 = sphi 0, %s588
    $region4: #{forward.1} parent=1 // loop_header_branch
      %47 = sbr.rel (%p45) target = $region8
    $region5: #{forward.1} parent=1 // loop_body
      %s49 = ssub.s32 %s44, 1
      %s50 = ssub.s32 %s44, 2
      %s51 = sadd.s32 %s44, 1
      %s52 = ssub.s32 %s44, %s51
      %p53 = scmp.eq.s32.totalorder %s52, 0
      %s55 = sadd.s32 %s54, 1
      %s56 = scalar_select %p53, %s54, %s55
      %p59 = pneg %p53
      %p60 = scmp.eq.s32.totalorder %s44, 1
      %p61 = por %p59, %p60
      %p62 = scmp.ne.s32.totalorder %s54, %s57
      %p63 = scmp.eq.s32.totalorder %s44, 0
      %p64 = por %p62, %p63
      %p65 = scmp.ne.s32.totalorder %s54, %s57
      %p66 = scmp.eq.s32.totalorder %s49, 1
      %p67 = por %p65, %p66
      %p68 = scmp.ne.s32.totalorder %s57, %s58
      %p69 = scmp.eq.s32.totalorder %s49, 0
      %p70 = por %p68, %p69
      %p71 = scmp.ne.s32.totalorder %s57, %s58
      %p72 = scmp.eq.s32.totalorder %s50, 1
      %p73 = por %p71, %p72
      %p75 = scmp.ne.s32.totalorder %s58, %s74
      %p76 = scmp.eq.s32.totalorder %s50, 0
      %p77 = por %p75, %p76
      %s79 = sadd.s32 %s78, 1
      %p82 = scmp.eq.s32.totalorder %s44, 1
      %p83 = scmp.ne.s32.totalorder %s78, %s80
      %p84 = scmp.eq.s32.totalorder %s44, 0
      %p85 = por %p83, %p84
      %p86 = scmp.ne.s32.totalorder %s78, %s80
      %p87 = scmp.eq.s32.totalorder %s49, 1
      %p88 = por %p86, %p87
      %p89 = scmp.ne.s32.totalorder %s80, %s81
      %p90 = scmp.eq.s32.totalorder %s49, 0
      %p91 = por %p89, %p90
      %p92 = scmp.ne.s32.totalorder %s80, %s81
      %p93 = scmp.eq.s32.totalorder %s50, 1
      %p94 = por %p92, %p93
      %p96 = scmp.ne.s32.totalorder %s81, %s95
      %p97 = scmp.eq.s32.totalorder %s50, 0
      %p98 = por %p96, %p97
      %s100 = sadd.s32 %s99, 1
      %p103 = scmp.eq.s32.totalorder %s44, 1
      %p104 = scmp.ne.s32.totalorder %s99, %s101
      %p105 = scmp.eq.s32.totalorder %s44, 0
      %p106 = por %p104, %p105
      %p107 = scmp.ne.s32.totalorder %s99, %s101
      %p108 = scmp.eq.s32.totalorder %s49, 1
      %p109 = por %p107, %p108
      %p110 = scmp.ne.s32.totalorder %s101, %s102
      %p111 = scmp.eq.s32.totalorder %s49, 0
      %p112 = por %p110, %p111
      %p113 = scmp.ne.s32.totalorder %s101, %s102
      %p114 = scmp.eq.s32.totalorder %s50, 1
      %p115 = por %p113, %p114
      %p117 = scmp.ne.s32.totalorder %s102, %s116
      %p118 = scmp.eq.s32.totalorder %s50, 0
      %p119 = por %p117, %p118
      %s121 = sadd.s32 %s120, 1
      %p124 = scmp.eq.s32.totalorder %s44, 1
      %p125 = scmp.ne.s32.totalorder %s120, %s122
      %p126 = scmp.eq.s32.totalorder %s44, 0
      %p127 = por %p125, %p126
      %p128 = scmp.ne.s32.totalorder %s120, %s122
      %p129 = scmp.eq.s32.totalorder %s49, 1
      %p130 = por %p128, %p129
      %p131 = scmp.ne.s32.totalorder %s122, %s123
      %p132 = scmp.eq.s32.totalorder %s49, 0
      %p133 = por %p131, %p132
      %p134 = scmp.ne.s32.totalorder %s122, %s123
      %p135 = scmp.eq.s32.totalorder %s50, 1
      %p136 = por %p134, %p135
      %p138 = scmp.ne.s32.totalorder %s123, %s137
      %p139 = scmp.eq.s32.totalorder %s50, 0
      %p140 = por %p138, %p139
      %s142 = sadd.s32 %s141, 1
      %p145 = scmp.eq.s32.totalorder %s44, 1
      %p146 = scmp.ne.s32.totalorder %s141, %s143
      %p147 = scmp.eq.s32.totalorder %s44, 0
      %p148 = por %p146, %p147
      %p149 = scmp.ne.s32.totalorder %s141, %s143
      %p150 = scmp.eq.s32.totalorder %s49, 1
      %p151 = por %p149, %p150
      %p152 = scmp.ne.s32.totalorder %s143, %s144
      %p153 = scmp.eq.s32.totalorder %s49, 0
      %p154 = por %p152, %p153
      %p155 = scmp.ne.s32.totalorder %s143, %s144
      %p156 = scmp.eq.s32.totalorder %s50, 1
      %p157 = por %p155, %p156
      %p159 = scmp.ne.s32.totalorder %s144, %s158
      %p160 = scmp.eq.s32.totalorder %s50, 0
      %p161 = por %p159, %p160
      %s163 = sadd.s32 %s162, 1
      %p166 = scmp.eq.s32.totalorder %s44, 1
      %p167 = scmp.ne.s32.totalorder %s162, %s164
      %p168 = scmp.eq.s32.totalorder %s44, 0
      %p169 = por %p167, %p168
      %p170 = scmp.ne.s32.totalorder %s162, %s164
      %p171 = scmp.eq.s32.totalorder %s49, 1
      %p172 = por %p170, %p171
      %p173 = scmp.ne.s32.totalorder %s164, %s165
      %p174 = scmp.eq.s32.totalorder %s49, 0
      %p175 = por %p173, %p174
      %p176 = scmp.ne.s32.totalorder %s164, %s165
      %p177 = scmp.eq.s32.totalorder %s50, 1
      %p178 = por %p176, %p177
      %p180 = scmp.ne.s32.totalorder %s165, %s179
      %p181 = scmp.eq.s32.totalorder %s50, 0
      %p182 = por %p180, %p181
      %s184 = sadd.s32 %s183, 1
      %p187 = scmp.eq.s32.totalorder %s44, 1
      %p188 = scmp.ne.s32.totalorder %s183, %s185
      %p189 = scmp.eq.s32.totalorder %s44, 0
      %p190 = por %p188, %p189
      %p191 = scmp.ne.s32.totalorder %s183, %s185
      %p192 = scmp.eq.s32.totalorder %s49, 1
      %p193 = por %p191, %p192
      %p194 = scmp.ne.s32.totalorder %s185, %s186
      %p195 = scmp.eq.s32.totalorder %s49, 0
      %p196 = por %p194, %p195
      %p197 = scmp.ne.s32.totalorder %s185, %s186
      %p198 = scmp.eq.s32.totalorder %s50, 1
      %p199 = por %p197, %p198
      %p201 = scmp.ne.s32.totalorder %s186, %s200
      %p202 = scmp.eq.s32.totalorder %s50, 0
      %p203 = por %p201, %p202
      %s205 = sadd.s32 %s204, 1
      %p208 = scmp.eq.s32.totalorder %s44, 1
      %p209 = scmp.ne.s32.totalorder %s204, %s206
      %p210 = scmp.eq.s32.totalorder %s44, 0
      %p211 = por %p209, %p210
      %p212 = scmp.ne.s32.totalorder %s204, %s206
      %p213 = scmp.eq.s32.totalorder %s49, 1
      %p214 = por %p212, %p213
      %p215 = scmp.ne.s32.totalorder %s206, %s207
      %p216 = scmp.eq.s32.totalorder %s49, 0
      %p217 = por %p215, %p216
      %p218 = scmp.ne.s32.totalorder %s206, %s207
      %p219 = scmp.eq.s32.totalorder %s50, 1
      %p220 = por %p218, %p219
      %p222 = scmp.ne.s32.totalorder %s207, %s221
      %p223 = scmp.eq.s32.totalorder %s50, 0
      %p224 = por %p222, %p223
      %s226 = sadd.s32 %s225, 1
      %p229 = scmp.eq.s32.totalorder %s44, 1
      %p230 = scmp.ne.s32.totalorder %s225, %s227
      %p231 = scmp.eq.s32.totalorder %s44, 0
      %p232 = por %p230, %p231
      %p233 = scmp.ne.s32.totalorder %s225, %s227
      %p234 = scmp.eq.s32.totalorder %s49, 1
      %p235 = por %p233, %p234
      %p236 = scmp.ne.s32.totalorder %s227, %s228
      %p237 = scmp.eq.s32.totalorder %s49, 0
      %p238 = por %p236, %p237
      %p239 = scmp.ne.s32.totalorder %s227, %s228
      %p240 = scmp.eq.s32.totalorder %s50, 1
      %p241 = por %p239, %p240
      %p243 = scmp.ne.s32.totalorder %s228, %s242
      %p244 = scmp.eq.s32.totalorder %s50, 0
      %p245 = por %p243, %p244
      %s247 = sadd.s32 %s246, 1
      %p250 = scmp.eq.s32.totalorder %s44, 1
      %p251 = scmp.ne.s32.totalorder %s246, %s248
      %p252 = scmp.eq.s32.totalorder %s44, 0
      %p253 = por %p251, %p252
      %p254 = scmp.ne.s32.totalorder %s246, %s248
      %p255 = scmp.eq.s32.totalorder %s49, 1
      %p256 = por %p254, %p255
      %p257 = scmp.ne.s32.totalorder %s248, %s249
      %p258 = scmp.eq.s32.totalorder %s49, 0
      %p259 = por %p257, %p258
      %p260 = scmp.ne.s32.totalorder %s248, %s249
      %p261 = scmp.eq.s32.totalorder %s50, 1
      %p262 = por %p260, %p261
      %p264 = scmp.ne.s32.totalorder %s249, %s263
      %p265 = scmp.eq.s32.totalorder %s50, 0
      %p266 = por %p264, %p265
      %s268 = sadd.s32 %s267, 1
      %p271 = scmp.eq.s32.totalorder %s44, 1
      %p272 = scmp.ne.s32.totalorder %s267, %s269
      %p273 = scmp.eq.s32.totalorder %s44, 0
      %p274 = por %p272, %p273
      %p275 = scmp.ne.s32.totalorder %s267, %s269
      %p276 = scmp.eq.s32.totalorder %s49, 1
      %p277 = por %p275, %p276
      %p278 = scmp.ne.s32.totalorder %s269, %s270
      %p279 = scmp.eq.s32.totalorder %s49, 0
      %p280 = por %p278, %p279
      %p281 = scmp.ne.s32.totalorder %s269, %s270
      %p282 = scmp.eq.s32.totalorder %s50, 1
      %p283 = por %p281, %p282
      %p285 = scmp.ne.s32.totalorder %s270, %s284
      %p286 = scmp.eq.s32.totalorder %s50, 0
      %p287 = por %p285, %p286
      %s289 = sadd.s32 %s288, 1
      %p292 = scmp.eq.s32.totalorder %s44, 1
      %p293 = scmp.ne.s32.totalorder %s288, %s290
      %p294 = scmp.eq.s32.totalorder %s44, 0
      %p295 = por %p293, %p294
      %p296 = scmp.ne.s32.totalorder %s288, %s290
      %p297 = scmp.eq.s32.totalorder %s49, 1
      %p298 = por %p296, %p297
      %p299 = scmp.ne.s32.totalorder %s290, %s291
      %p300 = scmp.eq.s32.totalorder %s49, 0
      %p301 = por %p299, %p300
      %p302 = scmp.ne.s32.totalorder %s290, %s291
      %p303 = scmp.eq.s32.totalorder %s50, 1
      %p304 = por %p302, %p303
      %p306 = scmp.ne.s32.totalorder %s291, %s305
      %p307 = scmp.eq.s32.totalorder %s50, 0
      %p308 = por %p306, %p307
      %s310 = sadd.s32 %s309, 1
      %p313 = scmp.eq.s32.totalorder %s44, 1
      %p314 = scmp.ne.s32.totalorder %s309, %s311
      %p315 = scmp.eq.s32.totalorder %s44, 0
      %p316 = por %p314, %p315
      %p317 = scmp.ne.s32.totalorder %s309, %s311
      %p318 = scmp.eq.s32.totalorder %s49, 1
      %p319 = por %p317, %p318
      %p320 = scmp.ne.s32.totalorder %s311, %s312
      %p321 = scmp.eq.s32.totalorder %s49, 0
      %p322 = por %p320, %p321
      %p323 = scmp.ne.s32.totalorder %s311, %s312
      %p324 = scmp.eq.s32.totalorder %s50, 1
      %p325 = por %p323, %p324
      %p327 = scmp.ne.s32.totalorder %s312, %s326
      %p328 = scmp.eq.s32.totalorder %s50, 0
      %p329 = por %p327, %p328
      %s331 = sadd.s32 %s330, 1
      %p334 = scmp.eq.s32.totalorder %s44, 1
      %p335 = scmp.ne.s32.totalorder %s330, %s332
      %p336 = scmp.eq.s32.totalorder %s44, 0
      %p337 = por %p335, %p336
      %p338 = scmp.ne.s32.totalorder %s330, %s332
      %p339 = scmp.eq.s32.totalorder %s49, 1
      %p340 = por %p338, %p339
      %p341 = scmp.ne.s32.totalorder %s332, %s333
      %p342 = scmp.eq.s32.totalorder %s49, 0
      %p343 = por %p341, %p342
      %p344 = scmp.ne.s32.totalorder %s332, %s333
      %p345 = scmp.eq.s32.totalorder %s50, 1
      %p346 = por %p344, %p345
      %p348 = scmp.ne.s32.totalorder %s333, %s347
      %p349 = scmp.eq.s32.totalorder %s50, 0
      %p350 = por %p348, %p349
      %s352 = sadd.s32 %s351, 1
      %p355 = scmp.eq.s32.totalorder %s44, 1
      %p356 = scmp.ne.s32.totalorder %s351, %s353
      %p357 = scmp.eq.s32.totalorder %s44, 0
      %p358 = por %p356, %p357
      %p359 = scmp.ne.s32.totalorder %s351, %s353
      %p360 = scmp.eq.s32.totalorder %s49, 1
      %p361 = por %p359, %p360
      %p362 = scmp.ne.s32.totalorder %s353, %s354
      %p363 = scmp.eq.s32.totalorder %s49, 0
      %p364 = por %p362, %p363
      %p365 = scmp.ne.s32.totalorder %s353, %s354
      %p366 = scmp.eq.s32.totalorder %s50, 1
      %p367 = por %p365, %p366
      %p369 = scmp.ne.s32.totalorder %s354, %s368
      %p370 = scmp.eq.s32.totalorder %s50, 0
      %p371 = por %p369, %p370
      %s373 = sadd.s32 %s372, 1
      %p376 = scmp.eq.s32.totalorder %s44, 1
      %p377 = scmp.ne.s32.totalorder %s372, %s374
      %p378 = scmp.eq.s32.totalorder %s44, 0
      %p379 = por %p377, %p378
      %p380 = scmp.ne.s32.totalorder %s372, %s374
      %p381 = scmp.eq.s32.totalorder %s49, 1
      %p382 = por %p380, %p381
      %p383 = scmp.ne.s32.totalorder %s374, %s375
      %p384 = scmp.eq.s32.totalorder %s49, 0
      %p385 = por %p383, %p384
      %p386 = scmp.ne.s32.totalorder %s374, %s375
      %p387 = scmp.eq.s32.totalorder %s50, 1
      %p388 = por %p386, %p387
      %p390 = scmp.ne.s32.totalorder %s375, %s389
      %p391 = scmp.eq.s32.totalorder %s50, 0
      %p392 = por %p390, %p391
      %s394 = sadd.s32 %s393, 1
      %p397 = scmp.eq.s32.totalorder %s44, 1
      %p398 = scmp.ne.s32.totalorder %s393, %s395
      %p399 = scmp.eq.s32.totalorder %s44, 0
      %p400 = por %p398, %p399
      %p401 = scmp.ne.s32.totalorder %s393, %s395
      %p402 = scmp.eq.s32.totalorder %s49, 1
      %p403 = por %p401, %p402
      %p404 = scmp.ne.s32.totalorder %s395, %s396
      %p405 = scmp.eq.s32.totalorder %s49, 0
      %p406 = por %p404, %p405
      %p407 = scmp.ne.s32.totalorder %s395, %s396
      %p408 = scmp.eq.s32.totalorder %s50, 1
      %p409 = por %p407, %p408
      %p411 = scmp.ne.s32.totalorder %s396, %s410
      %p412 = scmp.eq.s32.totalorder %s50, 0
      %p413 = por %p411, %p412
      %s415 = sadd.s32 %s414, 1
      %p418 = scmp.eq.s32.totalorder %s44, 1
      %p419 = scmp.ne.s32.totalorder %s414, %s416
      %p420 = scmp.eq.s32.totalorder %s44, 0
      %p421 = por %p419, %p420
      %p422 = scmp.ne.s32.totalorder %s414, %s416
      %p423 = scmp.eq.s32.totalorder %s49, 1
      %p424 = por %p422, %p423
      %p425 = scmp.ne.s32.totalorder %s416, %s417
      %p426 = scmp.eq.s32.totalorder %s49, 0
      %p427 = por %p425, %p426
      %p428 = scmp.ne.s32.totalorder %s416, %s417
      %p429 = scmp.eq.s32.totalorder %s50, 1
      %p430 = por %p428, %p429
      %p432 = scmp.ne.s32.totalorder %s417, %s431
      %p433 = scmp.eq.s32.totalorder %s50, 0
      %p434 = por %p432, %p433
      %s436 = sadd.s32 %s435, 1
      %p439 = scmp.eq.s32.totalorder %s44, 1
      %p440 = scmp.ne.s32.totalorder %s435, %s437
      %p441 = scmp.eq.s32.totalorder %s44, 0
      %p442 = por %p440, %p441
      %p443 = scmp.ne.s32.totalorder %s435, %s437
      %p444 = scmp.eq.s32.totalorder %s49, 1
      %p445 = por %p443, %p444
      %p446 = scmp.ne.s32.totalorder %s437, %s438
      %p447 = scmp.eq.s32.totalorder %s49, 0
      %p448 = por %p446, %p447
      %p449 = scmp.ne.s32.totalorder %s437, %s438
      %p450 = scmp.eq.s32.totalorder %s50, 1
      %p451 = por %p449, %p450
      %p453 = scmp.ne.s32.totalorder %s438, %s452
      %p454 = scmp.eq.s32.totalorder %s50, 0
      %p455 = por %p453, %p454
      %s457 = sadd.s32 %s456, 1
      %p460 = scmp.eq.s32.totalorder %s44, 1
      %p461 = scmp.ne.s32.totalorder %s456, %s458
      %p462 = scmp.eq.s32.totalorder %s44, 0
      %p463 = por %p461, %p462
      %p464 = scmp.ne.s32.totalorder %s456, %s458
      %p465 = scmp.eq.s32.totalorder %s49, 1
      %p466 = por %p464, %p465
      %p467 = scmp.ne.s32.totalorder %s458, %s459
      %p468 = scmp.eq.s32.totalorder %s49, 0
      %p469 = por %p467, %p468
      %p470 = scmp.ne.s32.totalorder %s458, %s459
      %p471 = scmp.eq.s32.totalorder %s50, 1
      %p472 = por %p470, %p471
      %p474 = scmp.ne.s32.totalorder %s459, %s473
      %p475 = scmp.eq.s32.totalorder %s50, 0
      %p476 = por %p474, %p475
      %s478 = sadd.s32 %s477, 1
      %p481 = scmp.eq.s32.totalorder %s44, 1
      %p482 = scmp.ne.s32.totalorder %s477, %s479
      %p483 = scmp.eq.s32.totalorder %s44, 0
      %p484 = por %p482, %p483
      %p485 = scmp.ne.s32.totalorder %s477, %s479
      %p486 = scmp.eq.s32.totalorder %s49, 1
      %p487 = por %p485, %p486
      %p488 = scmp.ne.s32.totalorder %s479, %s480
      %p489 = scmp.eq.s32.totalorder %s49, 0
      %p490 = por %p488, %p489
      %p491 = scmp.ne.s32.totalorder %s479, %s480
      %p492 = scmp.eq.s32.totalorder %s50, 1
      %p493 = por %p491, %p492
      %p495 = scmp.ne.s32.totalorder %s480, %s494
      %p496 = scmp.eq.s32.totalorder %s50, 0
      %p497 = por %p495, %p496
      %s499 = sadd.s32 %s498, 1
      %p502 = scmp.eq.s32.totalorder %s44, 1
      %p503 = scmp.ne.s32.totalorder %s498, %s500
      %p504 = scmp.eq.s32.totalorder %s44, 0
      %p505 = por %p503, %p504
      %p506 = scmp.ne.s32.totalorder %s498, %s500
      %p507 = scmp.eq.s32.totalorder %s49, 1
      %p508 = por %p506, %p507
      %p509 = scmp.ne.s32.totalorder %s500, %s501
      %p510 = scmp.eq.s32.totalorder %s49, 0
      %p511 = por %p509, %p510
      %p512 = scmp.ne.s32.totalorder %s500, %s501
      %p513 = scmp.eq.s32.totalorder %s50, 1
      %p514 = por %p512, %p513
      %p516 = scmp.ne.s32.totalorder %s501, %s515
      %p517 = scmp.eq.s32.totalorder %s50, 0
      %p518 = por %p516, %p517
      %s520 = sadd.s32 %s519, 1
      %p523 = scmp.eq.s32.totalorder %s44, 1
      %p524 = scmp.ne.s32.totalorder %s519, %s521
      %p525 = scmp.eq.s32.totalorder %s44, 0
      %p526 = por %p524, %p525
      %p527 = scmp.ne.s32.totalorder %s519, %s521
      %p528 = scmp.eq.s32.totalorder %s49, 1
      %p529 = por %p527, %p528
      %p530 = scmp.ne.s32.totalorder %s521, %s522
      %p531 = scmp.eq.s32.totalorder %s49, 0
      %p532 = por %p530, %p531
      %p533 = scmp.ne.s32.totalorder %s521, %s522
      %p534 = scmp.eq.s32.totalorder %s50, 1
      %p535 = por %p533, %p534
      %p537 = scmp.ne.s32.totalorder %s522, %s536
      %p538 = scmp.eq.s32.totalorder %s50, 0
      %p539 = por %p537, %p538
      %s541 = sadd.s32 %s540, 1
      %p544 = scmp.eq.s32.totalorder %s44, 1
      %p545 = scmp.ne.s32.totalorder %s540, %s542
      %p546 = scmp.eq.s32.totalorder %s44, 0
      %p547 = por %p545, %p546
      %p548 = scmp.ne.s32.totalorder %s540, %s542
      %p549 = scmp.eq.s32.totalorder %s49, 1
      %p550 = por %p548, %p549
      %p551 = scmp.ne.s32.totalorder %s542, %s543
      %p552 = scmp.eq.s32.totalorder %s49, 0
      %p553 = por %p551, %p552
      %p554 = scmp.ne.s32.totalorder %s542, %s543
      %p555 = scmp.eq.s32.totalorder %s50, 1
      %p556 = por %p554, %p555
      %p558 = scmp.ne.s32.totalorder %s543, %s557
      %p559 = scmp.eq.s32.totalorder %s50, 0
      %p560 = por %p558, %p559
      %s562 = sadd.s32 %s561, 1
      %p565 = scmp.eq.s32.totalorder %s44, 1
      %p566 = scmp.ne.s32.totalorder %s561, %s563
      %p567 = scmp.eq.s32.totalorder %s44, 0
      %p568 = por %p566, %p567
      %p569 = scmp.ne.s32.totalorder %s561, %s563
      %p570 = scmp.eq.s32.totalorder %s49, 1
      %p571 = por %p569, %p570
      %p572 = scmp.ne.s32.totalorder %s563, %s564
      %p573 = scmp.eq.s32.totalorder %s49, 0
      %p574 = por %p572, %p573
      %p575 = scmp.ne.s32.totalorder %s563, %s564
      %p576 = scmp.eq.s32.totalorder %s50, 1
      %p577 = por %p575, %p576
      %p579 = scmp.ne.s32.totalorder %s564, %s578
      %p580 = scmp.eq.s32.totalorder %s50, 0
      %p581 = por %p579, %p580
      %s582 = ssub.s32 %s44, %s51
      %p583 = scmp.eq.s32.totalorder %s582, 0
      %s585 = sadd.s32 %s584, 1
      %s586 = scalar_select %p583, %s584, %s585
      %p589 = pneg %p583
      %p590 = scmp.eq.s32.totalorder %s44, 1
      %p591 = por %p589, %p590
      %p592 = scmp.ne.s32.totalorder %s584, %s587
      %p593 = scmp.eq.s32.totalorder %s44, 0
      %p594 = por %p592, %p593
      %p595 = scmp.ne.s32.totalorder %s584, %s587
      %p596 = scmp.eq.s32.totalorder %s49, 1
      %p597 = por %p595, %p596
      %p598 = scmp.ne.s32.totalorder %s587, %s588
      %p599 = scmp.eq.s32.totalorder %s49, 0
      %p600 = por %p598, %p599
      %p601 = scmp.ne.s32.totalorder %s587, %s588
      %p602 = scmp.eq.s32.totalorder %s50, 1
      %p603 = por %p601, %p602
      %p605 = scmp.ne.s32.totalorder %s588, %s604
      %p606 = scmp.eq.s32.totalorder %s50, 0
      %p607 = por %p605, %p606
      %p608 = scmp.le.s32.totalorder 1, %s44
      %p609 = scmp.lt.s32.totalorder %s44, 3
      %p610 = pnand %p608, %p609
      %p611 = pneg %p610
      // Predicated region
      $region9: #{forward.1} parent=5 // pred_check
        _
      $region10: #{forward.1} parent=5 // pred_check_branch
        %613 = sbr.rel (%p610) target = $region12
      $region11: #{forward.1} parent=5 // pred_region
        %s614 = ssub.s32 %s44, 1
        // Predicated region
        $region13: #{forward.1} parent=11 // pred_check
          %p615 = pneg %p91
        $region14: #{forward.1} parent=11 // pred_check_branch
          %617 = sbr.rel (%p615) target = $region16
        $region15: #{forward.1} parent=11 // pred_region
          %s619 = ssub.s32 1024, 1024
          %620 = vsyncadd [#allocation3], %s619
          %s621 = sshll.u32 [#allocation2], 4
          %s622 = int_to_ptr.vmem [resolvable:$true] %s621
          %627 = dma.hbm_to_vmem [thread:$0]  %s1, 1024, %s622, [#allocation3], 64, 64, 4
        $region16: #{forward.1} parent=11 // pred_fallthru
          _
        // Predicated region
        $region17: #{forward.1} parent=11 // pred_check
          %p628 = pneg %p112
        $region18: #{forward.1} parent=11 // pred_check_branch
          %630 = sbr.rel (%p628) target = $region20
        $region19: #{forward.1} parent=11 // pred_region
          %s632 = ssub.s32 16, 16
          %633 = vsyncadd [#allocation5], %s632
          %s635 = sshll.u32 [#allocation4], 4
          %s636 = int_to_ptr.vmem [resolvable:$true] %s635
          %638 = dma.hbm_to_vmem [thread:$0]  %s2, 16, %s636, [#allocation5]
        $region20: #{forward.1} parent=11 // pred_fallthru
          _
        // Predicated region
        $region21: #{forward.1} parent=11 // pred_check
          %p639 = pneg %p133
        $region22: #{forward.1} parent=11 // pred_check_branch
          %641 = sbr.rel (%p639) target = $region24
        $region23: #{forward.1} parent=11 // pred_region
          %s643 = ssub.s32 3072, 3072
          %644 = vsyncadd [#allocation5], %s643
          %s645 = sshll.u32 [#allocation6], 4
          %s646 = int_to_ptr.vmem [resolvable:$true] %s645
          %651 = dma.hbm_to_vmem [thread:$0]  %s3, 3072, %s646, [#allocation5], 64, 64, 4
        $region24: #{forward.1} parent=11 // pred_fallthru
          _
        // Predicated region
        $region25: #{forward.1} parent=11 // pred_check
          %p652 = pneg %p154
        $region26: #{forward.1} parent=11 // pred_check_branch
          %654 = sbr.rel (%p652) target = $region28
        $region27: #{forward.1} parent=11 // pred_region
          %s656 = ssub.s32 16, 16
          %657 = vsyncadd [#allocation8], %s656
          %s659 = sshll.u32 [#allocation7], 4
          %s660 = int_to_ptr.vmem [resolvable:$true] %s659
          %662 = dma.hbm_to_vmem [thread:$0]  %s4, 16, %s660, [#allocation8]
        $region28: #{forward.1} parent=11 // pred_fallthru
          _
        // Predicated region
        $region29: #{forward.1} parent=11 // pred_check
          %p663 = pneg %p175
        $region30: #{forward.1} parent=11 // pred_check_branch
          %665 = sbr.rel (%p663) target = $region32
        $region31: #{forward.1} parent=11 // pred_region
          %s667 = ssub.s32 3072, 3072
          %668 = vsyncadd [#allocation8], %s667
          %s669 = sshll.u32 [#allocation9], 4
          %s670 = int_to_ptr.vmem [resolvable:$true] %s669
          %675 = dma.hbm_to_vmem [thread:$0]  %s5, 3072, %s670, [#allocation8], 64, 64, 4
        $region32: #{forward.1} parent=11 // pred_fallthru
          _
        // Predicated region
        $region33: #{forward.1} parent=11 // pred_check
          %p676 = pneg %p196
        $region34: #{forward.1} parent=11 // pred_check_branch
          %678 = sbr.rel (%p676) target = $region36
        $region35: #{forward.1} parent=11 // pred_region
          %s680 = ssub.s32 16, 16
          %681 = vsyncadd [#allocation11], %s680
          %s683 = sshll.u32 [#allocation10], 4
          %s684 = int_to_ptr.vmem [resolvable:$true] %s683
          %686 = dma.hbm_to_vmem [thread:$0]  %s6, 16, %s684, [#allocation11]
        $region36: #{forward.1} parent=11 // pred_fallthru
          _
        // Predicated region
        $region37: #{forward.1} parent=11 // pred_check
          %p687 = pneg %p217
        $region38: #{forward.1} parent=11 // pred_check_branch
          %689 = sbr.rel (%p687) target = $region40
        $region39: #{forward.1} parent=11 // pred_region
          %s691 = ssub.s32 3072, 3072
          %692 = vsyncadd [#allocation11], %s691
          %s693 = sshll.u32 [#allocation12], 4
          %s694 = int_to_ptr.vmem [resolvable:$true] %s693
          %699 = dma.hbm_to_vmem [thread:$0]  %s7, 3072, %s694, [#allocation11], 64, 64, 4
        $region40: #{forward.1} parent=11 // pred_fallthru
          _
        // Predicated region
        $region41: #{forward.1} parent=11 // pred_check
          %p700 = pneg %p238
        $region42: #{forward.1} parent=11 // pred_check_branch
          %702 = sbr.rel (%p700) target = $region44
        $region43: #{forward.1} parent=11 // pred_region
          %s704 = ssub.s32 16, 16
          %705 = vsyncadd [#allocation14], %s704
          %s707 = sshll.u32 [#allocation13], 4
          %s708 = int_to_ptr.vmem [resolvable:$true] %s707
          %710 = dma.hbm_to_vmem [thread:$0]  %s8, 16, %s708, [#allocation14]
        $region44: #{forward.1} parent=11 // pred_fallthru
          _
        // Predicated region
        $region45: #{forward.1} parent=11 // pred_check
          %p711 = pneg %p259
        $region46: #{forward.1} parent=11 // pred_check_branch
          %713 = sbr.rel (%p711) target = $region48
        $region47: #{forward.1} parent=11 // pred_region
          %s715 = ssub.s32 3072, 3072
          %716 = vsyncadd [#allocation14], %s715
          %s717 = sshll.u32 [#allocation15], 4
          %s718 = int_to_ptr.vmem [resolvable:$true] %s717
          %723 = dma.hbm_to_vmem [thread:$0]  %s9, 3072, %s718, [#allocation14], 64, 64, 4
        $region48: #{forward.1} parent=11 // pred_fallthru
          _
        // Predicated region
        $region49: #{forward.1} parent=11 // pred_check
          %p724 = pneg %p280
        $region50: #{forward.1} parent=11 // pred_check_branch
          %726 = sbr.rel (%p724) target = $region52
        $region51: #{forward.1} parent=11 // pred_region
          %s728 = ssub.s32 16, 16
          %729 = vsyncadd [#allocation17], %s728
          %s731 = sshll.u32 [#allocation16], 4
          %s732 = int_to_ptr.vmem [resolvable:$true] %s731
          %734 = dma.hbm_to_vmem [thread:$0]  %s10, 16, %s732, [#allocation17]
        $region52: #{forward.1} parent=11 // pred_fallthru
          _
        // Predicated region
        $region53: #{forward.1} parent=11 // pred_check
          %p735 = pneg %p301
        $region54: #{forward.1} parent=11 // pred_check_branch
          %737 = sbr.rel (%p735) target = $region56
        $region55: #{forward.1} parent=11 // pred_region
          %s739 = ssub.s32 1024, 1024
          %740 = vsyncadd [#allocation17], %s739
          %s741 = sshll.u32 [#allocation18], 4
          %s742 = int_to_ptr.vmem [resolvable:$true] %s741
          %747 = dma.hbm_to_vmem [thread:$0]  %s11, 1024, %s742, [#allocation17], 64, 64, 4
        $region56: #{forward.1} parent=11 // pred_fallthru
          _
        // Predicated region
        $region57: #{forward.1} parent=11 // pred_check
          %p748 = pneg %p322
        $region58: #{forward.1} parent=11 // pred_check_branch
          %750 = sbr.rel (%p748) target = $region60
        $region59: #{forward.1} parent=11 // pred_region
          %s752 = ssub.s32 16, 16
          %753 = vsyncadd [#allocation20], %s752
          %s755 = sshll.u32 [#allocation19], 4
          %s756 = int_to_ptr.vmem [resolvable:$true] %s755
          %758 = dma.hbm_to_vmem [thread:$0]  %s12, 16, %s756, [#allocation20]
        $region60: #{forward.1} parent=11 // pred_fallthru
          _
        // Predicated region
        $region61: #{forward.1} parent=11 // pred_check
          %p759 = pneg %p343
        $region62: #{forward.1} parent=11 // pred_check_branch
          %761 = sbr.rel (%p759) target = $region64
        $region63: #{forward.1} parent=11 // pred_region
          %s763 = ssub.s32 6144, 6144
          %764 = vsyncadd [#allocation20], %s763
          %s765 = sshll.u32 [#allocation21], 4
          %s766 = int_to_ptr.vmem [resolvable:$true] %s765
          %771 = dma.hbm_to_vmem [thread:$0]  %s13, 6144, %s766, [#allocation20], 128, 128, 8
        $region64: #{forward.1} parent=11 // pred_fallthru
          _
        // Predicated region
        $region65: #{forward.1} parent=11 // pred_check
          %p772 = pneg %p364
        $region66: #{forward.1} parent=11 // pred_check_branch
          %774 = sbr.rel (%p772) target = $region68
        $region67: #{forward.1} parent=11 // pred_region
          %s776 = ssub.s32 32, 32
          %777 = vsyncadd [#allocation23], %s776
          %s779 = sshll.u32 [#allocation22], 4
          %s780 = int_to_ptr.vmem [resolvable:$true] %s779
          %782 = dma.hbm_to_vmem [thread:$0]  %s14, 32, %s780, [#allocation23]
        $region68: #{forward.1} parent=11 // pred_fallthru
          _
        // Predicated region
        $region69: #{forward.1} parent=11 // pred_check
          %p783 = pneg %p385
        $region70: #{forward.1} parent=11 // pred_check_branch
          %785 = sbr.rel (%p783) target = $region72
        $region71: #{forward.1} parent=11 // pred_region
          %s787 = ssub.s32 12288, 12288
          %788 = vsyncadd [#allocation23], %s787
          %s789 = sshll.u32 [#allocation24], 4
          %s790 = int_to_ptr.vmem [resolvable:$true] %s789
          %795 = dma.hbm_to_vmem [thread:$0]  %s15, 12288, %s790, [#allocation23], 128, 128, 8
        $region72: #{forward.1} parent=11 // pred_fallthru
          _
        // Predicated region
        $region73: #{forward.1} parent=11 // pred_check
          %p796 = pneg %p406
        $region74: #{forward.1} parent=11 // pred_check_branch
          %798 = sbr.rel (%p796) target = $region76
        $region75: #{forward.1} parent=11 // pred_region
          %s800 = ssub.s32 32, 32
          %801 = vsyncadd [#allocation26], %s800
          %s803 = sshll.u32 [#allocation25], 4
          %s804 = int_to_ptr.vmem [resolvable:$true] %s803
          %806 = dma.hbm_to_vmem [thread:$0]  %s16, 32, %s804, [#allocation26]
        $region76: #{forward.1} parent=11 // pred_fallthru
          _
        // Predicated region
        $region77: #{forward.1} parent=11 // pred_check
          %p807 = pneg %p427
        $region78: #{forward.1} parent=11 // pred_check_branch
          %809 = sbr.rel (%p807) target = $region80
        $region79: #{forward.1} parent=11 // pred_region
          %s811 = ssub.s32 2048, 2048
          %812 = vsyncadd [#allocation26], %s811
          %s813 = sshll.u32 [#allocation27], 4
          %s814 = int_to_ptr.vmem [resolvable:$true] %s813
          %819 = dma.hbm_to_vmem [thread:$0]  %s17, 2048, %s814, [#allocation26], 128, 128, 8
        $region80: #{forward.1} parent=11 // pred_fallthru
          _
        // Predicated region
        $region81: #{forward.1} parent=11 // pred_check
          %p820 = pneg %p448
        $region82: #{forward.1} parent=11 // pred_check_branch
          %822 = sbr.rel (%p820) target = $region84
        $region83: #{forward.1} parent=11 // pred_region
          %s824 = ssub.s32 32, 32
          %825 = vsyncadd [#allocation29], %s824
          %s827 = sshll.u32 [#allocation28], 4
          %s828 = int_to_ptr.vmem [resolvable:$true] %s827
          %830 = dma.hbm_to_vmem [thread:$0]  %s18, 32, %s828, [#allocation29]
        $region84: #{forward.1} parent=11 // pred_fallthru
          _
        // Predicated region
        $region85: #{forward.1} parent=11 // pred_check
          %p831 = pneg %p469
        $region86: #{forward.1} parent=11 // pred_check_branch
          %833 = sbr.rel (%p831) target = $region88
        $region87: #{forward.1} parent=11 // pred_region
          %s835 = ssub.s32 24576, 24576
          %836 = vsyncadd [#allocation29], %s835
          %s837 = sshll.u32 [#allocation30], 4
          %s838 = int_to_ptr.vmem [resolvable:$true] %s837
          %843 = dma.hbm_to_vmem [thread:$0]  %s19, 24576, %s838, [#allocation29], 256, 256, 16
        $region88: #{forward.1} parent=11 // pred_fallthru
          _
        // Predicated region
        $region89: #{forward.1} parent=11 // pred_check
          %p844 = pneg %p490
        $region90: #{forward.1} parent=11 // pred_check_branch
          %846 = sbr.rel (%p844) target = $region92
        $region91: #{forward.1} parent=11 // pred_region
          %s848 = ssub.s32 64, 64
          %849 = vsyncadd [#allocation32], %s848
          %s851 = sshll.u32 [#allocation31], 4
          %s852 = int_to_ptr.vmem [resolvable:$true] %s851
          %854 = dma.hbm_to_vmem [thread:$0]  %s20, 64, %s852, [#allocation32]
        $region92: #{forward.1} parent=11 // pred_fallthru
          _
        // Predicated region
        $region93: #{forward.1} parent=11 // pred_check
          %p855 = pneg %p511
        $region94: #{forward.1} parent=11 // pred_check_branch
          %857 = sbr.rel (%p855) target = $region96
        $region95: #{forward.1} parent=11 // pred_region
          %s859 = ssub.s32 49152, 49152
          %860 = vsyncadd [#allocation32], %s859
          %s861 = sshll.u32 [#allocation33], 4
          %s862 = int_to_ptr.vmem [resolvable:$true] %s861
          %867 = dma.hbm_to_vmem [thread:$0]  %s21, 49152, %s862, [#allocation32], 256, 256, 16
        $region96: #{forward.1} parent=11 // pred_fallthru
          _
        // Predicated region
        $region97: #{forward.1} parent=11 // pred_check
          %p868 = pneg %p532
        $region98: #{forward.1} parent=11 // pred_check_branch
          %870 = sbr.rel (%p868) target = $region100
        $region99: #{forward.1} parent=11 // pred_region
          %s872 = ssub.s32 64, 64
          %873 = vsyncadd [#allocation35], %s872
          %s875 = sshll.u32 [#allocation34], 4
          %s876 = int_to_ptr.vmem [resolvable:$true] %s875
          %878 = dma.hbm_to_vmem [thread:$0]  %s22, 64, %s876, [#allocation35]
        $region100: #{forward.1} parent=11 // pred_fallthru
          _
        // Predicated region
        $region101: #{forward.1} parent=11 // pred_check
          %p879 = pneg %p553
        $region102: #{forward.1} parent=11 // pred_check_branch
          %881 = sbr.rel (%p879) target = $region104
        $region103: #{forward.1} parent=11 // pred_region
          %s883 = ssub.s32 8192, 8192
          %884 = vsyncadd [#allocation35], %s883
          %s885 = sshll.u32 [#allocation36], 4
          %s886 = int_to_ptr.vmem [resolvable:$true] %s885
          %891 = dma.hbm_to_vmem [thread:$0]  %s23, 8192, %s886, [#allocation35], 256, 256, 16
        $region104: #{forward.1} parent=11 // pred_fallthru
          _
        // Predicated region
        $region105: #{forward.1} parent=11 // pred_check
          %p892 = pneg %p574
        $region106: #{forward.1} parent=11 // pred_check_branch
          %894 = sbr.rel (%p892) target = $region108
        $region107: #{forward.1} parent=11 // pred_region
          %s896 = ssub.s32 64, 64
          %897 = vsyncadd [#allocation38], %s896
          %s899 = sshll.u32 [#allocation37], 4
          %s900 = int_to_ptr.vmem [resolvable:$true] %s899
          %902 = dma.hbm_to_vmem [thread:$0]  %s24, 64, %s900, [#allocation38]
        $region108: #{forward.1} parent=11 // pred_fallthru
          _
      $region12: #{forward.1} parent=5 // pred_fallthru
        _
      %p903 = scmp.lt.s32.totalorder %s44, 2
      // Predicated region
      $region109: #{forward.1} parent=5 // pred_check
        %p904 = pneg %p903
      $region110: #{forward.1} parent=5 // pred_check_branch
        %906 = sbr.rel (%p904) target = $region112
      $region111: #{forward.1} parent=5 // pred_region
        // Predicated region
        $region113: #{forward.1} parent=111 // pred_check
          %p907 = pneg %p64
        $region114: #{forward.1} parent=111 // pred_check_branch
          %909 = sbr.rel (%p907) target = $region116
        $region115: #{forward.1} parent=111 // pred_region
          %p910 = scmp.lt.s32.totalorder %s44, 1
          %s911 = scalar_select %p910, %s44, 1
          %s912 = smul.addr %s911, 8
          %s913 = smul.addr %s912, 4
          %s914 = scalar_lea.vmem %s0, %s913
        $region116: #{forward.1} parent=111 // pred_fallthru
          _
      $region112: #{forward.1} parent=5 // pred_fallthru
        _
      %p915 = scmp.le.s32.totalorder 1, %s44
      %p916 = scmp.lt.s32.totalorder %s44, 3
      %p917 = pnand %p915, %p916
      %p918 = pneg %p917
      // Predicated region
      $region117: #{forward.1} parent=5 // pred_check
        _
      $region118: #{forward.1} parent=5 // pred_check_branch
        %920 = sbr.rel (%p917) target = $region120
      $region119: #{forward.1} parent=5 // pred_region
        %s921 = ssub.s32 %s44, 1
        // Predicated region
        $region121: #{forward.1} parent=119 // pred_check
          %p922 = pneg %p91
        $region122: #{forward.1} parent=119 // pred_check_branch
          %924 = sbr.rel (%p922) target = $region124
        $region123: #{forward.1} parent=119 // pred_region
          %925 = dma.done [#allocation3], 1024
        $region124: #{forward.1} parent=119 // pred_fallthru
          _
        // Predicated region
        $region125: #{forward.1} parent=119 // pred_check
          %p926 = pneg %p112
        $region126: #{forward.1} parent=119 // pred_check_branch
          %928 = sbr.rel (%p926) target = $region128
        $region127: #{forward.1} parent=119 // pred_region
          %929 = dma.done [#allocation5], 16
        $region128: #{forward.1} parent=119 // pred_fallthru
          _
        // Predicated region
        $region129: #{forward.1} parent=119 // pred_check
          %p930 = pneg %p133
        $region130: #{forward.1} parent=119 // pred_check_branch
          %932 = sbr.rel (%p930) target = $region132
        $region131: #{forward.1} parent=119 // pred_region
          %933 = dma.done [#allocation5], 3072
        $region132: #{forward.1} parent=119 // pred_fallthru
          _
        // Predicated region
        $region133: #{forward.1} parent=119 // pred_check
          %p934 = pneg %p154
        $region134: #{forward.1} parent=119 // pred_check_branch
          %936 = sbr.rel (%p934) target = $region136
        $region135: #{forward.1} parent=119 // pred_region
          %937 = dma.done [#allocation8], 16
        $region136: #{forward.1} parent=119 // pred_fallthru
          _
        // Predicated region
        $region137: #{forward.1} parent=119 // pred_check
          %p938 = pneg %p175
        $region138: #{forward.1} parent=119 // pred_check_branch
          %940 = sbr.rel (%p938) target = $region140
        $region139: #{forward.1} parent=119 // pred_region
          %941 = dma.done [#allocation8], 3072
        $region140: #{forward.1} parent=119 // pred_fallthru
          _
        // Predicated region
        $region141: #{forward.1} parent=119 // pred_check
          %p942 = pneg %p196
        $region142: #{forward.1} parent=119 // pred_check_branch
          %944 = sbr.rel (%p942) target = $region144
        $region143: #{forward.1} parent=119 // pred_region
          %945 = dma.done [#allocation11], 16
        $region144: #{forward.1} parent=119 // pred_fallthru
          _
        // Predicated region
        $region145: #{forward.1} parent=119 // pred_check
          %p946 = pneg %p217
        $region146: #{forward.1} parent=119 // pred_check_branch
          %948 = sbr.rel (%p946) target = $region148
        $region147: #{forward.1} parent=119 // pred_region
          %949 = dma.done [#allocation11], 3072
        $region148: #{forward.1} parent=119 // pred_fallthru
          _
        // Predicated region
        $region149: #{forward.1} parent=119 // pred_check
          %p950 = pneg %p238
        $region150: #{forward.1} parent=119 // pred_check_branch
          %952 = sbr.rel (%p950) target = $region152
        $region151: #{forward.1} parent=119 // pred_region
          %953 = dma.done [#allocation14], 16
        $region152: #{forward.1} parent=119 // pred_fallthru
          _
        // Predicated region
        $region153: #{forward.1} parent=119 // pred_check
          %p954 = pneg %p259
        $region154: #{forward.1} parent=119 // pred_check_branch
          %956 = sbr.rel (%p954) target = $region156
        $region155: #{forward.1} parent=119 // pred_region
          %957 = dma.done [#allocation14], 3072
        $region156: #{forward.1} parent=119 // pred_fallthru
          _
        // Predicated region
        $region157: #{forward.1} parent=119 // pred_check
          %p958 = pneg %p280
        $region158: #{forward.1} parent=119 // pred_check_branch
          %960 = sbr.rel (%p958) target = $region160
        $region159: #{forward.1} parent=119 // pred_region
          %961 = dma.done [#allocation17], 16
        $region160: #{forward.1} parent=119 // pred_fallthru
          _
        // Predicated region
        $region161: #{forward.1} parent=119 // pred_check
          %p962 = pneg %p301
        $region162: #{forward.1} parent=119 // pred_check_branch
          %964 = sbr.rel (%p962) target = $region164
        $region163: #{forward.1} parent=119 // pred_region
          %965 = dma.done [#allocation17], 1024
        $region164: #{forward.1} parent=119 // pred_fallthru
          _
        // Predicated region
        $region165: #{forward.1} parent=119 // pred_check
          %p966 = pneg %p322
        $region166: #{forward.1} parent=119 // pred_check_branch
          %968 = sbr.rel (%p966) target = $region168
        $region167: #{forward.1} parent=119 // pred_region
          %969 = dma.done [#allocation20], 16
        $region168: #{forward.1} parent=119 // pred_fallthru
          _
        // Predicated region
        $region169: #{forward.1} parent=119 // pred_check
          %p970 = pneg %p343
        $region170: #{forward.1} parent=119 // pred_check_branch
          %972 = sbr.rel (%p970) target = $region172
        $region171: #{forward.1} parent=119 // pred_region
          %973 = dma.done [#allocation20], 6144
        $region172: #{forward.1} parent=119 // pred_fallthru
          _
        // Predicated region
        $region173: #{forward.1} parent=119 // pred_check
          %p974 = pneg %p364
        $region174: #{forward.1} parent=119 // pred_check_branch
          %976 = sbr.rel (%p974) target = $region176
        $region175: #{forward.1} parent=119 // pred_region
          %977 = dma.done [#allocation23], 32
        $region176: #{forward.1} parent=119 // pred_fallthru
          _
        // Predicated region
        $region177: #{forward.1} parent=119 // pred_check
          %p978 = pneg %p385
        $region178: #{forward.1} parent=119 // pred_check_branch
          %980 = sbr.rel (%p978) target = $region180
        $region179: #{forward.1} parent=119 // pred_region
          %981 = dma.done [#allocation23], 12288
        $region180: #{forward.1} parent=119 // pred_fallthru
          _
        // Predicated region
        $region181: #{forward.1} parent=119 // pred_check
          %p982 = pneg %p406
        $region182: #{forward.1} parent=119 // pred_check_branch
          %984 = sbr.rel (%p982) target = $region184
        $region183: #{forward.1} parent=119 // pred_region
          %985 = dma.done [#allocation26], 32
        $region184: #{forward.1} parent=119 // pred_fallthru
          _
        // Predicated region
        $region185: #{forward.1} parent=119 // pred_check
          %p986 = pneg %p427
        $region186: #{forward.1} parent=119 // pred_check_branch
          %988 = sbr.rel (%p986) target = $region188
        $region187: #{forward.1} parent=119 // pred_region
          %989 = dma.done [#allocation26], 2048
        $region188: #{forward.1} parent=119 // pred_fallthru
          _
        // Predicated region
        $region189: #{forward.1} parent=119 // pred_check
          %p990 = pneg %p448
        $region190: #{forward.1} parent=119 // pred_check_branch
          %992 = sbr.rel (%p990) target = $region192
        $region191: #{forward.1} parent=119 // pred_region
          %993 = dma.done [#allocation29], 32
        $region192: #{forward.1} parent=119 // pred_fallthru
          _
        // Predicated region
        $region193: #{forward.1} parent=119 // pred_check
          %p994 = pneg %p469
        $region194: #{forward.1} parent=119 // pred_check_branch
          %996 = sbr.rel (%p994) target = $region196
        $region195: #{forward.1} parent=119 // pred_region
          %997 = dma.done [#allocation29], 24576
        $region196: #{forward.1} parent=119 // pred_fallthru
          _
        // Predicated region
        $region197: #{forward.1} parent=119 // pred_check
          %p998 = pneg %p490
        $region198: #{forward.1} parent=119 // pred_check_branch
          %1000 = sbr.rel (%p998) target = $region200
        $region199: #{forward.1} parent=119 // pred_region
          %1001 = dma.done [#allocation32], 64
        $region200: #{forward.1} parent=119 // pred_fallthru
          _
        // Predicated region
        $region201: #{forward.1} parent=119 // pred_check
          %p1002 = pneg %p511
        $region202: #{forward.1} parent=119 // pred_check_branch
          %1004 = sbr.rel (%p1002) target = $region204
        $region203: #{forward.1} parent=119 // pred_region
          %1005 = dma.done [#allocation32], 49152
        $region204: #{forward.1} parent=119 // pred_fallthru
          _
        // Predicated region
        $region205: #{forward.1} parent=119 // pred_check
          %p1006 = pneg %p532
        $region206: #{forward.1} parent=119 // pred_check_branch
          %1008 = sbr.rel (%p1006) target = $region208
        $region207: #{forward.1} parent=119 // pred_region
          %1009 = dma.done [#allocation35], 64
        $region208: #{forward.1} parent=119 // pred_fallthru
          _
        // Predicated region
        $region209: #{forward.1} parent=119 // pred_check
          %p1010 = pneg %p553
        $region210: #{forward.1} parent=119 // pred_check_branch
          %1012 = sbr.rel (%p1010) target = $region212
        $region211: #{forward.1} parent=119 // pred_region
          %1013 = dma.done [#allocation35], 8192
        $region212: #{forward.1} parent=119 // pred_fallthru
          _
        // Predicated region
        $region213: #{forward.1} parent=119 // pred_check
          %p1014 = pneg %p574
        $region214: #{forward.1} parent=119 // pred_check_branch
          %1016 = sbr.rel (%p1014) target = $region216
        $region215: #{forward.1} parent=119 // pred_region
          %1017 = dma.done [#allocation38], 64
        $region216: #{forward.1} parent=119 // pred_fallthru
          _
        %p1018 = scmp.lt.s32.totalorder %s49, 1
        %s1019 = scalar_select %p1018, %s49, 1
        %s1020 = smul.addr %s1019, 8
        %s1021 = smul.addr %s1020, 4
        %s1022 = scalar_lea.vmem %s0, %s1021
        %p1023 = pneg %p70
        %p1024 = pneg %p67
        %p1025 = pneg %p91
        %p1026 = pneg %p88
        %p1027 = pneg %p112
        %p1028 = pneg %p109
        %p1029 = pneg %p133
        %p1030 = pneg %p130
        %p1031 = pneg %p154
        %p1032 = pneg %p151
        %p1033 = pneg %p175
        %p1034 = pneg %p172
        %p1035 = pneg %p196
        %p1036 = pneg %p193
        %p1037 = pneg %p217
        %p1038 = pneg %p214
        %p1039 = pneg %p238
        %p1040 = pneg %p235
        %p1041 = pneg %p259
        %p1042 = pneg %p256
        %p1043 = pneg %p280
        %p1044 = pneg %p277
        %p1045 = pneg %p301
        %p1046 = pneg %p298
        %p1047 = pneg %p322
        %p1048 = pneg %p319
        %p1049 = pneg %p343
        %p1050 = pneg %p340
        %p1051 = pneg %p364
        %p1052 = pneg %p361
        %p1053 = pneg %p385
        %p1054 = pneg %p382
        %p1055 = pneg %p406
        %p1056 = pneg %p403
        %p1057 = pneg %p427
        %p1058 = pneg %p424
        %p1059 = pneg %p448
        %p1060 = pneg %p445
        %p1061 = pneg %p469
        %p1062 = pneg %p466
        %p1063 = pneg %p490
        %p1064 = pneg %p487
        %p1065 = pneg %p511
        %p1066 = pneg %p508
        %p1067 = pneg %p532
        %p1068 = pneg %p529
        %p1069 = pneg %p553
        %p1070 = pneg %p550
        %p1071 = pneg %p574
        %p1072 = pneg %p571
        %p1073 = pneg %p600
        %p1074 = pneg %p597
        %p1075 = scmp.lt.s32.totalorder %s49, 1
        %s1076 = scalar_select %p1075, %s49, 1
        %s1077 = smul.addr %s1076, 4
        %s1078 = scalar_lea.vmem %s25, %s1077
        %p1079 = scmp.lt.s32.totalorder %s49, 1
        %s1080 = scalar_select %p1079, %s49, 1
        %s1081 = smul.addr %s1080, 8
        %s1082 = smul.addr %s1081, 4
        %s1083 = scalar_lea.vmem %s0, %s1082
        %p1084 = scmp.lt.s32.totalorder %s49, 1
        %s1085 = scalar_select %p1084, %s49, 1
        %s1086 = smul.addr %s1085, 4
        %s1087 = scalar_lea.vmem %s25, %s1086
        %v1089 = vld [vmem:[%s1083] sm:$0xf]
        %v1090 = vld [vmem:[%s1083 + $0x4] sm:$0xf]
        %v1091 = vld [vmem:[%s1083 + $0x8] sm:$0xf]
        %v1092 = vld [vmem:[%s1083 + $0xc] sm:$0xf]
        %v1093 = vld [vmem:[%s1083 + $0x10] sm:$0xf]
        %v1094 = vld [vmem:[%s1083 + $0x14] sm:$0xf]
        %v1095 = vld [vmem:[%s1083 + $0x18] sm:$0xf]
        %v1096 = vld [vmem:[%s1083 + $0x1c] sm:$0xf]
        %v1097 = vld [vmem:[#allocation2] sm:$0xf]
        %v1098 = vld [vmem:[#allocation2 + $0x4] sm:$0xf]
        %v1099 = vld [vmem:[#allocation2 + $0x8] sm:$0xf]
        %v1100 = vld [vmem:[#allocation2 + $0xc] sm:$0xf]
        %v1101 = vld [vmem:[#allocation2 + $0x10] sm:$0xf]
        %v1102 = vld [vmem:[#allocation2 + $0x14] sm:$0xf]
        %v1103 = vld [vmem:[#allocation2 + $0x18] sm:$0xf]
        %v1104 = vld [vmem:[#allocation2 + $0x1c] sm:$0xf]
        %v1105 = vld [vmem:[#allocation2 + $0x20] sm:$0xf]
        %v1106 = vld [vmem:[#allocation2 + $0x24] sm:$0xf]
        %v1107 = vld [vmem:[#allocation2 + $0x28] sm:$0xf]
        %v1108 = vld [vmem:[#allocation2 + $0x2c] sm:$0xf]
        %v1109 = vld [vmem:[#allocation2 + $0x30] sm:$0xf]
        %v1110 = vld [vmem:[#allocation2 + $0x34] sm:$0xf]
        %v1111 = vld [vmem:[#allocation2 + $0x38] sm:$0xf]
        %v1112 = vld [vmem:[#allocation2 + $0x3c] sm:$0xf]
        %v1113 = vld [vmem:[#allocation4] sm:$0x1]
        %v1115 = vlaneseq
        %v1116 = vshrl.u32 %v1115, 7
        %v1117 = vsub.s32 0, %v1116
        %v1118 = vrot.slane %v1113, %v1117
        %v1128 = vunpack.c.l.b16 %v1089
        %v1129 = vunpack.c.l.b16 %v1090
        %v1130 = vunpack.c.l.b16 %v1091
        %v1131 = vunpack.c.l.b16 %v1092
        %v1132 = vunpack.c.l.b16 %v1093
        %v1133 = vunpack.c.l.b16 %v1094
        %v1134 = vunpack.c.l.b16 %v1095
        %v1135 = vunpack.c.l.b16 %v1096
        %v1136 = vpack.c.b16 %v1129, %v1128
        %v1137 = vpack.c.b16 %v1131, %v1130
        %v1138 = vpack.c.b16 %v1133, %v1132
        %v1139 = vpack.c.b16 %v1135, %v1134
        %v1160 = vunpack.c.l.b16 %v1097
        %v1161 = vunpack.c.l.b16 %v1098
        %v1162 = vunpack.c.l.b16 %v1099
        %v1163 = vunpack.c.l.b16 %v1100
        %v1164 = vunpack.c.l.b16 %v1101
        %v1165 = vunpack.c.l.b16 %v1102
        %v1166 = vunpack.c.l.b16 %v1103
        %v1167 = vunpack.c.l.b16 %v1104
        %v1168 = vunpack.c.l.b16 %v1105
        %v1169 = vunpack.c.l.b16 %v1106
        %v1170 = vunpack.c.l.b16 %v1107
        %v1171 = vunpack.c.l.b16 %v1108
        %v1172 = vunpack.c.l.b16 %v1109
        %v1173 = vunpack.c.l.b16 %v1110
        %v1174 = vunpack.c.l.b16 %v1111
        %v1175 = vunpack.c.l.b16 %v1112
        %v1176 = vpack.c.b16 %v1161, %v1160
        %v1177 = vpack.c.b16 %v1163, %v1162
        %v1178 = vpack.c.b16 %v1165, %v1164
        %v1179 = vpack.c.b16 %v1167, %v1166
        %v1180 = vpack.c.b16 %v1169, %v1168
        %v1181 = vpack.c.b16 %v1171, %v1170
        %v1182 = vpack.c.b16 %v1173, %v1172
        %v1183 = vpack.c.b16 %v1175, %v1174
        %1192 = vmatprep.subr.bf16.mxu0 0
        %1193 = vmatpush1.bf16.msra.mxu0 %v1176
        %1194 = vmatprep.subr.bf16.mxu0 0
        %1195 = vmatpush1.bf16.msra.mxu0 %v1177
        %1196 = vmatprep.subr.bf16.mxu0 0
        %1197 = vmatpush1.bf16.msra.mxu0 %v1178
        %1198 = vmatprep.subr.bf16.mxu0 0
        %1199 = vmatpush1.bf16.msra.mxu0 %v1179
        %1200 = vmatprep.subr.bf16.mxu0 0
        %1201 = vmatpush1.bf16.msra.mxu0 %v1180
        %1202 = vmatprep.subr.bf16.mxu0 0
        %1203 = vmatpush1.bf16.msra.mxu0 %v1181
        %1204 = vmatprep.subr.bf16.mxu0 0
        %1205 = vmatpush1.bf16.msra.mxu0 %v1182
        %1206 = vmatprep.subr.bf16.mxu0 0
        %1207 = vmatpush1.bf16.msra.mxu0 %v1183
        %1208 = vmatprep.subr.bf16.mxu0 0
        %1209 = vmatpush1.bf16.msra.mxu0 0
        %1210 = vmatprep.subr.bf16.mxu0 0
        %1211 = vmatpush1.bf16.msra.mxu0 0
        %1212 = vmatprep.subr.bf16.mxu0 0
        %1213 = vmatpush1.bf16.msra.mxu0 0
        %1214 = vmatprep.subr.bf16.mxu0 0
        %1215 = vmatpush1.bf16.msra.mxu0 0
        %1216 = vmatprep.subr.bf16.mxu0 0
        %1217 = vmatpush1.bf16.msra.mxu0 0
        %1218 = vmatprep.subr.bf16.mxu0 0
        %1219 = vmatpush1.bf16.msra.mxu0 0
        %1220 = vmatprep.subr.bf16.mxu0 0
        %1221 = vmatpush1.bf16.msra.mxu0 0
        %1222 = vmatprep.subr.bf16.mxu0 0
        %1223 = vmatpush1.bf16.msra.mxu0 0
        %1224 = vmatprep.mubr.bf16.mxu0 0
        %1225 = vmatmul.mubr.bf16.gmra.mrb[0].mxu0 %v1136
        %v1226 = vpop.f32.mrb[0].mxu0
        %v1227 = vadd.f32 %v1118, %v1226
        %v1228 = vpop.f32.mrb[0].mxu0
        %v1229 = vpop.f32.mrb[0].mxu0
        %v1230 = vadd.f32 %v1118, %v1229
        %v1231 = vpop.f32.mrb[0].mxu0
        %1232 = vmatprep.mubr.bf16.mxu0 0
        %1233 = vmatmul.mubr.bf16.gmra.mrb[0].mxu0 %v1137
        %v1234 = vpop.f32.mrb[0].mxu0
        %v1235 = vadd.f32 %v1118, %v1234
        %v1236 = vpop.f32.mrb[0].mxu0
        %v1237 = vpop.f32.mrb[0].mxu0
        %v1238 = vadd.f32 %v1118, %v1237
        %v1239 = vpop.f32.mrb[0].mxu0
        %1240 = vmatprep.mubr.bf16.mxu0 0
        %1241 = vmatmul.mubr.bf16.gmra.mrb[0].mxu0 %v1138
        %v1242 = vpop.f32.mrb[0].mxu0
        %v1243 = vadd.f32 %v1118, %v1242
        %v1244 = vpop.f32.mrb[0].mxu0
        %v1245 = vpop.f32.mrb[0].mxu0
        %v1246 = vadd.f32 %v1118, %v1245
        %v1247 = vpop.f32.mrb[0].mxu0
        %1248 = vmatprep.mubr.bf16.mxu0 0
        %1249 = vmatmul.mubr.bf16.gmra.mrb[0].mxu0 %v1139
        %v1250 = vpop.f32.mrb[0].mxu0
        %v1251 = vadd.f32 %v1118, %v1250
        %v1252 = vpop.f32.mrb[0].mxu0
        %v1253 = vpop.f32.mrb[0].mxu0
        %v1254 = vadd.f32 %v1118, %v1253
        %v1255 = vpop.f32.mrb[0].mxu0
        %1256 = vdwg.mxu0
        %v1257 = vmax.f32 %v1227, 0.0
        %v1258 = vmax.f32 %v1230, 0.0
        %v1259 = vmax.f32 %v1235, 0.0
        %v1260 = vmax.f32 %v1238, 0.0
        %v1261 = vmax.f32 %v1243, 0.0
        %v1262 = vmax.f32 %v1246, 0.0
        %v1263 = vmax.f32 %v1251, 0.0
        %v1264 = vmax.f32 %v1254, 0.0
        %v1265 = vpack.c.bf16 %v1258, %v1257
        %v1266 = vpack.c.bf16 %v1260, %v1259
        %v1267 = vpack.c.bf16 %v1262, %v1261
        %v1268 = vpack.c.bf16 %v1264, %v1263
        %v1269 = vlaneseq
        %v1270 = vshrl.u32 %v1269, 7
        %v1271 = vadd.s32 %v1270, 8
        %v1272 = vadd.s32 %v1270, 16
        %v1273 = vadd.s32 %v1270, 24
        %v1274 = vadd.s32 %v1270, 32
        %v1275 = vadd.s32 %v1270, 40
        %v1276 = vadd.s32 %v1270, 48
        %v1277 = vadd.s32 %v1270, 56
        %v1278 = vlaneseq
        %v1279 = vand.u32 %v1278, 127
        %v1280 = vsub.s32 %v1270, 1
        %v1281 = vsub.s32 %v1271, 1
        %v1282 = vsub.s32 %v1272, 1
        %v1283 = vsub.s32 %v1273, 1
        %v1284 = vsub.s32 %v1274, 1
        %v1285 = vsub.s32 %v1275, 1
        %v1286 = vsub.s32 %v1276, 1
        %v1287 = vsub.s32 %v1277, 1
        %vm1288 = vcmp.eq.s32.totalorder %v1279, %v1280
        %vm1289 = vcmp.eq.s32.totalorder %v1279, %v1281
        %vm1290 = vcmp.eq.s32.totalorder %v1279, %v1282
        %vm1291 = vcmp.eq.s32.totalorder %v1279, %v1283
        %vm1292 = vcmp.eq.s32.totalorder %v1279, %v1284
        %vm1293 = vcmp.eq.s32.totalorder %v1279, %v1285
        %vm1294 = vcmp.eq.s32.totalorder %v1279, %v1286
        %vm1295 = vcmp.eq.s32.totalorder %v1279, %v1287
        %v1296 = vsel %vm1288, 1.0, 0.0
        %v1297 = vsel %vm1289, 1.0, 0.0
        %v1298 = vsel %vm1290, 1.0, 0.0
        %v1299 = vsel %vm1291, 1.0, 0.0
        %v1300 = vsel %vm1292, 1.0, 0.0
        %v1301 = vsel %vm1293, 1.0, 0.0
        %v1302 = vsel %vm1294, 1.0, 0.0
        %v1303 = vsel %vm1295, 1.0, 0.0
        %v1304 = vpack.c.bf16 %v1297, %v1296
        %v1305 = vpack.c.bf16 %v1299, %v1298
        %v1306 = vpack.c.bf16 %v1301, %v1300
        %v1307 = vpack.c.bf16 %v1303, %v1302
        %v1308 = vadd.s32 %v1270, 1
        %v1309 = vadd.s32 %v1271, 1
        %v1310 = vadd.s32 %v1272, 1
        %v1311 = vadd.s32 %v1273, 1
        %v1312 = vadd.s32 %v1274, 1
        %v1313 = vadd.s32 %v1275, 1
        %v1314 = vadd.s32 %v1276, 1
        %v1315 = vadd.s32 %v1277, 1
        %vm1316 = vcmp.eq.s32.totalorder %v1279, %v1308
        %vm1317 = vcmp.eq.s32.totalorder %v1279, %v1309
        %vm1318 = vcmp.eq.s32.totalorder %v1279, %v1310
        %vm1319 = vcmp.eq.s32.totalorder %v1279, %v1311
        %vm1320 = vcmp.eq.s32.totalorder %v1279, %v1312
        %vm1321 = vcmp.eq.s32.totalorder %v1279, %v1313
        %vm1322 = vcmp.eq.s32.totalorder %v1279, %v1314
        %vm1323 = vcmp.eq.s32.totalorder %v1279, %v1315
        %v1324 = vsel %vm1316, 1.0, 0.0
        %v1325 = vsel %vm1317, 1.0, 0.0
        %v1326 = vsel %vm1318, 1.0, 0.0
        %v1327 = vsel %vm1319, 1.0, 0.0
        %v1328 = vsel %vm1320, 1.0, 0.0
        %v1329 = vsel %vm1321, 1.0, 0.0
        %v1330 = vsel %vm1322, 1.0, 0.0
        %v1331 = vsel %vm1323, 1.0, 0.0
        %v1332 = vpack.c.bf16 %v1325, %v1324
        %v1333 = vpack.c.bf16 %v1327, %v1326
        %v1334 = vpack.c.bf16 %v1329, %v1328
        %v1335 = vpack.c.bf16 %v1331, %v1330
        %vm1336 = vcmask 523264
        %v1338 = vsel %vm1336, %v1304, 0
        %v1341 = vsel %vm1336, %v1305, 0
        %v1344 = vsel %vm1336, %v1306, 0
        %v1347 = vsel %vm1336, %v1307, 0
        %1349 = vmatprep.subr.bf16.mxu0 0
        %1350 = vmatpush1.bf16.msra.mxu0 %v1265
        %1351 = vmatprep.subr.bf16.mxu0 0
        %1352 = vmatpush1.bf16.msra.mxu0 %v1266
        %1353 = vmatprep.subr.bf16.mxu0 0
        %1354 = vmatpush1.bf16.msra.mxu0 %v1267
        %1355 = vmatprep.subr.bf16.mxu0 0
        %1356 = vmatpush1.bf16.msra.mxu0 %v1268
        %1357 = vmatprep.subr.bf16.mxu0 0
        %1358 = vmatpush1.bf16.msra.mxu0 0
        %1359 = vmatprep.subr.bf16.mxu0 0
        %1360 = vmatpush1.bf16.msra.mxu0 0
        %1361 = vmatprep.subr.bf16.mxu0 0
        %1362 = vmatpush1.bf16.msra.mxu0 0
        %1363 = vmatprep.subr.bf16.mxu0 0
        %1364 = vmatpush1.bf16.msra.mxu0 0
        %1365 = vmatprep.subr.bf16.mxu0 0
        %1366 = vmatpush1.bf16.msra.mxu0 0
        %1367 = vmatprep.subr.bf16.mxu0 0
        %1368 = vmatpush1.bf16.msra.mxu0 0
        %1369 = vmatprep.subr.bf16.mxu0 0
        %1370 = vmatpush1.bf16.msra.mxu0 0
        %1371 = vmatprep.subr.bf16.mxu0 0
        %1372 = vmatpush1.bf16.msra.mxu0 0
        %1373 = vmatprep.subr.bf16.mxu0 0
        %1374 = vmatpush1.bf16.msra.mxu0 0
        %1375 = vmatprep.subr.bf16.mxu0 0
        %1376 = vmatpush1.bf16.msra.mxu0 0
        %1377 = vmatprep.subr.bf16.mxu0 0
        %1378 = vmatpush1.bf16.msra.mxu0 0
        %1379 = vmatprep.subr.bf16.mxu0 0
        %1380 = vmatpush1.bf16.msra.mxu0 0
        %1381 = vmatprep.mubr.bf16.mxu0 0
        %1382 = vmatmul.mubr.bf16.gmra.mrb[0].mxu0 %v1338
        %v1383 = vpop.f32.mrb[0].mxu0
        %v1384 = vadd.f32 0.0, %v1383
        %v1385 = vpop.f32.mrb[0].mxu0
        %v1386 = vpop.f32.mrb[0].mxu0
        %v1387 = vadd.f32 0.0, %v1386
        %v1388 = vpop.f32.mrb[0].mxu0
        %1389 = vmatprep.mubr.bf16.mxu0 0
        %1390 = vmatmul.mubr.bf16.gmra.mrb[0].mxu0 %v1341
        %v1391 = vpop.f32.mrb[0].mxu0
        %v1392 = vadd.f32 0.0, %v1391
        %v1393 = vpop.f32.mrb[0].mxu0
        %v1394 = vpop.f32.mrb[0].mxu0
        %v1395 = vadd.f32 0.0, %v1394
        %v1396 = vpop.f32.mrb[0].mxu0
        %1397 = vmatprep.mubr.bf16.mxu0 0
        %1398 = vmatmul.mubr.bf16.gmra.mrb[0].mxu0 %v1344
        %v1399 = vpop.f32.mrb[0].mxu0
        %v1400 = vadd.f32 0.0, %v1399
        %v1401 = vpop.f32.mrb[0].mxu0
        %v1402 = vpop.f32.mrb[0].mxu0
        %v1403 = vadd.f32 0.0, %v1402
        %v1404 = vpop.f32.mrb[0].mxu0
        %1405 = vmatprep.mubr.bf16.mxu0 0
        %1406 = vmatmul.mubr.bf16.gmra.mrb[0].mxu0 %v1347
        %v1407 = vpop.f32.mrb[0].mxu0
        %v1408 = vadd.f32 0.0, %v1407
        %v1409 = vpop.f32.mrb[0].mxu0
        %v1410 = vpop.f32.mrb[0].mxu0
        %v1411 = vadd.f32 0.0, %v1410
        %v1412 = vpop.f32.mrb[0].mxu0
        %1413 = vdwg.mxu0
        %v1414 = vpack.c.bf16 %v1387, %v1384
        %v1415 = vpack.c.bf16 %v1395, %v1392
        %v1416 = vpack.c.bf16 %v1403, %v1400
        %v1417 = vpack.c.bf16 %v1411, %v1408
        %v1419 = vsel %vm1336, %v1332, 0
        %v1422 = vsel %vm1336, %v1333, 0
        %v1425 = vsel %vm1336, %v1334, 0
        %v1428 = vsel %vm1336, %v1335, 0
        %1430 = vmatprep.subr.bf16.mxu0 0
        %1431 = vmatpush1.bf16.msra.mxu0 %v1265
        %1432 = vmatprep.subr.bf16.mxu0 0
        %1433 = vmatpush1.bf16.msra.mxu0 %v1266
        %1434 = vmatprep.subr.bf16.mxu0 0
        %1435 = vmatpush1.bf16.msra.mxu0 %v1267
        %1436 = vmatprep.subr.bf16.mxu0 0
        %1437 = vmatpush1.bf16.msra.mxu0 %v1268
        %1438 = vmatprep.subr.bf16.mxu0 0
        %1439 = vmatpush1.bf16.msra.mxu0 0
        %1440 = vmatprep.subr.bf16.mxu0 0
        %1441 = vmatpush1.bf16.msra.mxu0 0
        %1442 = vmatprep.subr.bf16.mxu0 0
        %1443 = vmatpush1.bf16.msra.mxu0 0
        %1444 = vmatprep.subr.bf16.mxu0 0
        %1445 = vmatpush1.bf16.msra.mxu0 0
        %1446 = vmatprep.subr.bf16.mxu0 0
        %1447 = vmatpush1.bf16.msra.mxu0 0
        %1448 = vmatprep.subr.bf16.mxu0 0
        %1449 = vmatpush1.bf16.msra.mxu0 0
        %1450 = vmatprep.subr.bf16.mxu0 0
        %1451 = vmatpush1.bf16.msra.mxu0 0
        %1452 = vmatprep.subr.bf16.mxu0 0
        %1453 = vmatpush1.bf16.msra.mxu0 0
        %1454 = vmatprep.subr.bf16.mxu0 0
        %1455 = vmatpush1.bf16.msra.mxu0 0
        %1456 = vmatprep.subr.bf16.mxu0 0
        %1457 = vmatpush1.bf16.msra.mxu0 0
        %1458 = vmatprep.subr.bf16.mxu0 0
        %1459 = vmatpush1.bf16.msra.mxu0 0
        %1460 = vmatprep.subr.bf16.mxu0 0
        %1461 = vmatpush1.bf16.msra.mxu0 0
        %1462 = vmatprep.mubr.bf16.mxu0 0
        %1463 = vmatmul.mubr.bf16.gmra.mrb[0].mxu0 %v1419
        %v1464 = vpop.f32.mrb[0].mxu0
        %v1465 = vadd.f32 0.0, %v1464
        %v1466 = vpop.f32.mrb[0].mxu0
        %v1467 = vpop.f32.mrb[0].mxu0
        %v1468 = vadd.f32 0.0, %v1467
        %v1469 = vpop.f32.mrb[0].mxu0
        %1470 = vmatprep.mubr.bf16.mxu0 0
        %1471 = vmatmul.mubr.bf16.gmra.mrb[0].mxu0 %v1422
        %v1472 = vpop.f32.mrb[0].mxu0
        %v1473 = vadd.f32 0.0, %v1472
        %v1474 = vpop.f32.mrb[0].mxu0
        %v1475 = vpop.f32.mrb[0].mxu0
        %v1476 = vadd.f32 0.0, %v1475
        %v1477 = vpop.f32.mrb[0].mxu0
        %1478 = vmatprep.mubr.bf16.mxu0 0
        %1479 = vmatmul.mubr.bf16.gmra.mrb[0].mxu0 %v1425
        %v1480 = vpop.f32.mrb[0].mxu0
        %v1481 = vadd.f32 0.0, %v1480
        %v1482 = vpop.f32.mrb[0].mxu0
        %v1483 = vpop.f32.mrb[0].mxu0
        %v1484 = vadd.f32 0.0, %v1483
        %v1485 = vpop.f32.mrb[0].mxu0
        %1486 = vmatprep.mubr.bf16.mxu0 0
        %1487 = vmatmul.mubr.bf16.gmra.mrb[0].mxu0 %v1428
        %v1488 = vpop.f32.mrb[0].mxu0
        %v1489 = vadd.f32 0.0, %v1488
        %v1490 = vpop.f32.mrb[0].mxu0
        %v1491 = vpop.f32.mrb[0].mxu0
        %v1492 = vadd.f32 0.0, %v1491
        %v1493 = vpop.f32.mrb[0].mxu0
        %1494 = vdwg.mxu0
        %v1495 = vpack.c.bf16 %v1468, %v1465
        %v1496 = vpack.c.bf16 %v1476, %v1473
        %v1497 = vpack.c.bf16 %v1484, %v1481
        %v1498 = vpack.c.bf16 %v1492, %v1489
        %v1499 = vld [vmem:[#allocation6] sm:$0xf]
        %v1500 = vld [vmem:[#allocation6 + $0x4] sm:$0xf]
        %v1501 = vld [vmem:[#allocation6 + $0x8] sm:$0xf]
        %v1502 = vld [vmem:[#allocation6 + $0xc] sm:$0xf]
        %v1503 = vld [vmem:[#allocation6 + $0x10] sm:$0xf]
        %v1504 = vld [vmem:[#allocation6 + $0x14] sm:$0xf]
        %v1505 = vld [vmem:[#allocation6 + $0x18] sm:$0xf]
        %v1506 = vld [vmem:[#allocation6 + $0x1c] sm:$0xf]
        %v1507 = vld [vmem:[#allocation6 + $0x20] sm:$0xf]
        %v1508 = vld [vmem:[#allocation6 + $0x24] sm:$0xf]
        %v1509 = vld [vmem:[#allocation6 + $0x28] sm:$0xf]
        %v1510 = vld [vmem:[#allocation6 + $0x2c] sm:$0xf]
        %v1511 = vld [vmem:[#allocation6 + $0x30] sm:$0xf]
        %v1512 = vld [vmem:[#allocation6 + $0x34] sm:$0xf]
        %v1513 = vld [vmem:[#allocation6 + $0x38] sm:$0xf]
        %v1514 = vld [vmem:[#allocation6 + $0x3c] sm:$0xf]
        %v1515 = vld [vmem:[#allocation6 + $0x40] sm:$0xf]
        %v1516 = vld [vmem:[#allocation6 + $0x44] sm:$0xf]
        %v1517 = vld [vmem:[#allocation6 + $0x48] sm:$0xf]
        %v1518 = vld [vmem:[#allocation6 + $0x4c] sm:$0xf]
        %v1519 = vld [vmem:[#allocation6 + $0x50] sm:$0xf]
        %v1520 = vld [vmem:[#allocation6 + $0x54] sm:$0xf]
        %v1521 = vld [vmem:[#allocation6 + $0x58] sm:$0xf]
        %v1522 = vld [vmem:[#allocation6 + $0x5c] sm:$0xf]
        %v1523 = vld [vmem:[#allocation6 + $0x60] sm:$0xf]
        %v1524 = vld [vmem:[#allocation6 + $0x64] sm:$0xf]
        %v1525 = vld [vmem:[#allocation6 + $0x68] sm:$0xf]
        %v1526 = vld [vmem:[#allocation6 + $0x6c] sm:$0xf]
        %v1527 = vld [vmem:[#allocation6 + $0x70] sm:$0xf]
        %v1528 = vld [vmem:[#allocation6 + $0x74] sm:$0xf]
        %v1529 = vld [vmem:[#allocation6 + $0x78] sm:$0xf]
        %v1530 = vld [vmem:[#allocation6 + $0x7c] sm:$0xf]
        %v1531 = vld [vmem:[#allocation6 + $0x80] sm:$0xf]
        %v1532 = vld [vmem:[#allocation6 + $0x84] sm:$0xf]
        %v1533 = vld [vmem:[#allocation6 + $0x88] sm:$0xf]
        %v1534 = vld [vmem:[#allocation6 + $0x8c] sm:$0xf]
        %v1535 = vld [vmem:[#allocation6 + $0x90] sm:$0xf]
        %v1536 = vld [vmem:[#allocation6 + $0x94] sm:$0xf]
        %v1537 = vld [vmem:[#allocation6 + $0x98] sm:$0xf]
        %v1538 = vld [vmem:[#allocation6 + $0x9c] sm:$0xf]
        %v1539 = vld [vmem:[#allocation6 + $0xa0] sm:$0xf]
        %v1540 = vld [vmem:[#allocation6 + $0xa4] sm:$0xf]
        %v1541 = vld [vmem:[#allocation6 + $0xa8] sm:$0xf]
        %v1542 = vld [vmem:[#allocation6 + $0xac] sm:$0xf]
        %v1543 = vld [vmem:[#allocation6 + $0xb0] sm:$0xf]
        %v1544 = vld [vmem:[#allocation6 + $0xb4] sm:$0xf]
        %v1545 = vld [vmem:[#allocation6 + $0xb8] sm:$0xf]
        %v1546 = vld [vmem:[#allocation6 + $0xbc] sm:$0xf]
        %v1547 = vld [vmem:[#allocation7] sm:$0x1]
        %v1549 = vlaneseq
        %v1550 = vshrl.u32 %v1549, 7
        %v1551 = vsub.s32 0, %v1550
        %v1552 = vrot.slane %v1547, %v1551
        %v1602 = vunpack.c.l.b16 %v1499
        %v1603 = vunpack.c.l.b16 %v1500
        %v1604 = vunpack.c.l.b16 %v1501
        %v1605 = vunpack.c.l.b16 %v1502
        %v1606 = vunpack.c.l.b16 %v1503
        %v1607 = vunpack.c.l.b16 %v1504
        %v1608 = vunpack.c.l.b16 %v1505
        %v1609 = vunpack.c.l.b16 %v1506
        %v1610 = vunpack.c.l.b16 %v1507
        %v1611 = vunpack.c.l.b16 %v1508
        %v1612 = vunpack.c.l.b16 %v1509
        %v1613 = vunpack.c.l.b16 %v1510
        %v1614 = vunpack.c.l.b16 %v1511
        %v1615 = vunpack.c.l.b16 %v1512
        %v1616 = vunpack.c.l.b16 %v1513
        %v1617 = vunpack.c.l.b16 %v1514
        %v1618 = vunpack.c.l.b16 %v1515
        %v1619 = vunpack.c.l.b16 %v1516
        %v1620 = vunpack.c.l.b16 %v1517
        %v1621 = vunpack.c.l.b16 %v1518
        %v1622 = vunpack.c.l.b16 %v1519
        %v1623 = vunpack.c.l.b16 %v1520
        %v1624 = vunpack.c.l.b16 %v1521
        %v1625 = vunpack.c.l.b16 %v1522
        %v1626 = vunpack.c.l.b16 %v1523
        %v1627 = vunpack.c.l.b16 %v1524
        %v1628 = vunpack.c.l.b16 %v1525
        %v1629 = vunpack.c.l.b16 %v1526
        %v1630 = vunpack.c.l.b16 %v1527
        %v1631 = vunpack.c.l.b16 %v1528
        %v1632 = vunpack.c.l.b16 %v1529
        %v1633 = vunpack.c.l.b16 %v1530
        %v1634 = vunpack.c.l.b16 %v1531
        %v1635 = vunpack.c.l.b16 %v1532
        %v1636 = vunpack.c.l.b16 %v1533
        %v1637 = vunpack.c.l.b16 %v1534
        %v1638 = vunpack.c.l.b16 %v1535
        %v1639 = vunpack.c.l.b16 %v1536
        %v1640 = vunpack.c.l.b16 %v1537
        %v1641 = vunpack.c.l.b16 %v1538
        %v1642 = vunpack.c.l.b16 %v1539
        %v1643 = vunpack.c.l.b16 %v1540
        %v1644 = vunpack.c.l.b16 %v1541
        %v1645 = vunpack.c.l.b16 %v1542
        %v1646 = vunpack.c.l.b16 %v1543
        %v1647 = vunpack.c.l.b16 %v1544
        %v1648 = vunpack.c.l.b16 %v1545
        %v1649 = vunpack.c.l.b16 %v1546
        %v1650 = vpack.c.b16 %v1603, %v1602
        %v1651 = vpack.c.b16 %v1605, %v1604
        %v1652 = vpack.c.b16 %v1607, %v1606
        %v1653 = vpack.c.b16 %v1609, %v1608
        %v1654 = vpack.c.b16 %v1611, %v1610
        %v1655 = vpack.c.b16 %v1613, %v1612
        %v1656 = vpack.c.b16 %v1615, %v1614
        %v1657 = vpack.c.b16 %v1617, %v1616
        %v1658 = vpack.c.b16 %v1619, %v1618
        %v1659 = vpack.c.b16 %v1621, %v1620
        %v1660 = vpack.c.b16 %v1623, %v1622
        %v1661 = vpack.c.b16 %v1625, %v1624
        %v1662 = vpack.c.b16 %v1627, %v1626
        %v1663 = vpack.c.b16 %v1629, %v1628
        %v1664 = vpack.c.b16 %v1631, %v1630
        %v1665 = vpack.c.b16 %v1633, %v1632
        %v1666 = vpack.c.b16 %v1635, %v1634
        %v1667 = vpack.c.b16 %v1637, %v1636
        %v1668 = vpack.c.b16 %v1639, %v1638
        %v1669 = vpack.c.b16 %v1641, %v1640
        %v1670 = vpack.c.b16 %v1643, %v1642
        %v1671 = vpack.c.b16 %v1645, %v1644
        %v1672 = vpack.c.b16 %v1647, %v1646
        %v1673 = vpack.c.b16 %v1649, %v1648
        %1698 = vmatprep.subr.bf16.mxu0 0
        %1699 = vmatpush1.bf16.msra.mxu0 %v1650
        %1700 = vmatprep.subr.bf16.mxu0 0
        %1701 = vmatpush1.bf16.msra.mxu0 %v1651
        %1702 = vmatprep.subr.bf16.mxu0 0
        %1703 = vmatpush1.bf16.msra.mxu0 %v1652
        %1704 = vmatprep.subr.bf16.mxu0 0
        %1705 = vmatpush1.bf16.msra.mxu0 %v1653
        %1706 = vmatprep.subr.bf16.mxu0 0
        %1707 = vmatpush1.bf16.msra.mxu0 %v1654
        %1708 = vmatprep.subr.bf16.mxu0 0
        %1709 = vmatpush1.bf16.msra.mxu0 %v1655
        %1710 = vmatprep.subr.bf16.mxu0 0
        %1711 = vmatpush1.bf16.msra.mxu0 %v1656
        %1712 = vmatprep.subr.bf16.mxu0 0
        %1713 = vmatpush1.bf16.msra.mxu0 %v1657
        %1714 = vmatprep.subr.bf16.mxu0 0
        %1715 = vmatpush1.bf16.msra.mxu0 %v1658
        %1716 = vmatprep.subr.bf16.mxu0 0
        %1717 = vmatpush1.bf16.msra.mxu0 %v1659
        %1718 = vmatprep.subr.bf16.mxu0 0
        %1719 = vmatpush1.bf16.msra.mxu0 %v1660
        %1720 = vmatprep.subr.bf16.mxu0 0
        %1721 = vmatpush1.bf16.msra.mxu0 %v1661
        %1722 = vmatprep.subr.bf16.mxu0 0
        %1723 = vmatpush1.bf16.msra.mxu0 %v1662
        %1724 = vmatprep.subr.bf16.mxu0 0
        %1725 = vmatpush1.bf16.msra.mxu0 %v1663
        %1726 = vmatprep.subr.bf16.mxu0 0
        %1727 = vmatpush1.bf16.msra.mxu0 %v1664
        %1728 = vmatprep.subr.bf16.mxu0 0
        %1729 = vmatpush1.bf16.msra.mxu0 %v1665
        %1730 = vmatprep.mubr.bf16.mxu0 %v1265
        %1731 = vmatmul.mubr.bf16.gmra.mrb[0].mxu0 %v1414
        %v1732 = vpop.f32.mrb[0].mxu0
        %v1733 = vadd.f32 %v1552, %v1732
        %v1734 = vpop.f32.mrb[0].mxu0
        %v1735 = vpop.f32.mrb[0].mxu0
        %v1736 = vadd.f32 %v1552, %v1735
        %v1737 = vpop.f32.mrb[0].mxu0
        %1738 = vmatprep.mubr.bf16.mxu0 %v1266
        %1739 = vmatmul.mubr.bf16.gmra.mrb[0].mxu0 %v1415
        %v1740 = vpop.f32.mrb[0].mxu0
        %v1741 = vadd.f32 %v1552, %v1740
        %v1742 = vpop.f32.mrb[0].mxu0
        %v1743 = vpop.f32.mrb[0].mxu0
        %v1744 = vadd.f32 %v1552, %v1743
        %v1745 = vpop.f32.mrb[0].mxu0
        %1746 = vmatprep.mubr.bf16.mxu0 %v1267
        %1747 = vmatmul.mubr.bf16.gmra.mrb[0].mxu0 %v1416
        %v1748 = vpop.f32.mrb[0].mxu0
        %v1749 = vadd.f32 %v1552, %v1748
        %v1750 = vpop.f32.mrb[0].mxu0
        %v1751 = vpop.f32.mrb[0].mxu0
        %v1752 = vadd.f32 %v1552, %v1751
        %v1753 = vpop.f32.mrb[0].mxu0
        %1754 = vmatprep.mubr.bf16.mxu0 %v1268
        %1755 = vmatmul.mubr.bf16.gmra.mrb[0].mxu0 %v1417
        %v1756 = vpop.f32.mrb[0].mxu0
        %v1757 = vadd.f32 %v1552, %v1756
        %v1758 = vpop.f32.mrb[0].mxu0
        %v1759 = vpop.f32.mrb[0].mxu0
        %v1760 = vadd.f32 %v1552, %v1759
        %v1761 = vpop.f32.mrb[0].mxu0
        %1762 = vdwg.mxu0
        %1763 = vmatprep.subr.bf16.mxu0 0
        %1764 = vmatpush1.bf16.msra.mxu0 %v1666
        %1765 = vmatprep.subr.bf16.mxu0 0
        %1766 = vmatpush1.bf16.msra.mxu0 %v1667
        %1767 = vmatprep.subr.bf16.mxu0 0
        %1768 = vmatpush1.bf16.msra.mxu0 %v1668
        %1769 = vmatprep.subr.bf16.mxu0 0
        %1770 = vmatpush1.bf16.msra.mxu0 %v1669
        %1771 = vmatprep.subr.bf16.mxu0 0
        %1772 = vmatpush1.bf16.msra.mxu0 %v1670
        %1773 = vmatprep.subr.bf16.mxu0 0
        %1774 = vmatpush1.bf16.msra.mxu0 %v1671
        %1775 = vmatprep.subr.bf16.mxu0 0
        %1776 = vmatpush1.bf16.msra.mxu0 %v1672
        %1777 = vmatprep.subr.bf16.mxu0 0
        %1778 = vmatpush1.bf16.msra.mxu0 %v1673
        %1779 = vmatprep.subr.bf16.mxu0 0
        %1780 = vmatpush1.bf16.msra.mxu0 0
        %1781 = vmatprep.subr.bf16.mxu0 0
        %1782 = vmatpush1.bf16.msra.mxu0 0
        %1783 = vmatprep.subr.bf16.mxu0 0
        %1784 = vmatpush1.bf16.msra.mxu0 0
        %1785 = vmatprep.subr.bf16.mxu0 0
        %1786 = vmatpush1.bf16.msra.mxu0 0
        %1787 = vmatprep.subr.bf16.mxu0 0
        %1788 = vmatpush1.bf16.msra.mxu0 0
        %1789 = vmatprep.subr.bf16.mxu0 0
        %1790 = vmatpush1.bf16.msra.mxu0 0
        %1791 = vmatprep.subr.bf16.mxu0 0
        %1792 = vmatpush1.bf16.msra.mxu0 0
        %1793 = vmatprep.subr.bf16.mxu0 0
        %1794 = vmatpush1.bf16.msra.mxu0 0
        %1795 = vmatprep.mubr.bf16.mxu0 0
        %1796 = vmatmul.mubr.bf16.gmra.mrb[0].mxu0 %v1495
        %v1797 = vpop.f32.mrb[0].mxu0
        %v1798 = vadd.f32 %v1733, %v1797
        %v1799 = vpop.f32.mrb[0].mxu0
        %v1800 = vpop.f32.mrb[0].mxu0
        %v1801 = vadd.f32 %v1736, %v1800
        %v1802 = vpop.f32.mrb[0].mxu0
        %1803 = vmatprep.mubr.bf16.mxu0 0
        %1804 = vmatmul.mubr.bf16.gmra.mrb[0].mxu0 %v1496
        %v1805 = vpop.f32.mrb[0].mxu0
        %v1806 = vadd.f32 %v1741, %v1805
        %v1807 = vpop.f32.mrb[0].mxu0
        %v1808 = vpop.f32.mrb[0].mxu0
        %v1809 = vadd.f32 %v1744, %v1808
        %v1810 = vpop.f32.mrb[0].mxu0
        %1811 = vmatprep.mubr.bf16.mxu0 0
        %1812 = vmatmul.mubr.bf16.gmra.mrb[0].mxu0 %v1497
        %v1813 = vpop.f32.mrb[0].mxu0
        %v1814 = vadd.f32 %v1749, %v1813
        %v1815 = vpop.f32.mrb[0].mxu0
        %v1816 = vpop.f32.mrb[0].mxu0
        %v1817 = vadd.f32 %v1752, %v1816
        %v1818 = vpop.f32.mrb[0].mxu0
        %1819 = vmatprep.mubr.bf16.mxu0 0
        %1820 = vmatmul.mubr.bf16.gmra.mrb[0].mxu0 %v1498
        %v1821 = vpop.f32.mrb[0].mxu0
        %v1822 = vadd.f32 %v1757, %v1821
        %v1823 = vpop.f32.mrb[0].mxu0
        %v1824 = vpop.f32.mrb[0].mxu0
        %v1825 = vadd.f32 %v1760, %v1824
        %v1826 = vpop.f32.mrb[0].mxu0
        %1827 = vdwg.mxu0
        %v1828 = vmax.f32 %v1798, 0.0
        %v1829 = vmax.f32 %v1801, 0.0
        %v1830 = vmax.f32 %v1806, 0.0
        %v1831 = vmax.f32 %v1809, 0.0
        %v1832 = vmax.f32 %v1814, 0.0
        %v1833 = vmax.f32 %v1817, 0.0
        %v1834 = vmax.f32 %v1822, 0.0
        %v1835 = vmax.f32 %v1825, 0.0
        %v1836 = vpack.c.bf16 %v1829, %v1828
        %v1837 = vpack.c.bf16 %v1831, %v1830
        %v1838 = vpack.c.bf16 %v1833, %v1832
        %v1839 = vpack.c.bf16 %v1835, %v1834
        %v1840 = vunpack.c.l.bf16 %v1265
        %v1841 = vunpack.c.h.bf16 %v1265
        %v1842 = vunpack.c.l.bf16 %v1266
        %v1843 = vunpack.c.h.bf16 %v1266
        %v1844 = vunpack.c.l.bf16 %v1267
        %v1845 = vunpack.c.h.bf16 %v1267
        %v1846 = vunpack.c.l.bf16 %v1268
        %v1847 = vunpack.c.h.bf16 %v1268
        %1848 = vmatprep.subr.bf16.mxu0 0
        %1849 = vmatpush1.bf16.msra.mxu0 %v1836
        %1850 = vmatprep.subr.bf16.mxu0 0
        %1851 = vmatpush1.bf16.msra.mxu0 %v1837
        %1852 = vmatprep.subr.bf16.mxu0 0
        %1853 = vmatpush1.bf16.msra.mxu0 %v1838
        %1854 = vmatprep.subr.bf16.mxu0 0
        %1855 = vmatpush1.bf16.msra.mxu0 %v1839
        %1856 = vmatprep.subr.bf16.mxu0 0
        %1857 = vmatpush1.bf16.msra.mxu0 0
        %1858 = vmatprep.subr.bf16.mxu0 0
        %1859 = vmatpush1.bf16.msra.mxu0 0
        %1860 = vmatprep.subr.bf16.mxu0 0
        %1861 = vmatpush1.bf16.msra.mxu0 0
        %1862 = vmatprep.subr.bf16.mxu0 0
        %1863 = vmatpush1.bf16.msra.mxu0 0
        %1864 = vmatprep.subr.bf16.mxu0 0
        %1865 = vmatpush1.bf16.msra.mxu0 0
        %1866 = vmatprep.subr.bf16.mxu0 0
        %1867 = vmatpush1.bf16.msra.mxu0 0
        %1868 = vmatprep.subr.bf16.mxu0 0
        %1869 = vmatpush1.bf16.msra.mxu0 0
        %1870 = vmatprep.subr.bf16.mxu0 0
        %1871 = vmatpush1.bf16.msra.mxu0 0
        %1872 = vmatprep.subr.bf16.mxu0 0
        %1873 = vmatpush1.bf16.msra.mxu0 0
        %1874 = vmatprep.subr.bf16.mxu0 0
        %1875 = vmatpush1.bf16.msra.mxu0 0
        %1876 = vmatprep.subr.bf16.mxu0 0
        %1877 = vmatpush1.bf16.msra.mxu0 0
        %1878 = vmatprep.subr.bf16.mxu0 0
        %1879 = vmatpush1.bf16.msra.mxu0 0
        %1880 = vmatprep.mubr.bf16.mxu0 0
        %1881 = vmatmul.mubr.bf16.gmra.mrb[0].mxu0 %v1338
        %v1882 = vpop.f32.mrb[0].mxu0
        %v1883 = vadd.f32 0.0, %v1882
        %v1884 = vpop.f32.mrb[0].mxu0
        %v1885 = vpop.f32.mrb[0].mxu0
        %v1886 = vadd.f32 0.0, %v1885
        %v1887 = vpop.f32.mrb[0].mxu0
        %1888 = vmatprep.mubr.bf16.mxu0 0
        %1889 = vmatmul.mubr.bf16.gmra.mrb[0].mxu0 %v1341
        %v1890 = vpop.f32.mrb[0].mxu0
        %v1891 = vadd.f32 0.0, %v1890
        %v1892 = vpop.f32.mrb[0].mxu0
        %v1893 = vpop.f32.mrb[0].mxu0
        %v1894 = vadd.f32 0.0, %v1893
        %v1895 = vpop.f32.mrb[0].mxu0
        %1896 = vmatprep.mubr.bf16.mxu0 0
        %1897 = vmatmul.mubr.bf16.gmra.mrb[0].mxu0 %v1344
        %v1898 = vpop.f32.mrb[0].mxu0
        %v1899 = vadd.f32 0.0, %v1898
        %v1900 = vpop.f32.mrb[0].mxu0
        %v1901 = vpop.f32.mrb[0].mxu0
        %v1902 = vadd.f32 0.0, %v1901
        %v1903 = vpop.f32.mrb[0].mxu0
        %1904 = vmatprep.mubr.bf16.mxu0 0
        %1905 = vmatmul.mubr.bf16.gmra.mrb[0].mxu0 %v1347
        %v1906 = vpop.f32.mrb[0].mxu0
        %v1907 = vadd.f32 0.0, %v1906
        %v1908 = vpop.f32.mrb[0].mxu0
        %v1909 = vpop.f32.mrb[0].mxu0
        %v1910 = vadd.f32 0.0, %v1909
        %v1911 = vpop.f32.mrb[0].mxu0
        %1912 = vdwg.mxu0
        %v1913 = vpack.c.bf16 %v1886, %v1883
        %v1914 = vpack.c.bf16 %v1894, %v1891
        %v1915 = vpack.c.bf16 %v1902, %v1899
        %v1916 = vpack.c.bf16 %v1910, %v1907
        %1917 = vmatprep.subr.bf16.mxu0 0
        %1918 = vmatpush1.bf16.msra.mxu0 %v1836
        %1919 = vmatprep.subr.bf16.mxu0 0
        %1920 = vmatpush1.bf16.msra.mxu0 %v1837
        %1921 = vmatprep.subr.bf16.mxu0 0
        %1922 = vmatpush1.bf16.msra.mxu0 %v1838
        %1923 = vmatprep.subr.bf16.mxu0 0
        %1924 = vmatpush1.bf16.msra.mxu0 %v1839
        %1925 = vmatprep.subr.bf16.mxu0 0
        %1926 = vmatpush1.bf16.msra.mxu0 0
        %1927 = vmatprep.subr.bf16.mxu0 0
        %1928 = vmatpush1.bf16.msra.mxu0 0
        %1929 = vmatprep.subr.bf16.mxu0 0
        %1930 = vmatpush1.bf16.msra.mxu0 0
        %1931 = vmatprep.subr.bf16.mxu0 0
        %1932 = vmatpush1.bf16.msra.mxu0 0
        %1933 = vmatprep.subr.bf16.mxu0 0
        %1934 = vmatpush1.bf16.msra.mxu0 0
        %1935 = vmatprep.subr.bf16.mxu0 0
        %1936 = vmatpush1.bf16.msra.mxu0 0
        %1937 = vmatprep.subr.bf16.mxu0 0
        %1938 = vmatpush1.bf16.msra.mxu0 0
        %1939 = vmatprep.subr.bf16.mxu0 0
        %1940 = vmatpush1.bf16.msra.mxu0 0
        %1941 = vmatprep.subr.bf16.mxu0 0
        %1942 = vmatpush1.bf16.msra.mxu0 0
        %1943 = vmatprep.subr.bf16.mxu0 0
        %1944 = vmatpush1.bf16.msra.mxu0 0
        %1945 = vmatprep.subr.bf16.mxu0 0
        %1946 = vmatpush1.bf16.msra.mxu0 0
        %1947 = vmatprep.subr.bf16.mxu0 0
        %1948 = vmatpush1.bf16.msra.mxu0 0
        %1949 = vmatprep.mubr.bf16.mxu0 0
        %1950 = vmatmul.mubr.bf16.gmra.mrb[0].mxu0 %v1419
        %v1951 = vpop.f32.mrb[0].mxu0
        %v1952 = vadd.f32 0.0, %v1951
        %v1953 = vpop.f32.mrb[0].mxu0
        %v1954 = vpop.f32.mrb[0].mxu0
        %v1955 = vadd.f32 0.0, %v1954
        %v1956 = vpop.f32.mrb[0].mxu0
        %1957 = vmatprep.mubr.bf16.mxu0 0
        %1958 = vmatmul.mubr.bf16.gmra.mrb[0].mxu0 %v1422
        %v1959 = vpop.f32.mrb[0].mxu0
        %v1960 = vadd.f32 0.0, %v1959
        %v1961 = vpop.f32.mrb[0].mxu0
        %v1962 = vpop.f32.mrb[0].mxu0
        %v1963 = vadd.f32 0.0, %v1962
        %v1964 = vpop.f32.mrb[0].mxu0
        %1965 = vmatprep.mubr.bf16.mxu0 0
        %1966 = vmatmul.mubr.bf16.gmra.mrb[0].mxu0 %v1425
        %v1967 = vpop.f32.mrb[0].mxu0
        %v1968 = vadd.f32 0.0, %v1967
        %v1969 = vpop.f32.mrb[0].mxu0
        %v1970 = vpop.f32.mrb[0].mxu0
        %v1971 = vadd.f32 0.0, %v1970
        %v1972 = vpop.f32.mrb[0].mxu0
        %1973 = vmatprep.mubr.bf16.mxu0 0
        %1974 = vmatmul.mubr.bf16.gmra.mrb[0].mxu0 %v1428
        %v1975 = vpop.f32.mrb[0].mxu0
        %v1976 = vadd.f32 0.0, %v1975
        %v1977 = vpop.f32.mrb[0].mxu0
        %v1978 = vpop.f32.mrb[0].mxu0
        %v1979 = vadd.f32 0.0, %v1978
        %v1980 = vpop.f32.mrb[0].mxu0
        %1981 = vdwg.mxu0
        %v1982 = vpack.c.bf16 %v1955, %v1952
        %v1983 = vpack.c.bf16 %v1963, %v1960
        %v1984 = vpack.c.bf16 %v1971, %v1968
        %v1985 = vpack.c.bf16 %v1979, %v1976
        %v1986 = vld [vmem:[#allocation9] sm:$0xf]
        %v1987 = vld [vmem:[#allocation9 + $0x4] sm:$0xf]
        %v1988 = vld [vmem:[#allocation9 + $0x8] sm:$0xf]
        %v1989 = vld [vmem:[#allocation9 + $0xc] sm:$0xf]
        %v1990 = vld [vmem:[#allocation9 + $0x10] sm:$0xf]
        %v1991 = vld [vmem:[#allocation9 + $0x14] sm:$0xf]
        %v1992 = vld [vmem:[#allocation9 + $0x18] sm:$0xf]
        %v1993 = vld [vmem:[#allocation9 + $0x1c] sm:$0xf]
        %v1994 = vld [vmem:[#allocation9 + $0x20] sm:$0xf]
        %v1995 = vld [vmem:[#allocation9 + $0x24] sm:$0xf]
        %v1996 = vld [vmem:[#allocation9 + $0x28] sm:$0xf]
        %v1997 = vld [vmem:[#allocation9 + $0x2c] sm:$0xf]
        %v1998 = vld [vmem:[#allocation9 + $0x30] sm:$0xf]
        %v1999 = vld [vmem:[#allocation9 + $0x34] sm:$0xf]
        %v2000 = vld [vmem:[#allocation9 + $0x38] sm:$0xf]
        %v2001 = vld [vmem:[#allocation9 + $0x3c] sm:$0xf]
        %v2002 = vld [vmem:[#allocation9 + $0x40] sm:$0xf]
        %v2003 = vld [vmem:[#allocation9 + $0x44] sm:$0xf]
        %v2004 = vld [vmem:[#allocation9 + $0x48] sm:$0xf]
        %v2005 = vld [vmem:[#allocation9 + $0x4c] sm:$0xf]
        %v2006 = vld [vmem:[#allocation9 + $0x50] sm:$0xf]
        %v2007 = vld [vmem:[#allocation9 + $0x54] sm:$0xf]
        %v2008 = vld [vmem:[#allocation9 + $0x58] sm:$0xf]
        %v2009 = vld [vmem:[#allocation9 + $0x5c] sm:$0xf]
        %v2010 = vld [vmem:[#allocation9 + $0x60] sm:$0xf]
        %v2011 = vld [vmem:[#allocation9 + $0x64] sm:$0xf]
        %v2012 = vld [vmem:[#allocation9 + $0x68] sm:$0xf]
        %v2013 = vld [vmem:[#allocation9 + $0x6c] sm:$0xf]
        %v2014 = vld [vmem:[#allocation9 + $0x70] sm:$0xf]
        %v2015 = vld [vmem:[#allocation9 + $0x74] sm:$0xf]
        %v2016 = vld [vmem:[#allocation9 + $0x78] sm:$0xf]
        %v2017 = vld [vmem:[#allocation9 + $0x7c] sm:$0xf]
        %v2018 = vld [vmem:[#allocation9 + $0x80] sm:$0xf]
        %v2019 = vld [vmem:[#allocation9 + $0x84] sm:$0xf]
        %v2020 = vld [vmem:[#allocation9 + $0x88] sm:$0xf]
        %v2021 = vld [vmem:[#allocation9 + $0x8c] sm:$0xf]
        %v2022 = vld [vmem:[#allocation9 + $0x90] sm:$0xf]
        %v2023 = vld [vmem:[#allocation9 + $0x94] sm:$0xf]
        %v2024 = vld [vmem:[#allocation9 + $0x98] sm:$0xf]
        %v2025 = vld [vmem:[#allocation9 + $0x9c] sm:$0xf]
        %v2026 = vld [vmem:[#allocation9 + $0xa0] sm:$0xf]
        %v2027 = vld [vmem:[#allocation9 + $0xa4] sm:$0xf]
        %v2028 = vld [vmem:[#allocation9 + $0xa8] sm:$0xf]
        %v2029 = vld [vmem:[#allocation9 + $0xac] sm:$0xf]
        %v2030 = vld [vmem:[#allocation9 + $0xb0] sm:$0xf]
        %v2031 = vld [vmem:[#allocation9 + $0xb4] sm:$0xf]
        %v2032 = vld [vmem:[#allocation9 + $0xb8] sm:$0xf]
        %v2033 = vld [vmem:[#allocation9 + $0xbc] sm:$0xf]
        %v2034 = vld [vmem:[#allocation10] sm:$0x1]
        %v2036 = vlaneseq
        %v2037 = vshrl.u32 %v2036, 7
        %v2038 = vsub.s32 0, %v2037
        %v2039 = vrot.slane %v2034, %v2038
        %v2089 = vunpack.c.l.b16 %v1986
        %v2090 = vunpack.c.l.b16 %v1987
        %v2091 = vunpack.c.l.b16 %v1988
        %v2092 = vunpack.c.l.b16 %v1989
        %v2093 = vunpack.c.l.b16 %v1990
        %v2094 = vunpack.c.l.b16 %v1991
        %v2095 = vunpack.c.l.b16 %v1992
        %v2096 = vunpack.c.l.b16 %v1993
        %v2097 = vunpack.c.l.b16 %v1994
        %v2098 = vunpack.c.l.b16 %v1995
        %v2099 = vunpack.c.l.b16 %v1996
        %v2100 = vunpack.c.l.b16 %v1997
        %v2101 = vunpack.c.l.b16 %v1998
        %v2102 = vunpack.c.l.b16 %v1999
        %v2103 = vunpack.c.l.b16 %v2000
        %v2104 = vunpack.c.l.b16 %v2001
        %v2105 = vunpack.c.l.b16 %v2002
        %v2106 = vunpack.c.l.b16 %v2003
        %v2107 = vunpack.c.l.b16 %v2004
        %v2108 = vunpack.c.l.b16 %v2005
        %v2109 = vunpack.c.l.b16 %v2006
        %v2110 = vunpack.c.l.b16 %v2007
        %v2111 = vunpack.c.l.b16 %v2008
        %v2112 = vunpack.c.l.b16 %v2009
        %v2113 = vunpack.c.l.b16 %v2010
        %v2114 = vunpack.c.l.b16 %v2011
        %v2115 = vunpack.c.l.b16 %v2012
        %v2116 = vunpack.c.l.b16 %v2013
        %v2117 = vunpack.c.l.b16 %v2014
        %v2118 = vunpack.c.l.b16 %v2015
        %v2119 = vunpack.c.l.b16 %v2016
        %v2120 = vunpack.c.l.b16 %v2017
        %v2121 = vunpack.c.l.b16 %v2018
        %v2122 = vunpack.c.l.b16 %v2019
        %v2123 = vunpack.c.l.b16 %v2020
        %v2124 = vunpack.c.l.b16 %v2021
        %v2125 = vunpack.c.l.b16 %v2022
        %v2126 = vunpack.c.l.b16 %v2023
        %v2127 = vunpack.c.l.b16 %v2024
        %v2128 = vunpack.c.l.b16 %v2025
        %v2129 = vunpack.c.l.b16 %v2026
        %v2130 = vunpack.c.l.b16 %v2027
        %v2131 = vunpack.c.l.b16 %v2028
        %v2132 = vunpack.c.l.b16 %v2029
        %v2133 = vunpack.c.l.b16 %v2030
        %v2134 = vunpack.c.l.b16 %v2031
        %v2135 = vunpack.c.l.b16 %v2032
        %v2136 = vunpack.c.l.b16 %v2033
        %v2137 = vpack.c.b16 %v2090, %v2089
        %v2138 = vpack.c.b16 %v2092, %v2091
        %v2139 = vpack.c.b16 %v2094, %v2093
        %v2140 = vpack.c.b16 %v2096, %v2095
        %v2141 = vpack.c.b16 %v2098, %v2097
        %v2142 = vpack.c.b16 %v2100, %v2099
        %v2143 = vpack.c.b16 %v2102, %v2101
        %v2144 = vpack.c.b16 %v2104, %v2103
        %v2145 = vpack.c.b16 %v2106, %v2105
        %v2146 = vpack.c.b16 %v2108, %v2107
        %v2147 = vpack.c.b16 %v2110, %v2109
        %v2148 = vpack.c.b16 %v2112, %v2111
        %v2149 = vpack.c.b16 %v2114, %v2113
        %v2150 = vpack.c.b16 %v2116, %v2115
        %v2151 = vpack.c.b16 %v2118, %v2117
        %v2152 = vpack.c.b16 %v2120, %v2119
        %v2153 = vpack.c.b16 %v2122, %v2121
        %v2154 = vpack.c.b16 %v2124, %v2123
        %v2155 = vpack.c.b16 %v2126, %v2125
        %v2156 = vpack.c.b16 %v2128, %v2127
        %v2157 = vpack.c.b16 %v2130, %v2129
        %v2158 = vpack.c.b16 %v2132, %v2131
        %v2159 = vpack.c.b16 %v2134, %v2133
        %v2160 = vpack.c.b16 %v2136, %v2135
        %2185 = vmatprep.subr.bf16.mxu0 0
        %2186 = vmatpush1.bf16.msra.mxu0 %v2137
        %2187 = vmatprep.subr.bf16.mxu0 0
        %2188 = vmatpush1.bf16.msra.mxu0 %v2138
        %2189 = vmatprep.subr.bf16.mxu0 0
        %2190 = vmatpush1.bf16.msra.mxu0 %v2139
        %2191 = vmatprep.subr.bf16.mxu0 0
        %2192 = vmatpush1.bf16.msra.mxu0 %v2140
        %2193 = vmatprep.subr.bf16.mxu0 0
        %2194 = vmatpush1.bf16.msra.mxu0 %v2141
        %2195 = vmatprep.subr.bf16.mxu0 0
        %2196 = vmatpush1.bf16.msra.mxu0 %v2142
        %2197 = vmatprep.subr.bf16.mxu0 0
        %2198 = vmatpush1.bf16.msra.mxu0 %v2143
        %2199 = vmatprep.subr.bf16.mxu0 0
        %2200 = vmatpush1.bf16.msra.mxu0 %v2144
        %2201 = vmatprep.subr.bf16.mxu0 0
        %2202 = vmatpush1.bf16.msra.mxu0 %v2145
        %2203 = vmatprep.subr.bf16.mxu0 0
        %2204 = vmatpush1.bf16.msra.mxu0 %v2146
        %2205 = vmatprep.subr.bf16.mxu0 0
        %2206 = vmatpush1.bf16.msra.mxu0 %v2147
        %2207 = vmatprep.subr.bf16.mxu0 0
        %2208 = vmatpush1.bf16.msra.mxu0 %v2148
        %2209 = vmatprep.subr.bf16.mxu0 0
        %2210 = vmatpush1.bf16.msra.mxu0 %v2149
        %2211 = vmatprep.subr.bf16.mxu0 0
        %2212 = vmatpush1.bf16.msra.mxu0 %v2150
        %2213 = vmatprep.subr.bf16.mxu0 0
        %2214 = vmatpush1.bf16.msra.mxu0 %v2151
        %2215 = vmatprep.subr.bf16.mxu0 0
        %2216 = vmatpush1.bf16.msra.mxu0 %v2152
        %2217 = vmatprep.mubr.bf16.mxu0 %v1836
        %2218 = vmatmul.mubr.bf16.gmra.mrb[0].mxu0 %v1913
        %v2219 = vpop.f32.mrb[0].mxu0
        %v2220 = vadd.f32 %v2039, %v2219
        %v2221 = vpop.f32.mrb[0].mxu0
        %v2222 = vpop.f32.mrb[0].mxu0
        %v2223 = vadd.f32 %v2039, %v2222
        %v2224 = vpop.f32.mrb[0].mxu0
        %2225 = vmatprep.mubr.bf16.mxu0 %v1837
        %2226 = vmatmul.mubr.bf16.gmra.mrb[0].mxu0 %v1914
        %v2227 = vpop.f32.mrb[0].mxu0
        %v2228 = vadd.f32 %v2039, %v2227
        %v2229 = vpop.f32.mrb[0].mxu0
        %v2230 = vpop.f32.mrb[0].mxu0
        %v2231 = vadd.f32 %v2039, %v2230
        %v2232 = vpop.f32.mrb[0].mxu0
        %2233 = vmatprep.mubr.bf16.mxu0 %v1838
        %2234 = vmatmul.mubr.bf16.gmra.mrb[0].mxu0 %v1915
        %v2235 = vpop.f32.mrb[0].mxu0
        %v2236 = vadd.f32 %v2039, %v2235
        %v2237 = vpop.f32.mrb[0].mxu0
        %v2238 = vpop.f32.mrb[0].mxu0
        %v2239 = vadd.f32 %v2039, %v2238
        %v2240 = vpop.f32.mrb[0].mxu0
        %2241 = vmatprep.mubr.bf16.mxu0 %v1839
        %2242 = vmatmul.mubr.bf16.gmra.mrb[0].mxu0 %v1916
        %v2243 = vpop.f32.mrb[0].mxu0
        %v2244 = vadd.f32 %v2039, %v2243
        %v2245 = vpop.f32.mrb[0].mxu0
        %v2246 = vpop.f32.mrb[0].mxu0
        %v2247 = vadd.f32 %v2039, %v2246
        %v2248 = vpop.f32.mrb[0].mxu0
        %2249 = vdwg.mxu0
        %2250 = vmatprep.subr.bf16.mxu0 0
        %2251 = vmatpush1.bf16.msra.mxu0 %v2153
        %2252 = vmatprep.subr.bf16.mxu0 0
        %2253 = vmatpush1.bf16.msra.mxu0 %v2154
        %2254 = vmatprep.subr.bf16.mxu0 0
        %2255 = vmatpush1.bf16.msra.mxu0 %v2155
        %2256 = vmatprep.subr.bf16.mxu0 0
        %2257 = vmatpush1.bf16.msra.mxu0 %v2156
        %2258 = vmatprep.subr.bf16.mxu0 0
        %2259 = vmatpush1.bf16.msra.mxu0 %v2157
        %2260 = vmatprep.subr.bf16.mxu0 0
        %2261 = vmatpush1.bf16.msra.mxu0 %v2158
        %2262 = vmatprep.subr.bf16.mxu0 0
        %2263 = vmatpush1.bf16.msra.mxu0 %v2159
        %2264 = vmatprep.subr.bf16.mxu0 0
        %2265 = vmatpush1.bf16.msra.mxu0 %v2160
        %2266 = vmatprep.subr.bf16.mxu0 0
        %2267 = vmatpush1.bf16.msra.mxu0 0
        %2268 = vmatprep.subr.bf16.mxu0 0
        %2269 = vmatpush1.bf16.msra.mxu0 0
        %2270 = vmatprep.subr.bf16.mxu0 0
        %2271 = vmatpush1.bf16.msra.mxu0 0
        %2272 = vmatprep.subr.bf16.mxu0 0
        %2273 = vmatpush1.bf16.msra.mxu0 0
        %2274 = vmatprep.subr.bf16.mxu0 0
        %2275 = vmatpush1.bf16.msra.mxu0 0
        %2276 = vmatprep.subr.bf16.mxu0 0
        %2277 = vmatpush1.bf16.msra.mxu0 0
        %2278 = vmatprep.subr.bf16.mxu0 0
        %2279 = vmatpush1.bf16.msra.mxu0 0
        %2280 = vmatprep.subr.bf16.mxu0 0
        %2281 = vmatpush1.bf16.msra.mxu0 0
        %2282 = vmatprep.mubr.bf16.mxu0 0
        %2283 = vmatmul.mubr.bf16.gmra.mrb[0].mxu0 %v1982
        %v2284 = vpop.f32.mrb[0].mxu0
        %v2285 = vadd.f32 %v2220, %v2284
        %v2286 = vpop.f32.mrb[0].mxu0
        %v2287 = vpop.f32.mrb[0].mxu0
        %v2288 = vadd.f32 %v2223, %v2287
        %v2289 = vpop.f32.mrb[0].mxu0
        %2290 = vmatprep.mubr.bf16.mxu0 0
        %2291 = vmatmul.mubr.bf16.gmra.mrb[0].mxu0 %v1983
        %v2292 = vpop.f32.mrb[0].mxu0
        %v2293 = vadd.f32 %v2228, %v2292
        %v2294 = vpop.f32.mrb[0].mxu0
        %v2295 = vpop.f32.mrb[0].mxu0
        %v2296 = vadd.f32 %v2231, %v2295
        %v2297 = vpop.f32.mrb[0].mxu0
        %2298 = vmatprep.mubr.bf16.mxu0 0
        %2299 = vmatmul.mubr.bf16.gmra.mrb[0].mxu0 %v1984
        %v2300 = vpop.f32.mrb[0].mxu0
        %v2301 = vadd.f32 %v2236, %v2300
        %v2302 = vpop.f32.mrb[0].mxu0
        %v2303 = vpop.f32.mrb[0].mxu0
        %v2304 = vadd.f32 %v2239, %v2303
        %v2305 = vpop.f32.mrb[0].mxu0
        %2306 = vmatprep.mubr.bf16.mxu0 0
        %2307 = vmatmul.mubr.bf16.gmra.mrb[0].mxu0 %v1985
        %v2308 = vpop.f32.mrb[0].mxu0
        %v2309 = vadd.f32 %v2244, %v2308
        %v2310 = vpop.f32.mrb[0].mxu0
        %v2311 = vpop.f32.mrb[0].mxu0
        %v2312 = vadd.f32 %v2247, %v2311
        %v2313 = vpop.f32.mrb[0].mxu0
        %2314 = vdwg.mxu0
        %v2315 = vadd.f32 %v2285, %v1840
        %v2316 = vadd.f32 %v2288, %v1841
        %v2317 = vadd.f32 %v2293, %v1842
        %v2318 = vadd.f32 %v2296, %v1843
        %v2319 = vadd.f32 %v2301, %v1844
        %v2320 = vadd.f32 %v2304, %v1845
        %v2321 = vadd.f32 %v2309, %v1846
        %v2322 = vadd.f32 %v2312, %v1847
        %v2323 = vmax.f32 %v2315, 0.0
        %v2324 = vmax.f32 %v2316, 0.0
        %v2325 = vmax.f32 %v2317, 0.0
        %v2326 = vmax.f32 %v2318, 0.0
        %v2327 = vmax.f32 %v2319, 0.0
        %v2328 = vmax.f32 %v2320, 0.0
        %v2329 = vmax.f32 %v2321, 0.0
        %v2330 = vmax.f32 %v2322, 0.0
        %v2331 = vpack.c.bf16 %v2324, %v2323
        %v2332 = vpack.c.bf16 %v2326, %v2325
        %v2333 = vpack.c.bf16 %v2328, %v2327
        %v2334 = vpack.c.bf16 %v2330, %v2329
        %2335 = vmatprep.subr.bf16.mxu0 0
        %2336 = vmatpush1.bf16.msra.mxu0 %v2331
        %2337 = vmatprep.subr.bf16.mxu0 0
        %2338 = vmatpush1.bf16.msra.mxu0 %v2332
        %2339 = vmatprep.subr.bf16.mxu0 0
        %2340 = vmatpush1.bf16.msra.mxu0 %v2333
        %2341 = vmatprep.subr.bf16.mxu0 0
        %2342 = vmatpush1.bf16.msra.mxu0 %v2334
        %2343 = vmatprep.subr.bf16.mxu0 0
        %2344 = vmatpush1.bf16.msra.mxu0 0
        %2345 = vmatprep.subr.bf16.mxu0 0
        %2346 = vmatpush1.bf16.msra.mxu0 0
        %2347 = vmatprep.subr.bf16.mxu0 0
        %2348 = vmatpush1.bf16.msra.mxu0 0
        %2349 = vmatprep.subr.bf16.mxu0 0
        %2350 = vmatpush1.bf16.msra.mxu0 0
        %2351 = vmatprep.subr.bf16.mxu0 0
        %2352 = vmatpush1.bf16.msra.mxu0 0
        %2353 = vmatprep.subr.bf16.mxu0 0
        %2354 = vmatpush1.bf16.msra.mxu0 0
        %2355 = vmatprep.subr.bf16.mxu0 0
        %2356 = vmatpush1.bf16.msra.mxu0 0
        %2357 = vmatprep.subr.bf16.mxu0 0
        %2358 = vmatpush1.bf16.msra.mxu0 0
        %2359 = vmatprep.subr.bf16.mxu0 0
        %2360 = vmatpush1.bf16.msra.mxu0 0
        %2361 = vmatprep.subr.bf16.mxu0 0
        %2362 = vmatpush1.bf16.msra.mxu0 0
        %2363 = vmatprep.subr.bf16.mxu0 0
        %2364 = vmatpush1.bf16.msra.mxu0 0
        %2365 = vmatprep.subr.bf16.mxu0 0
        %2366 = vmatpush1.bf16.msra.mxu0 0
        %2367 = vmatprep.mubr.bf16.mxu0 0
        %2368 = vmatmul.mubr.bf16.gmra.mrb[0].mxu0 %v1338
        %v2369 = vpop.f32.mrb[0].mxu0
        %v2370 = vadd.f32 0.0, %v2369
        %v2371 = vpop.f32.mrb[0].mxu0
        %v2372 = vpop.f32.mrb[0].mxu0
        %v2373 = vadd.f32 0.0, %v2372
        %v2374 = vpop.f32.mrb[0].mxu0
        %2375 = vmatprep.mubr.bf16.mxu0 0
        %2376 = vmatmul.mubr.bf16.gmra.mrb[0].mxu0 %v1341
        %v2377 = vpop.f32.mrb[0].mxu0
        %v2378 = vadd.f32 0.0, %v2377
        %v2379 = vpop.f32.mrb[0].mxu0
        %v2380 = vpop.f32.mrb[0].mxu0
        %v2381 = vadd.f32 0.0, %v2380
        %v2382 = vpop.f32.mrb[0].mxu0
        %2383 = vmatprep.mubr.bf16.mxu0 0
        %2384 = vmatmul.mubr.bf16.gmra.mrb[0].mxu0 %v1344
        %v2385 = vpop.f32.mrb[0].mxu0
        %v2386 = vadd.f32 0.0, %v2385
        %v2387 = vpop.f32.mrb[0].mxu0
        %v2388 = vpop.f32.mrb[0].mxu0
        %v2389 = vadd.f32 0.0, %v2388
        %v2390 = vpop.f32.mrb[0].mxu0
        %2391 = vmatprep.mubr.bf16.mxu0 0
        %2392 = vmatmul.mubr.bf16.gmra.mrb[0].mxu0 %v1347
        %v2393 = vpop.f32.mrb[0].mxu0
        %v2394 = vadd.f32 0.0, %v2393
        %v2395 = vpop.f32.mrb[0].mxu0
        %v2396 = vpop.f32.mrb[0].mxu0
        %v2397 = vadd.f32 0.0, %v2396
        %v2398 = vpop.f32.mrb[0].mxu0
        %2399 = vdwg.mxu0
        %v2400 = vpack.c.bf16 %v2373, %v2370
        %v2401 = vpack.c.bf16 %v2381, %v2378
        %v2402 = vpack.c.bf16 %v2389, %v2386
        %v2403 = vpack.c.bf16 %v2397, %v2394
        %2404 = vmatprep.subr.bf16.mxu0 0
        %2405 = vmatpush1.bf16.msra.mxu0 %v2331
        %2406 = vmatprep.subr.bf16.mxu0 0
        %2407 = vmatpush1.bf16.msra.mxu0 %v2332
        %2408 = vmatprep.subr.bf16.mxu0 0
        %2409 = vmatpush1.bf16.msra.mxu0 %v2333
        %2410 = vmatprep.subr.bf16.mxu0 0
        %2411 = vmatpush1.bf16.msra.mxu0 %v2334
        %2412 = vmatprep.subr.bf16.mxu0 0
        %2413 = vmatpush1.bf16.msra.mxu0 0
        %2414 = vmatprep.subr.bf16.mxu0 0
        %2415 = vmatpush1.bf16.msra.mxu0 0
        %2416 = vmatprep.subr.bf16.mxu0 0
        %2417 = vmatpush1.bf16.msra.mxu0 0
        %2418 = vmatprep.subr.bf16.mxu0 0
        %2419 = vmatpush1.bf16.msra.mxu0 0
        %2420 = vmatprep.subr.bf16.mxu0 0
        %2421 = vmatpush1.bf16.msra.mxu0 0
        %2422 = vmatprep.subr.bf16.mxu0 0
        %2423 = vmatpush1.bf16.msra.mxu0 0
        %2424 = vmatprep.subr.bf16.mxu0 0
        %2425 = vmatpush1.bf16.msra.mxu0 0
        %2426 = vmatprep.subr.bf16.mxu0 0
        %2427 = vmatpush1.bf16.msra.mxu0 0
        %2428 = vmatprep.subr.bf16.mxu0 0
        %2429 = vmatpush1.bf16.msra.mxu0 0
        %2430 = vmatprep.subr.bf16.mxu0 0
        %2431 = vmatpush1.bf16.msra.mxu0 0
        %2432 = vmatprep.subr.bf16.mxu0 0
        %2433 = vmatpush1.bf16.msra.mxu0 0
        %2434 = vmatprep.subr.bf16.mxu0 0
        %2435 = vmatpush1.bf16.msra.mxu0 0
        %2436 = vmatprep.mubr.bf16.mxu0 0
        %2437 = vmatmul.mubr.bf16.gmra.mrb[0].mxu0 %v1419
        %v2438 = vpop.f32.mrb[0].mxu0
        %v2439 = vadd.f32 0.0, %v2438
        %v2440 = vpop.f32.mrb[0].mxu0
        %v2441 = vpop.f32.mrb[0].mxu0
        %v2442 = vadd.f32 0.0, %v2441
        %v2443 = vpop.f32.mrb[0].mxu0
        %2444 = vmatprep.mubr.bf16.mxu0 0
        %2445 = vmatmul.mubr.bf16.gmra.mrb[0].mxu0 %v1422
        %v2446 = vpop.f32.mrb[0].mxu0
        %v2447 = vadd.f32 0.0, %v2446
        %v2448 = vpop.f32.mrb[0].mxu0
        %v2449 = vpop.f32.mrb[0].mxu0
        %v2450 = vadd.f32 0.0, %v2449
        %v2451 = vpop.f32.mrb[0].mxu0
        %2452 = vmatprep.mubr.bf16.mxu0 0
        %2453 = vmatmul.mubr.bf16.gmra.mrb[0].mxu0 %v1425
        %v2454 = vpop.f32.mrb[0].mxu0
        %v2455 = vadd.f32 0.0, %v2454
        %v2456 = vpop.f32.mrb[0].mxu0
        %v2457 = vpop.f32.mrb[0].mxu0
        %v2458 = vadd.f32 0.0, %v2457
        %v2459 = vpop.f32.mrb[0].mxu0
        %2460 = vmatprep.mubr.bf16.mxu0 0
        %2461 = vmatmul.mubr.bf16.gmra.mrb[0].mxu0 %v1428
        %v2462 = vpop.f32.mrb[0].mxu0
        %v2463 = vadd.f32 0.0, %v2462
        %v2464 = vpop.f32.mrb[0].mxu0
        %v2465 = vpop.f32.mrb[0].mxu0
        %v2466 = vadd.f32 0.0, %v2465
        %v2467 = vpop.f32.mrb[0].mxu0
        %2468 = vdwg.mxu0
        %v2469 = vpack.c.bf16 %v2442, %v2439
        %v2470 = vpack.c.bf16 %v2450, %v2447
        %v2471 = vpack.c.bf16 %v2458, %v2455
        %v2472 = vpack.c.bf16 %v2466, %v2463
        %v2473 = vld [vmem:[#allocation12] sm:$0xf]
        %v2474 = vld [vmem:[#allocation12 + $0x4] sm:$0xf]
        %v2475 = vld [vmem:[#allocation12 + $0x8] sm:$0xf]
        %v2476 = vld [vmem:[#allocation12 + $0xc] sm:$0xf]
        %v2477 = vld [vmem:[#allocation12 + $0x10] sm:$0xf]
        %v2478 = vld [vmem:[#allocation12 + $0x14] sm:$0xf]
        %v2479 = vld [vmem:[#allocation12 + $0x18] sm:$0xf]
        %v2480 = vld [vmem:[#allocation12 + $0x1c] sm:$0xf]
        %v2481 = vld [vmem:[#allocation12 + $0x20] sm:$0xf]
        %v2482 = vld [vmem:[#allocation12 + $0x24] sm:$0xf]
        %v2483 = vld [vmem:[#allocation12 + $0x28] sm:$0xf]
        %v2484 = vld [vmem:[#allocation12 + $0x2c] sm:$0xf]
        %v2485 = vld [vmem:[#allocation12 + $0x30] sm:$0xf]
        %v2486 = vld [vmem:[#allocation12 + $0x34] sm:$0xf]
        %v2487 = vld [vmem:[#allocation12 + $0x38] sm:$0xf]
        %v2488 = vld [vmem:[#allocation12 + $0x3c] sm:$0xf]
        %v2489 = vld [vmem:[#allocation12 + $0x40] sm:$0xf]
        %v2490 = vld [vmem:[#allocation12 + $0x44] sm:$0xf]
        %v2491 = vld [vmem:[#allocation12 + $0x48] sm:$0xf]
        %v2492 = vld [vmem:[#allocation12 + $0x4c] sm:$0xf]
        %v2493 = vld [vmem:[#allocation12 + $0x50] sm:$0xf]
        %v2494 = vld [vmem:[#allocation12 + $0x54] sm:$0xf]
        %v2495 = vld [vmem:[#allocation12 + $0x58] sm:$0xf]
        %v2496 = vld [vmem:[#allocation12 + $0x5c] sm:$0xf]
        %v2497 = vld [vmem:[#allocation12 + $0x60] sm:$0xf]
        %v2498 = vld [vmem:[#allocation12 + $0x64] sm:$0xf]
        %v2499 = vld [vmem:[#allocation12 + $0x68] sm:$0xf]
        %v2500 = vld [vmem:[#allocation12 + $0x6c] sm:$0xf]
        %v2501 = vld [vmem:[#allocation12 + $0x70] sm:$0xf]
        %v2502 = vld [vmem:[#allocation12 + $0x74] sm:$0xf]
        %v2503 = vld [vmem:[#allocation12 + $0x78] sm:$0xf]
        %v2504 = vld [vmem:[#allocation12 + $0x7c] sm:$0xf]
        %v2505 = vld [vmem:[#allocation12 + $0x80] sm:$0xf]
        %v2506 = vld [vmem:[#allocation12 + $0x84] sm:$0xf]
        %v2507 = vld [vmem:[#allocation12 + $0x88] sm:$0xf]
        %v2508 = vld [vmem:[#allocation12 + $0x8c] sm:$0xf]
        %v2509 = vld [vmem:[#allocation12 + $0x90] sm:$0xf]
        %v2510 = vld [vmem:[#allocation12 + $0x94] sm:$0xf]
        %v2511 = vld [vmem:[#allocation12 + $0x98] sm:$0xf]
        %v2512 = vld [vmem:[#allocation12 + $0x9c] sm:$0xf]
        %v2513 = vld [vmem:[#allocation12 + $0xa0] sm:$0xf]
        %v2514 = vld [vmem:[#allocation12 + $0xa4] sm:$0xf]
        %v2515 = vld [vmem:[#allocation12 + $0xa8] sm:$0xf]
        %v2516 = vld [vmem:[#allocation12 + $0xac] sm:$0xf]
        %v2517 = vld [vmem:[#allocation12 + $0xb0] sm:$0xf]
        %v2518 = vld [vmem:[#allocation12 + $0xb4] sm:$0xf]
        %v2519 = vld [vmem:[#allocation12 + $0xb8] sm:$0xf]
        %v2520 = vld [vmem:[#allocation12 + $0xbc] sm:$0xf]
        %v2521 = vld [vmem:[#allocation13] sm:$0x1]
        %v2523 = vlaneseq
        %v2524 = vshrl.u32 %v2523, 7
        %v2525 = vsub.s32 0, %v2524
        %v2526 = vrot.slane %v2521, %v2525
        %v2576 = vunpack.c.l.b16 %v2473
        %v2577 = vunpack.c.l.b16 %v2474
        %v2578 = vunpack.c.l.b16 %v2475
        %v2579 = vunpack.c.l.b16 %v2476
        %v2580 = vunpack.c.l.b16 %v2477
        %v2581 = vunpack.c.l.b16 %v2478
        %v2582 = vunpack.c.l.b16 %v2479
        %v2583 = vunpack.c.l.b16 %v2480
        %v2584 = vunpack.c.l.b16 %v2481
        %v2585 = vunpack.c.l.b16 %v2482
        %v2586 = vunpack.c.l.b16 %v2483
        %v2587 = vunpack.c.l.b16 %v2484
        %v2588 = vunpack.c.l.b16 %v2485
        %v2589 = vunpack.c.l.b16 %v2486
        %v2590 = vunpack.c.l.b16 %v2487
        %v2591 = vunpack.c.l.b16 %v2488
        %v2592 = vunpack.c.l.b16 %v2489
        %v2593 = vunpack.c.l.b16 %v2490
        %v2594 = vunpack.c.l.b16 %v2491
        %v2595 = vunpack.c.l.b16 %v2492
        %v2596 = vunpack.c.l.b16 %v2493
        %v2597 = vunpack.c.l.b16 %v2494
        %v2598 = vunpack.c.l.b16 %v2495
        %v2599 = vunpack.c.l.b16 %v2496
        %v2600 = vunpack.c.l.b16 %v2497
        %v2601 = vunpack.c.l.b16 %v2498
        %v2602 = vunpack.c.l.b16 %v2499
        %v2603 = vunpack.c.l.b16 %v2500
        %v2604 = vunpack.c.l.b16 %v2501
        %v2605 = vunpack.c.l.b16 %v2502
        %v2606 = vunpack.c.l.b16 %v2503
        %v2607 = vunpack.c.l.b16 %v2504
        %v2608 = vunpack.c.l.b16 %v2505
        %v2609 = vunpack.c.l.b16 %v2506
        %v2610 = vunpack.c.l.b16 %v2507
        %v2611 = vunpack.c.l.b16 %v2508
        %v2612 = vunpack.c.l.b16 %v2509
        %v2613 = vunpack.c.l.b16 %v2510
        %v2614 = vunpack.c.l.b16 %v2511
        %v2615 = vunpack.c.l.b16 %v2512
        %v2616 = vunpack.c.l.b16 %v2513
        %v2617 = vunpack.c.l.b16 %v2514
        %v2618 = vunpack.c.l.b16 %v2515
        %v2619 = vunpack.c.l.b16 %v2516
        %v2620 = vunpack.c.l.b16 %v2517
        %v2621 = vunpack.c.l.b16 %v2518
        %v2622 = vunpack.c.l.b16 %v2519
        %v2623 = vunpack.c.l.b16 %v2520
        %v2624 = vpack.c.b16 %v2577, %v2576
        %v2625 = vpack.c.b16 %v2579, %v2578
        %v2626 = vpack.c.b16 %v2581, %v2580
        %v2627 = vpack.c.b16 %v2583, %v2582
        %v2628 = vpack.c.b16 %v2585, %v2584
        %v2629 = vpack.c.b16 %v2587, %v2586
        %v2630 = vpack.c.b16 %v2589, %v2588
        %v2631 = vpack.c.b16 %v2591, %v2590
        %v2632 = vpack.c.b16 %v2593, %v2592
        %v2633 = vpack.c.b16 %v2595, %v2594
        %v2634 = vpack.c.b16 %v2597, %v2596
        %v2635 = vpack.c.b16 %v2599, %v2598
        %v2636 = vpack.c.b16 %v2601, %v2600
        %v2637 = vpack.c.b16 %v2603, %v2602
        %v2638 = vpack.c.b16 %v2605, %v2604
        %v2639 = vpack.c.b16 %v2607, %v2606
        %v2640 = vpack.c.b16 %v2609, %v2608
        %v2641 = vpack.c.b16 %v2611, %v2610
        %v2642 = vpack.c.b16 %v2613, %v2612
        %v2643 = vpack.c.b16 %v2615, %v2614
        %v2644 = vpack.c.b16 %v2617, %v2616
        %v2645 = vpack.c.b16 %v2619, %v2618
        %v2646 = vpack.c.b16 %v2621, %v2620
        %v2647 = vpack.c.b16 %v2623, %v2622
        %2672 = vmatprep.subr.bf16.mxu0 0
        %2673 = vmatpush1.bf16.msra.mxu0 %v2624
        %2674 = vmatprep.subr.bf16.mxu0 0
        %2675 = vmatpush1.bf16.msra.mxu0 %v2625
        %2676 = vmatprep.subr.bf16.mxu0 0
        %2677 = vmatpush1.bf16.msra.mxu0 %v2626
        %2678 = vmatprep.subr.bf16.mxu0 0
        %2679 = vmatpush1.bf16.msra.mxu0 %v2627
        %2680 = vmatprep.subr.bf16.mxu0 0
        %2681 = vmatpush1.bf16.msra.mxu0 %v2628
        %2682 = vmatprep.subr.bf16.mxu0 0
        %2683 = vmatpush1.bf16.msra.mxu0 %v2629
        %2684 = vmatprep.subr.bf16.mxu0 0
        %2685 = vmatpush1.bf16.msra.mxu0 %v2630
        %2686 = vmatprep.subr.bf16.mxu0 0
        %2687 = vmatpush1.bf16.msra.mxu0 %v2631
        %2688 = vmatprep.subr.bf16.mxu0 0
        %2689 = vmatpush1.bf16.msra.mxu0 %v2632
        %2690 = vmatprep.subr.bf16.mxu0 0
        %2691 = vmatpush1.bf16.msra.mxu0 %v2633
        %2692 = vmatprep.subr.bf16.mxu0 0
        %2693 = vmatpush1.bf16.msra.mxu0 %v2634
        %2694 = vmatprep.subr.bf16.mxu0 0
        %2695 = vmatpush1.bf16.msra.mxu0 %v2635
        %2696 = vmatprep.subr.bf16.mxu0 0
        %2697 = vmatpush1.bf16.msra.mxu0 %v2636
        %2698 = vmatprep.subr.bf16.mxu0 0
        %2699 = vmatpush1.bf16.msra.mxu0 %v2637
        %2700 = vmatprep.subr.bf16.mxu0 0
        %2701 = vmatpush1.bf16.msra.mxu0 %v2638
        %2702 = vmatprep.subr.bf16.mxu0 0
        %2703 = vmatpush1.bf16.msra.mxu0 %v2639
        %2704 = vmatprep.mubr.bf16.mxu0 %v2331
        %2705 = vmatmul.mubr.bf16.gmra.mrb[0].mxu0 %v2400
        %v2706 = vpop.f32.mrb[0].mxu0
        %v2707 = vadd.f32 %v2526, %v2706
        %v2708 = vpop.f32.mrb[0].mxu0
        %v2709 = vpop.f32.mrb[0].mxu0
        %v2710 = vadd.f32 %v2526, %v2709
        %v2711 = vpop.f32.mrb[0].mxu0
        %2712 = vmatprep.mubr.bf16.mxu0 %v2332
        %2713 = vmatmul.mubr.bf16.gmra.mrb[0].mxu0 %v2401
        %v2714 = vpop.f32.mrb[0].mxu0
        %v2715 = vadd.f32 %v2526, %v2714
        %v2716 = vpop.f32.mrb[0].mxu0
        %v2717 = vpop.f32.mrb[0].mxu0
        %v2718 = vadd.f32 %v2526, %v2717
        %v2719 = vpop.f32.mrb[0].mxu0
        %2720 = vmatprep.mubr.bf16.mxu0 %v2333
        %2721 = vmatmul.mubr.bf16.gmra.mrb[0].mxu0 %v2402
        %v2722 = vpop.f32.mrb[0].mxu0
        %v2723 = vadd.f32 %v2526, %v2722
        %v2724 = vpop.f32.mrb[0].mxu0
        %v2725 = vpop.f32.mrb[0].mxu0
        %v2726 = vadd.f32 %v2526, %v2725
        %v2727 = vpop.f32.mrb[0].mxu0
        %2728 = vmatprep.mubr.bf16.mxu0 %v2334
        %2729 = vmatmul.mubr.bf16.gmra.mrb[0].mxu0 %v2403
        %v2730 = vpop.f32.mrb[0].mxu0
        %v2731 = vadd.f32 %v2526, %v2730
        %v2732 = vpop.f32.mrb[0].mxu0
        %v2733 = vpop.f32.mrb[0].mxu0
        %v2734 = vadd.f32 %v2526, %v2733
        %v2735 = vpop.f32.mrb[0].mxu0
        %2736 = vdwg.mxu0
        %2737 = vmatprep.subr.bf16.mxu0 0
        %2738 = vmatpush1.bf16.msra.mxu0 %v2640
        %2739 = vmatprep.subr.bf16.mxu0 0
        %2740 = vmatpush1.bf16.msra.mxu0 %v2641
        %2741 = vmatprep.subr.bf16.mxu0 0
        %2742 = vmatpush1.bf16.msra.mxu0 %v2642
        %2743 = vmatprep.subr.bf16.mxu0 0
        %2744 = vmatpush1.bf16.msra.mxu0 %v2643
        %2745 = vmatprep.subr.bf16.mxu0 0
        %2746 = vmatpush1.bf16.msra.mxu0 %v2644
        %2747 = vmatprep.subr.bf16.mxu0 0
        %2748 = vmatpush1.bf16.msra.mxu0 %v2645
        %2749 = vmatprep.subr.bf16.mxu0 0
        %2750 = vmatpush1.bf16.msra.mxu0 %v2646
        %2751 = vmatprep.subr.bf16.mxu0 0
        %2752 = vmatpush1.bf16.msra.mxu0 %v2647
        %2753 = vmatprep.subr.bf16.mxu0 0
        %2754 = vmatpush1.bf16.msra.mxu0 0
        %2755 = vmatprep.subr.bf16.mxu0 0
        %2756 = vmatpush1.bf16.msra.mxu0 0
        %2757 = vmatprep.subr.bf16.mxu0 0
        %2758 = vmatpush1.bf16.msra.mxu0 0
        %2759 = vmatprep.subr.bf16.mxu0 0
        %2760 = vmatpush1.bf16.msra.mxu0 0
        %2761 = vmatprep.subr.bf16.mxu0 0
        %2762 = vmatpush1.bf16.msra.mxu0 0
        %2763 = vmatprep.subr.bf16.mxu0 0
        %2764 = vmatpush1.bf16.msra.mxu0 0
        %2765 = vmatprep.subr.bf16.mxu0 0
        %2766 = vmatpush1.bf16.msra.mxu0 0
        %2767 = vmatprep.subr.bf16.mxu0 0
        %2768 = vmatpush1.bf16.msra.mxu0 0
        %2769 = vmatprep.mubr.bf16.mxu0 0
        %2770 = vmatmul.mubr.bf16.gmra.mrb[0].mxu0 %v2469
        %v2771 = vpop.f32.mrb[0].mxu0
        %v2772 = vadd.f32 %v2707, %v2771
        %v2773 = vpop.f32.mrb[0].mxu0
        %v2774 = vpop.f32.mrb[0].mxu0
        %v2775 = vadd.f32 %v2710, %v2774
        %v2776 = vpop.f32.mrb[0].mxu0
        %2777 = vmatprep.mubr.bf16.mxu0 0
        %2778 = vmatmul.mubr.bf16.gmra.mrb[0].mxu0 %v2470
        %v2779 = vpop.f32.mrb[0].mxu0
        %v2780 = vadd.f32 %v2715, %v2779
        %v2781 = vpop.f32.mrb[0].mxu0
        %v2782 = vpop.f32.mrb[0].mxu0
        %v2783 = vadd.f32 %v2718, %v2782
        %v2784 = vpop.f32.mrb[0].mxu0
        %2785 = vmatprep.mubr.bf16.mxu0 0
        %2786 = vmatmul.mubr.bf16.gmra.mrb[0].mxu0 %v2471
        %v2787 = vpop.f32.mrb[0].mxu0
        %v2788 = vadd.f32 %v2723, %v2787
        %v2789 = vpop.f32.mrb[0].mxu0
        %v2790 = vpop.f32.mrb[0].mxu0
        %v2791 = vadd.f32 %v2726, %v2790
        %v2792 = vpop.f32.mrb[0].mxu0
        %2793 = vmatprep.mubr.bf16.mxu0 0
        %2794 = vmatmul.mubr.bf16.gmra.mrb[0].mxu0 %v2472
        %v2795 = vpop.f32.mrb[0].mxu0
        %v2796 = vadd.f32 %v2731, %v2795
        %v2797 = vpop.f32.mrb[0].mxu0
        %v2798 = vpop.f32.mrb[0].mxu0
        %v2799 = vadd.f32 %v2734, %v2798
        %v2800 = vpop.f32.mrb[0].mxu0
        %2801 = vdwg.mxu0
        %v2802 = vmax.f32 %v2772, 0.0
        %v2803 = vmax.f32 %v2775, 0.0
        %v2804 = vmax.f32 %v2780, 0.0
        %v2805 = vmax.f32 %v2783, 0.0
        %v2806 = vmax.f32 %v2788, 0.0
        %v2807 = vmax.f32 %v2791, 0.0
        %v2808 = vmax.f32 %v2796, 0.0
        %v2809 = vmax.f32 %v2799, 0.0
        %v2810 = vmul.u32 %v1270, 2
        %v2811 = vmul.u32 %v1271, 2
        %v2812 = vmul.u32 %v1272, 2
        %v2813 = vmul.u32 %v1273, 2
        %vm2814 = vcmp.eq.s32.totalorder %v1279, %v2810
        %vm2815 = vcmp.eq.s32.totalorder %v1279, %v2811
        %vm2816 = vcmp.eq.s32.totalorder %v1279, %v2812
        %vm2817 = vcmp.eq.s32.totalorder %v1279, %v2813
        %v2818 = vsel %vm2814, 1.0, 0.0
        %v2819 = vsel %vm2815, 1.0, 0.0
        %v2820 = vsel %vm2816, 1.0, 0.0
        %v2821 = vsel %vm2817, 1.0, 0.0
        %v2823 = vsel %vm1336, %v2818, 0
        %v2826 = vsel %vm1336, %v2819, 0
        %v2829 = vsel %vm1336, %v2820, 0
        %v2832 = vsel %vm1336, %v2821, 0
        %2834 = vmatprep.subr.mxu0 0.0
        %2835 = vmatpush1.msra.mxu0 %v2802
        %2836 = vmatprep.subr.mxu0 0.0
        %2837 = vmatpush1.msra.mxu0 %v2803
        %2838 = vmatprep.subr.mxu0 0.0
        %2839 = vmatpush1.msra.mxu0 %v2804
        %2840 = vmatprep.subr.mxu0 0.0
        %2841 = vmatpush1.msra.mxu0 %v2805
        %2842 = vmatprep.subr.mxu0 0.0
        %2843 = vmatpush1.msra.mxu0 %v2806
        %2844 = vmatprep.subr.mxu0 0.0
        %2845 = vmatpush1.msra.mxu0 %v2807
        %2846 = vmatprep.subr.mxu0 0.0
        %2847 = vmatpush1.msra.mxu0 %v2808
        %2848 = vmatprep.subr.mxu0 0.0
        %2849 = vmatpush1.msra.mxu0 %v2809
        %2850 = vmatprep.subr.mxu0 0.0
        %2851 = vmatpush1.msra.mxu0 0.0
        %2852 = vmatprep.subr.mxu0 0.0
        %2853 = vmatpush1.msra.mxu0 0.0
        %2854 = vmatprep.subr.mxu0 0.0
        %2855 = vmatpush1.msra.mxu0 0.0
        %2856 = vmatprep.subr.mxu0 0.0
        %2857 = vmatpush1.msra.mxu0 0.0
        %2858 = vmatprep.subr.mxu0 0.0
        %2859 = vmatpush1.msra.mxu0 0.0
        %2860 = vmatprep.subr.mxu0 0.0
        %2861 = vmatpush1.msra.mxu0 0.0
        %2862 = vmatprep.subr.mxu0 0.0
        %2863 = vmatpush1.msra.mxu0 0.0
        %2864 = vmatprep.subr.mxu0 0.0
        %2865 = vmatpush1.msra.mxu0 0.0
        %2866 = vmatprep.subr.mxu0 0.0
        %2867 = vmatpush1.msra.mxu0 0.0
        %2868 = vmatprep.subr.mxu0 0.0
        %2869 = vmatpush1.msra.mxu0 0.0
        %2870 = vmatprep.subr.mxu0 0.0
        %2871 = vmatpush1.msra.mxu0 0.0
        %2872 = vmatprep.subr.mxu0 0.0
        %2873 = vmatpush1.msra.mxu0 0.0
        %2874 = vmatprep.subr.mxu0 0.0
        %2875 = vmatpush1.msra.mxu0 0.0
        %2876 = vmatprep.subr.mxu0 0.0
        %2877 = vmatpush1.msra.mxu0 0.0
        %2878 = vmatprep.subr.mxu0 0.0
        %2879 = vmatpush1.msra.mxu0 0.0
        %2880 = vmatprep.subr.mxu0 0.0
        %2881 = vmatpush1.msra.mxu0 0.0
        %2882 = vmatprep.subr.mxu0 0.0
        %2883 = vmatpush1.msra.mxu0 0.0
        %2884 = vmatprep.subr.mxu0 0.0
        %2885 = vmatpush1.msra.mxu0 0.0
        %2886 = vmatprep.subr.mxu0 0.0
        %2887 = vmatpush1.msra.mxu0 0.0
        %2888 = vmatprep.subr.mxu0 0.0
        %2889 = vmatpush1.msra.mxu0 0.0
        %2890 = vmatprep.subr.mxu0 0.0
        %2891 = vmatpush1.msra.mxu0 0.0
        %2892 = vmatprep.subr.mxu0 0.0
        %2893 = vmatpush1.msra.mxu0 0.0
        %2894 = vmatprep.subr.mxu0 0.0
        %2895 = vmatpush1.msra.mxu0 0.0
        %2896 = vmatprep.subr.mxu0 0.0
        %2897 = vmatpush1.msra.mxu0 0.0
        %2898 = vmatprep.mubr.f32.mxu0 0.0
        %2899 = vmatmul.mubr.f32.gmra.mrb[0].mxu0 %v2823
        %v2900 = vpop.f32.mrb[0].mxu0
        %v2901 = vadd.f32 0.0, %v2900
        %v2902 = vpop.f32.mrb[0].mxu0
        %2903 = vmatprep.mubr.f32.mxu0 0.0
        %2904 = vmatmul.mubr.f32.gmra.mrb[0].mxu0 %v2826
        %v2905 = vpop.f32.mrb[0].mxu0
        %v2906 = vadd.f32 0.0, %v2905
        %v2907 = vpop.f32.mrb[0].mxu0
        %2908 = vmatprep.mubr.f32.mxu0 0.0
        %2909 = vmatmul.mubr.f32.gmra.mrb[0].mxu0 %v2829
        %v2910 = vpop.f32.mrb[0].mxu0
        %v2911 = vadd.f32 0.0, %v2910
        %v2912 = vpop.f32.mrb[0].mxu0
        %2913 = vmatprep.mubr.f32.mxu0 0.0
        %2914 = vmatmul.mubr.f32.gmra.mrb[0].mxu0 %v2832
        %v2915 = vpop.f32.mrb[0].mxu0
        %v2916 = vadd.f32 0.0, %v2915
        %v2917 = vpop.f32.mrb[0].mxu0
        %2918 = vdwg.mxu0
        %v2919 = vpack.c.bf16 %v2906, %v2901
        %v2920 = vpack.c.bf16 %v2916, %v2911
        %v2921 = vpack.c.bf16 %v2819, %v2818
        %v2922 = vpack.c.bf16 %v2821, %v2820
        %v2924 = vsel %vm1336, %v2921, 0
        %v2927 = vsel %vm1336, %v2922, 0
        %2929 = vmatprep.subr.bf16.mxu0 0
        %2930 = vmatpush1.bf16.msra.mxu0 %v2331
        %2931 = vmatprep.subr.bf16.mxu0 0
        %2932 = vmatpush1.bf16.msra.mxu0 %v2332
        %2933 = vmatprep.subr.bf16.mxu0 0
        %2934 = vmatpush1.bf16.msra.mxu0 %v2333
        %2935 = vmatprep.subr.bf16.mxu0 0
        %2936 = vmatpush1.bf16.msra.mxu0 %v2334
        %2937 = vmatprep.subr.bf16.mxu0 0
        %2938 = vmatpush1.bf16.msra.mxu0 0
        %2939 = vmatprep.subr.bf16.mxu0 0
        %2940 = vmatpush1.bf16.msra.mxu0 0
        %2941 = vmatprep.subr.bf16.mxu0 0
        %2942 = vmatpush1.bf16.msra.mxu0 0
        %2943 = vmatprep.subr.bf16.mxu0 0
        %2944 = vmatpush1.bf16.msra.mxu0 0
        %2945 = vmatprep.subr.bf16.mxu0 0
        %2946 = vmatpush1.bf16.msra.mxu0 0
        %2947 = vmatprep.subr.bf16.mxu0 0
        %2948 = vmatpush1.bf16.msra.mxu0 0
        %2949 = vmatprep.subr.bf16.mxu0 0
        %2950 = vmatpush1.bf16.msra.mxu0 0
        %2951 = vmatprep.subr.bf16.mxu0 0
        %2952 = vmatpush1.bf16.msra.mxu0 0
        %2953 = vmatprep.subr.bf16.mxu0 0
        %2954 = vmatpush1.bf16.msra.mxu0 0
        %2955 = vmatprep.subr.bf16.mxu0 0
        %2956 = vmatpush1.bf16.msra.mxu0 0
        %2957 = vmatprep.subr.bf16.mxu0 0
        %2958 = vmatpush1.bf16.msra.mxu0 0
        %2959 = vmatprep.subr.bf16.mxu0 0
        %2960 = vmatpush1.bf16.msra.mxu0 0
        %2961 = vmatprep.mubr.bf16.mxu0 0
        %2962 = vmatmul.mubr.bf16.gmra.mrb[0].mxu0 %v2924
        %v2963 = vpop.f32.mrb[0].mxu0
        %v2964 = vadd.f32 0.0, %v2963
        %v2965 = vpop.f32.mrb[0].mxu0
        %v2966 = vpop.f32.mrb[0].mxu0
        %v2967 = vadd.f32 0.0, %v2966
        %v2968 = vpop.f32.mrb[0].mxu0
        %2969 = vmatprep.mubr.bf16.mxu0 0
        %2970 = vmatmul.mubr.bf16.gmra.mrb[0].mxu0 %v2927
        %v2971 = vpop.f32.mrb[0].mxu0
        %v2972 = vadd.f32 0.0, %v2971
        %v2973 = vpop.f32.mrb[0].mxu0
        %v2974 = vpop.f32.mrb[0].mxu0
        %v2975 = vadd.f32 0.0, %v2974
        %v2976 = vpop.f32.mrb[0].mxu0
        %2977 = vdwg.mxu0
        %v2978 = vpack.c.bf16 %v2967, %v2964
        %v2979 = vpack.c.bf16 %v2975, %v2972
        %v2980 = vld [vmem:[#allocation18] sm:$0xf]
        %v2981 = vld [vmem:[#allocation18 + $0x4] sm:$0xf]
        %v2982 = vld [vmem:[#allocation18 + $0x8] sm:$0xf]
        %v2983 = vld [vmem:[#allocation18 + $0xc] sm:$0xf]
        %v2984 = vld [vmem:[#allocation18 + $0x10] sm:$0xf]
        %v2985 = vld [vmem:[#allocation18 + $0x14] sm:$0xf]
        %v2986 = vld [vmem:[#allocation18 + $0x18] sm:$0xf]
        %v2987 = vld [vmem:[#allocation18 + $0x1c] sm:$0xf]
        %v2988 = vld [vmem:[#allocation18 + $0x20] sm:$0xf]
        %v2989 = vld [vmem:[#allocation18 + $0x24] sm:$0xf]
        %v2990 = vld [vmem:[#allocation18 + $0x28] sm:$0xf]
        %v2991 = vld [vmem:[#allocation18 + $0x2c] sm:$0xf]
        %v2992 = vld [vmem:[#allocation18 + $0x30] sm:$0xf]
        %v2993 = vld [vmem:[#allocation18 + $0x34] sm:$0xf]
        %v2994 = vld [vmem:[#allocation18 + $0x38] sm:$0xf]
        %v2995 = vld [vmem:[#allocation18 + $0x3c] sm:$0xf]
        %v2996 = vld [vmem:[#allocation19] sm:$0x1]
        %v2998 = vlaneseq
        %v2999 = vshrl.u32 %v2998, 7
        %v3000 = vsub.s32 0, %v2999
        %v3001 = vrot.slane %v2996, %v3000
        %v3019 = vunpack.c.l.b16 %v2980
        %v3020 = vunpack.c.l.b16 %v2981
        %v3021 = vunpack.c.l.b16 %v2982
        %v3022 = vunpack.c.l.b16 %v2983
        %v3023 = vunpack.c.l.b16 %v2984
        %v3024 = vunpack.c.l.b16 %v2985
        %v3025 = vunpack.c.l.b16 %v2986
        %v3026 = vunpack.c.l.b16 %v2987
        %v3027 = vunpack.c.l.b16 %v2988
        %v3028 = vunpack.c.l.b16 %v2989
        %v3029 = vunpack.c.l.b16 %v2990
        %v3030 = vunpack.c.l.b16 %v2991
        %v3031 = vunpack.c.l.b16 %v2992
        %v3032 = vunpack.c.l.b16 %v2993
        %v3033 = vunpack.c.l.b16 %v2994
        %v3034 = vunpack.c.l.b16 %v2995
        %v3035 = vpack.c.b16 %v3020, %v3019
        %v3036 = vpack.c.b16 %v3022, %v3021
        %v3037 = vpack.c.b16 %v3024, %v3023
        %v3038 = vpack.c.b16 %v3026, %v3025
        %v3039 = vpack.c.b16 %v3028, %v3027
        %v3040 = vpack.c.b16 %v3030, %v3029
        %v3041 = vpack.c.b16 %v3032, %v3031
        %v3042 = vpack.c.b16 %v3034, %v3033
        %3051 = vmatprep.subr.bf16.mxu0 0
        %3052 = vmatpush1.bf16.msra.mxu0 %v3035
        %3053 = vmatprep.subr.bf16.mxu0 0
        %3054 = vmatpush1.bf16.msra.mxu0 %v3036
        %3055 = vmatprep.subr.bf16.mxu0 0
        %3056 = vmatpush1.bf16.msra.mxu0 %v3037
        %3057 = vmatprep.subr.bf16.mxu0 0
        %3058 = vmatpush1.bf16.msra.mxu0 %v3038
        %3059 = vmatprep.subr.bf16.mxu0 0
        %3060 = vmatpush1.bf16.msra.mxu0 %v3039
        %3061 = vmatprep.subr.bf16.mxu0 0
        %3062 = vmatpush1.bf16.msra.mxu0 %v3040
        %3063 = vmatprep.subr.bf16.mxu0 0
        %3064 = vmatpush1.bf16.msra.mxu0 %v3041
        %3065 = vmatprep.subr.bf16.mxu0 0
        %3066 = vmatpush1.bf16.msra.mxu0 %v3042
        %3067 = vmatprep.subr.bf16.mxu0 0
        %3068 = vmatpush1.bf16.msra.mxu0 0
        %3069 = vmatprep.subr.bf16.mxu0 0
        %3070 = vmatpush1.bf16.msra.mxu0 0
        %3071 = vmatprep.subr.bf16.mxu0 0
        %3072 = vmatpush1.bf16.msra.mxu0 0
        %3073 = vmatprep.subr.bf16.mxu0 0
        %3074 = vmatpush1.bf16.msra.mxu0 0
        %3075 = vmatprep.subr.bf16.mxu0 0
        %3076 = vmatpush1.bf16.msra.mxu0 0
        %3077 = vmatprep.subr.bf16.mxu0 0
        %3078 = vmatpush1.bf16.msra.mxu0 0
        %3079 = vmatprep.subr.bf16.mxu0 0
        %3080 = vmatpush1.bf16.msra.mxu0 0
        %3081 = vmatprep.subr.bf16.mxu0 0
        %3082 = vmatpush1.bf16.msra.mxu0 0
        %3083 = vmatprep.mubr.bf16.mxu0 0
        %3084 = vmatmul.mubr.bf16.gmra.mrb[0].mxu0 %v2978
        %v3085 = vpop.f32.mrb[0].mxu0
        %v3086 = vadd.f32 %v3001, %v3085
        %v3087 = vpop.f32.mrb[0].mxu0
        %v3088 = vpop.f32.mrb[0].mxu0
        %v3089 = vadd.f32 %v3001, %v3088
        %v3090 = vpop.f32.mrb[0].mxu0
        %3091 = vmatprep.mubr.bf16.mxu0 0
        %3092 = vmatmul.mubr.bf16.gmra.mrb[0].mxu0 %v2979
        %v3093 = vpop.f32.mrb[0].mxu0
        %v3094 = vadd.f32 %v3001, %v3093
        %v3095 = vpop.f32.mrb[0].mxu0
        %v3096 = vpop.f32.mrb[0].mxu0
        %v3097 = vadd.f32 %v3001, %v3096
        %v3098 = vpop.f32.mrb[0].mxu0
        %3099 = vdwg.mxu0
        %vm3100 = vcmask 261120
        %v3101 = vsel %vm3100, %v1304, 0
        %v3103 = vsel %vm3100, %v1305, 0
        %3105 = vmatprep.subr.bf16.mxu0 0
        %3106 = vmatpush1.bf16.msra.mxu0 %v2919
        %3107 = vmatprep.subr.bf16.mxu0 0
        %3108 = vmatpush1.bf16.msra.mxu0 %v2920
        %3109 = vmatprep.subr.bf16.mxu0 0
        %3110 = vmatpush1.bf16.msra.mxu0 0
        %3111 = vmatprep.subr.bf16.mxu0 0
        %3112 = vmatpush1.bf16.msra.mxu0 0
        %3113 = vmatprep.subr.bf16.mxu0 0
        %3114 = vmatpush1.bf16.msra.mxu0 0
        %3115 = vmatprep.subr.bf16.mxu0 0
        %3116 = vmatpush1.bf16.msra.mxu0 0
        %3117 = vmatprep.subr.bf16.mxu0 0
        %3118 = vmatpush1.bf16.msra.mxu0 0
        %3119 = vmatprep.subr.bf16.mxu0 0
        %3120 = vmatpush1.bf16.msra.mxu0 0
        %3121 = vmatprep.subr.bf16.mxu0 0
        %3122 = vmatpush1.bf16.msra.mxu0 0
        %3123 = vmatprep.subr.bf16.mxu0 0
        %3124 = vmatpush1.bf16.msra.mxu0 0
        %3125 = vmatprep.subr.bf16.mxu0 0
        %3126 = vmatpush1.bf16.msra.mxu0 0
        %3127 = vmatprep.subr.bf16.mxu0 0
        %3128 = vmatpush1.bf16.msra.mxu0 0
        %3129 = vmatprep.subr.bf16.mxu0 0
        %3130 = vmatpush1.bf16.msra.mxu0 0
        %3131 = vmatprep.subr.bf16.mxu0 0
        %3132 = vmatpush1.bf16.msra.mxu0 0
        %3133 = vmatprep.subr.bf16.mxu0 0
        %3134 = vmatpush1.bf16.msra.mxu0 0
        %3135 = vmatprep.subr.bf16.mxu0 0
        %3136 = vmatpush1.bf16.msra.mxu0 0
        %3137 = vmatprep.mubr.bf16.mxu0 0
        %3138 = vmatmul.mubr.bf16.gmra.mrb[0].mxu0 %v3101
        %v3139 = vpop.f32.mrb[0].mxu0
        %v3140 = vadd.f32 0.0, %v3139
        %v3141 = vpop.f32.mrb[0].mxu0
        %v3142 = vpop.f32.mrb[0].mxu0
        %v3143 = vadd.f32 0.0, %v3142
        %v3144 = vpop.f32.mrb[0].mxu0
        %3145 = vmatprep.mubr.bf16.mxu0 0
        %3146 = vmatmul.mubr.bf16.gmra.mrb[0].mxu0 %v3103
        %v3147 = vpop.f32.mrb[0].mxu0
        %v3148 = vadd.f32 0.0, %v3147
        %v3149 = vpop.f32.mrb[0].mxu0
        %v3150 = vpop.f32.mrb[0].mxu0
        %v3151 = vadd.f32 0.0, %v3150
        %v3152 = vpop.f32.mrb[0].mxu0
        %3153 = vdwg.mxu0
        %v3154 = vpack.c.bf16 %v3143, %v3140
        %v3155 = vpack.c.bf16 %v3151, %v3148
        %v3156 = vsel %vm3100, %v1332, 0
        %v3158 = vsel %vm3100, %v1333, 0
        %3160 = vmatprep.subr.bf16.mxu0 0
        %3161 = vmatpush1.bf16.msra.mxu0 %v2919
        %3162 = vmatprep.subr.bf16.mxu0 0
        %3163 = vmatpush1.bf16.msra.mxu0 %v2920
        %3164 = vmatprep.subr.bf16.mxu0 0
        %3165 = vmatpush1.bf16.msra.mxu0 0
        %3166 = vmatprep.subr.bf16.mxu0 0
        %3167 = vmatpush1.bf16.msra.mxu0 0
        %3168 = vmatprep.subr.bf16.mxu0 0
        %3169 = vmatpush1.bf16.msra.mxu0 0
        %3170 = vmatprep.subr.bf16.mxu0 0
        %3171 = vmatpush1.bf16.msra.mxu0 0
        %3172 = vmatprep.subr.bf16.mxu0 0
        %3173 = vmatpush1.bf16.msra.mxu0 0
        %3174 = vmatprep.subr.bf16.mxu0 0
        %3175 = vmatpush1.bf16.msra.mxu0 0
        %3176 = vmatprep.subr.bf16.mxu0 0
        %3177 = vmatpush1.bf16.msra.mxu0 0
        %3178 = vmatprep.subr.bf16.mxu0 0
        %3179 = vmatpush1.bf16.msra.mxu0 0
        %3180 = vmatprep.subr.bf16.mxu0 0
        %3181 = vmatpush1.bf16.msra.mxu0 0
        %3182 = vmatprep.subr.bf16.mxu0 0
        %3183 = vmatpush1.bf16.msra.mxu0 0
        %3184 = vmatprep.subr.bf16.mxu0 0
        %3185 = vmatpush1.bf16.msra.mxu0 0
        %3186 = vmatprep.subr.bf16.mxu0 0
        %3187 = vmatpush1.bf16.msra.mxu0 0
        %3188 = vmatprep.subr.bf16.mxu0 0
        %3189 = vmatpush1.bf16.msra.mxu0 0
        %3190 = vmatprep.subr.bf16.mxu0 0
        %3191 = vmatpush1.bf16.msra.mxu0 0
        %3192 = vmatprep.mubr.bf16.mxu0 0
        %3193 = vmatmul.mubr.bf16.gmra.mrb[0].mxu0 %v3156
        %v3194 = vpop.f32.mrb[0].mxu0
        %v3195 = vadd.f32 0.0, %v3194
        %v3196 = vpop.f32.mrb[0].mxu0
        %v3197 = vpop.f32.mrb[0].mxu0
        %v3198 = vadd.f32 0.0, %v3197
        %v3199 = vpop.f32.mrb[0].mxu0
        %3200 = vmatprep.mubr.bf16.mxu0 0
        %3201 = vmatmul.mubr.bf16.gmra.mrb[0].mxu0 %v3158
        %v3202 = vpop.f32.mrb[0].mxu0
        %v3203 = vadd.f32 0.0, %v3202
        %v3204 = vpop.f32.mrb[0].mxu0
        %v3205 = vpop.f32.mrb[0].mxu0
        %v3206 = vadd.f32 0.0, %v3205
        %v3207 = vpop.f32.mrb[0].mxu0
        %3208 = vdwg.mxu0
        %v3209 = vpack.c.bf16 %v3198, %v3195
        %v3210 = vpack.c.bf16 %v3206, %v3203
        %v3211 = vld [vmem:[#allocation15] sm:$0xf]
        %v3212 = vld [vmem:[#allocation15 + $0x4] sm:$0xf]
        %v3213 = vld [vmem:[#allocation15 + $0x8] sm:$0xf]
        %v3214 = vld [vmem:[#allocation15 + $0xc] sm:$0xf]
        %v3215 = vld [vmem:[#allocation15 + $0x10] sm:$0xf]
        %v3216 = vld [vmem:[#allocation15 + $0x14] sm:$0xf]
        %v3217 = vld [vmem:[#allocation15 + $0x18] sm:$0xf]
        %v3218 = vld [vmem:[#allocation15 + $0x1c] sm:$0xf]
        %v3219 = vld [vmem:[#allocation15 + $0x20] sm:$0xf]
        %v3220 = vld [vmem:[#allocation15 + $0x24] sm:$0xf]
        %v3221 = vld [vmem:[#allocation15 + $0x28] sm:$0xf]
        %v3222 = vld [vmem:[#allocation15 + $0x2c] sm:$0xf]
        %v3223 = vld [vmem:[#allocation15 + $0x30] sm:$0xf]
        %v3224 = vld [vmem:[#allocation15 + $0x34] sm:$0xf]
        %v3225 = vld [vmem:[#allocation15 + $0x38] sm:$0xf]
        %v3226 = vld [vmem:[#allocation15 + $0x3c] sm:$0xf]
        %v3227 = vld [vmem:[#allocation15 + $0x40] sm:$0xf]
        %v3228 = vld [vmem:[#allocation15 + $0x44] sm:$0xf]
        %v3229 = vld [vmem:[#allocation15 + $0x48] sm:$0xf]
        %v3230 = vld [vmem:[#allocation15 + $0x4c] sm:$0xf]
        %v3231 = vld [vmem:[#allocation15 + $0x50] sm:$0xf]
        %v3232 = vld [vmem:[#allocation15 + $0x54] sm:$0xf]
        %v3233 = vld [vmem:[#allocation15 + $0x58] sm:$0xf]
        %v3234 = vld [vmem:[#allocation15 + $0x5c] sm:$0xf]
        %v3235 = vld [vmem:[#allocation15 + $0x60] sm:$0xf]
        %v3236 = vld [vmem:[#allocation15 + $0x64] sm:$0xf]
        %v3237 = vld [vmem:[#allocation15 + $0x68] sm:$0xf]
        %v3238 = vld [vmem:[#allocation15 + $0x6c] sm:$0xf]
        %v3239 = vld [vmem:[#allocation15 + $0x70] sm:$0xf]
        %v3240 = vld [vmem:[#allocation15 + $0x74] sm:$0xf]
        %v3241 = vld [vmem:[#allocation15 + $0x78] sm:$0xf]
        %v3242 = vld [vmem:[#allocation15 + $0x7c] sm:$0xf]
        %v3243 = vld [vmem:[#allocation15 + $0x80] sm:$0xf]
        %v3244 = vld [vmem:[#allocation15 + $0x84] sm:$0xf]
        %v3245 = vld [vmem:[#allocation15 + $0x88] sm:$0xf]
        %v3246 = vld [vmem:[#allocation15 + $0x8c] sm:$0xf]
        %v3247 = vld [vmem:[#allocation15 + $0x90] sm:$0xf]
        %v3248 = vld [vmem:[#allocation15 + $0x94] sm:$0xf]
        %v3249 = vld [vmem:[#allocation15 + $0x98] sm:$0xf]
        %v3250 = vld [vmem:[#allocation15 + $0x9c] sm:$0xf]
        %v3251 = vld [vmem:[#allocation15 + $0xa0] sm:$0xf]
        %v3252 = vld [vmem:[#allocation15 + $0xa4] sm:$0xf]
        %v3253 = vld [vmem:[#allocation15 + $0xa8] sm:$0xf]
        %v3254 = vld [vmem:[#allocation15 + $0xac] sm:$0xf]
        %v3255 = vld [vmem:[#allocation15 + $0xb0] sm:$0xf]
        %v3256 = vld [vmem:[#allocation15 + $0xb4] sm:$0xf]
        %v3257 = vld [vmem:[#allocation15 + $0xb8] sm:$0xf]
        %v3258 = vld [vmem:[#allocation15 + $0xbc] sm:$0xf]
        %v3259 = vld [vmem:[#allocation16] sm:$0x1]
        %v3261 = vlaneseq
        %v3262 = vshrl.u32 %v3261, 7
        %v3263 = vsub.s32 0, %v3262
        %v3264 = vrot.slane %v3259, %v3263
        %v3314 = vunpack.c.l.b16 %v3211
        %v3315 = vunpack.c.l.b16 %v3212
        %v3316 = vunpack.c.l.b16 %v3213
        %v3317 = vunpack.c.l.b16 %v3214
        %v3318 = vunpack.c.l.b16 %v3215
        %v3319 = vunpack.c.l.b16 %v3216
        %v3320 = vunpack.c.l.b16 %v3217
        %v3321 = vunpack.c.l.b16 %v3218
        %v3322 = vunpack.c.l.b16 %v3219
        %v3323 = vunpack.c.l.b16 %v3220
        %v3324 = vunpack.c.l.b16 %v3221
        %v3325 = vunpack.c.l.b16 %v3222
        %v3326 = vunpack.c.l.b16 %v3223
        %v3327 = vunpack.c.l.b16 %v3224
        %v3328 = vunpack.c.l.b16 %v3225
        %v3329 = vunpack.c.l.b16 %v3226
        %v3330 = vunpack.c.l.b16 %v3227
        %v3331 = vunpack.c.l.b16 %v3228
        %v3332 = vunpack.c.l.b16 %v3229
        %v3333 = vunpack.c.l.b16 %v3230
        %v3334 = vunpack.c.l.b16 %v3231
        %v3335 = vunpack.c.l.b16 %v3232
        %v3336 = vunpack.c.l.b16 %v3233
        %v3337 = vunpack.c.l.b16 %v3234
        %v3338 = vunpack.c.l.b16 %v3235
        %v3339 = vunpack.c.l.b16 %v3236
        %v3340 = vunpack.c.l.b16 %v3237
        %v3341 = vunpack.c.l.b16 %v3238
        %v3342 = vunpack.c.l.b16 %v3239
        %v3343 = vunpack.c.l.b16 %v3240
        %v3344 = vunpack.c.l.b16 %v3241
        %v3345 = vunpack.c.l.b16 %v3242
        %v3346 = vunpack.c.l.b16 %v3243
        %v3347 = vunpack.c.l.b16 %v3244
        %v3348 = vunpack.c.l.b16 %v3245
        %v3349 = vunpack.c.l.b16 %v3246
        %v3350 = vunpack.c.l.b16 %v3247
        %v3351 = vunpack.c.l.b16 %v3248
        %v3352 = vunpack.c.l.b16 %v3249
        %v3353 = vunpack.c.l.b16 %v3250
        %v3354 = vunpack.c.l.b16 %v3251
        %v3355 = vunpack.c.l.b16 %v3252
        %v3356 = vunpack.c.l.b16 %v3253
        %v3357 = vunpack.c.l.b16 %v3254
        %v3358 = vunpack.c.l.b16 %v3255
        %v3359 = vunpack.c.l.b16 %v3256
        %v3360 = vunpack.c.l.b16 %v3257
        %v3361 = vunpack.c.l.b16 %v3258
        %v3362 = vpack.c.b16 %v3315, %v3314
        %v3363 = vpack.c.b16 %v3317, %v3316
        %v3364 = vpack.c.b16 %v3319, %v3318
        %v3365 = vpack.c.b16 %v3321, %v3320
        %v3366 = vpack.c.b16 %v3323, %v3322
        %v3367 = vpack.c.b16 %v3325, %v3324
        %v3368 = vpack.c.b16 %v3327, %v3326
        %v3369 = vpack.c.b16 %v3329, %v3328
        %v3370 = vpack.c.b16 %v3331, %v3330
        %v3371 = vpack.c.b16 %v3333, %v3332
        %v3372 = vpack.c.b16 %v3335, %v3334
        %v3373 = vpack.c.b16 %v3337, %v3336
        %v3374 = vpack.c.b16 %v3339, %v3338
        %v3375 = vpack.c.b16 %v3341, %v3340
        %v3376 = vpack.c.b16 %v3343, %v3342
        %v3377 = vpack.c.b16 %v3345, %v3344
        %v3378 = vpack.c.b16 %v3347, %v3346
        %v3379 = vpack.c.b16 %v3349, %v3348
        %v3380 = vpack.c.b16 %v3351, %v3350
        %v3381 = vpack.c.b16 %v3353, %v3352
        %v3382 = vpack.c.b16 %v3355, %v3354
        %v3383 = vpack.c.b16 %v3357, %v3356
        %v3384 = vpack.c.b16 %v3359, %v3358
        %v3385 = vpack.c.b16 %v3361, %v3360
        %3410 = vmatprep.subr.bf16.mxu0 0
        %3411 = vmatpush1.bf16.msra.mxu0 %v3362
        %3412 = vmatprep.subr.bf16.mxu0 0
        %3413 = vmatpush1.bf16.msra.mxu0 %v3363
        %3414 = vmatprep.subr.bf16.mxu0 0
        %3415 = vmatpush1.bf16.msra.mxu0 %v3364
        %3416 = vmatprep.subr.bf16.mxu0 0
        %3417 = vmatpush1.bf16.msra.mxu0 %v3365
        %3418 = vmatprep.subr.bf16.mxu0 0
        %3419 = vmatpush1.bf16.msra.mxu0 %v3366
        %3420 = vmatprep.subr.bf16.mxu0 0
        %3421 = vmatpush1.bf16.msra.mxu0 %v3367
        %3422 = vmatprep.subr.bf16.mxu0 0
        %3423 = vmatpush1.bf16.msra.mxu0 %v3368
        %3424 = vmatprep.subr.bf16.mxu0 0
        %3425 = vmatpush1.bf16.msra.mxu0 %v3369
        %3426 = vmatprep.subr.bf16.mxu0 0
        %3427 = vmatpush1.bf16.msra.mxu0 %v3370
        %3428 = vmatprep.subr.bf16.mxu0 0
        %3429 = vmatpush1.bf16.msra.mxu0 %v3371
        %3430 = vmatprep.subr.bf16.mxu0 0
        %3431 = vmatpush1.bf16.msra.mxu0 %v3372
        %3432 = vmatprep.subr.bf16.mxu0 0
        %3433 = vmatpush1.bf16.msra.mxu0 %v3373
        %3434 = vmatprep.subr.bf16.mxu0 0
        %3435 = vmatpush1.bf16.msra.mxu0 %v3374
        %3436 = vmatprep.subr.bf16.mxu0 0
        %3437 = vmatpush1.bf16.msra.mxu0 %v3375
        %3438 = vmatprep.subr.bf16.mxu0 0
        %3439 = vmatpush1.bf16.msra.mxu0 %v3376
        %3440 = vmatprep.subr.bf16.mxu0 0
        %3441 = vmatpush1.bf16.msra.mxu0 %v3377
        %3442 = vmatprep.mubr.bf16.mxu0 %v2919
        %3443 = vmatmul.mubr.bf16.gmra.mrb[0].mxu0 %v3154
        %v3444 = vpop.f32.mrb[0].mxu0
        %v3445 = vadd.f32 %v3264, %v3444
        %v3446 = vpop.f32.mrb[0].mxu0
        %v3447 = vpop.f32.mrb[0].mxu0
        %v3448 = vadd.f32 %v3264, %v3447
        %v3449 = vpop.f32.mrb[0].mxu0
        %3450 = vmatprep.mubr.bf16.mxu0 %v2920
        %3451 = vmatmul.mubr.bf16.gmra.mrb[0].mxu0 %v3155
        %v3452 = vpop.f32.mrb[0].mxu0
        %v3453 = vadd.f32 %v3264, %v3452
        %v3454 = vpop.f32.mrb[0].mxu0
        %v3455 = vpop.f32.mrb[0].mxu0
        %v3456 = vadd.f32 %v3264, %v3455
        %v3457 = vpop.f32.mrb[0].mxu0
        %3458 = vdwg.mxu0
        %3459 = vmatprep.subr.bf16.mxu0 0
        %3460 = vmatpush1.bf16.msra.mxu0 %v3378
        %3461 = vmatprep.subr.bf16.mxu0 0
        %3462 = vmatpush1.bf16.msra.mxu0 %v3379
        %3463 = vmatprep.subr.bf16.mxu0 0
        %3464 = vmatpush1.bf16.msra.mxu0 %v3380
        %3465 = vmatprep.subr.bf16.mxu0 0
        %3466 = vmatpush1.bf16.msra.mxu0 %v3381
        %3467 = vmatprep.subr.bf16.mxu0 0
        %3468 = vmatpush1.bf16.msra.mxu0 %v3382
        %3469 = vmatprep.subr.bf16.mxu0 0
        %3470 = vmatpush1.bf16.msra.mxu0 %v3383
        %3471 = vmatprep.subr.bf16.mxu0 0
        %3472 = vmatpush1.bf16.msra.mxu0 %v3384
        %3473 = vmatprep.subr.bf16.mxu0 0
        %3474 = vmatpush1.bf16.msra.mxu0 %v3385
        %3475 = vmatprep.subr.bf16.mxu0 0
        %3476 = vmatpush1.bf16.msra.mxu0 0
        %3477 = vmatprep.subr.bf16.mxu0 0
        %3478 = vmatpush1.bf16.msra.mxu0 0
        %3479 = vmatprep.subr.bf16.mxu0 0
        %3480 = vmatpush1.bf16.msra.mxu0 0
        %3481 = vmatprep.subr.bf16.mxu0 0
        %3482 = vmatpush1.bf16.msra.mxu0 0
        %3483 = vmatprep.subr.bf16.mxu0 0
        %3484 = vmatpush1.bf16.msra.mxu0 0
        %3485 = vmatprep.subr.bf16.mxu0 0
        %3486 = vmatpush1.bf16.msra.mxu0 0
        %3487 = vmatprep.subr.bf16.mxu0 0
        %3488 = vmatpush1.bf16.msra.mxu0 0
        %3489 = vmatprep.subr.bf16.mxu0 0
        %3490 = vmatpush1.bf16.msra.mxu0 0
        %3491 = vmatprep.mubr.bf16.mxu0 0
        %3492 = vmatmul.mubr.bf16.gmra.mrb[0].mxu0 %v3209
        %v3493 = vpop.f32.mrb[0].mxu0
        %v3494 = vadd.f32 %v3445, %v3493
        %v3495 = vpop.f32.mrb[0].mxu0
        %v3496 = vpop.f32.mrb[0].mxu0
        %v3497 = vadd.f32 %v3448, %v3496
        %v3498 = vpop.f32.mrb[0].mxu0
        %3499 = vmatprep.mubr.bf16.mxu0 0
        %3500 = vmatmul.mubr.bf16.gmra.mrb[0].mxu0 %v3210
        %v3501 = vpop.f32.mrb[0].mxu0
        %v3502 = vadd.f32 %v3453, %v3501
        %v3503 = vpop.f32.mrb[0].mxu0
        %v3504 = vpop.f32.mrb[0].mxu0
        %v3505 = vadd.f32 %v3456, %v3504
        %v3506 = vpop.f32.mrb[0].mxu0
        %3507 = vdwg.mxu0
        %v3508 = vadd.f32 %v3494, %v3086
        %v3509 = vadd.f32 %v3497, %v3089
        %v3510 = vadd.f32 %v3502, %v3094
        %v3511 = vadd.f32 %v3505, %v3097
        %v3512 = vmax.f32 %v3508, 0.0
        %v3513 = vmax.f32 %v3509, 0.0
        %v3514 = vmax.f32 %v3510, 0.0
        %v3515 = vmax.f32 %v3511, 0.0
        %v3516 = vpack.c.bf16 %v3513, %v3512
        %v3517 = vpack.c.bf16 %v3515, %v3514
        %3518 = vmatprep.subr.bf16.mxu0 0
        %3519 = vmatpush1.bf16.msra.mxu0 %v3516
        %3520 = vmatprep.subr.bf16.mxu0 0
        %3521 = vmatpush1.bf16.msra.mxu0 %v3517
        %3522 = vmatprep.subr.bf16.mxu0 0
        %3523 = vmatpush1.bf16.msra.mxu0 0
        %3524 = vmatprep.subr.bf16.mxu0 0
        %3525 = vmatpush1.bf16.msra.mxu0 0
        %3526 = vmatprep.subr.bf16.mxu0 0
        %3527 = vmatpush1.bf16.msra.mxu0 0
        %3528 = vmatprep.subr.bf16.mxu0 0
        %3529 = vmatpush1.bf16.msra.mxu0 0
        %3530 = vmatprep.subr.bf16.mxu0 0
        %3531 = vmatpush1.bf16.msra.mxu0 0
        %3532 = vmatprep.subr.bf16.mxu0 0
        %3533 = vmatpush1.bf16.msra.mxu0 0
        %3534 = vmatprep.subr.bf16.mxu0 0
        %3535 = vmatpush1.bf16.msra.mxu0 0
        %3536 = vmatprep.subr.bf16.mxu0 0
        %3537 = vmatpush1.bf16.msra.mxu0 0
        %3538 = vmatprep.subr.bf16.mxu0 0
        %3539 = vmatpush1.bf16.msra.mxu0 0
        %3540 = vmatprep.subr.bf16.mxu0 0
        %3541 = vmatpush1.bf16.msra.mxu0 0
        %3542 = vmatprep.subr.bf16.mxu0 0
        %3543 = vmatpush1.bf16.msra.mxu0 0
        %3544 = vmatprep.subr.bf16.mxu0 0
        %3545 = vmatpush1.bf16.msra.mxu0 0
        %3546 = vmatprep.subr.bf16.mxu0 0
        %3547 = vmatpush1.bf16.msra.mxu0 0
        %3548 = vmatprep.subr.bf16.mxu0 0
        %3549 = vmatpush1.bf16.msra.mxu0 0
        %3550 = vmatprep.mubr.bf16.mxu0 0
        %3551 = vmatmul.mubr.bf16.gmra.mrb[0].mxu0 %v3101
        %v3552 = vpop.f32.mrb[0].mxu0
        %v3553 = vadd.f32 0.0, %v3552
        %v3554 = vpop.f32.mrb[0].mxu0
        %v3555 = vpop.f32.mrb[0].mxu0
        %v3556 = vadd.f32 0.0, %v3555
        %v3557 = vpop.f32.mrb[0].mxu0
        %3558 = vmatprep.mubr.bf16.mxu0 0
        %3559 = vmatmul.mubr.bf16.gmra.mrb[0].mxu0 %v3103
        %v3560 = vpop.f32.mrb[0].mxu0
        %v3561 = vadd.f32 0.0, %v3560
        %v3562 = vpop.f32.mrb[0].mxu0
        %v3563 = vpop.f32.mrb[0].mxu0
        %v3564 = vadd.f32 0.0, %v3563
        %v3565 = vpop.f32.mrb[0].mxu0
        %3566 = vdwg.mxu0
        %v3567 = vpack.c.bf16 %v3556, %v3553
        %v3568 = vpack.c.bf16 %v3564, %v3561
        %3569 = vmatprep.subr.bf16.mxu0 0
        %3570 = vmatpush1.bf16.msra.mxu0 %v3516
        %3571 = vmatprep.subr.bf16.mxu0 0
        %3572 = vmatpush1.bf16.msra.mxu0 %v3517
        %3573 = vmatprep.subr.bf16.mxu0 0
        %3574 = vmatpush1.bf16.msra.mxu0 0
        %3575 = vmatprep.subr.bf16.mxu0 0
        %3576 = vmatpush1.bf16.msra.mxu0 0
        %3577 = vmatprep.subr.bf16.mxu0 0
        %3578 = vmatpush1.bf16.msra.mxu0 0
        %3579 = vmatprep.subr.bf16.mxu0 0
        %3580 = vmatpush1.bf16.msra.mxu0 0
        %3581 = vmatprep.subr.bf16.mxu0 0
        %3582 = vmatpush1.bf16.msra.mxu0 0
        %3583 = vmatprep.subr.bf16.mxu0 0
        %3584 = vmatpush1.bf16.msra.mxu0 0
        %3585 = vmatprep.subr.bf16.mxu0 0
        %3586 = vmatpush1.bf16.msra.mxu0 0
        %3587 = vmatprep.subr.bf16.mxu0 0
        %3588 = vmatpush1.bf16.msra.mxu0 0
        %3589 = vmatprep.subr.bf16.mxu0 0
        %3590 = vmatpush1.bf16.msra.mxu0 0
        %3591 = vmatprep.subr.bf16.mxu0 0
        %3592 = vmatpush1.bf16.msra.mxu0 0
        %3593 = vmatprep.subr.bf16.mxu0 0
        %3594 = vmatpush1.bf16.msra.mxu0 0
        %3595 = vmatprep.subr.bf16.mxu0 0
        %3596 = vmatpush1.bf16.msra.mxu0 0
        %3597 = vmatprep.subr.bf16.mxu0 0
        %3598 = vmatpush1.bf16.msra.mxu0 0
        %3599 = vmatprep.subr.bf16.mxu0 0
        %3600 = vmatpush1.bf16.msra.mxu0 0
        %3601 = vmatprep.mubr.bf16.mxu0 0
        %3602 = vmatmul.mubr.bf16.gmra.mrb[0].mxu0 %v3156
        %v3603 = vpop.f32.mrb[0].mxu0
        %v3604 = vadd.f32 0.0, %v3603
        %v3605 = vpop.f32.mrb[0].mxu0
        %v3606 = vpop.f32.mrb[0].mxu0
        %v3607 = vadd.f32 0.0, %v3606
        %v3608 = vpop.f32.mrb[0].mxu0
        %3609 = vmatprep.mubr.bf16.mxu0 0
        %3610 = vmatmul.mubr.bf16.gmra.mrb[0].mxu0 %v3158
        %v3611 = vpop.f32.mrb[0].mxu0
        %v3612 = vadd.f32 0.0, %v3611
        %v3613 = vpop.f32.mrb[0].mxu0
        %v3614 = vpop.f32.mrb[0].mxu0
        %v3615 = vadd.f32 0.0, %v3614
        %v3616 = vpop.f32.mrb[0].mxu0
        %3617 = vdwg.mxu0
        %v3618 = vpack.c.bf16 %v3607, %v3604
        %v3619 = vpack.c.bf16 %v3615, %v3612
        %v3620 = vld [vmem:[#allocation21] sm:$0xff]
        %v3621 = vld [vmem:[#allocation21 + $0x8] sm:$0xff]
        %v3622 = vld [vmem:[#allocation21 + $0x10] sm:$0xff]
        %v3623 = vld [vmem:[#allocation21 + $0x18] sm:$0xff]
        %v3624 = vld [vmem:[#allocation21 + $0x20] sm:$0xff]
        %v3625 = vld [vmem:[#allocation21 + $0x28] sm:$0xff]
        %v3626 = vld [vmem:[#allocation21 + $0x30] sm:$0xff]
        %v3627 = vld [vmem:[#allocation21 + $0x38] sm:$0xff]
        %v3628 = vld [vmem:[#allocation21 + $0x40] sm:$0xff]
        %v3629 = vld [vmem:[#allocation21 + $0x48] sm:$0xff]
        %v3630 = vld [vmem:[#allocation21 + $0x50] sm:$0xff]
        %v3631 = vld [vmem:[#allocation21 + $0x58] sm:$0xff]
        %v3632 = vld [vmem:[#allocation21 + $0x60] sm:$0xff]
        %v3633 = vld [vmem:[#allocation21 + $0x68] sm:$0xff]
        %v3634 = vld [vmem:[#allocation21 + $0x70] sm:$0xff]
        %v3635 = vld [vmem:[#allocation21 + $0x78] sm:$0xff]
        %v3636 = vld [vmem:[#allocation21 + $0x80] sm:$0xff]
        %v3637 = vld [vmem:[#allocation21 + $0x88] sm:$0xff]
        %v3638 = vld [vmem:[#allocation21 + $0x90] sm:$0xff]
        %v3639 = vld [vmem:[#allocation21 + $0x98] sm:$0xff]
        %v3640 = vld [vmem:[#allocation21 + $0xa0] sm:$0xff]
        %v3641 = vld [vmem:[#allocation21 + $0xa8] sm:$0xff]
        %v3642 = vld [vmem:[#allocation21 + $0xb0] sm:$0xff]
        %v3643 = vld [vmem:[#allocation21 + $0xb8] sm:$0xff]
        %v3644 = vld [vmem:[#allocation21 + $0xc0] sm:$0xff]
        %v3645 = vld [vmem:[#allocation21 + $0xc8] sm:$0xff]
        %v3646 = vld [vmem:[#allocation21 + $0xd0] sm:$0xff]
        %v3647 = vld [vmem:[#allocation21 + $0xd8] sm:$0xff]
        %v3648 = vld [vmem:[#allocation21 + $0xe0] sm:$0xff]
        %v3649 = vld [vmem:[#allocation21 + $0xe8] sm:$0xff]
        %v3650 = vld [vmem:[#allocation21 + $0xf0] sm:$0xff]
        %v3651 = vld [vmem:[#allocation21 + $0xf8] sm:$0xff]
        %v3652 = vld [vmem:[#allocation21 + $0x100] sm:$0xff]
        %v3653 = vld [vmem:[#allocation21 + $0x108] sm:$0xff]
        %v3654 = vld [vmem:[#allocation21 + $0x110] sm:$0xff]
        %v3655 = vld [vmem:[#allocation21 + $0x118] sm:$0xff]
        %v3656 = vld [vmem:[#allocation21 + $0x120] sm:$0xff]
        %v3657 = vld [vmem:[#allocation21 + $0x128] sm:$0xff]
        %v3658 = vld [vmem:[#allocation21 + $0x130] sm:$0xff]
        %v3659 = vld [vmem:[#allocation21 + $0x138] sm:$0xff]
        %v3660 = vld [vmem:[#allocation21 + $0x140] sm:$0xff]
        %v3661 = vld [vmem:[#allocation21 + $0x148] sm:$0xff]
        %v3662 = vld [vmem:[#allocation21 + $0x150] sm:$0xff]
        %v3663 = vld [vmem:[#allocation21 + $0x158] sm:$0xff]
        %v3664 = vld [vmem:[#allocation21 + $0x160] sm:$0xff]
        %v3665 = vld [vmem:[#allocation21 + $0x168] sm:$0xff]
        %v3666 = vld [vmem:[#allocation21 + $0x170] sm:$0xff]
        %v3667 = vld [vmem:[#allocation21 + $0x178] sm:$0xff]
        %v3668 = vld [vmem:[#allocation22] sm:$0x3]
        %v3670 = vlaneseq
        %v3671 = vshrl.u32 %v3670, 7
        %v3672 = vsub.s32 0, %v3671
        %v3673 = vrot.slane %v3668, %v3672
        %v3674 = vlaneseq
        %v3675 = vshrl.u32 %v3674, 7
        %v3676 = vsub.s32 1, %v3675
        %v3677 = vrot.slane %v3668, %v3676
        %v3728 = vunpack.c.l.b16 %v3620
        %v3729 = vunpack.c.h.b16 %v3620
        %v3730 = vunpack.c.l.b16 %v3621
        %v3731 = vunpack.c.h.b16 %v3621
        %v3732 = vunpack.c.l.b16 %v3622
        %v3733 = vunpack.c.h.b16 %v3622
        %v3734 = vunpack.c.l.b16 %v3623
        %v3735 = vunpack.c.h.b16 %v3623
        %v3736 = vunpack.c.l.b16 %v3624
        %v3737 = vunpack.c.h.b16 %v3624
        %v3738 = vunpack.c.l.b16 %v3625
        %v3739 = vunpack.c.h.b16 %v3625
        %v3740 = vunpack.c.l.b16 %v3626
        %v3741 = vunpack.c.h.b16 %v3626
        %v3742 = vunpack.c.l.b16 %v3627
        %v3743 = vunpack.c.h.b16 %v3627
        %v3744 = vunpack.c.l.b16 %v3628
        %v3745 = vunpack.c.h.b16 %v3628
        %v3746 = vunpack.c.l.b16 %v3629
        %v3747 = vunpack.c.h.b16 %v3629
        %v3748 = vunpack.c.l.b16 %v3630
        %v3749 = vunpack.c.h.b16 %v3630
        %v3750 = vunpack.c.l.b16 %v3631
        %v3751 = vunpack.c.h.b16 %v3631
        %v3752 = vunpack.c.l.b16 %v3632
        %v3753 = vunpack.c.h.b16 %v3632
        %v3754 = vunpack.c.l.b16 %v3633
        %v3755 = vunpack.c.h.b16 %v3633
        %v3756 = vunpack.c.l.b16 %v3634
        %v3757 = vunpack.c.h.b16 %v3634
        %v3758 = vunpack.c.l.b16 %v3635
        %v3759 = vunpack.c.h.b16 %v3635
        %v3760 = vunpack.c.l.b16 %v3636
        %v3761 = vunpack.c.h.b16 %v3636
        %v3762 = vunpack.c.l.b16 %v3637
        %v3763 = vunpack.c.h.b16 %v3637
        %v3764 = vunpack.c.l.b16 %v3638
        %v3765 = vunpack.c.h.b16 %v3638
        %v3766 = vunpack.c.l.b16 %v3639
        %v3767 = vunpack.c.h.b16 %v3639
        %v3768 = vunpack.c.l.b16 %v3640
        %v3769 = vunpack.c.h.b16 %v3640
        %v3770 = vunpack.c.l.b16 %v3641
        %v3771 = vunpack.c.h.b16 %v3641
        %v3772 = vunpack.c.l.b16 %v3642
        %v3773 = vunpack.c.h.b16 %v3642
        %v3774 = vunpack.c.l.b16 %v3643
        %v3775 = vunpack.c.h.b16 %v3643
        %v3776 = vunpack.c.l.b16 %v3644
        %v3777 = vunpack.c.h.b16 %v3644
        %v3778 = vunpack.c.l.b16 %v3645
        %v3779 = vunpack.c.h.b16 %v3645
        %v3780 = vunpack.c.l.b16 %v3646
        %v3781 = vunpack.c.h.b16 %v3646
        %v3782 = vunpack.c.l.b16 %v3647
        %v3783 = vunpack.c.h.b16 %v3647
        %v3784 = vunpack.c.l.b16 %v3648
        %v3785 = vunpack.c.h.b16 %v3648
        %v3786 = vunpack.c.l.b16 %v3649
        %v3787 = vunpack.c.h.b16 %v3649
        %v3788 = vunpack.c.l.b16 %v3650
        %v3789 = vunpack.c.h.b16 %v3650
        %v3790 = vunpack.c.l.b16 %v3651
        %v3791 = vunpack.c.h.b16 %v3651
        %v3792 = vunpack.c.l.b16 %v3652
        %v3793 = vunpack.c.h.b16 %v3652
        %v3794 = vunpack.c.l.b16 %v3653
        %v3795 = vunpack.c.h.b16 %v3653
        %v3796 = vunpack.c.l.b16 %v3654
        %v3797 = vunpack.c.h.b16 %v3654
        %v3798 = vunpack.c.l.b16 %v3655
        %v3799 = vunpack.c.h.b16 %v3655
        %v3800 = vunpack.c.l.b16 %v3656
        %v3801 = vunpack.c.h.b16 %v3656
        %v3802 = vunpack.c.l.b16 %v3657
        %v3803 = vunpack.c.h.b16 %v3657
        %v3804 = vunpack.c.l.b16 %v3658
        %v3805 = vunpack.c.h.b16 %v3658
        %v3806 = vunpack.c.l.b16 %v3659
        %v3807 = vunpack.c.h.b16 %v3659
        %v3808 = vunpack.c.l.b16 %v3660
        %v3809 = vunpack.c.h.b16 %v3660
        %v3810 = vunpack.c.l.b16 %v3661
        %v3811 = vunpack.c.h.b16 %v3661
        %v3812 = vunpack.c.l.b16 %v3662
        %v3813 = vunpack.c.h.b16 %v3662
        %v3814 = vunpack.c.l.b16 %v3663
        %v3815 = vunpack.c.h.b16 %v3663
        %v3816 = vunpack.c.l.b16 %v3664
        %v3817 = vunpack.c.h.b16 %v3664
        %v3818 = vunpack.c.l.b16 %v3665
        %v3819 = vunpack.c.h.b16 %v3665
        %v3820 = vunpack.c.l.b16 %v3666
        %v3821 = vunpack.c.h.b16 %v3666
        %v3822 = vunpack.c.l.b16 %v3667
        %v3823 = vunpack.c.h.b16 %v3667
        %v3824 = vpack.c.b16 %v3730, %v3728
        %v3825 = vpack.c.b16 %v3731, %v3729
        %v3826 = vpack.c.b16 %v3734, %v3732
        %v3827 = vpack.c.b16 %v3735, %v3733
        %v3828 = vpack.c.b16 %v3738, %v3736
        %v3829 = vpack.c.b16 %v3739, %v3737
        %v3830 = vpack.c.b16 %v3742, %v3740
        %v3831 = vpack.c.b16 %v3743, %v3741
        %v3832 = vpack.c.b16 %v3746, %v3744
        %v3833 = vpack.c.b16 %v3747, %v3745
        %v3834 = vpack.c.b16 %v3750, %v3748
        %v3835 = vpack.c.b16 %v3751, %v3749
        %v3836 = vpack.c.b16 %v3754, %v3752
        %v3837 = vpack.c.b16 %v3755, %v3753
        %v3838 = vpack.c.b16 %v3758, %v3756
        %v3839 = vpack.c.b16 %v3759, %v3757
        %v3840 = vpack.c.b16 %v3762, %v3760
        %v3841 = vpack.c.b16 %v3763, %v3761
        %v3842 = vpack.c.b16 %v3766, %v3764
        %v3843 = vpack.c.b16 %v3767, %v3765
        %v3844 = vpack.c.b16 %v3770, %v3768
        %v3845 = vpack.c.b16 %v3771, %v3769
        %v3846 = vpack.c.b16 %v3774, %v3772
        %v3847 = vpack.c.b16 %v3775, %v3773
        %v3848 = vpack.c.b16 %v3778, %v3776
        %v3849 = vpack.c.b16 %v3779, %v3777
        %v3850 = vpack.c.b16 %v3782, %v3780
        %v3851 = vpack.c.b16 %v3783, %v3781
        %v3852 = vpack.c.b16 %v3786, %v3784
        %v3853 = vpack.c.b16 %v3787, %v3785
        %v3854 = vpack.c.b16 %v3790, %v3788
        %v3855 = vpack.c.b16 %v3791, %v3789
        %v3856 = vpack.c.b16 %v3794, %v3792
        %v3857 = vpack.c.b16 %v3795, %v3793
        %v3858 = vpack.c.b16 %v3798, %v3796
        %v3859 = vpack.c.b16 %v3799, %v3797
        %v3860 = vpack.c.b16 %v3802, %v3800
        %v3861 = vpack.c.b16 %v3803, %v3801
        %v3862 = vpack.c.b16 %v3806, %v3804
        %v3863 = vpack.c.b16 %v3807, %v3805
        %v3864 = vpack.c.b16 %v3810, %v3808
        %v3865 = vpack.c.b16 %v3811, %v3809
        %v3866 = vpack.c.b16 %v3814, %v3812
        %v3867 = vpack.c.b16 %v3815, %v3813
        %v3868 = vpack.c.b16 %v3818, %v3816
        %v3869 = vpack.c.b16 %v3819, %v3817
        %v3870 = vpack.c.b16 %v3822, %v3820
        %v3871 = vpack.c.b16 %v3823, %v3821
        %3920 = vmatprep.subr.bf16.mxu0 %v3825
        %3921 = vmatpush1.bf16.msra.mxu0 %v3824
        %3922 = vmatprep.subr.bf16.mxu0 %v3827
        %3923 = vmatpush1.bf16.msra.mxu0 %v3826
        %3924 = vmatprep.subr.bf16.mxu0 %v3829
        %3925 = vmatpush1.bf16.msra.mxu0 %v3828
        %3926 = vmatprep.subr.bf16.mxu0 %v3831
        %3927 = vmatpush1.bf16.msra.mxu0 %v3830
        %3928 = vmatprep.subr.bf16.mxu0 %v3833
        %3929 = vmatpush1.bf16.msra.mxu0 %v3832
        %3930 = vmatprep.subr.bf16.mxu0 %v3835
        %3931 = vmatpush1.bf16.msra.mxu0 %v3834
        %3932 = vmatprep.subr.bf16.mxu0 %v3837
        %3933 = vmatpush1.bf16.msra.mxu0 %v3836
        %3934 = vmatprep.subr.bf16.mxu0 %v3839
        %3935 = vmatpush1.bf16.msra.mxu0 %v3838
        %3936 = vmatprep.subr.bf16.mxu0 %v3841
        %3937 = vmatpush1.bf16.msra.mxu0 %v3840
        %3938 = vmatprep.subr.bf16.mxu0 %v3843
        %3939 = vmatpush1.bf16.msra.mxu0 %v3842
        %3940 = vmatprep.subr.bf16.mxu0 %v3845
        %3941 = vmatpush1.bf16.msra.mxu0 %v3844
        %3942 = vmatprep.subr.bf16.mxu0 %v3847
        %3943 = vmatpush1.bf16.msra.mxu0 %v3846
        %3944 = vmatprep.subr.bf16.mxu0 %v3849
        %3945 = vmatpush1.bf16.msra.mxu0 %v3848
        %3946 = vmatprep.subr.bf16.mxu0 %v3851
        %3947 = vmatpush1.bf16.msra.mxu0 %v3850
        %3948 = vmatprep.subr.bf16.mxu0 %v3853
        %3949 = vmatpush1.bf16.msra.mxu0 %v3852
        %3950 = vmatprep.subr.bf16.mxu0 %v3855
        %3951 = vmatpush1.bf16.msra.mxu0 %v3854
        %3952 = vmatprep.mubr.bf16.mxu0 %v3516
        %3953 = vmatmul.mubr.bf16.gmra.mrb[0].mxu0 %v3567
        %v3954 = vpop.f32.mrb[0].mxu0
        %v3955 = vadd.f32 %v3673, %v3954
        %v3956 = vpop.f32.mrb[0].mxu0
        %v3957 = vadd.f32 %v3677, %v3956
        %v3958 = vpop.f32.mrb[0].mxu0
        %v3959 = vadd.f32 %v3673, %v3958
        %v3960 = vpop.f32.mrb[0].mxu0
        %v3961 = vadd.f32 %v3677, %v3960
        %3962 = vmatprep.mubr.bf16.mxu0 %v3517
        %3963 = vmatmul.mubr.bf16.gmra.mrb[0].mxu0 %v3568
        %v3964 = vpop.f32.mrb[0].mxu0
        %v3965 = vadd.f32 %v3673, %v3964
        %v3966 = vpop.f32.mrb[0].mxu0
        %v3967 = vadd.f32 %v3677, %v3966
        %v3968 = vpop.f32.mrb[0].mxu0
        %v3969 = vadd.f32 %v3673, %v3968
        %v3970 = vpop.f32.mrb[0].mxu0
        %v3971 = vadd.f32 %v3677, %v3970
        %3972 = vdwg.mxu0
        %3973 = vmatprep.subr.bf16.mxu0 %v3857
        %3974 = vmatpush1.bf16.msra.mxu0 %v3856
        %3975 = vmatprep.subr.bf16.mxu0 %v3859
        %3976 = vmatpush1.bf16.msra.mxu0 %v3858
        %3977 = vmatprep.subr.bf16.mxu0 %v3861
        %3978 = vmatpush1.bf16.msra.mxu0 %v3860
        %3979 = vmatprep.subr.bf16.mxu0 %v3863
        %3980 = vmatpush1.bf16.msra.mxu0 %v3862
        %3981 = vmatprep.subr.bf16.mxu0 %v3865
        %3982 = vmatpush1.bf16.msra.mxu0 %v3864
        %3983 = vmatprep.subr.bf16.mxu0 %v3867
        %3984 = vmatpush1.bf16.msra.mxu0 %v3866
        %3985 = vmatprep.subr.bf16.mxu0 %v3869
        %3986 = vmatpush1.bf16.msra.mxu0 %v3868
        %3987 = vmatprep.subr.bf16.mxu0 %v3871
        %3988 = vmatpush1.bf16.msra.mxu0 %v3870
        %3989 = vmatprep.subr.bf16.mxu0 0
        %3990 = vmatpush1.bf16.msra.mxu0 0
        %3991 = vmatprep.subr.bf16.mxu0 0
        %3992 = vmatpush1.bf16.msra.mxu0 0
        %3993 = vmatprep.subr.bf16.mxu0 0
        %3994 = vmatpush1.bf16.msra.mxu0 0
        %3995 = vmatprep.subr.bf16.mxu0 0
        %3996 = vmatpush1.bf16.msra.mxu0 0
        %3997 = vmatprep.subr.bf16.mxu0 0
        %3998 = vmatpush1.bf16.msra.mxu0 0
        %3999 = vmatprep.subr.bf16.mxu0 0
        %4000 = vmatpush1.bf16.msra.mxu0 0
        %4001 = vmatprep.subr.bf16.mxu0 0
        %4002 = vmatpush1.bf16.msra.mxu0 0
        %4003 = vmatprep.subr.bf16.mxu0 0
        %4004 = vmatpush1.bf16.msra.mxu0 0
        %4005 = vmatprep.mubr.bf16.mxu0 0
        %4006 = vmatmul.mubr.bf16.gmra.mrb[0].mxu0 %v3618
        %v4007 = vpop.f32.mrb[0].mxu0
        %v4008 = vadd.f32 %v3955, %v4007
        %v4009 = vpop.f32.mrb[0].mxu0
        %v4010 = vadd.f32 %v3957, %v4009
        %v4011 = vpop.f32.mrb[0].mxu0
        %v4012 = vadd.f32 %v3959, %v4011
        %v4013 = vpop.f32.mrb[0].mxu0
        %v4014 = vadd.f32 %v3961, %v4013
        %4015 = vmatprep.mubr.bf16.mxu0 0
        %4016 = vmatmul.mubr.bf16.gmra.mrb[0].mxu0 %v3619
        %v4017 = vpop.f32.mrb[0].mxu0
        %v4018 = vadd.f32 %v3965, %v4017
        %v4019 = vpop.f32.mrb[0].mxu0
        %v4020 = vadd.f32 %v3967, %v4019
        %v4021 = vpop.f32.mrb[0].mxu0
        %v4022 = vadd.f32 %v3969, %v4021
        %v4023 = vpop.f32.mrb[0].mxu0
        %v4024 = vadd.f32 %v3971, %v4023
        %4025 = vdwg.mxu0
        %v4026 = vmax.f32 %v4008, 0.0
        %v4027 = vmax.f32 %v4010, 0.0
        %v4028 = vmax.f32 %v4012, 0.0
        %v4029 = vmax.f32 %v4014, 0.0
        %v4030 = vmax.f32 %v4018, 0.0
        %v4031 = vmax.f32 %v4020, 0.0
        %v4032 = vmax.f32 %v4022, 0.0
        %v4033 = vmax.f32 %v4024, 0.0
        %v4034 = vsel %vm3100, %v2818, 0
        %v4036 = vsel %vm3100, %v2819, 0
        %4038 = vmatprep.subr.mxu0 %v4027
        %4039 = vmatpush1.msra.mxu0 %v4026
        %4040 = vmatprep.subr.mxu0 %v4029
        %4041 = vmatpush1.msra.mxu0 %v4028
        %4042 = vmatprep.subr.mxu0 %v4031
        %4043 = vmatpush1.msra.mxu0 %v4030
        %4044 = vmatprep.subr.mxu0 %v4033
        %4045 = vmatpush1.msra.mxu0 %v4032
        %4046 = vmatprep.subr.mxu0 0.0
        %4047 = vmatpush1.msra.mxu0 0.0
        %4048 = vmatprep.subr.mxu0 0.0
        %4049 = vmatpush1.msra.mxu0 0.0
        %4050 = vmatprep.subr.mxu0 0.0
        %4051 = vmatpush1.msra.mxu0 0.0
        %4052 = vmatprep.subr.mxu0 0.0
        %4053 = vmatpush1.msra.mxu0 0.0
        %4054 = vmatprep.subr.mxu0 0.0
        %4055 = vmatpush1.msra.mxu0 0.0
        %4056 = vmatprep.subr.mxu0 0.0
        %4057 = vmatpush1.msra.mxu0 0.0
        %4058 = vmatprep.subr.mxu0 0.0
        %4059 = vmatpush1.msra.mxu0 0.0
        %4060 = vmatprep.subr.mxu0 0.0
        %4061 = vmatpush1.msra.mxu0 0.0
        %4062 = vmatprep.subr.mxu0 0.0
        %4063 = vmatpush1.msra.mxu0 0.0
        %4064 = vmatprep.subr.mxu0 0.0
        %4065 = vmatpush1.msra.mxu0 0.0
        %4066 = vmatprep.subr.mxu0 0.0
        %4067 = vmatpush1.msra.mxu0 0.0
        %4068 = vmatprep.subr.mxu0 0.0
        %4069 = vmatpush1.msra.mxu0 0.0
        %4070 = vmatprep.subr.mxu0 0.0
        %4071 = vmatpush1.msra.mxu0 0.0
        %4072 = vmatprep.subr.mxu0 0.0
        %4073 = vmatpush1.msra.mxu0 0.0
        %4074 = vmatprep.subr.mxu0 0.0
        %4075 = vmatpush1.msra.mxu0 0.0
        %4076 = vmatprep.subr.mxu0 0.0
        %4077 = vmatpush1.msra.mxu0 0.0
        %4078 = vmatprep.subr.mxu0 0.0
        %4079 = vmatpush1.msra.mxu0 0.0
        %4080 = vmatprep.subr.mxu0 0.0
        %4081 = vmatpush1.msra.mxu0 0.0
        %4082 = vmatprep.subr.mxu0 0.0
        %4083 = vmatpush1.msra.mxu0 0.0
        %4084 = vmatprep.subr.mxu0 0.0
        %4085 = vmatpush1.msra.mxu0 0.0
        %4086 = vmatprep.subr.mxu0 0.0
        %4087 = vmatpush1.msra.mxu0 0.0
        %4088 = vmatprep.subr.mxu0 0.0
        %4089 = vmatpush1.msra.mxu0 0.0
        %4090 = vmatprep.subr.mxu0 0.0
        %4091 = vmatpush1.msra.mxu0 0.0
        %4092 = vmatprep.subr.mxu0 0.0
        %4093 = vmatpush1.msra.mxu0 0.0
        %4094 = vmatprep.subr.mxu0 0.0
        %4095 = vmatpush1.msra.mxu0 0.0
        %4096 = vmatprep.subr.mxu0 0.0
        %4097 = vmatpush1.msra.mxu0 0.0
        %4098 = vmatprep.subr.mxu0 0.0
        %4099 = vmatpush1.msra.mxu0 0.0
        %4100 = vmatprep.subr.mxu0 0.0
        %4101 = vmatpush1.msra.mxu0 0.0
        %4102 = vmatprep.mubr.f32.mxu0 0.0
        %4103 = vmatmul.mubr.f32.gmra.mrb[0].mxu0 %v4034
        %v4104 = vpop.f32.mrb[0].mxu0
        %v4105 = vadd.f32 0.0, %v4104
        %v4106 = vpop.f32.mrb[0].mxu0
        %v4107 = vadd.f32 0.0, %v4106
        %4108 = vmatprep.mubr.f32.mxu0 0.0
        %4109 = vmatmul.mubr.f32.gmra.mrb[0].mxu0 %v4036
        %v4110 = vpop.f32.mrb[0].mxu0
        %v4111 = vadd.f32 0.0, %v4110
        %v4112 = vpop.f32.mrb[0].mxu0
        %v4113 = vadd.f32 0.0, %v4112
        %4114 = vdwg.mxu0
        %v4115 = vpack.c.bf16 %v4111, %v4105
        %v4116 = vpack.c.bf16 %v4113, %v4107
        %v4117 = vsel %vm3100, %v2921, 0
        %4119 = vmatprep.subr.bf16.mxu0 0
        %4120 = vmatpush1.bf16.msra.mxu0 %v3516
        %4121 = vmatprep.subr.bf16.mxu0 0
        %4122 = vmatpush1.bf16.msra.mxu0 %v3517
        %4123 = vmatprep.subr.bf16.mxu0 0
        %4124 = vmatpush1.bf16.msra.mxu0 0
        %4125 = vmatprep.subr.bf16.mxu0 0
        %4126 = vmatpush1.bf16.msra.mxu0 0
        %4127 = vmatprep.subr.bf16.mxu0 0
        %4128 = vmatpush1.bf16.msra.mxu0 0
        %4129 = vmatprep.subr.bf16.mxu0 0
        %4130 = vmatpush1.bf16.msra.mxu0 0
        %4131 = vmatprep.subr.bf16.mxu0 0
        %4132 = vmatpush1.bf16.msra.mxu0 0
        %4133 = vmatprep.subr.bf16.mxu0 0
        %4134 = vmatpush1.bf16.msra.mxu0 0
        %4135 = vmatprep.subr.bf16.mxu0 0
        %4136 = vmatpush1.bf16.msra.mxu0 0
        %4137 = vmatprep.subr.bf16.mxu0 0
        %4138 = vmatpush1.bf16.msra.mxu0 0
        %4139 = vmatprep.subr.bf16.mxu0 0
        %4140 = vmatpush1.bf16.msra.mxu0 0
        %4141 = vmatprep.subr.bf16.mxu0 0
        %4142 = vmatpush1.bf16.msra.mxu0 0
        %4143 = vmatprep.subr.bf16.mxu0 0
        %4144 = vmatpush1.bf16.msra.mxu0 0
        %4145 = vmatprep.subr.bf16.mxu0 0
        %4146 = vmatpush1.bf16.msra.mxu0 0
        %4147 = vmatprep.subr.bf16.mxu0 0
        %4148 = vmatpush1.bf16.msra.mxu0 0
        %4149 = vmatprep.subr.bf16.mxu0 0
        %4150 = vmatpush1.bf16.msra.mxu0 0
        %4151 = vmatprep.mubr.bf16.mxu0 0
        %4152 = vmatmul.mubr.bf16.gmra.mrb[0].mxu0 %v4117
        %v4153 = vpop.f32.mrb[0].mxu0
        %v4154 = vadd.f32 0.0, %v4153
        %v4155 = vpop.f32.mrb[0].mxu0
        %v4156 = vpop.f32.mrb[0].mxu0
        %v4157 = vadd.f32 0.0, %v4156
        %v4158 = vpop.f32.mrb[0].mxu0
        %4159 = vdwg.mxu0
        %v4160 = vpack.c.bf16 %v4157, %v4154
        %v4161 = vld [vmem:[#allocation27] sm:$0xff]
        %v4162 = vld [vmem:[#allocation27 + $0x8] sm:$0xff]
        %v4163 = vld [vmem:[#allocation27 + $0x10] sm:$0xff]
        %v4164 = vld [vmem:[#allocation27 + $0x18] sm:$0xff]
        %v4165 = vld [vmem:[#allocation27 + $0x20] sm:$0xff]
        %v4166 = vld [vmem:[#allocation27 + $0x28] sm:$0xff]
        %v4167 = vld [vmem:[#allocation27 + $0x30] sm:$0xff]
        %v4168 = vld [vmem:[#allocation27 + $0x38] sm:$0xff]
        %v4169 = vld [vmem:[#allocation27 + $0x40] sm:$0xff]
        %v4170 = vld [vmem:[#allocation27 + $0x48] sm:$0xff]
        %v4171 = vld [vmem:[#allocation27 + $0x50] sm:$0xff]
        %v4172 = vld [vmem:[#allocation27 + $0x58] sm:$0xff]
        %v4173 = vld [vmem:[#allocation27 + $0x60] sm:$0xff]
        %v4174 = vld [vmem:[#allocation27 + $0x68] sm:$0xff]
        %v4175 = vld [vmem:[#allocation27 + $0x70] sm:$0xff]
        %v4176 = vld [vmem:[#allocation27 + $0x78] sm:$0xff]
        %v4177 = vld [vmem:[#allocation28] sm:$0x3]
        %v4179 = vlaneseq
        %v4180 = vshrl.u32 %v4179, 7
        %v4181 = vsub.s32 0, %v4180
        %v4182 = vrot.slane %v4177, %v4181
        %v4183 = vlaneseq
        %v4184 = vshrl.u32 %v4183, 7
        %v4185 = vsub.s32 1, %v4184
        %v4186 = vrot.slane %v4177, %v4185
        %v4205 = vunpack.c.l.b16 %v4161
        %v4206 = vunpack.c.h.b16 %v4161
        %v4207 = vunpack.c.l.b16 %v4162
        %v4208 = vunpack.c.h.b16 %v4162
        %v4209 = vunpack.c.l.b16 %v4163
        %v4210 = vunpack.c.h.b16 %v4163
        %v4211 = vunpack.c.l.b16 %v4164
        %v4212 = vunpack.c.h.b16 %v4164
        %v4213 = vunpack.c.l.b16 %v4165
        %v4214 = vunpack.c.h.b16 %v4165
        %v4215 = vunpack.c.l.b16 %v4166
        %v4216 = vunpack.c.h.b16 %v4166
        %v4217 = vunpack.c.l.b16 %v4167
        %v4218 = vunpack.c.h.b16 %v4167
        %v4219 = vunpack.c.l.b16 %v4168
        %v4220 = vunpack.c.h.b16 %v4168
        %v4221 = vunpack.c.l.b16 %v4169
        %v4222 = vunpack.c.h.b16 %v4169
        %v4223 = vunpack.c.l.b16 %v4170
        %v4224 = vunpack.c.h.b16 %v4170
        %v4225 = vunpack.c.l.b16 %v4171
        %v4226 = vunpack.c.h.b16 %v4171
        %v4227 = vunpack.c.l.b16 %v4172
        %v4228 = vunpack.c.h.b16 %v4172
        %v4229 = vunpack.c.l.b16 %v4173
        %v4230 = vunpack.c.h.b16 %v4173
        %v4231 = vunpack.c.l.b16 %v4174
        %v4232 = vunpack.c.h.b16 %v4174
        %v4233 = vunpack.c.l.b16 %v4175
        %v4234 = vunpack.c.h.b16 %v4175
        %v4235 = vunpack.c.l.b16 %v4176
        %v4236 = vunpack.c.h.b16 %v4176
        %v4237 = vpack.c.b16 %v4207, %v4205
        %v4238 = vpack.c.b16 %v4208, %v4206
        %v4239 = vpack.c.b16 %v4211, %v4209
        %v4240 = vpack.c.b16 %v4212, %v4210
        %v4241 = vpack.c.b16 %v4215, %v4213
        %v4242 = vpack.c.b16 %v4216, %v4214
        %v4243 = vpack.c.b16 %v4219, %v4217
        %v4244 = vpack.c.b16 %v4220, %v4218
        %v4245 = vpack.c.b16 %v4223, %v4221
        %v4246 = vpack.c.b16 %v4224, %v4222
        %v4247 = vpack.c.b16 %v4227, %v4225
        %v4248 = vpack.c.b16 %v4228, %v4226
        %v4249 = vpack.c.b16 %v4231, %v4229
        %v4250 = vpack.c.b16 %v4232, %v4230
        %v4251 = vpack.c.b16 %v4235, %v4233
        %v4252 = vpack.c.b16 %v4236, %v4234
        %4269 = vmatprep.subr.bf16.mxu0 %v4238
        %4270 = vmatpush1.bf16.msra.mxu0 %v4237
        %4271 = vmatprep.subr.bf16.mxu0 %v4240
        %4272 = vmatpush1.bf16.msra.mxu0 %v4239
        %4273 = vmatprep.subr.bf16.mxu0 %v4242
        %4274 = vmatpush1.bf16.msra.mxu0 %v4241
        %4275 = vmatprep.subr.bf16.mxu0 %v4244
        %4276 = vmatpush1.bf16.msra.mxu0 %v4243
        %4277 = vmatprep.subr.bf16.mxu0 %v4246
        %4278 = vmatpush1.bf16.msra.mxu0 %v4245
        %4279 = vmatprep.subr.bf16.mxu0 %v4248
        %4280 = vmatpush1.bf16.msra.mxu0 %v4247
        %4281 = vmatprep.subr.bf16.mxu0 %v4250
        %4282 = vmatpush1.bf16.msra.mxu0 %v4249
        %4283 = vmatprep.subr.bf16.mxu0 %v4252
        %4284 = vmatpush1.bf16.msra.mxu0 %v4251
        %4285 = vmatprep.subr.bf16.mxu0 0
        %4286 = vmatpush1.bf16.msra.mxu0 0
        %4287 = vmatprep.subr.bf16.mxu0 0
        %4288 = vmatpush1.bf16.msra.mxu0 0
        %4289 = vmatprep.subr.bf16.mxu0 0
        %4290 = vmatpush1.bf16.msra.mxu0 0
        %4291 = vmatprep.subr.bf16.mxu0 0
        %4292 = vmatpush1.bf16.msra.mxu0 0
        %4293 = vmatprep.subr.bf16.mxu0 0
        %4294 = vmatpush1.bf16.msra.mxu0 0
        %4295 = vmatprep.subr.bf16.mxu0 0
        %4296 = vmatpush1.bf16.msra.mxu0 0
        %4297 = vmatprep.subr.bf16.mxu0 0
        %4298 = vmatpush1.bf16.msra.mxu0 0
        %4299 = vmatprep.subr.bf16.mxu0 0
        %4300 = vmatpush1.bf16.msra.mxu0 0
        %4301 = vmatprep.mubr.bf16.mxu0 0
        %4302 = vmatmul.mubr.bf16.gmra.mrb[0].mxu0 %v4160
        %v4303 = vpop.f32.mrb[0].mxu0
        %v4304 = vadd.f32 %v4182, %v4303
        %v4305 = vpop.f32.mrb[0].mxu0
        %v4306 = vadd.f32 %v4186, %v4305
        %v4307 = vpop.f32.mrb[0].mxu0
        %v4308 = vadd.f32 %v4182, %v4307
        %v4309 = vpop.f32.mrb[0].mxu0
        %v4310 = vadd.f32 %v4186, %v4309
        %4311 = vdwg.mxu0
        %vm4312 = vcmask 130048
        %v4313 = vsel %vm4312, %v1304, 0
        %4315 = vmatprep.subr.bf16.mxu0 %v4116
        %4316 = vmatpush1.bf16.msra.mxu0 %v4115
        %4317 = vmatprep.subr.bf16.mxu0 0
        %4318 = vmatpush1.bf16.msra.mxu0 0
        %4319 = vmatprep.subr.bf16.mxu0 0
        %4320 = vmatpush1.bf16.msra.mxu0 0
        %4321 = vmatprep.subr.bf16.mxu0 0
        %4322 = vmatpush1.bf16.msra.mxu0 0
        %4323 = vmatprep.subr.bf16.mxu0 0
        %4324 = vmatpush1.bf16.msra.mxu0 0
        %4325 = vmatprep.subr.bf16.mxu0 0
        %4326 = vmatpush1.bf16.msra.mxu0 0
        %4327 = vmatprep.subr.bf16.mxu0 0
        %4328 = vmatpush1.bf16.msra.mxu0 0
        %4329 = vmatprep.subr.bf16.mxu0 0
        %4330 = vmatpush1.bf16.msra.mxu0 0
        %4331 = vmatprep.subr.bf16.mxu0 0
        %4332 = vmatpush1.bf16.msra.mxu0 0
        %4333 = vmatprep.subr.bf16.mxu0 0
        %4334 = vmatpush1.bf16.msra.mxu0 0
        %4335 = vmatprep.subr.bf16.mxu0 0
        %4336 = vmatpush1.bf16.msra.mxu0 0
        %4337 = vmatprep.subr.bf16.mxu0 0
        %4338 = vmatpush1.bf16.msra.mxu0 0
        %4339 = vmatprep.subr.bf16.mxu0 0
        %4340 = vmatpush1.bf16.msra.mxu0 0
        %4341 = vmatprep.subr.bf16.mxu0 0
        %4342 = vmatpush1.bf16.msra.mxu0 0
        %4343 = vmatprep.subr.bf16.mxu0 0
        %4344 = vmatpush1.bf16.msra.mxu0 0
        %4345 = vmatprep.subr.bf16.mxu0 0
        %4346 = vmatpush1.bf16.msra.mxu0 0
        %4347 = vmatprep.mubr.bf16.mxu0 0
        %4348 = vmatmul.mubr.bf16.gmra.mrb[0].mxu0 %v4313
        %v4349 = vpop.f32.mrb[0].mxu0
        %v4350 = vadd.f32 0.0, %v4349
        %v4351 = vpop.f32.mrb[0].mxu0
        %v4352 = vadd.f32 0.0, %v4351
        %v4353 = vpop.f32.mrb[0].mxu0
        %v4354 = vadd.f32 0.0, %v4353
        %v4355 = vpop.f32.mrb[0].mxu0
        %v4356 = vadd.f32 0.0, %v4355
        %4357 = vdwg.mxu0
        %v4358 = vpack.c.bf16 %v4354, %v4350
        %v4359 = vpack.c.bf16 %v4356, %v4352
        %v4360 = vsel %vm4312, %v1332, 0
        %4362 = vmatprep.subr.bf16.mxu0 %v4116
        %4363 = vmatpush1.bf16.msra.mxu0 %v4115
        %4364 = vmatprep.subr.bf16.mxu0 0
        %4365 = vmatpush1.bf16.msra.mxu0 0
        %4366 = vmatprep.subr.bf16.mxu0 0
        %4367 = vmatpush1.bf16.msra.mxu0 0
        %4368 = vmatprep.subr.bf16.mxu0 0
        %4369 = vmatpush1.bf16.msra.mxu0 0
        %4370 = vmatprep.subr.bf16.mxu0 0
        %4371 = vmatpush1.bf16.msra.mxu0 0
        %4372 = vmatprep.subr.bf16.mxu0 0
        %4373 = vmatpush1.bf16.msra.mxu0 0
        %4374 = vmatprep.subr.bf16.mxu0 0
        %4375 = vmatpush1.bf16.msra.mxu0 0
        %4376 = vmatprep.subr.bf16.mxu0 0
        %4377 = vmatpush1.bf16.msra.mxu0 0
        %4378 = vmatprep.subr.bf16.mxu0 0
        %4379 = vmatpush1.bf16.msra.mxu0 0
        %4380 = vmatprep.subr.bf16.mxu0 0
        %4381 = vmatpush1.bf16.msra.mxu0 0
        %4382 = vmatprep.subr.bf16.mxu0 0
        %4383 = vmatpush1.bf16.msra.mxu0 0
        %4384 = vmatprep.subr.bf16.mxu0 0
        %4385 = vmatpush1.bf16.msra.mxu0 0
        %4386 = vmatprep.subr.bf16.mxu0 0
        %4387 = vmatpush1.bf16.msra.mxu0 0
        %4388 = vmatprep.subr.bf16.mxu0 0
        %4389 = vmatpush1.bf16.msra.mxu0 0
        %4390 = vmatprep.subr.bf16.mxu0 0
        %4391 = vmatpush1.bf16.msra.mxu0 0
        %4392 = vmatprep.subr.bf16.mxu0 0
        %4393 = vmatpush1.bf16.msra.mxu0 0
        %4394 = vmatprep.mubr.bf16.mxu0 0
        %4395 = vmatmul.mubr.bf16.gmra.mrb[0].mxu0 %v4360
        %v4396 = vpop.f32.mrb[0].mxu0
        %v4397 = vadd.f32 0.0, %v4396
        %v4398 = vpop.f32.mrb[0].mxu0
        %v4399 = vadd.f32 0.0, %v4398
        %v4400 = vpop.f32.mrb[0].mxu0
        %v4401 = vadd.f32 0.0, %v4400
        %v4402 = vpop.f32.mrb[0].mxu0
        %v4403 = vadd.f32 0.0, %v4402
        %4404 = vdwg.mxu0
        %v4405 = vpack.c.bf16 %v4401, %v4397
        %v4406 = vpack.c.bf16 %v4403, %v4399
        %v4407 = vld [vmem:[#allocation24] sm:$0xff]
        %v4408 = vld [vmem:[#allocation24 + $0x8] sm:$0xff]
        %v4409 = vld [vmem:[#allocation24 + $0x10] sm:$0xff]
        %v4410 = vld [vmem:[#allocation24 + $0x18] sm:$0xff]
        %v4411 = vld [vmem:[#allocation24 + $0x20] sm:$0xff]
        %v4412 = vld [vmem:[#allocation24 + $0x28] sm:$0xff]
        %v4413 = vld [vmem:[#allocation24 + $0x30] sm:$0xff]
        %v4414 = vld [vmem:[#allocation24 + $0x38] sm:$0xff]
        %v4415 = vld [vmem:[#allocation24 + $0x40] sm:$0xff]
        %v4416 = vld [vmem:[#allocation24 + $0x48] sm:$0xff]
        %v4417 = vld [vmem:[#allocation24 + $0x50] sm:$0xff]
        %v4418 = vld [vmem:[#allocation24 + $0x58] sm:$0xff]
        %v4419 = vld [vmem:[#allocation24 + $0x60] sm:$0xff]
        %v4420 = vld [vmem:[#allocation24 + $0x68] sm:$0xff]
        %v4421 = vld [vmem:[#allocation24 + $0x70] sm:$0xff]
        %v4422 = vld [vmem:[#allocation24 + $0x78] sm:$0xff]
        %v4423 = vld [vmem:[#allocation24 + $0x80] sm:$0xff]
        %v4424 = vld [vmem:[#allocation24 + $0x88] sm:$0xff]
        %v4425 = vld [vmem:[#allocation24 + $0x90] sm:$0xff]
        %v4426 = vld [vmem:[#allocation24 + $0x98] sm:$0xff]
        %v4427 = vld [vmem:[#allocation24 + $0xa0] sm:$0xff]
        %v4428 = vld [vmem:[#allocation24 + $0xa8] sm:$0xff]
        %v4429 = vld [vmem:[#allocation24 + $0xb0] sm:$0xff]
        %v4430 = vld [vmem:[#allocation24 + $0xb8] sm:$0xff]
        %v4431 = vld [vmem:[#allocation24 + $0xc0] sm:$0xff]
        %v4432 = vld [vmem:[#allocation24 + $0xc8] sm:$0xff]
        %v4433 = vld [vmem:[#allocation24 + $0xd0] sm:$0xff]
        %v4434 = vld [vmem:[#allocation24 + $0xd8] sm:$0xff]
        %v4435 = vld [vmem:[#allocation24 + $0xe0] sm:$0xff]
        %v4436 = vld [vmem:[#allocation24 + $0xe8] sm:$0xff]
        %v4437 = vld [vmem:[#allocation24 + $0xf0] sm:$0xff]
        %v4438 = vld [vmem:[#allocation24 + $0xf8] sm:$0xff]
        %v4439 = vld [vmem:[#allocation24 + $0x100] sm:$0xff]
        %v4440 = vld [vmem:[#allocation24 + $0x108] sm:$0xff]
        %v4441 = vld [vmem:[#allocation24 + $0x110] sm:$0xff]
        %v4442 = vld [vmem:[#allocation24 + $0x118] sm:$0xff]
        %v4443 = vld [vmem:[#allocation24 + $0x120] sm:$0xff]
        %v4444 = vld [vmem:[#allocation24 + $0x128] sm:$0xff]
        %v4445 = vld [vmem:[#allocation24 + $0x130] sm:$0xff]
        %v4446 = vld [vmem:[#allocation24 + $0x138] sm:$0xff]
        %v4447 = vld [vmem:[#allocation24 + $0x140] sm:$0xff]
        %v4448 = vld [vmem:[#allocation24 + $0x148] sm:$0xff]
        %v4449 = vld [vmem:[#allocation24 + $0x150] sm:$0xff]
        %v4450 = vld [vmem:[#allocation24 + $0x158] sm:$0xff]
        %v4451 = vld [vmem:[#allocation24 + $0x160] sm:$0xff]
        %v4452 = vld [vmem:[#allocation24 + $0x168] sm:$0xff]
        %v4453 = vld [vmem:[#allocation24 + $0x170] sm:$0xff]
        %v4454 = vld [vmem:[#allocation24 + $0x178] sm:$0xff]
        %v4455 = vld [vmem:[#allocation24 + $0x180] sm:$0xff]
        %v4456 = vld [vmem:[#allocation24 + $0x188] sm:$0xff]
        %v4457 = vld [vmem:[#allocation24 + $0x190] sm:$0xff]
        %v4458 = vld [vmem:[#allocation24 + $0x198] sm:$0xff]
        %v4459 = vld [vmem:[#allocation24 + $0x1a0] sm:$0xff]
        %v4460 = vld [vmem:[#allocation24 + $0x1a8] sm:$0xff]
        %v4461 = vld [vmem:[#allocation24 + $0x1b0] sm:$0xff]
        %v4462 = vld [vmem:[#allocation24 + $0x1b8] sm:$0xff]
        %v4463 = vld [vmem:[#allocation24 + $0x1c0] sm:$0xff]
        %v4464 = vld [vmem:[#allocation24 + $0x1c8] sm:$0xff]
        %v4465 = vld [vmem:[#allocation24 + $0x1d0] sm:$0xff]
        %v4466 = vld [vmem:[#allocation24 + $0x1d8] sm:$0xff]
        %v4467 = vld [vmem:[#allocation24 + $0x1e0] sm:$0xff]
        %v4468 = vld [vmem:[#allocation24 + $0x1e8] sm:$0xff]
        %v4469 = vld [vmem:[#allocation24 + $0x1f0] sm:$0xff]
        %v4470 = vld [vmem:[#allocation24 + $0x1f8] sm:$0xff]
        %v4471 = vld [vmem:[#allocation24 + $0x200] sm:$0xff]
        %v4472 = vld [vmem:[#allocation24 + $0x208] sm:$0xff]
        %v4473 = vld [vmem:[#allocation24 + $0x210] sm:$0xff]
        %v4474 = vld [vmem:[#allocation24 + $0x218] sm:$0xff]
        %v4475 = vld [vmem:[#allocation24 + $0x220] sm:$0xff]
        %v4476 = vld [vmem:[#allocation24 + $0x228] sm:$0xff]
        %v4477 = vld [vmem:[#allocation24 + $0x230] sm:$0xff]
        %v4478 = vld [vmem:[#allocation24 + $0x238] sm:$0xff]
        %v4479 = vld [vmem:[#allocation24 + $0x240] sm:$0xff]
        %v4480 = vld [vmem:[#allocation24 + $0x248] sm:$0xff]
        %v4481 = vld [vmem:[#allocation24 + $0x250] sm:$0xff]
        %v4482 = vld [vmem:[#allocation24 + $0x258] sm:$0xff]
        %v4483 = vld [vmem:[#allocation24 + $0x260] sm:$0xff]
        %v4484 = vld [vmem:[#allocation24 + $0x268] sm:$0xff]
        %v4485 = vld [vmem:[#allocation24 + $0x270] sm:$0xff]
        %v4486 = vld [vmem:[#allocation24 + $0x278] sm:$0xff]
        %v4487 = vld [vmem:[#allocation24 + $0x280] sm:$0xff]
        %v4488 = vld [vmem:[#allocation24 + $0x288] sm:$0xff]
        %v4489 = vld [vmem:[#allocation24 + $0x290] sm:$0xff]
        %v4490 = vld [vmem:[#allocation24 + $0x298] sm:$0xff]
        %v4491 = vld [vmem:[#allocation24 + $0x2a0] sm:$0xff]
        %v4492 = vld [vmem:[#allocation24 + $0x2a8] sm:$0xff]
        %v4493 = vld [vmem:[#allocation24 + $0x2b0] sm:$0xff]
        %v4494 = vld [vmem:[#allocation24 + $0x2b8] sm:$0xff]
        %v4495 = vld [vmem:[#allocation24 + $0x2c0] sm:$0xff]
        %v4496 = vld [vmem:[#allocation24 + $0x2c8] sm:$0xff]
        %v4497 = vld [vmem:[#allocation24 + $0x2d0] sm:$0xff]
        %v4498 = vld [vmem:[#allocation24 + $0x2d8] sm:$0xff]
        %v4499 = vld [vmem:[#allocation24 + $0x2e0] sm:$0xff]
        %v4500 = vld [vmem:[#allocation24 + $0x2e8] sm:$0xff]
        %v4501 = vld [vmem:[#allocation24 + $0x2f0] sm:$0xff]
        %v4502 = vld [vmem:[#allocation24 + $0x2f8] sm:$0xff]
        %v4503 = vld [vmem:[#allocation25] sm:$0x3]
        %v4505 = vlaneseq
        %v4506 = vshrl.u32 %v4505, 7
        %v4507 = vsub.s32 0, %v4506
        %v4508 = vrot.slane %v4503, %v4507
        %v4509 = vlaneseq
        %v4510 = vshrl.u32 %v4509, 7
        %v4511 = vsub.s32 1, %v4510
        %v4512 = vrot.slane %v4503, %v4511
        %v4611 = vunpack.c.l.b16 %v4407
        %v4612 = vunpack.c.h.b16 %v4407
        %v4613 = vunpack.c.l.b16 %v4408
        %v4614 = vunpack.c.h.b16 %v4408
        %v4615 = vunpack.c.l.b16 %v4409
        %v4616 = vunpack.c.h.b16 %v4409
        %v4617 = vunpack.c.l.b16 %v4410
        %v4618 = vunpack.c.h.b16 %v4410
        %v4619 = vunpack.c.l.b16 %v4411
        %v4620 = vunpack.c.h.b16 %v4411
        %v4621 = vunpack.c.l.b16 %v4412
        %v4622 = vunpack.c.h.b16 %v4412
        %v4623 = vunpack.c.l.b16 %v4413
        %v4624 = vunpack.c.h.b16 %v4413
        %v4625 = vunpack.c.l.b16 %v4414
        %v4626 = vunpack.c.h.b16 %v4414
        %v4627 = vunpack.c.l.b16 %v4415
        %v4628 = vunpack.c.h.b16 %v4415
        %v4629 = vunpack.c.l.b16 %v4416
        %v4630 = vunpack.c.h.b16 %v4416
        %v4631 = vunpack.c.l.b16 %v4417
        %v4632 = vunpack.c.h.b16 %v4417
        %v4633 = vunpack.c.l.b16 %v4418
        %v4634 = vunpack.c.h.b16 %v4418
        %v4635 = vunpack.c.l.b16 %v4419
        %v4636 = vunpack.c.h.b16 %v4419
        %v4637 = vunpack.c.l.b16 %v4420
        %v4638 = vunpack.c.h.b16 %v4420
        %v4639 = vunpack.c.l.b16 %v4421
        %v4640 = vunpack.c.h.b16 %v4421
        %v4641 = vunpack.c.l.b16 %v4422
        %v4642 = vunpack.c.h.b16 %v4422
        %v4643 = vunpack.c.l.b16 %v4423
        %v4644 = vunpack.c.h.b16 %v4423
        %v4645 = vunpack.c.l.b16 %v4424
        %v4646 = vunpack.c.h.b16 %v4424
        %v4647 = vunpack.c.l.b16 %v4425
        %v4648 = vunpack.c.h.b16 %v4425
        %v4649 = vunpack.c.l.b16 %v4426
        %v4650 = vunpack.c.h.b16 %v4426
        %v4651 = vunpack.c.l.b16 %v4427
        %v4652 = vunpack.c.h.b16 %v4427
        %v4653 = vunpack.c.l.b16 %v4428
        %v4654 = vunpack.c.h.b16 %v4428
        %v4655 = vunpack.c.l.b16 %v4429
        %v4656 = vunpack.c.h.b16 %v4429
        %v4657 = vunpack.c.l.b16 %v4430
        %v4658 = vunpack.c.h.b16 %v4430
        %v4659 = vunpack.c.l.b16 %v4431
        %v4660 = vunpack.c.h.b16 %v4431
        %v4661 = vunpack.c.l.b16 %v4432
        %v4662 = vunpack.c.h.b16 %v4432
        %v4663 = vunpack.c.l.b16 %v4433
        %v4664 = vunpack.c.h.b16 %v4433
        %v4665 = vunpack.c.l.b16 %v4434
        %v4666 = vunpack.c.h.b16 %v4434
        %v4667 = vunpack.c.l.b16 %v4435
        %v4668 = vunpack.c.h.b16 %v4435
        %v4669 = vunpack.c.l.b16 %v4436
        %v4670 = vunpack.c.h.b16 %v4436
        %v4671 = vunpack.c.l.b16 %v4437
        %v4672 = vunpack.c.h.b16 %v4437
        %v4673 = vunpack.c.l.b16 %v4438
        %v4674 = vunpack.c.h.b16 %v4438
        %v4675 = vunpack.c.l.b16 %v4439
        %v4676 = vunpack.c.h.b16 %v4439
        %v4677 = vunpack.c.l.b16 %v4440
        %v4678 = vunpack.c.h.b16 %v4440
        %v4679 = vunpack.c.l.b16 %v4441
        %v4680 = vunpack.c.h.b16 %v4441
        %v4681 = vunpack.c.l.b16 %v4442
        %v4682 = vunpack.c.h.b16 %v4442
        %v4683 = vunpack.c.l.b16 %v4443
        %v4684 = vunpack.c.h.b16 %v4443
        %v4685 = vunpack.c.l.b16 %v4444
        %v4686 = vunpack.c.h.b16 %v4444
        %v4687 = vunpack.c.l.b16 %v4445
        %v4688 = vunpack.c.h.b16 %v4445
        %v4689 = vunpack.c.l.b16 %v4446
        %v4690 = vunpack.c.h.b16 %v4446
        %v4691 = vunpack.c.l.b16 %v4447
        %v4692 = vunpack.c.h.b16 %v4447
        %v4693 = vunpack.c.l.b16 %v4448
        %v4694 = vunpack.c.h.b16 %v4448
        %v4695 = vunpack.c.l.b16 %v4449
        %v4696 = vunpack.c.h.b16 %v4449
        %v4697 = vunpack.c.l.b16 %v4450
        %v4698 = vunpack.c.h.b16 %v4450
        %v4699 = vunpack.c.l.b16 %v4451
        %v4700 = vunpack.c.h.b16 %v4451
        %v4701 = vunpack.c.l.b16 %v4452
        %v4702 = vunpack.c.h.b16 %v4452
        %v4703 = vunpack.c.l.b16 %v4453
        %v4704 = vunpack.c.h.b16 %v4453
        %v4705 = vunpack.c.l.b16 %v4454
        %v4706 = vunpack.c.h.b16 %v4454
        %v4707 = vunpack.c.l.b16 %v4455
        %v4708 = vunpack.c.h.b16 %v4455
        %v4709 = vunpack.c.l.b16 %v4456
        %v4710 = vunpack.c.h.b16 %v4456
        %v4711 = vunpack.c.l.b16 %v4457
        %v4712 = vunpack.c.h.b16 %v4457
        %v4713 = vunpack.c.l.b16 %v4458
        %v4714 = vunpack.c.h.b16 %v4458
        %v4715 = vunpack.c.l.b16 %v4459
        %v4716 = vunpack.c.h.b16 %v4459
        %v4717 = vunpack.c.l.b16 %v4460
        %v4718 = vunpack.c.h.b16 %v4460
        %v4719 = vunpack.c.l.b16 %v4461
        %v4720 = vunpack.c.h.b16 %v4461
        %v4721 = vunpack.c.l.b16 %v4462
        %v4722 = vunpack.c.h.b16 %v4462
        %v4723 = vunpack.c.l.b16 %v4463
        %v4724 = vunpack.c.h.b16 %v4463
        %v4725 = vunpack.c.l.b16 %v4464
        %v4726 = vunpack.c.h.b16 %v4464
        %v4727 = vunpack.c.l.b16 %v4465
        %v4728 = vunpack.c.h.b16 %v4465
        %v4729 = vunpack.c.l.b16 %v4466
        %v4730 = vunpack.c.h.b16 %v4466
        %v4731 = vunpack.c.l.b16 %v4467
        %v4732 = vunpack.c.h.b16 %v4467
        %v4733 = vunpack.c.l.b16 %v4468
        %v4734 = vunpack.c.h.b16 %v4468
        %v4735 = vunpack.c.l.b16 %v4469
        %v4736 = vunpack.c.h.b16 %v4469
        %v4737 = vunpack.c.l.b16 %v4470
        %v4738 = vunpack.c.h.b16 %v4470
        %v4739 = vunpack.c.l.b16 %v4471
        %v4740 = vunpack.c.h.b16 %v4471
        %v4741 = vunpack.c.l.b16 %v4472
        %v4742 = vunpack.c.h.b16 %v4472
        %v4743 = vunpack.c.l.b16 %v4473
        %v4744 = vunpack.c.h.b16 %v4473
        %v4745 = vunpack.c.l.b16 %v4474
        %v4746 = vunpack.c.h.b16 %v4474
        %v4747 = vunpack.c.l.b16 %v4475
        %v4748 = vunpack.c.h.b16 %v4475
        %v4749 = vunpack.c.l.b16 %v4476
        %v4750 = vunpack.c.h.b16 %v4476
        %v4751 = vunpack.c.l.b16 %v4477
        %v4752 = vunpack.c.h.b16 %v4477
        %v4753 = vunpack.c.l.b16 %v4478
        %v4754 = vunpack.c.h.b16 %v4478
        %v4755 = vunpack.c.l.b16 %v4479
        %v4756 = vunpack.c.h.b16 %v4479
        %v4757 = vunpack.c.l.b16 %v4480
        %v4758 = vunpack.c.h.b16 %v4480
        %v4759 = vunpack.c.l.b16 %v4481
        %v4760 = vunpack.c.h.b16 %v4481
        %v4761 = vunpack.c.l.b16 %v4482
        %v4762 = vunpack.c.h.b16 %v4482
        %v4763 = vunpack.c.l.b16 %v4483
        %v4764 = vunpack.c.h.b16 %v4483
        %v4765 = vunpack.c.l.b16 %v4484
        %v4766 = vunpack.c.h.b16 %v4484
        %v4767 = vunpack.c.l.b16 %v4485
        %v4768 = vunpack.c.h.b16 %v4485
        %v4769 = vunpack.c.l.b16 %v4486
        %v4770 = vunpack.c.h.b16 %v4486
        %v4771 = vunpack.c.l.b16 %v4487
        %v4772 = vunpack.c.h.b16 %v4487
        %v4773 = vunpack.c.l.b16 %v4488
        %v4774 = vunpack.c.h.b16 %v4488
        %v4775 = vunpack.c.l.b16 %v4489
        %v4776 = vunpack.c.h.b16 %v4489
        %v4777 = vunpack.c.l.b16 %v4490
        %v4778 = vunpack.c.h.b16 %v4490
        %v4779 = vunpack.c.l.b16 %v4491
        %v4780 = vunpack.c.h.b16 %v4491
        %v4781 = vunpack.c.l.b16 %v4492
        %v4782 = vunpack.c.h.b16 %v4492
        %v4783 = vunpack.c.l.b16 %v4493
        %v4784 = vunpack.c.h.b16 %v4493
        %v4785 = vunpack.c.l.b16 %v4494
        %v4786 = vunpack.c.h.b16 %v4494
        %v4787 = vunpack.c.l.b16 %v4495
        %v4788 = vunpack.c.h.b16 %v4495
        %v4789 = vunpack.c.l.b16 %v4496
        %v4790 = vunpack.c.h.b16 %v4496
        %v4791 = vunpack.c.l.b16 %v4497
        %v4792 = vunpack.c.h.b16 %v4497
        %v4793 = vunpack.c.l.b16 %v4498
        %v4794 = vunpack.c.h.b16 %v4498
        %v4795 = vunpack.c.l.b16 %v4499
        %v4796 = vunpack.c.h.b16 %v4499
        %v4797 = vunpack.c.l.b16 %v4500
        %v4798 = vunpack.c.h.b16 %v4500
        %v4799 = vunpack.c.l.b16 %v4501
        %v4800 = vunpack.c.h.b16 %v4501
        %v4801 = vunpack.c.l.b16 %v4502
        %v4802 = vunpack.c.h.b16 %v4502
        %v4803 = vpack.c.b16 %v4613, %v4611
        %v4804 = vpack.c.b16 %v4614, %v4612
        %v4805 = vpack.c.b16 %v4617, %v4615
        %v4806 = vpack.c.b16 %v4618, %v4616
        %v4807 = vpack.c.b16 %v4621, %v4619
        %v4808 = vpack.c.b16 %v4622, %v4620
        %v4809 = vpack.c.b16 %v4625, %v4623
        %v4810 = vpack.c.b16 %v4626, %v4624
        %v4811 = vpack.c.b16 %v4629, %v4627
        %v4812 = vpack.c.b16 %v4630, %v4628
        %v4813 = vpack.c.b16 %v4633, %v4631
        %v4814 = vpack.c.b16 %v4634, %v4632
        %v4815 = vpack.c.b16 %v4637, %v4635
        %v4816 = vpack.c.b16 %v4638, %v4636
        %v4817 = vpack.c.b16 %v4641, %v4639
        %v4818 = vpack.c.b16 %v4642, %v4640
        %v4819 = vpack.c.b16 %v4645, %v4643
        %v4820 = vpack.c.b16 %v4646, %v4644
        %v4821 = vpack.c.b16 %v4649, %v4647
        %v4822 = vpack.c.b16 %v4650, %v4648
        %v4823 = vpack.c.b16 %v4653, %v4651
        %v4824 = vpack.c.b16 %v4654, %v4652
        %v4825 = vpack.c.b16 %v4657, %v4655
        %v4826 = vpack.c.b16 %v4658, %v4656
        %v4827 = vpack.c.b16 %v4661, %v4659
        %v4828 = vpack.c.b16 %v4662, %v4660
        %v4829 = vpack.c.b16 %v4665, %v4663
        %v4830 = vpack.c.b16 %v4666, %v4664
        %v4831 = vpack.c.b16 %v4669, %v4667
        %v4832 = vpack.c.b16 %v4670, %v4668
        %v4833 = vpack.c.b16 %v4673, %v4671
        %v4834 = vpack.c.b16 %v4674, %v4672
        %v4835 = vpack.c.b16 %v4677, %v4675
        %v4836 = vpack.c.b16 %v4678, %v4676
        %v4837 = vpack.c.b16 %v4681, %v4679
        %v4838 = vpack.c.b16 %v4682, %v4680
        %v4839 = vpack.c.b16 %v4685, %v4683
        %v4840 = vpack.c.b16 %v4686, %v4684
        %v4841 = vpack.c.b16 %v4689, %v4687
        %v4842 = vpack.c.b16 %v4690, %v4688
        %v4843 = vpack.c.b16 %v4693, %v4691
        %v4844 = vpack.c.b16 %v4694, %v4692
        %v4845 = vpack.c.b16 %v4697, %v4695
        %v4846 = vpack.c.b16 %v4698, %v4696
        %v4847 = vpack.c.b16 %v4701, %v4699
        %v4848 = vpack.c.b16 %v4702, %v4700
        %v4849 = vpack.c.b16 %v4705, %v4703
        %v4850 = vpack.c.b16 %v4706, %v4704
        %v4851 = vpack.c.b16 %v4709, %v4707
        %v4852 = vpack.c.b16 %v4710, %v4708
        %v4853 = vpack.c.b16 %v4713, %v4711
        %v4854 = vpack.c.b16 %v4714, %v4712
        %v4855 = vpack.c.b16 %v4717, %v4715
        %v4856 = vpack.c.b16 %v4718, %v4716
        %v4857 = vpack.c.b16 %v4721, %v4719
        %v4858 = vpack.c.b16 %v4722, %v4720
        %v4859 = vpack.c.b16 %v4725, %v4723
        %v4860 = vpack.c.b16 %v4726, %v4724
        %v4861 = vpack.c.b16 %v4729, %v4727
        %v4862 = vpack.c.b16 %v4730, %v4728
        %v4863 = vpack.c.b16 %v4733, %v4731
        %v4864 = vpack.c.b16 %v4734, %v4732
        %v4865 = vpack.c.b16 %v4737, %v4735
        %v4866 = vpack.c.b16 %v4738, %v4736
        %v4867 = vpack.c.b16 %v4741, %v4739
        %v4868 = vpack.c.b16 %v4742, %v4740
        %v4869 = vpack.c.b16 %v4745, %v4743
        %v4870 = vpack.c.b16 %v4746, %v4744
        %v4871 = vpack.c.b16 %v4749, %v4747
        %v4872 = vpack.c.b16 %v4750, %v4748
        %v4873 = vpack.c.b16 %v4753, %v4751
        %v4874 = vpack.c.b16 %v4754, %v4752
        %v4875 = vpack.c.b16 %v4757, %v4755
        %v4876 = vpack.c.b16 %v4758, %v4756
        %v4877 = vpack.c.b16 %v4761, %v4759
        %v4878 = vpack.c.b16 %v4762, %v4760
        %v4879 = vpack.c.b16 %v4765, %v4763
        %v4880 = vpack.c.b16 %v4766, %v4764
        %v4881 = vpack.c.b16 %v4769, %v4767
        %v4882 = vpack.c.b16 %v4770, %v4768
        %v4883 = vpack.c.b16 %v4773, %v4771
        %v4884 = vpack.c.b16 %v4774, %v4772
        %v4885 = vpack.c.b16 %v4777, %v4775
        %v4886 = vpack.c.b16 %v4778, %v4776
        %v4887 = vpack.c.b16 %v4781, %v4779
        %v4888 = vpack.c.b16 %v4782, %v4780
        %v4889 = vpack.c.b16 %v4785, %v4783
        %v4890 = vpack.c.b16 %v4786, %v4784
        %v4891 = vpack.c.b16 %v4789, %v4787
        %v4892 = vpack.c.b16 %v4790, %v4788
        %v4893 = vpack.c.b16 %v4793, %v4791
        %v4894 = vpack.c.b16 %v4794, %v4792
        %v4895 = vpack.c.b16 %v4797, %v4795
        %v4896 = vpack.c.b16 %v4798, %v4796
        %v4897 = vpack.c.b16 %v4801, %v4799
        %v4898 = vpack.c.b16 %v4802, %v4800
        %4995 = vmatprep.subr.bf16.mxu0 %v4804
        %4996 = vmatpush1.bf16.msra.mxu0 %v4803
        %4997 = vmatprep.subr.bf16.mxu0 %v4806
        %4998 = vmatpush1.bf16.msra.mxu0 %v4805
        %4999 = vmatprep.subr.bf16.mxu0 %v4808
        %5000 = vmatpush1.bf16.msra.mxu0 %v4807
        %5001 = vmatprep.subr.bf16.mxu0 %v4810
        %5002 = vmatpush1.bf16.msra.mxu0 %v4809
        %5003 = vmatprep.subr.bf16.mxu0 %v4812
        %5004 = vmatpush1.bf16.msra.mxu0 %v4811
        %5005 = vmatprep.subr.bf16.mxu0 %v4814
        %5006 = vmatpush1.bf16.msra.mxu0 %v4813
        %5007 = vmatprep.subr.bf16.mxu0 %v4816
        %5008 = vmatpush1.bf16.msra.mxu0 %v4815
        %5009 = vmatprep.subr.bf16.mxu0 %v4818
        %5010 = vmatpush1.bf16.msra.mxu0 %v4817
        %5011 = vmatprep.subr.bf16.mxu0 %v4820
        %5012 = vmatpush1.bf16.msra.mxu0 %v4819
        %5013 = vmatprep.subr.bf16.mxu0 %v4822
        %5014 = vmatpush1.bf16.msra.mxu0 %v4821
        %5015 = vmatprep.subr.bf16.mxu0 %v4824
        %5016 = vmatpush1.bf16.msra.mxu0 %v4823
        %5017 = vmatprep.subr.bf16.mxu0 %v4826
        %5018 = vmatpush1.bf16.msra.mxu0 %v4825
        %5019 = vmatprep.subr.bf16.mxu0 %v4828
        %5020 = vmatpush1.bf16.msra.mxu0 %v4827
        %5021 = vmatprep.subr.bf16.mxu0 %v4830
        %5022 = vmatpush1.bf16.msra.mxu0 %v4829
        %5023 = vmatprep.subr.bf16.mxu0 %v4832
        %5024 = vmatpush1.bf16.msra.mxu0 %v4831
        %5025 = vmatprep.subr.bf16.mxu0 %v4834
        %5026 = vmatpush1.bf16.msra.mxu0 %v4833
        %5027 = vmatprep.mubr.bf16.mxu0 %v4359
        %5028 = vmatmul.mubr.bf16.gmra.mrb[0].mxu0 %v4358
        %v5029 = vpop.f32.mrb[0].mxu0
        %v5030 = vadd.f32 %v4508, %v5029
        %v5031 = vpop.f32.mrb[0].mxu0
        %v5032 = vadd.f32 %v4512, %v5031
        %v5033 = vpop.f32.mrb[0].mxu0
        %v5034 = vadd.f32 %v4508, %v5033
        %v5035 = vpop.f32.mrb[0].mxu0
        %v5036 = vadd.f32 %v4512, %v5035
        %5037 = vdwg.mxu0
        %5038 = vmatprep.subr.bf16.mxu0 %v4836
        %5039 = vmatpush1.bf16.msra.mxu0 %v4835
        %5040 = vmatprep.subr.bf16.mxu0 %v4838
        %5041 = vmatpush1.bf16.msra.mxu0 %v4837
        %5042 = vmatprep.subr.bf16.mxu0 %v4840
        %5043 = vmatpush1.bf16.msra.mxu0 %v4839
        %5044 = vmatprep.subr.bf16.mxu0 %v4842
        %5045 = vmatpush1.bf16.msra.mxu0 %v4841
        %5046 = vmatprep.subr.bf16.mxu0 %v4844
        %5047 = vmatpush1.bf16.msra.mxu0 %v4843
        %5048 = vmatprep.subr.bf16.mxu0 %v4846
        %5049 = vmatpush1.bf16.msra.mxu0 %v4845
        %5050 = vmatprep.subr.bf16.mxu0 %v4848
        %5051 = vmatpush1.bf16.msra.mxu0 %v4847
        %5052 = vmatprep.subr.bf16.mxu0 %v4850
        %5053 = vmatpush1.bf16.msra.mxu0 %v4849
        %5054 = vmatprep.subr.bf16.mxu0 %v4852
        %5055 = vmatpush1.bf16.msra.mxu0 %v4851
        %5056 = vmatprep.subr.bf16.mxu0 %v4854
        %5057 = vmatpush1.bf16.msra.mxu0 %v4853
        %5058 = vmatprep.subr.bf16.mxu0 %v4856
        %5059 = vmatpush1.bf16.msra.mxu0 %v4855
        %5060 = vmatprep.subr.bf16.mxu0 %v4858
        %5061 = vmatpush1.bf16.msra.mxu0 %v4857
        %5062 = vmatprep.subr.bf16.mxu0 %v4860
        %5063 = vmatpush1.bf16.msra.mxu0 %v4859
        %5064 = vmatprep.subr.bf16.mxu0 %v4862
        %5065 = vmatpush1.bf16.msra.mxu0 %v4861
        %5066 = vmatprep.subr.bf16.mxu0 %v4864
        %5067 = vmatpush1.bf16.msra.mxu0 %v4863
        %5068 = vmatprep.subr.bf16.mxu0 %v4866
        %5069 = vmatpush1.bf16.msra.mxu0 %v4865
        %5070 = vmatprep.mubr.bf16.mxu0 %v4116
        %5071 = vmatmul.mubr.bf16.gmra.mrb[0].mxu0 %v4115
        %v5072 = vpop.f32.mrb[0].mxu0
        %v5073 = vadd.f32 %v5030, %v5072
        %v5074 = vpop.f32.mrb[0].mxu0
        %v5075 = vadd.f32 %v5032, %v5074
        %v5076 = vpop.f32.mrb[0].mxu0
        %v5077 = vadd.f32 %v5034, %v5076
        %v5078 = vpop.f32.mrb[0].mxu0
        %v5079 = vadd.f32 %v5036, %v5078
        %5080 = vdwg.mxu0
        %5081 = vmatprep.subr.bf16.mxu0 %v4868
        %5082 = vmatpush1.bf16.msra.mxu0 %v4867
        %5083 = vmatprep.subr.bf16.mxu0 %v4870
        %5084 = vmatpush1.bf16.msra.mxu0 %v4869
        %5085 = vmatprep.subr.bf16.mxu0 %v4872
        %5086 = vmatpush1.bf16.msra.mxu0 %v4871
        %5087 = vmatprep.subr.bf16.mxu0 %v4874
        %5088 = vmatpush1.bf16.msra.mxu0 %v4873
        %5089 = vmatprep.subr.bf16.mxu0 %v4876
        %5090 = vmatpush1.bf16.msra.mxu0 %v4875
        %5091 = vmatprep.subr.bf16.mxu0 %v4878
        %5092 = vmatpush1.bf16.msra.mxu0 %v4877
        %5093 = vmatprep.subr.bf16.mxu0 %v4880
        %5094 = vmatpush1.bf16.msra.mxu0 %v4879
        %5095 = vmatprep.subr.bf16.mxu0 %v4882
        %5096 = vmatpush1.bf16.msra.mxu0 %v4881
        %5097 = vmatprep.subr.bf16.mxu0 %v4884
        %5098 = vmatpush1.bf16.msra.mxu0 %v4883
        %5099 = vmatprep.subr.bf16.mxu0 %v4886
        %5100 = vmatpush1.bf16.msra.mxu0 %v4885
        %5101 = vmatprep.subr.bf16.mxu0 %v4888
        %5102 = vmatpush1.bf16.msra.mxu0 %v4887
        %5103 = vmatprep.subr.bf16.mxu0 %v4890
        %5104 = vmatpush1.bf16.msra.mxu0 %v4889
        %5105 = vmatprep.subr.bf16.mxu0 %v4892
        %5106 = vmatpush1.bf16.msra.mxu0 %v4891
        %5107 = vmatprep.subr.bf16.mxu0 %v4894
        %5108 = vmatpush1.bf16.msra.mxu0 %v4893
        %5109 = vmatprep.subr.bf16.mxu0 %v4896
        %5110 = vmatpush1.bf16.msra.mxu0 %v4895
        %5111 = vmatprep.subr.bf16.mxu0 %v4898
        %5112 = vmatpush1.bf16.msra.mxu0 %v4897
        %5113 = vmatprep.mubr.bf16.mxu0 %v4406
        %5114 = vmatmul.mubr.bf16.gmra.mrb[0].mxu0 %v4405
        %v5115 = vpop.f32.mrb[0].mxu0
        %v5116 = vadd.f32 %v5073, %v5115
        %v5117 = vpop.f32.mrb[0].mxu0
        %v5118 = vadd.f32 %v5075, %v5117
        %v5119 = vpop.f32.mrb[0].mxu0
        %v5120 = vadd.f32 %v5077, %v5119
        %v5121 = vpop.f32.mrb[0].mxu0
        %v5122 = vadd.f32 %v5079, %v5121
        %5123 = vdwg.mxu0
        %v5124 = vadd.f32 %v5116, %v4304
        %v5125 = vadd.f32 %v5118, %v4306
        %v5126 = vadd.f32 %v5120, %v4308
        %v5127 = vadd.f32 %v5122, %v4310
        %v5128 = vmax.f32 %v5124, 0.0
        %v5129 = vmax.f32 %v5125, 0.0
        %v5130 = vmax.f32 %v5126, 0.0
        %v5131 = vmax.f32 %v5127, 0.0
        %v5132 = vpack.c.bf16 %v5130, %v5128
        %v5133 = vpack.c.bf16 %v5131, %v5129
        %5134 = vmatprep.subr.bf16.mxu0 %v5133
        %5135 = vmatpush1.bf16.msra.mxu0 %v5132
        %5136 = vmatprep.subr.bf16.mxu0 0
        %5137 = vmatpush1.bf16.msra.mxu0 0
        %5138 = vmatprep.subr.bf16.mxu0 0
        %5139 = vmatpush1.bf16.msra.mxu0 0
        %5140 = vmatprep.subr.bf16.mxu0 0
        %5141 = vmatpush1.bf16.msra.mxu0 0
        %5142 = vmatprep.subr.bf16.mxu0 0
        %5143 = vmatpush1.bf16.msra.mxu0 0
        %5144 = vmatprep.subr.bf16.mxu0 0
        %5145 = vmatpush1.bf16.msra.mxu0 0
        %5146 = vmatprep.subr.bf16.mxu0 0
        %5147 = vmatpush1.bf16.msra.mxu0 0
        %5148 = vmatprep.subr.bf16.mxu0 0
        %5149 = vmatpush1.bf16.msra.mxu0 0
        %5150 = vmatprep.subr.bf16.mxu0 0
        %5151 = vmatpush1.bf16.msra.mxu0 0
        %5152 = vmatprep.subr.bf16.mxu0 0
        %5153 = vmatpush1.bf16.msra.mxu0 0
        %5154 = vmatprep.subr.bf16.mxu0 0
        %5155 = vmatpush1.bf16.msra.mxu0 0
        %5156 = vmatprep.subr.bf16.mxu0 0
        %5157 = vmatpush1.bf16.msra.mxu0 0
        %5158 = vmatprep.subr.bf16.mxu0 0
        %5159 = vmatpush1.bf16.msra.mxu0 0
        %5160 = vmatprep.subr.bf16.mxu0 0
        %5161 = vmatpush1.bf16.msra.mxu0 0
        %5162 = vmatprep.subr.bf16.mxu0 0
        %5163 = vmatpush1.bf16.msra.mxu0 0
        %5164 = vmatprep.subr.bf16.mxu0 0
        %5165 = vmatpush1.bf16.msra.mxu0 0
        %5166 = vmatprep.mubr.bf16.mxu0 0
        %5167 = vmatmul.mubr.bf16.gmra.mrb[0].mxu0 %v4313
        %v5168 = vpop.f32.mrb[0].mxu0
        %v5169 = vadd.f32 0.0, %v5168
        %v5170 = vpop.f32.mrb[0].mxu0
        %v5171 = vadd.f32 0.0, %v5170
        %v5172 = vpop.f32.mrb[0].mxu0
        %v5173 = vadd.f32 0.0, %v5172
        %v5174 = vpop.f32.mrb[0].mxu0
        %v5175 = vadd.f32 0.0, %v5174
        %5176 = vdwg.mxu0
        %v5177 = vpack.c.bf16 %v5173, %v5169
        %v5178 = vpack.c.bf16 %v5175, %v5171
        %5179 = vmatprep.subr.bf16.mxu0 %v5133
        %5180 = vmatpush1.bf16.msra.mxu0 %v5132
        %5181 = vmatprep.subr.bf16.mxu0 0
        %5182 = vmatpush1.bf16.msra.mxu0 0
        %5183 = vmatprep.subr.bf16.mxu0 0
        %5184 = vmatpush1.bf16.msra.mxu0 0
        %5185 = vmatprep.subr.bf16.mxu0 0
        %5186 = vmatpush1.bf16.msra.mxu0 0
        %5187 = vmatprep.subr.bf16.mxu0 0
        %5188 = vmatpush1.bf16.msra.mxu0 0
        %5189 = vmatprep.subr.bf16.mxu0 0
        %5190 = vmatpush1.bf16.msra.mxu0 0
        %5191 = vmatprep.subr.bf16.mxu0 0
        %5192 = vmatpush1.bf16.msra.mxu0 0
        %5193 = vmatprep.subr.bf16.mxu0 0
        %5194 = vmatpush1.bf16.msra.mxu0 0
        %5195 = vmatprep.subr.bf16.mxu0 0
        %5196 = vmatpush1.bf16.msra.mxu0 0
        %5197 = vmatprep.subr.bf16.mxu0 0
        %5198 = vmatpush1.bf16.msra.mxu0 0
        %5199 = vmatprep.subr.bf16.mxu0 0
        %5200 = vmatpush1.bf16.msra.mxu0 0
        %5201 = vmatprep.subr.bf16.mxu0 0
        %5202 = vmatpush1.bf16.msra.mxu0 0
        %5203 = vmatprep.subr.bf16.mxu0 0
        %5204 = vmatpush1.bf16.msra.mxu0 0
        %5205 = vmatprep.subr.bf16.mxu0 0
        %5206 = vmatpush1.bf16.msra.mxu0 0
        %5207 = vmatprep.subr.bf16.mxu0 0
        %5208 = vmatpush1.bf16.msra.mxu0 0
        %5209 = vmatprep.subr.bf16.mxu0 0
        %5210 = vmatpush1.bf16.msra.mxu0 0
        %5211 = vmatprep.mubr.bf16.mxu0 0
        %5212 = vmatmul.mubr.bf16.gmra.mrb[0].mxu0 %v4360
        %v5213 = vpop.f32.mrb[0].mxu0
        %v5214 = vadd.f32 0.0, %v5213
        %v5215 = vpop.f32.mrb[0].mxu0
        %v5216 = vadd.f32 0.0, %v5215
        %v5217 = vpop.f32.mrb[0].mxu0
        %v5218 = vadd.f32 0.0, %v5217
        %v5219 = vpop.f32.mrb[0].mxu0
        %v5220 = vadd.f32 0.0, %v5219
        %5221 = vdwg.mxu0
        %v5222 = vpack.c.bf16 %v5218, %v5214
        %v5223 = vpack.c.bf16 %v5220, %v5216
        %v5224 = vld [vmem:[#allocation30] sm:$0xff]
        %v5225 = vld [vmem:[#allocation30 + $0x8] sm:$0xff]
        %v5226 = vld [vmem:[#allocation30 + $0x10] sm:$0xff]
        %v5227 = vld [vmem:[#allocation30 + $0x18] sm:$0xff]
        %v5228 = vld [vmem:[#allocation30 + $0x20] sm:$0xff]
        %v5229 = vld [vmem:[#allocation30 + $0x28] sm:$0xff]
        %v5230 = vld [vmem:[#allocation30 + $0x30] sm:$0xff]
        %v5231 = vld [vmem:[#allocation30 + $0x38] sm:$0xff]
        %v5232 = vld [vmem:[#allocation30 + $0x40] sm:$0xff]
        %v5233 = vld [vmem:[#allocation30 + $0x48] sm:$0xff]
        %v5234 = vld [vmem:[#allocation30 + $0x50] sm:$0xff]
        %v5235 = vld [vmem:[#allocation30 + $0x58] sm:$0xff]
        %v5236 = vld [vmem:[#allocation30 + $0x60] sm:$0xff]
        %v5237 = vld [vmem:[#allocation30 + $0x68] sm:$0xff]
        %v5238 = vld [vmem:[#allocation30 + $0x70] sm:$0xff]
        %v5239 = vld [vmem:[#allocation30 + $0x78] sm:$0xff]
        %v5240 = vld [vmem:[#allocation30 + $0x80] sm:$0xff]
        %v5241 = vld [vmem:[#allocation30 + $0x88] sm:$0xff]
        %v5242 = vld [vmem:[#allocation30 + $0x90] sm:$0xff]
        %v5243 = vld [vmem:[#allocation30 + $0x98] sm:$0xff]
        %v5244 = vld [vmem:[#allocation30 + $0xa0] sm:$0xff]
        %v5245 = vld [vmem:[#allocation30 + $0xa8] sm:$0xff]
        %v5246 = vld [vmem:[#allocation30 + $0xb0] sm:$0xff]
        %v5247 = vld [vmem:[#allocation30 + $0xb8] sm:$0xff]
        %v5248 = vld [vmem:[#allocation30 + $0xc0] sm:$0xff]
        %v5249 = vld [vmem:[#allocation30 + $0xc8] sm:$0xff]
        %v5250 = vld [vmem:[#allocation30 + $0xd0] sm:$0xff]
        %v5251 = vld [vmem:[#allocation30 + $0xd8] sm:$0xff]
        %v5252 = vld [vmem:[#allocation30 + $0xe0] sm:$0xff]
        %v5253 = vld [vmem:[#allocation30 + $0xe8] sm:$0xff]
        %v5254 = vld [vmem:[#allocation30 + $0xf0] sm:$0xff]
        %v5255 = vld [vmem:[#allocation30 + $0xf8] sm:$0xff]
        %v5256 = vld [vmem:[#allocation30 + $0x100] sm:$0xff]
        %v5257 = vld [vmem:[#allocation30 + $0x108] sm:$0xff]
        %v5258 = vld [vmem:[#allocation30 + $0x110] sm:$0xff]
        %v5259 = vld [vmem:[#allocation30 + $0x118] sm:$0xff]
        %v5260 = vld [vmem:[#allocation30 + $0x120] sm:$0xff]
        %v5261 = vld [vmem:[#allocation30 + $0x128] sm:$0xff]
        %v5262 = vld [vmem:[#allocation30 + $0x130] sm:$0xff]
        %v5263 = vld [vmem:[#allocation30 + $0x138] sm:$0xff]
        %v5264 = vld [vmem:[#allocation30 + $0x140] sm:$0xff]
        %v5265 = vld [vmem:[#allocation30 + $0x148] sm:$0xff]
        %v5266 = vld [vmem:[#allocation30 + $0x150] sm:$0xff]
        %v5267 = vld [vmem:[#allocation30 + $0x158] sm:$0xff]
        %v5268 = vld [vmem:[#allocation30 + $0x160] sm:$0xff]
        %v5269 = vld [vmem:[#allocation30 + $0x168] sm:$0xff]
        %v5270 = vld [vmem:[#allocation30 + $0x170] sm:$0xff]
        %v5271 = vld [vmem:[#allocation30 + $0x178] sm:$0xff]
        %v5272 = vld [vmem:[#allocation30 + $0x180] sm:$0xff]
        %v5273 = vld [vmem:[#allocation30 + $0x188] sm:$0xff]
        %v5274 = vld [vmem:[#allocation30 + $0x190] sm:$0xff]
        %v5275 = vld [vmem:[#allocation30 + $0x198] sm:$0xff]
        %v5276 = vld [vmem:[#allocation30 + $0x1a0] sm:$0xff]
        %v5277 = vld [vmem:[#allocation30 + $0x1a8] sm:$0xff]
        %v5278 = vld [vmem:[#allocation30 + $0x1b0] sm:$0xff]
        %v5279 = vld [vmem:[#allocation30 + $0x1b8] sm:$0xff]
        %v5280 = vld [vmem:[#allocation30 + $0x1c0] sm:$0xff]
        %v5281 = vld [vmem:[#allocation30 + $0x1c8] sm:$0xff]
        %v5282 = vld [vmem:[#allocation30 + $0x1d0] sm:$0xff]
        %v5283 = vld [vmem:[#allocation30 + $0x1d8] sm:$0xff]
        %v5284 = vld [vmem:[#allocation30 + $0x1e0] sm:$0xff]
        %v5285 = vld [vmem:[#allocation30 + $0x1e8] sm:$0xff]
        %v5286 = vld [vmem:[#allocation30 + $0x1f0] sm:$0xff]
        %v5287 = vld [vmem:[#allocation30 + $0x1f8] sm:$0xff]
        %v5288 = vld [vmem:[#allocation30 + $0x200] sm:$0xff]
        %v5289 = vld [vmem:[#allocation30 + $0x208] sm:$0xff]
        %v5290 = vld [vmem:[#allocation30 + $0x210] sm:$0xff]
        %v5291 = vld [vmem:[#allocation30 + $0x218] sm:$0xff]
        %v5292 = vld [vmem:[#allocation30 + $0x220] sm:$0xff]
        %v5293 = vld [vmem:[#allocation30 + $0x228] sm:$0xff]
        %v5294 = vld [vmem:[#allocation30 + $0x230] sm:$0xff]
        %v5295 = vld [vmem:[#allocation30 + $0x238] sm:$0xff]
        %v5296 = vld [vmem:[#allocation30 + $0x240] sm:$0xff]
        %v5297 = vld [vmem:[#allocation30 + $0x248] sm:$0xff]
        %v5298 = vld [vmem:[#allocation30 + $0x250] sm:$0xff]
        %v5299 = vld [vmem:[#allocation30 + $0x258] sm:$0xff]
        %v5300 = vld [vmem:[#allocation30 + $0x260] sm:$0xff]
        %v5301 = vld [vmem:[#allocation30 + $0x268] sm:$0xff]
        %v5302 = vld [vmem:[#allocation30 + $0x270] sm:$0xff]
        %v5303 = vld [vmem:[#allocation30 + $0x278] sm:$0xff]
        %v5304 = vld [vmem:[#allocation30 + $0x280] sm:$0xff]
        %v5305 = vld [vmem:[#allocation30 + $0x288] sm:$0xff]
        %v5306 = vld [vmem:[#allocation30 + $0x290] sm:$0xff]
        %v5307 = vld [vmem:[#allocation30 + $0x298] sm:$0xff]
        %v5308 = vld [vmem:[#allocation30 + $0x2a0] sm:$0xff]
        %v5309 = vld [vmem:[#allocation30 + $0x2a8] sm:$0xff]
        %v5310 = vld [vmem:[#allocation30 + $0x2b0] sm:$0xff]
        %v5311 = vld [vmem:[#allocation30 + $0x2b8] sm:$0xff]
        %v5312 = vld [vmem:[#allocation30 + $0x2c0] sm:$0xff]
        %v5313 = vld [vmem:[#allocation30 + $0x2c8] sm:$0xff]
        %v5314 = vld [vmem:[#allocation30 + $0x2d0] sm:$0xff]
        %v5315 = vld [vmem:[#allocation30 + $0x2d8] sm:$0xff]
        %v5316 = vld [vmem:[#allocation30 + $0x2e0] sm:$0xff]
        %v5317 = vld [vmem:[#allocation30 + $0x2e8] sm:$0xff]
        %v5318 = vld [vmem:[#allocation30 + $0x2f0] sm:$0xff]
        %v5319 = vld [vmem:[#allocation30 + $0x2f8] sm:$0xff]
        %v5320 = vld [vmem:[#allocation30 + $0x300] sm:$0xff]
        %v5321 = vld [vmem:[#allocation30 + $0x308] sm:$0xff]
        %v5322 = vld [vmem:[#allocation30 + $0x310] sm:$0xff]
        %v5323 = vld [vmem:[#allocation30 + $0x318] sm:$0xff]
        %v5324 = vld [vmem:[#allocation30 + $0x320] sm:$0xff]
        %v5325 = vld [vmem:[#allocation30 + $0x328] sm:$0xff]
        %v5326 = vld [vmem:[#allocation30 + $0x330] sm:$0xff]
        %v5327 = vld [vmem:[#allocation30 + $0x338] sm:$0xff]
        %v5328 = vld [vmem:[#allocation30 + $0x340] sm:$0xff]
        %v5329 = vld [vmem:[#allocation30 + $0x348] sm:$0xff]
        %v5330 = vld [vmem:[#allocation30 + $0x350] sm:$0xff]
        %v5331 = vld [vmem:[#allocation30 + $0x358] sm:$0xff]
        %v5332 = vld [vmem:[#allocation30 + $0x360] sm:$0xff]
        %v5333 = vld [vmem:[#allocation30 + $0x368] sm:$0xff]
        %v5334 = vld [vmem:[#allocation30 + $0x370] sm:$0xff]
        %v5335 = vld [vmem:[#allocation30 + $0x378] sm:$0xff]
        %v5336 = vld [vmem:[#allocation30 + $0x380] sm:$0xff]
        %v5337 = vld [vmem:[#allocation30 + $0x388] sm:$0xff]
        %v5338 = vld [vmem:[#allocation30 + $0x390] sm:$0xff]
        %v5339 = vld [vmem:[#allocation30 + $0x398] sm:$0xff]
        %v5340 = vld [vmem:[#allocation30 + $0x3a0] sm:$0xff]
        %v5341 = vld [vmem:[#allocation30 + $0x3a8] sm:$0xff]
        %v5342 = vld [vmem:[#allocation30 + $0x3b0] sm:$0xff]
        %v5343 = vld [vmem:[#allocation30 + $0x3b8] sm:$0xff]
        %v5344 = vld [vmem:[#allocation30 + $0x3c0] sm:$0xff]
        %v5345 = vld [vmem:[#allocation30 + $0x3c8] sm:$0xff]
        %v5346 = vld [vmem:[#allocation30 + $0x3d0] sm:$0xff]
        %v5347 = vld [vmem:[#allocation30 + $0x3d8] sm:$0xff]
        %v5348 = vld [vmem:[#allocation30 + $0x3e0] sm:$0xff]
        %v5349 = vld [vmem:[#allocation30 + $0x3e8] sm:$0xff]
        %v5350 = vld [vmem:[#allocation30 + $0x3f0] sm:$0xff]
        %v5351 = vld [vmem:[#allocation30 + $0x3f8] sm:$0xff]
        %v5352 = vld [vmem:[#allocation30 + $0x400] sm:$0xff]
        %v5353 = vld [vmem:[#allocation30 + $0x408] sm:$0xff]
        %v5354 = vld [vmem:[#allocation30 + $0x410] sm:$0xff]
        %v5355 = vld [vmem:[#allocation30 + $0x418] sm:$0xff]
        %v5356 = vld [vmem:[#allocation30 + $0x420] sm:$0xff]
        %v5357 = vld [vmem:[#allocation30 + $0x428] sm:$0xff]
        %v5358 = vld [vmem:[#allocation30 + $0x430] sm:$0xff]
        %v5359 = vld [vmem:[#allocation30 + $0x438] sm:$0xff]
        %v5360 = vld [vmem:[#allocation30 + $0x440] sm:$0xff]
        %v5361 = vld [vmem:[#allocation30 + $0x448] sm:$0xff]
        %v5362 = vld [vmem:[#allocation30 + $0x450] sm:$0xff]
        %v5363 = vld [vmem:[#allocation30 + $0x458] sm:$0xff]
        %v5364 = vld [vmem:[#allocation30 + $0x460] sm:$0xff]
        %v5365 = vld [vmem:[#allocation30 + $0x468] sm:$0xff]
        %v5366 = vld [vmem:[#allocation30 + $0x470] sm:$0xff]
        %v5367 = vld [vmem:[#allocation30 + $0x478] sm:$0xff]
        %v5368 = vld [vmem:[#allocation30 + $0x480] sm:$0xff]
        %v5369 = vld [vmem:[#allocation30 + $0x488] sm:$0xff]
        %v5370 = vld [vmem:[#allocation30 + $0x490] sm:$0xff]
        %v5371 = vld [vmem:[#allocation30 + $0x498] sm:$0xff]
        %v5372 = vld [vmem:[#allocation30 + $0x4a0] sm:$0xff]
        %v5373 = vld [vmem:[#allocation30 + $0x4a8] sm:$0xff]
        %v5374 = vld [vmem:[#allocation30 + $0x4b0] sm:$0xff]
        %v5375 = vld [vmem:[#allocation30 + $0x4b8] sm:$0xff]
        %v5376 = vld [vmem:[#allocation30 + $0x4c0] sm:$0xff]
        %v5377 = vld [vmem:[#allocation30 + $0x4c8] sm:$0xff]
        %v5378 = vld [vmem:[#allocation30 + $0x4d0] sm:$0xff]
        %v5379 = vld [vmem:[#allocation30 + $0x4d8] sm:$0xff]
        %v5380 = vld [vmem:[#allocation30 + $0x4e0] sm:$0xff]
        %v5381 = vld [vmem:[#allocation30 + $0x4e8] sm:$0xff]
        %v5382 = vld [vmem:[#allocation30 + $0x4f0] sm:$0xff]
        %v5383 = vld [vmem:[#allocation30 + $0x4f8] sm:$0xff]
        %v5384 = vld [vmem:[#allocation30 + $0x500] sm:$0xff]
        %v5385 = vld [vmem:[#allocation30 + $0x508] sm:$0xff]
        %v5386 = vld [vmem:[#allocation30 + $0x510] sm:$0xff]
        %v5387 = vld [vmem:[#allocation30 + $0x518] sm:$0xff]
        %v5388 = vld [vmem:[#allocation30 + $0x520] sm:$0xff]
        %v5389 = vld [vmem:[#allocation30 + $0x528] sm:$0xff]
        %v5390 = vld [vmem:[#allocation30 + $0x530] sm:$0xff]
        %v5391 = vld [vmem:[#allocation30 + $0x538] sm:$0xff]
        %v5392 = vld [vmem:[#allocation30 + $0x540] sm:$0xff]
        %v5393 = vld [vmem:[#allocation30 + $0x548] sm:$0xff]
        %v5394 = vld [vmem:[#allocation30 + $0x550] sm:$0xff]
        %v5395 = vld [vmem:[#allocation30 + $0x558] sm:$0xff]
        %v5396 = vld [vmem:[#allocation30 + $0x560] sm:$0xff]
        %v5397 = vld [vmem:[#allocation30 + $0x568] sm:$0xff]
        %v5398 = vld [vmem:[#allocation30 + $0x570] sm:$0xff]
        %v5399 = vld [vmem:[#allocation30 + $0x578] sm:$0xff]
        %v5400 = vld [vmem:[#allocation30 + $0x580] sm:$0xff]
        %v5401 = vld [vmem:[#allocation30 + $0x588] sm:$0xff]
        %v5402 = vld [vmem:[#allocation30 + $0x590] sm:$0xff]
        %v5403 = vld [vmem:[#allocation30 + $0x598] sm:$0xff]
        %v5404 = vld [vmem:[#allocation30 + $0x5a0] sm:$0xff]
        %v5405 = vld [vmem:[#allocation30 + $0x5a8] sm:$0xff]
        %v5406 = vld [vmem:[#allocation30 + $0x5b0] sm:$0xff]
        %v5407 = vld [vmem:[#allocation30 + $0x5b8] sm:$0xff]
        %v5408 = vld [vmem:[#allocation30 + $0x5c0] sm:$0xff]
        %v5409 = vld [vmem:[#allocation30 + $0x5c8] sm:$0xff]
        %v5410 = vld [vmem:[#allocation30 + $0x5d0] sm:$0xff]
        %v5411 = vld [vmem:[#allocation30 + $0x5d8] sm:$0xff]
        %v5412 = vld [vmem:[#allocation30 + $0x5e0] sm:$0xff]
        %v5413 = vld [vmem:[#allocation30 + $0x5e8] sm:$0xff]
        %v5414 = vld [vmem:[#allocation30 + $0x5f0] sm:$0xff]
        %v5415 = vld [vmem:[#allocation30 + $0x5f8] sm:$0xff]
        %v5416 = vld [vmem:[#allocation31] sm:$0xf]
        %v5418 = vlaneseq
        %v5419 = vshrl.u32 %v5418, 7
        %v5420 = vsub.s32 0, %v5419
        %v5421 = vrot.slane %v5416, %v5420
        %v5422 = vlaneseq
        %v5423 = vshrl.u32 %v5422, 7
        %v5424 = vsub.s32 1, %v5423
        %v5425 = vrot.slane %v5416, %v5424
        %v5426 = vlaneseq
        %v5427 = vshrl.u32 %v5426, 7
        %v5428 = vsub.s32 2, %v5427
        %v5429 = vrot.slane %v5416, %v5428
        %v5430 = vlaneseq
        %v5431 = vshrl.u32 %v5430, 7
        %v5432 = vsub.s32 3, %v5431
        %v5433 = vrot.slane %v5416, %v5432
        %v5630 = vunpack.c.l.b16 %v5224
        %v5631 = vunpack.c.h.b16 %v5224
        %v5632 = vunpack.c.l.b16 %v5225
        %v5633 = vunpack.c.h.b16 %v5225
        %v5634 = vunpack.c.l.b16 %v5226
        %v5635 = vunpack.c.h.b16 %v5226
        %v5636 = vunpack.c.l.b16 %v5227
        %v5637 = vunpack.c.h.b16 %v5227
        %v5638 = vunpack.c.l.b16 %v5228
        %v5639 = vunpack.c.h.b16 %v5228
        %v5640 = vunpack.c.l.b16 %v5229
        %v5641 = vunpack.c.h.b16 %v5229
        %v5642 = vunpack.c.l.b16 %v5230
        %v5643 = vunpack.c.h.b16 %v5230
        %v5644 = vunpack.c.l.b16 %v5231
        %v5645 = vunpack.c.h.b16 %v5231
        %v5646 = vunpack.c.l.b16 %v5232
        %v5647 = vunpack.c.h.b16 %v5232
        %v5648 = vunpack.c.l.b16 %v5233
        %v5649 = vunpack.c.h.b16 %v5233
        %v5650 = vunpack.c.l.b16 %v5234
        %v5651 = vunpack.c.h.b16 %v5234
        %v5652 = vunpack.c.l.b16 %v5235
        %v5653 = vunpack.c.h.b16 %v5235
        %v5654 = vunpack.c.l.b16 %v5236
        %v5655 = vunpack.c.h.b16 %v5236
        %v5656 = vunpack.c.l.b16 %v5237
        %v5657 = vunpack.c.h.b16 %v5237
        %v5658 = vunpack.c.l.b16 %v5238
        %v5659 = vunpack.c.h.b16 %v5238
        %v5660 = vunpack.c.l.b16 %v5239
        %v5661 = vunpack.c.h.b16 %v5239
        %v5662 = vunpack.c.l.b16 %v5240
        %v5663 = vunpack.c.h.b16 %v5240
        %v5664 = vunpack.c.l.b16 %v5241
        %v5665 = vunpack.c.h.b16 %v5241
        %v5666 = vunpack.c.l.b16 %v5242
        %v5667 = vunpack.c.h.b16 %v5242
        %v5668 = vunpack.c.l.b16 %v5243
        %v5669 = vunpack.c.h.b16 %v5243
        %v5670 = vunpack.c.l.b16 %v5244
        %v5671 = vunpack.c.h.b16 %v5244
        %v5672 = vunpack.c.l.b16 %v5245
        %v5673 = vunpack.c.h.b16 %v5245
        %v5674 = vunpack.c.l.b16 %v5246
        %v5675 = vunpack.c.h.b16 %v5246
        %v5676 = vunpack.c.l.b16 %v5247
        %v5677 = vunpack.c.h.b16 %v5247
        %v5678 = vunpack.c.l.b16 %v5248
        %v5679 = vunpack.c.h.b16 %v5248
        %v5680 = vunpack.c.l.b16 %v5249
        %v5681 = vunpack.c.h.b16 %v5249
        %v5682 = vunpack.c.l.b16 %v5250
        %v5683 = vunpack.c.h.b16 %v5250
        %v5684 = vunpack.c.l.b16 %v5251
        %v5685 = vunpack.c.h.b16 %v5251
        %v5686 = vunpack.c.l.b16 %v5252
        %v5687 = vunpack.c.h.b16 %v5252
        %v5688 = vunpack.c.l.b16 %v5253
        %v5689 = vunpack.c.h.b16 %v5253
        %v5690 = vunpack.c.l.b16 %v5254
        %v5691 = vunpack.c.h.b16 %v5254
        %v5692 = vunpack.c.l.b16 %v5255
        %v5693 = vunpack.c.h.b16 %v5255
        %v5694 = vunpack.c.l.b16 %v5256
        %v5695 = vunpack.c.h.b16 %v5256
        %v5696 = vunpack.c.l.b16 %v5257
        %v5697 = vunpack.c.h.b16 %v5257
        %v5698 = vunpack.c.l.b16 %v5258
        %v5699 = vunpack.c.h.b16 %v5258
        %v5700 = vunpack.c.l.b16 %v5259
        %v5701 = vunpack.c.h.b16 %v5259
        %v5702 = vunpack.c.l.b16 %v5260
        %v5703 = vunpack.c.h.b16 %v5260
        %v5704 = vunpack.c.l.b16 %v5261
        %v5705 = vunpack.c.h.b16 %v5261
        %v5706 = vunpack.c.l.b16 %v5262
        %v5707 = vunpack.c.h.b16 %v5262
        %v5708 = vunpack.c.l.b16 %v5263
        %v5709 = vunpack.c.h.b16 %v5263
        %v5710 = vunpack.c.l.b16 %v5264
        %v5711 = vunpack.c.h.b16 %v5264
        %v5712 = vunpack.c.l.b16 %v5265
        %v5713 = vunpack.c.h.b16 %v5265
        %v5714 = vunpack.c.l.b16 %v5266
        %v5715 = vunpack.c.h.b16 %v5266
        %v5716 = vunpack.c.l.b16 %v5267
        %v5717 = vunpack.c.h.b16 %v5267
        %v5718 = vunpack.c.l.b16 %v5268
        %v5719 = vunpack.c.h.b16 %v5268
        %v5720 = vunpack.c.l.b16 %v5269
        %v5721 = vunpack.c.h.b16 %v5269
        %v5722 = vunpack.c.l.b16 %v5270
        %v5723 = vunpack.c.h.b16 %v5270
        %v5724 = vunpack.c.l.b16 %v5271
        %v5725 = vunpack.c.h.b16 %v5271
        %v5726 = vunpack.c.l.b16 %v5272
        %v5727 = vunpack.c.h.b16 %v5272
        %v5728 = vunpack.c.l.b16 %v5273
        %v5729 = vunpack.c.h.b16 %v5273
        %v5730 = vunpack.c.l.b16 %v5274
        %v5731 = vunpack.c.h.b16 %v5274
        %v5732 = vunpack.c.l.b16 %v5275
        %v5733 = vunpack.c.h.b16 %v5275
        %v5734 = vunpack.c.l.b16 %v5276
        %v5735 = vunpack.c.h.b16 %v5276
        %v5736 = vunpack.c.l.b16 %v5277
        %v5737 = vunpack.c.h.b16 %v5277
        %v5738 = vunpack.c.l.b16 %v5278
        %v5739 = vunpack.c.h.b16 %v5278
        %v5740 = vunpack.c.l.b16 %v5279
        %v5741 = vunpack.c.h.b16 %v5279
        %v5742 = vunpack.c.l.b16 %v5280
        %v5743 = vunpack.c.h.b16 %v5280
        %v5744 = vunpack.c.l.b16 %v5281
        %v5745 = vunpack.c.h.b16 %v5281
        %v5746 = vunpack.c.l.b16 %v5282
        %v5747 = vunpack.c.h.b16 %v5282
        %v5748 = vunpack.c.l.b16 %v5283
        %v5749 = vunpack.c.h.b16 %v5283
        %v5750 = vunpack.c.l.b16 %v5284
        %v5751 = vunpack.c.h.b16 %v5284
        %v5752 = vunpack.c.l.b16 %v5285
        %v5753 = vunpack.c.h.b16 %v5285
        %v5754 = vunpack.c.l.b16 %v5286
        %v5755 = vunpack.c.h.b16 %v5286
        %v5756 = vunpack.c.l.b16 %v5287
        %v5757 = vunpack.c.h.b16 %v5287
        %v5758 = vunpack.c.l.b16 %v5288
        %v5759 = vunpack.c.h.b16 %v5288
        %v5760 = vunpack.c.l.b16 %v5289
        %v5761 = vunpack.c.h.b16 %v5289
        %v5762 = vunpack.c.l.b16 %v5290
        %v5763 = vunpack.c.h.b16 %v5290
        %v5764 = vunpack.c.l.b16 %v5291
        %v5765 = vunpack.c.h.b16 %v5291
        %v5766 = vunpack.c.l.b16 %v5292
        %v5767 = vunpack.c.h.b16 %v5292
        %v5768 = vunpack.c.l.b16 %v5293
        %v5769 = vunpack.c.h.b16 %v5293
        %v5770 = vunpack.c.l.b16 %v5294
        %v5771 = vunpack.c.h.b16 %v5294
        %v5772 = vunpack.c.l.b16 %v5295
        %v5773 = vunpack.c.h.b16 %v5295
        %v5774 = vunpack.c.l.b16 %v5296
        %v5775 = vunpack.c.h.b16 %v5296
        %v5776 = vunpack.c.l.b16 %v5297
        %v5777 = vunpack.c.h.b16 %v5297
        %v5778 = vunpack.c.l.b16 %v5298
        %v5779 = vunpack.c.h.b16 %v5298
        %v5780 = vunpack.c.l.b16 %v5299
        %v5781 = vunpack.c.h.b16 %v5299
        %v5782 = vunpack.c.l.b16 %v5300
        %v5783 = vunpack.c.h.b16 %v5300
        %v5784 = vunpack.c.l.b16 %v5301
        %v5785 = vunpack.c.h.b16 %v5301
        %v5786 = vunpack.c.l.b16 %v5302
        %v5787 = vunpack.c.h.b16 %v5302
        %v5788 = vunpack.c.l.b16 %v5303
        %v5789 = vunpack.c.h.b16 %v5303
        %v5790 = vunpack.c.l.b16 %v5304
        %v5791 = vunpack.c.h.b16 %v5304
        %v5792 = vunpack.c.l.b16 %v5305
        %v5793 = vunpack.c.h.b16 %v5305
        %v5794 = vunpack.c.l.b16 %v5306
        %v5795 = vunpack.c.h.b16 %v5306
        %v5796 = vunpack.c.l.b16 %v5307
        %v5797 = vunpack.c.h.b16 %v5307
        %v5798 = vunpack.c.l.b16 %v5308
        %v5799 = vunpack.c.h.b16 %v5308
        %v5800 = vunpack.c.l.b16 %v5309
        %v5801 = vunpack.c.h.b16 %v5309
        %v5802 = vunpack.c.l.b16 %v5310
        %v5803 = vunpack.c.h.b16 %v5310
        %v5804 = vunpack.c.l.b16 %v5311
        %v5805 = vunpack.c.h.b16 %v5311
        %v5806 = vunpack.c.l.b16 %v5312
        %v5807 = vunpack.c.h.b16 %v5312
        %v5808 = vunpack.c.l.b16 %v5313
        %v5809 = vunpack.c.h.b16 %v5313
        %v5810 = vunpack.c.l.b16 %v5314
        %v5811 = vunpack.c.h.b16 %v5314
        %v5812 = vunpack.c.l.b16 %v5315
        %v5813 = vunpack.c.h.b16 %v5315
        %v5814 = vunpack.c.l.b16 %v5316
        %v5815 = vunpack.c.h.b16 %v5316
        %v5816 = vunpack.c.l.b16 %v5317
        %v5817 = vunpack.c.h.b16 %v5317
        %v5818 = vunpack.c.l.b16 %v5318
        %v5819 = vunpack.c.h.b16 %v5318
        %v5820 = vunpack.c.l.b16 %v5319
        %v5821 = vunpack.c.h.b16 %v5319
        %v5822 = vunpack.c.l.b16 %v5320
        %v5823 = vunpack.c.h.b16 %v5320
        %v5824 = vunpack.c.l.b16 %v5321
        %v5825 = vunpack.c.h.b16 %v5321
        %v5826 = vunpack.c.l.b16 %v5322
        %v5827 = vunpack.c.h.b16 %v5322
        %v5828 = vunpack.c.l.b16 %v5323
        %v5829 = vunpack.c.h.b16 %v5323
        %v5830 = vunpack.c.l.b16 %v5324
        %v5831 = vunpack.c.h.b16 %v5324
        %v5832 = vunpack.c.l.b16 %v5325
        %v5833 = vunpack.c.h.b16 %v5325
        %v5834 = vunpack.c.l.b16 %v5326
        %v5835 = vunpack.c.h.b16 %v5326
        %v5836 = vunpack.c.l.b16 %v5327
        %v5837 = vunpack.c.h.b16 %v5327
        %v5838 = vunpack.c.l.b16 %v5328
        %v5839 = vunpack.c.h.b16 %v5328
        %v5840 = vunpack.c.l.b16 %v5329
        %v5841 = vunpack.c.h.b16 %v5329
        %v5842 = vunpack.c.l.b16 %v5330
        %v5843 = vunpack.c.h.b16 %v5330
        %v5844 = vunpack.c.l.b16 %v5331
        %v5845 = vunpack.c.h.b16 %v5331
        %v5846 = vunpack.c.l.b16 %v5332
        %v5847 = vunpack.c.h.b16 %v5332
        %v5848 = vunpack.c.l.b16 %v5333
        %v5849 = vunpack.c.h.b16 %v5333
        %v5850 = vunpack.c.l.b16 %v5334
        %v5851 = vunpack.c.h.b16 %v5334
        %v5852 = vunpack.c.l.b16 %v5335
        %v5853 = vunpack.c.h.b16 %v5335
        %v5854 = vunpack.c.l.b16 %v5336
        %v5855 = vunpack.c.h.b16 %v5336
        %v5856 = vunpack.c.l.b16 %v5337
        %v5857 = vunpack.c.h.b16 %v5337
        %v5858 = vunpack.c.l.b16 %v5338
        %v5859 = vunpack.c.h.b16 %v5338
        %v5860 = vunpack.c.l.b16 %v5339
        %v5861 = vunpack.c.h.b16 %v5339
        %v5862 = vunpack.c.l.b16 %v5340
        %v5863 = vunpack.c.h.b16 %v5340
        %v5864 = vunpack.c.l.b16 %v5341
        %v5865 = vunpack.c.h.b16 %v5341
        %v5866 = vunpack.c.l.b16 %v5342
        %v5867 = vunpack.c.h.b16 %v5342
        %v5868 = vunpack.c.l.b16 %v5343
        %v5869 = vunpack.c.h.b16 %v5343
        %v5870 = vunpack.c.l.b16 %v5344
        %v5871 = vunpack.c.h.b16 %v5344
        %v5872 = vunpack.c.l.b16 %v5345
        %v5873 = vunpack.c.h.b16 %v5345
        %v5874 = vunpack.c.l.b16 %v5346
        %v5875 = vunpack.c.h.b16 %v5346
        %v5876 = vunpack.c.l.b16 %v5347
        %v5877 = vunpack.c.h.b16 %v5347
        %v5878 = vunpack.c.l.b16 %v5348
        %v5879 = vunpack.c.h.b16 %v5348
        %v5880 = vunpack.c.l.b16 %v5349
        %v5881 = vunpack.c.h.b16 %v5349
        %v5882 = vunpack.c.l.b16 %v5350
        %v5883 = vunpack.c.h.b16 %v5350
        %v5884 = vunpack.c.l.b16 %v5351
        %v5885 = vunpack.c.h.b16 %v5351
        %v5886 = vunpack.c.l.b16 %v5352
        %v5887 = vunpack.c.h.b16 %v5352
        %v5888 = vunpack.c.l.b16 %v5353
        %v5889 = vunpack.c.h.b16 %v5353
        %v5890 = vunpack.c.l.b16 %v5354
        %v5891 = vunpack.c.h.b16 %v5354
        %v5892 = vunpack.c.l.b16 %v5355
        %v5893 = vunpack.c.h.b16 %v5355
        %v5894 = vunpack.c.l.b16 %v5356
        %v5895 = vunpack.c.h.b16 %v5356
        %v5896 = vunpack.c.l.b16 %v5357
        %v5897 = vunpack.c.h.b16 %v5357
        %v5898 = vunpack.c.l.b16 %v5358
        %v5899 = vunpack.c.h.b16 %v5358
        %v5900 = vunpack.c.l.b16 %v5359
        %v5901 = vunpack.c.h.b16 %v5359
        %v5902 = vunpack.c.l.b16 %v5360
        %v5903 = vunpack.c.h.b16 %v5360
        %v5904 = vunpack.c.l.b16 %v5361
        %v5905 = vunpack.c.h.b16 %v5361
        %v5906 = vunpack.c.l.b16 %v5362
        %v5907 = vunpack.c.h.b16 %v5362
        %v5908 = vunpack.c.l.b16 %v5363
        %v5909 = vunpack.c.h.b16 %v5363
        %v5910 = vunpack.c.l.b16 %v5364
        %v5911 = vunpack.c.h.b16 %v5364
        %v5912 = vunpack.c.l.b16 %v5365
        %v5913 = vunpack.c.h.b16 %v5365
        %v5914 = vunpack.c.l.b16 %v5366
        %v5915 = vunpack.c.h.b16 %v5366
        %v5916 = vunpack.c.l.b16 %v5367
        %v5917 = vunpack.c.h.b16 %v5367
        %v5918 = vunpack.c.l.b16 %v5368
        %v5919 = vunpack.c.h.b16 %v5368
        %v5920 = vunpack.c.l.b16 %v5369
        %v5921 = vunpack.c.h.b16 %v5369
        %v5922 = vunpack.c.l.b16 %v5370
        %v5923 = vunpack.c.h.b16 %v5370
        %v5924 = vunpack.c.l.b16 %v5371
        %v5925 = vunpack.c.h.b16 %v5371
        %v5926 = vunpack.c.l.b16 %v5372
        %v5927 = vunpack.c.h.b16 %v5372
        %v5928 = vunpack.c.l.b16 %v5373
        %v5929 = vunpack.c.h.b16 %v5373
        %v5930 = vunpack.c.l.b16 %v5374
        %v5931 = vunpack.c.h.b16 %v5374
        %v5932 = vunpack.c.l.b16 %v5375
        %v5933 = vunpack.c.h.b16 %v5375
        %v5934 = vunpack.c.l.b16 %v5376
        %v5935 = vunpack.c.h.b16 %v5376
        %v5936 = vunpack.c.l.b16 %v5377
        %v5937 = vunpack.c.h.b16 %v5377
        %v5938 = vunpack.c.l.b16 %v5378
        %v5939 = vunpack.c.h.b16 %v5378
        %v5940 = vunpack.c.l.b16 %v5379
        %v5941 = vunpack.c.h.b16 %v5379
        %v5942 = vunpack.c.l.b16 %v5380
        %v5943 = vunpack.c.h.b16 %v5380
        %v5944 = vunpack.c.l.b16 %v5381
        %v5945 = vunpack.c.h.b16 %v5381
        %v5946 = vunpack.c.l.b16 %v5382
        %v5947 = vunpack.c.h.b16 %v5382
        %v5948 = vunpack.c.l.b16 %v5383
        %v5949 = vunpack.c.h.b16 %v5383
        %v5950 = vunpack.c.l.b16 %v5384
        %v5951 = vunpack.c.h.b16 %v5384
        %v5952 = vunpack.c.l.b16 %v5385
        %v5953 = vunpack.c.h.b16 %v5385
        %v5954 = vunpack.c.l.b16 %v5386
        %v5955 = vunpack.c.h.b16 %v5386
        %v5956 = vunpack.c.l.b16 %v5387
        %v5957 = vunpack.c.h.b16 %v5387
        %v5958 = vunpack.c.l.b16 %v5388
        %v5959 = vunpack.c.h.b16 %v5388
        %v5960 = vunpack.c.l.b16 %v5389
        %v5961 = vunpack.c.h.b16 %v5389
        %v5962 = vunpack.c.l.b16 %v5390
        %v5963 = vunpack.c.h.b16 %v5390
        %v5964 = vunpack.c.l.b16 %v5391
        %v5965 = vunpack.c.h.b16 %v5391
        %v5966 = vunpack.c.l.b16 %v5392
        %v5967 = vunpack.c.h.b16 %v5392
        %v5968 = vunpack.c.l.b16 %v5393
        %v5969 = vunpack.c.h.b16 %v5393
        %v5970 = vunpack.c.l.b16 %v5394
        %v5971 = vunpack.c.h.b16 %v5394
        %v5972 = vunpack.c.l.b16 %v5395
        %v5973 = vunpack.c.h.b16 %v5395
        %v5974 = vunpack.c.l.b16 %v5396
        %v5975 = vunpack.c.h.b16 %v5396
        %v5976 = vunpack.c.l.b16 %v5397
        %v5977 = vunpack.c.h.b16 %v5397
        %v5978 = vunpack.c.l.b16 %v5398
        %v5979 = vunpack.c.h.b16 %v5398
        %v5980 = vunpack.c.l.b16 %v5399
        %v5981 = vunpack.c.h.b16 %v5399
        %v5982 = vunpack.c.l.b16 %v5400
        %v5983 = vunpack.c.h.b16 %v5400
        %v5984 = vunpack.c.l.b16 %v5401
        %v5985 = vunpack.c.h.b16 %v5401
        %v5986 = vunpack.c.l.b16 %v5402
        %v5987 = vunpack.c.h.b16 %v5402
        %v5988 = vunpack.c.l.b16 %v5403
        %v5989 = vunpack.c.h.b16 %v5403
        %v5990 = vunpack.c.l.b16 %v5404
        %v5991 = vunpack.c.h.b16 %v5404
        %v5992 = vunpack.c.l.b16 %v5405
        %v5993 = vunpack.c.h.b16 %v5405
        %v5994 = vunpack.c.l.b16 %v5406
        %v5995 = vunpack.c.h.b16 %v5406
        %v5996 = vunpack.c.l.b16 %v5407
        %v5997 = vunpack.c.h.b16 %v5407
        %v5998 = vunpack.c.l.b16 %v5408
        %v5999 = vunpack.c.h.b16 %v5408
        %v6000 = vunpack.c.l.b16 %v5409
        %v6001 = vunpack.c.h.b16 %v5409
        %v6002 = vunpack.c.l.b16 %v5410
        %v6003 = vunpack.c.h.b16 %v5410
        %v6004 = vunpack.c.l.b16 %v5411
        %v6005 = vunpack.c.h.b16 %v5411
        %v6006 = vunpack.c.l.b16 %v5412
        %v6007 = vunpack.c.h.b16 %v5412
        %v6008 = vunpack.c.l.b16 %v5413
        %v6009 = vunpack.c.h.b16 %v5413
        %v6010 = vunpack.c.l.b16 %v5414
        %v6011 = vunpack.c.h.b16 %v5414
        %v6012 = vunpack.c.l.b16 %v5415
        %v6013 = vunpack.c.h.b16 %v5415
        %v6014 = vpack.c.b16 %v5634, %v5630
        %v6015 = vpack.c.b16 %v5635, %v5631
        %v6016 = vpack.c.b16 %v5636, %v5632
        %v6017 = vpack.c.b16 %v5637, %v5633
        %v6018 = vpack.c.b16 %v5642, %v5638
        %v6019 = vpack.c.b16 %v5643, %v5639
        %v6020 = vpack.c.b16 %v5644, %v5640
        %v6021 = vpack.c.b16 %v5645, %v5641
        %v6022 = vpack.c.b16 %v5650, %v5646
        %v6023 = vpack.c.b16 %v5651, %v5647
        %v6024 = vpack.c.b16 %v5652, %v5648
        %v6025 = vpack.c.b16 %v5653, %v5649
        %v6026 = vpack.c.b16 %v5658, %v5654
        %v6027 = vpack.c.b16 %v5659, %v5655
        %v6028 = vpack.c.b16 %v5660, %v5656
        %v6029 = vpack.c.b16 %v5661, %v5657
        %v6030 = vpack.c.b16 %v5666, %v5662
        %v6031 = vpack.c.b16 %v5667, %v5663
        %v6032 = vpack.c.b16 %v5668, %v5664
        %v6033 = vpack.c.b16 %v5669, %v5665
        %v6034 = vpack.c.b16 %v5674, %v5670
        %v6035 = vpack.c.b16 %v5675, %v5671
        %v6036 = vpack.c.b16 %v5676, %v5672
        %v6037 = vpack.c.b16 %v5677, %v5673
        %v6038 = vpack.c.b16 %v5682, %v5678
        %v6039 = vpack.c.b16 %v5683, %v5679
        %v6040 = vpack.c.b16 %v5684, %v5680
        %v6041 = vpack.c.b16 %v5685, %v5681
        %v6042 = vpack.c.b16 %v5690, %v5686
        %v6043 = vpack.c.b16 %v5691, %v5687
        %v6044 = vpack.c.b16 %v5692, %v5688
        %v6045 = vpack.c.b16 %v5693, %v5689
        %v6046 = vpack.c.b16 %v5698, %v5694
        %v6047 = vpack.c.b16 %v5699, %v5695
        %v6048 = vpack.c.b16 %v5700, %v5696
        %v6049 = vpack.c.b16 %v5701, %v5697
        %v6050 = vpack.c.b16 %v5706, %v5702
        %v6051 = vpack.c.b16 %v5707, %v5703
        %v6052 = vpack.c.b16 %v5708, %v5704
        %v6053 = vpack.c.b16 %v5709, %v5705
        %v6054 = vpack.c.b16 %v5714, %v5710
        %v6055 = vpack.c.b16 %v5715, %v5711
        %v6056 = vpack.c.b16 %v5716, %v5712
        %v6057 = vpack.c.b16 %v5717, %v5713
        %v6058 = vpack.c.b16 %v5722, %v5718
        %v6059 = vpack.c.b16 %v5723, %v5719
        %v6060 = vpack.c.b16 %v5724, %v5720
        %v6061 = vpack.c.b16 %v5725, %v5721
        %v6062 = vpack.c.b16 %v5730, %v5726
        %v6063 = vpack.c.b16 %v5731, %v5727
        %v6064 = vpack.c.b16 %v5732, %v5728
        %v6065 = vpack.c.b16 %v5733, %v5729
        %v6066 = vpack.c.b16 %v5738, %v5734
        %v6067 = vpack.c.b16 %v5739, %v5735
        %v6068 = vpack.c.b16 %v5740, %v5736
        %v6069 = vpack.c.b16 %v5741, %v5737
        %v6070 = vpack.c.b16 %v5746, %v5742
        %v6071 = vpack.c.b16 %v5747, %v5743
        %v6072 = vpack.c.b16 %v5748, %v5744
        %v6073 = vpack.c.b16 %v5749, %v5745
        %v6074 = vpack.c.b16 %v5754, %v5750
        %v6075 = vpack.c.b16 %v5755, %v5751
        %v6076 = vpack.c.b16 %v5756, %v5752
        %v6077 = vpack.c.b16 %v5757, %v5753
        %v6078 = vpack.c.b16 %v5762, %v5758
        %v6079 = vpack.c.b16 %v5763, %v5759
        %v6080 = vpack.c.b16 %v5764, %v5760
        %v6081 = vpack.c.b16 %v5765, %v5761
        %v6082 = vpack.c.b16 %v5770, %v5766
        %v6083 = vpack.c.b16 %v5771, %v5767
        %v6084 = vpack.c.b16 %v5772, %v5768
        %v6085 = vpack.c.b16 %v5773, %v5769
        %v6086 = vpack.c.b16 %v5778, %v5774
        %v6087 = vpack.c.b16 %v5779, %v5775
        %v6088 = vpack.c.b16 %v5780, %v5776
        %v6089 = vpack.c.b16 %v5781, %v5777
        %v6090 = vpack.c.b16 %v5786, %v5782
        %v6091 = vpack.c.b16 %v5787, %v5783
        %v6092 = vpack.c.b16 %v5788, %v5784
        %v6093 = vpack.c.b16 %v5789, %v5785
        %v6094 = vpack.c.b16 %v5794, %v5790
        %v6095 = vpack.c.b16 %v5795, %v5791
        %v6096 = vpack.c.b16 %v5796, %v5792
        %v6097 = vpack.c.b16 %v5797, %v5793
        %v6098 = vpack.c.b16 %v5802, %v5798
        %v6099 = vpack.c.b16 %v5803, %v5799
        %v6100 = vpack.c.b16 %v5804, %v5800
        %v6101 = vpack.c.b16 %v5805, %v5801
        %v6102 = vpack.c.b16 %v5810, %v5806
        %v6103 = vpack.c.b16 %v5811, %v5807
        %v6104 = vpack.c.b16 %v5812, %v5808
        %v6105 = vpack.c.b16 %v5813, %v5809
        %v6106 = vpack.c.b16 %v5818, %v5814
        %v6107 = vpack.c.b16 %v5819, %v5815
        %v6108 = vpack.c.b16 %v5820, %v5816
        %v6109 = vpack.c.b16 %v5821, %v5817
        %v6110 = vpack.c.b16 %v5826, %v5822
        %v6111 = vpack.c.b16 %v5827, %v5823
        %v6112 = vpack.c.b16 %v5828, %v5824
        %v6113 = vpack.c.b16 %v5829, %v5825
        %v6114 = vpack.c.b16 %v5834, %v5830
        %v6115 = vpack.c.b16 %v5835, %v5831
        %v6116 = vpack.c.b16 %v5836, %v5832
        %v6117 = vpack.c.b16 %v5837, %v5833
        %v6118 = vpack.c.b16 %v5842, %v5838
        %v6119 = vpack.c.b16 %v5843, %v5839
        %v6120 = vpack.c.b16 %v5844, %v5840
        %v6121 = vpack.c.b16 %v5845, %v5841
        %v6122 = vpack.c.b16 %v5850, %v5846
        %v6123 = vpack.c.b16 %v5851, %v5847
        %v6124 = vpack.c.b16 %v5852, %v5848
        %v6125 = vpack.c.b16 %v5853, %v5849
        %v6126 = vpack.c.b16 %v5858, %v5854
        %v6127 = vpack.c.b16 %v5859, %v5855
        %v6128 = vpack.c.b16 %v5860, %v5856
        %v6129 = vpack.c.b16 %v5861, %v5857
        %v6130 = vpack.c.b16 %v5866, %v5862
        %v6131 = vpack.c.b16 %v5867, %v5863
        %v6132 = vpack.c.b16 %v5868, %v5864
        %v6133 = vpack.c.b16 %v5869, %v5865
        %v6134 = vpack.c.b16 %v5874, %v5870
        %v6135 = vpack.c.b16 %v5875, %v5871
        %v6136 = vpack.c.b16 %v5876, %v5872
        %v6137 = vpack.c.b16 %v5877, %v5873
        %v6138 = vpack.c.b16 %v5882, %v5878
        %v6139 = vpack.c.b16 %v5883, %v5879
        %v6140 = vpack.c.b16 %v5884, %v5880
        %v6141 = vpack.c.b16 %v5885, %v5881
        %v6142 = vpack.c.b16 %v5890, %v5886
        %v6143 = vpack.c.b16 %v5891, %v5887
        %v6144 = vpack.c.b16 %v5892, %v5888
        %v6145 = vpack.c.b16 %v5893, %v5889
        %v6146 = vpack.c.b16 %v5898, %v5894
        %v6147 = vpack.c.b16 %v5899, %v5895
        %v6148 = vpack.c.b16 %v5900, %v5896
        %v6149 = vpack.c.b16 %v5901, %v5897
        %v6150 = vpack.c.b16 %v5906, %v5902
        %v6151 = vpack.c.b16 %v5907, %v5903
        %v6152 = vpack.c.b16 %v5908, %v5904
        %v6153 = vpack.c.b16 %v5909, %v5905
        %v6154 = vpack.c.b16 %v5914, %v5910
        %v6155 = vpack.c.b16 %v5915, %v5911
        %v6156 = vpack.c.b16 %v5916, %v5912
        %v6157 = vpack.c.b16 %v5917, %v5913
        %v6158 = vpack.c.b16 %v5922, %v5918
        %v6159 = vpack.c.b16 %v5923, %v5919
        %v6160 = vpack.c.b16 %v5924, %v5920
        %v6161 = vpack.c.b16 %v5925, %v5921
        %v6162 = vpack.c.b16 %v5930, %v5926
        %v6163 = vpack.c.b16 %v5931, %v5927
        %v6164 = vpack.c.b16 %v5932, %v5928
        %v6165 = vpack.c.b16 %v5933, %v5929
        %v6166 = vpack.c.b16 %v5938, %v5934
        %v6167 = vpack.c.b16 %v5939, %v5935
        %v6168 = vpack.c.b16 %v5940, %v5936
        %v6169 = vpack.c.b16 %v5941, %v5937
        %v6170 = vpack.c.b16 %v5946, %v5942
        %v6171 = vpack.c.b16 %v5947, %v5943
        %v6172 = vpack.c.b16 %v5948, %v5944
        %v6173 = vpack.c.b16 %v5949, %v5945
        %v6174 = vpack.c.b16 %v5954, %v5950
        %v6175 = vpack.c.b16 %v5955, %v5951
        %v6176 = vpack.c.b16 %v5956, %v5952
        %v6177 = vpack.c.b16 %v5957, %v5953
        %v6178 = vpack.c.b16 %v5962, %v5958
        %v6179 = vpack.c.b16 %v5963, %v5959
        %v6180 = vpack.c.b16 %v5964, %v5960
        %v6181 = vpack.c.b16 %v5965, %v5961
        %v6182 = vpack.c.b16 %v5970, %v5966
        %v6183 = vpack.c.b16 %v5971, %v5967
        %v6184 = vpack.c.b16 %v5972, %v5968
        %v6185 = vpack.c.b16 %v5973, %v5969
        %v6186 = vpack.c.b16 %v5978, %v5974
        %v6187 = vpack.c.b16 %v5979, %v5975
        %v6188 = vpack.c.b16 %v5980, %v5976
        %v6189 = vpack.c.b16 %v5981, %v5977
        %v6190 = vpack.c.b16 %v5986, %v5982
        %v6191 = vpack.c.b16 %v5987, %v5983
        %v6192 = vpack.c.b16 %v5988, %v5984
        %v6193 = vpack.c.b16 %v5989, %v5985
        %v6194 = vpack.c.b16 %v5994, %v5990
        %v6195 = vpack.c.b16 %v5995, %v5991
        %v6196 = vpack.c.b16 %v5996, %v5992
        %v6197 = vpack.c.b16 %v5997, %v5993
        %v6198 = vpack.c.b16 %v6002, %v5998
        %v6199 = vpack.c.b16 %v6003, %v5999
        %v6200 = vpack.c.b16 %v6004, %v6000
        %v6201 = vpack.c.b16 %v6005, %v6001
        %v6202 = vpack.c.b16 %v6010, %v6006
        %v6203 = vpack.c.b16 %v6011, %v6007
        %v6204 = vpack.c.b16 %v6012, %v6008
        %v6205 = vpack.c.b16 %v6013, %v6009
        %6398 = vmatprep.subr.bf16.mxu0 %v6015
        %6399 = vmatpush1.bf16.msra.mxu0 %v6014
        %6400 = vmatprep.subr.bf16.mxu0 %v6019
        %6401 = vmatpush1.bf16.msra.mxu0 %v6018
        %6402 = vmatprep.subr.bf16.mxu0 %v6023
        %6403 = vmatpush1.bf16.msra.mxu0 %v6022
        %6404 = vmatprep.subr.bf16.mxu0 %v6027
        %6405 = vmatpush1.bf16.msra.mxu0 %v6026
        %6406 = vmatprep.subr.bf16.mxu0 %v6031
        %6407 = vmatpush1.bf16.msra.mxu0 %v6030
        %6408 = vmatprep.subr.bf16.mxu0 %v6035
        %6409 = vmatpush1.bf16.msra.mxu0 %v6034
        %6410 = vmatprep.subr.bf16.mxu0 %v6039
        %6411 = vmatpush1.bf16.msra.mxu0 %v6038
        %6412 = vmatprep.subr.bf16.mxu0 %v6043
        %6413 = vmatpush1.bf16.msra.mxu0 %v6042
        %6414 = vmatprep.subr.bf16.mxu0 %v6047
        %6415 = vmatpush1.bf16.msra.mxu0 %v6046
        %6416 = vmatprep.subr.bf16.mxu0 %v6051
        %6417 = vmatpush1.bf16.msra.mxu0 %v6050
        %6418 = vmatprep.subr.bf16.mxu0 %v6055
        %6419 = vmatpush1.bf16.msra.mxu0 %v6054
        %6420 = vmatprep.subr.bf16.mxu0 %v6059
        %6421 = vmatpush1.bf16.msra.mxu0 %v6058
        %6422 = vmatprep.subr.bf16.mxu0 %v6063
        %6423 = vmatpush1.bf16.msra.mxu0 %v6062
        %6424 = vmatprep.subr.bf16.mxu0 %v6067
        %6425 = vmatpush1.bf16.msra.mxu0 %v6066
        %6426 = vmatprep.subr.bf16.mxu0 %v6071
        %6427 = vmatpush1.bf16.msra.mxu0 %v6070
        %6428 = vmatprep.subr.bf16.mxu0 %v6075
        %6429 = vmatpush1.bf16.msra.mxu0 %v6074
        %6430 = vmatprep.mubr.bf16.mxu0 %v5178
        %6431 = vmatmul.mubr.bf16.gmra.mrb[0].mxu0 %v5177
        %v6432 = vpop.f32.mrb[0].mxu0
        %v6433 = vadd.f32 %v5421, %v6432
        %v6434 = vpop.f32.mrb[0].mxu0
        %v6435 = vadd.f32 %v5425, %v6434
        %v6436 = vpop.f32.mrb[0].mxu0
        %v6437 = vadd.f32 %v5421, %v6436
        %v6438 = vpop.f32.mrb[0].mxu0
        %v6439 = vadd.f32 %v5425, %v6438
        %6440 = vdwg.mxu0
        %6441 = vmatprep.subr.bf16.mxu0 %v6079
        %6442 = vmatpush1.bf16.msra.mxu0 %v6078
        %6443 = vmatprep.subr.bf16.mxu0 %v6083
        %6444 = vmatpush1.bf16.msra.mxu0 %v6082
        %6445 = vmatprep.subr.bf16.mxu0 %v6087
        %6446 = vmatpush1.bf16.msra.mxu0 %v6086
        %6447 = vmatprep.subr.bf16.mxu0 %v6091
        %6448 = vmatpush1.bf16.msra.mxu0 %v6090
        %6449 = vmatprep.subr.bf16.mxu0 %v6095
        %6450 = vmatpush1.bf16.msra.mxu0 %v6094
        %6451 = vmatprep.subr.bf16.mxu0 %v6099
        %6452 = vmatpush1.bf16.msra.mxu0 %v6098
        %6453 = vmatprep.subr.bf16.mxu0 %v6103
        %6454 = vmatpush1.bf16.msra.mxu0 %v6102
        %6455 = vmatprep.subr.bf16.mxu0 %v6107
        %6456 = vmatpush1.bf16.msra.mxu0 %v6106
        %6457 = vmatprep.subr.bf16.mxu0 %v6111
        %6458 = vmatpush1.bf16.msra.mxu0 %v6110
        %6459 = vmatprep.subr.bf16.mxu0 %v6115
        %6460 = vmatpush1.bf16.msra.mxu0 %v6114
        %6461 = vmatprep.subr.bf16.mxu0 %v6119
        %6462 = vmatpush1.bf16.msra.mxu0 %v6118
        %6463 = vmatprep.subr.bf16.mxu0 %v6123
        %6464 = vmatpush1.bf16.msra.mxu0 %v6122
        %6465 = vmatprep.subr.bf16.mxu0 %v6127
        %6466 = vmatpush1.bf16.msra.mxu0 %v6126
        %6467 = vmatprep.subr.bf16.mxu0 %v6131
        %6468 = vmatpush1.bf16.msra.mxu0 %v6130
        %6469 = vmatprep.subr.bf16.mxu0 %v6135
        %6470 = vmatpush1.bf16.msra.mxu0 %v6134
        %6471 = vmatprep.subr.bf16.mxu0 %v6139
        %6472 = vmatpush1.bf16.msra.mxu0 %v6138
        %6473 = vmatprep.mubr.bf16.mxu0 %v5133
        %6474 = vmatmul.mubr.bf16.gmra.mrb[0].mxu0 %v5132
        %v6475 = vpop.f32.mrb[0].mxu0
        %v6476 = vadd.f32 %v6433, %v6475
        %v6477 = vpop.f32.mrb[0].mxu0
        %v6478 = vadd.f32 %v6435, %v6477
        %v6479 = vpop.f32.mrb[0].mxu0
        %v6480 = vadd.f32 %v6437, %v6479
        %v6481 = vpop.f32.mrb[0].mxu0
        %v6482 = vadd.f32 %v6439, %v6481
        %6483 = vdwg.mxu0
        %6484 = vmatprep.subr.bf16.mxu0 %v6143
        %6485 = vmatpush1.bf16.msra.mxu0 %v6142
        %6486 = vmatprep.subr.bf16.mxu0 %v6147
        %6487 = vmatpush1.bf16.msra.mxu0 %v6146
        %6488 = vmatprep.subr.bf16.mxu0 %v6151
        %6489 = vmatpush1.bf16.msra.mxu0 %v6150
        %6490 = vmatprep.subr.bf16.mxu0 %v6155
        %6491 = vmatpush1.bf16.msra.mxu0 %v6154
        %6492 = vmatprep.subr.bf16.mxu0 %v6159
        %6493 = vmatpush1.bf16.msra.mxu0 %v6158
        %6494 = vmatprep.subr.bf16.mxu0 %v6163
        %6495 = vmatpush1.bf16.msra.mxu0 %v6162
        %6496 = vmatprep.subr.bf16.mxu0 %v6167
        %6497 = vmatpush1.bf16.msra.mxu0 %v6166
        %6498 = vmatprep.subr.bf16.mxu0 %v6171
        %6499 = vmatpush1.bf16.msra.mxu0 %v6170
        %6500 = vmatprep.subr.bf16.mxu0 %v6175
        %6501 = vmatpush1.bf16.msra.mxu0 %v6174
        %6502 = vmatprep.subr.bf16.mxu0 %v6179
        %6503 = vmatpush1.bf16.msra.mxu0 %v6178
        %6504 = vmatprep.subr.bf16.mxu0 %v6183
        %6505 = vmatpush1.bf16.msra.mxu0 %v6182
        %6506 = vmatprep.subr.bf16.mxu0 %v6187
        %6507 = vmatpush1.bf16.msra.mxu0 %v6186
        %6508 = vmatprep.subr.bf16.mxu0 %v6191
        %6509 = vmatpush1.bf16.msra.mxu0 %v6190
        %6510 = vmatprep.subr.bf16.mxu0 %v6195
        %6511 = vmatpush1.bf16.msra.mxu0 %v6194
        %6512 = vmatprep.subr.bf16.mxu0 %v6199
        %6513 = vmatpush1.bf16.msra.mxu0 %v6198
        %6514 = vmatprep.subr.bf16.mxu0 %v6203
        %6515 = vmatpush1.bf16.msra.mxu0 %v6202
        %6516 = vmatprep.mubr.bf16.mxu0 %v5223
        %6517 = vmatmul.mubr.bf16.gmra.mrb[0].mxu0 %v5222
        %v6518 = vpop.f32.mrb[0].mxu0
        %v6519 = vadd.f32 %v6476, %v6518
        %v6520 = vpop.f32.mrb[0].mxu0
        %v6521 = vadd.f32 %v6478, %v6520
        %v6522 = vpop.f32.mrb[0].mxu0
        %v6523 = vadd.f32 %v6480, %v6522
        %v6524 = vpop.f32.mrb[0].mxu0
        %v6525 = vadd.f32 %v6482, %v6524
        %6526 = vdwg.mxu0
        %6527 = vmatprep.subr.bf16.mxu0 %v6017
        %6528 = vmatpush1.bf16.msra.mxu0 %v6016
        %6529 = vmatprep.subr.bf16.mxu0 %v6021
        %6530 = vmatpush1.bf16.msra.mxu0 %v6020
        %6531 = vmatprep.subr.bf16.mxu0 %v6025
        %6532 = vmatpush1.bf16.msra.mxu0 %v6024
        %6533 = vmatprep.subr.bf16.mxu0 %v6029
        %6534 = vmatpush1.bf16.msra.mxu0 %v6028
        %6535 = vmatprep.subr.bf16.mxu0 %v6033
        %6536 = vmatpush1.bf16.msra.mxu0 %v6032
        %6537 = vmatprep.subr.bf16.mxu0 %v6037
        %6538 = vmatpush1.bf16.msra.mxu0 %v6036
        %6539 = vmatprep.subr.bf16.mxu0 %v6041
        %6540 = vmatpush1.bf16.msra.mxu0 %v6040
        %6541 = vmatprep.subr.bf16.mxu0 %v6045
        %6542 = vmatpush1.bf16.msra.mxu0 %v6044
        %6543 = vmatprep.subr.bf16.mxu0 %v6049
        %6544 = vmatpush1.bf16.msra.mxu0 %v6048
        %6545 = vmatprep.subr.bf16.mxu0 %v6053
        %6546 = vmatpush1.bf16.msra.mxu0 %v6052
        %6547 = vmatprep.subr.bf16.mxu0 %v6057
        %6548 = vmatpush1.bf16.msra.mxu0 %v6056
        %6549 = vmatprep.subr.bf16.mxu0 %v6061
        %6550 = vmatpush1.bf16.msra.mxu0 %v6060
        %6551 = vmatprep.subr.bf16.mxu0 %v6065
        %6552 = vmatpush1.bf16.msra.mxu0 %v6064
        %6553 = vmatprep.subr.bf16.mxu0 %v6069
        %6554 = vmatpush1.bf16.msra.mxu0 %v6068
        %6555 = vmatprep.subr.bf16.mxu0 %v6073
        %6556 = vmatpush1.bf16.msra.mxu0 %v6072
        %6557 = vmatprep.subr.bf16.mxu0 %v6077
        %6558 = vmatpush1.bf16.msra.mxu0 %v6076
        %6559 = vmatprep.mubr.bf16.mxu0 %v5178
        %6560 = vmatmul.mubr.bf16.gmra.mrb[0].mxu0 %v5177
        %v6561 = vpop.f32.mrb[0].mxu0
        %v6562 = vadd.f32 %v5429, %v6561
        %v6563 = vpop.f32.mrb[0].mxu0
        %v6564 = vadd.f32 %v5433, %v6563
        %v6565 = vpop.f32.mrb[0].mxu0
        %v6566 = vadd.f32 %v5429, %v6565
        %v6567 = vpop.f32.mrb[0].mxu0
        %v6568 = vadd.f32 %v5433, %v6567
        %6569 = vdwg.mxu0
        %6570 = vmatprep.subr.bf16.mxu0 %v6081
        %6571 = vmatpush1.bf16.msra.mxu0 %v6080
        %6572 = vmatprep.subr.bf16.mxu0 %v6085
        %6573 = vmatpush1.bf16.msra.mxu0 %v6084
        %6574 = vmatprep.subr.bf16.mxu0 %v6089
        %6575 = vmatpush1.bf16.msra.mxu0 %v6088
        %6576 = vmatprep.subr.bf16.mxu0 %v6093
        %6577 = vmatpush1.bf16.msra.mxu0 %v6092
        %6578 = vmatprep.subr.bf16.mxu0 %v6097
        %6579 = vmatpush1.bf16.msra.mxu0 %v6096
        %6580 = vmatprep.subr.bf16.mxu0 %v6101
        %6581 = vmatpush1.bf16.msra.mxu0 %v6100
        %6582 = vmatprep.subr.bf16.mxu0 %v6105
        %6583 = vmatpush1.bf16.msra.mxu0 %v6104
        %6584 = vmatprep.subr.bf16.mxu0 %v6109
        %6585 = vmatpush1.bf16.msra.mxu0 %v6108
        %6586 = vmatprep.subr.bf16.mxu0 %v6113
        %6587 = vmatpush1.bf16.msra.mxu0 %v6112
        %6588 = vmatprep.subr.bf16.mxu0 %v6117
        %6589 = vmatpush1.bf16.msra.mxu0 %v6116
        %6590 = vmatprep.subr.bf16.mxu0 %v6121
        %6591 = vmatpush1.bf16.msra.mxu0 %v6120
        %6592 = vmatprep.subr.bf16.mxu0 %v6125
        %6593 = vmatpush1.bf16.msra.mxu0 %v6124
        %6594 = vmatprep.subr.bf16.mxu0 %v6129
        %6595 = vmatpush1.bf16.msra.mxu0 %v6128
        %6596 = vmatprep.subr.bf16.mxu0 %v6133
        %6597 = vmatpush1.bf16.msra.mxu0 %v6132
        %6598 = vmatprep.subr.bf16.mxu0 %v6137
        %6599 = vmatpush1.bf16.msra.mxu0 %v6136
        %6600 = vmatprep.subr.bf16.mxu0 %v6141
        %6601 = vmatpush1.bf16.msra.mxu0 %v6140
        %6602 = vmatprep.mubr.bf16.mxu0 %v5133
        %6603 = vmatmul.mubr.bf16.gmra.mrb[0].mxu0 %v5132
        %v6604 = vpop.f32.mrb[0].mxu0
        %v6605 = vadd.f32 %v6562, %v6604
        %v6606 = vpop.f32.mrb[0].mxu0
        %v6607 = vadd.f32 %v6564, %v6606
        %v6608 = vpop.f32.mrb[0].mxu0
        %v6609 = vadd.f32 %v6566, %v6608
        %v6610 = vpop.f32.mrb[0].mxu0
        %v6611 = vadd.f32 %v6568, %v6610
        %6612 = vdwg.mxu0
        %6613 = vmatprep.subr.bf16.mxu0 %v6145
        %6614 = vmatpush1.bf16.msra.mxu0 %v6144
        %6615 = vmatprep.subr.bf16.mxu0 %v6149
        %6616 = vmatpush1.bf16.msra.mxu0 %v6148
        %6617 = vmatprep.subr.bf16.mxu0 %v6153
        %6618 = vmatpush1.bf16.msra.mxu0 %v6152
        %6619 = vmatprep.subr.bf16.mxu0 %v6157
        %6620 = vmatpush1.bf16.msra.mxu0 %v6156
        %6621 = vmatprep.subr.bf16.mxu0 %v6161
        %6622 = vmatpush1.bf16.msra.mxu0 %v6160
        %6623 = vmatprep.subr.bf16.mxu0 %v6165
        %6624 = vmatpush1.bf16.msra.mxu0 %v6164
        %6625 = vmatprep.subr.bf16.mxu0 %v6169
        %6626 = vmatpush1.bf16.msra.mxu0 %v6168
        %6627 = vmatprep.subr.bf16.mxu0 %v6173
        %6628 = vmatpush1.bf16.msra.mxu0 %v6172
        %6629 = vmatprep.subr.bf16.mxu0 %v6177
        %6630 = vmatpush1.bf16.msra.mxu0 %v6176
        %6631 = vmatprep.subr.bf16.mxu0 %v6181
        %6632 = vmatpush1.bf16.msra.mxu0 %v6180
        %6633 = vmatprep.subr.bf16.mxu0 %v6185
        %6634 = vmatpush1.bf16.msra.mxu0 %v6184
        %6635 = vmatprep.subr.bf16.mxu0 %v6189
        %6636 = vmatpush1.bf16.msra.mxu0 %v6188
        %6637 = vmatprep.subr.bf16.mxu0 %v6193
        %6638 = vmatpush1.bf16.msra.mxu0 %v6192
        %6639 = vmatprep.subr.bf16.mxu0 %v6197
        %6640 = vmatpush1.bf16.msra.mxu0 %v6196
        %6641 = vmatprep.subr.bf16.mxu0 %v6201
        %6642 = vmatpush1.bf16.msra.mxu0 %v6200
        %6643 = vmatprep.subr.bf16.mxu0 %v6205
        %6644 = vmatpush1.bf16.msra.mxu0 %v6204
        %6645 = vmatprep.mubr.bf16.mxu0 %v5223
        %6646 = vmatmul.mubr.bf16.gmra.mrb[0].mxu0 %v5222
        %v6647 = vpop.f32.mrb[0].mxu0
        %v6648 = vadd.f32 %v6605, %v6647
        %v6649 = vpop.f32.mrb[0].mxu0
        %v6650 = vadd.f32 %v6607, %v6649
        %v6651 = vpop.f32.mrb[0].mxu0
        %v6652 = vadd.f32 %v6609, %v6651
        %v6653 = vpop.f32.mrb[0].mxu0
        %v6654 = vadd.f32 %v6611, %v6653
        %6655 = vdwg.mxu0
        %v6656 = vmax.f32 %v6519, 0.0
        %v6657 = vmax.f32 %v6521, 0.0
        %v6658 = vmax.f32 %v6648, 0.0
        %v6659 = vmax.f32 %v6650, 0.0
        %v6660 = vmax.f32 %v6523, 0.0
        %v6661 = vmax.f32 %v6525, 0.0
        %v6662 = vmax.f32 %v6652, 0.0
        %v6663 = vmax.f32 %v6654, 0.0
        %v6664 = vsel %vm4312, %v2818, 0
        %6666 = vmatprep.subr.mxu0 %v6657
        %6667 = vmatpush1.msra.mxu0 %v6656
        %6668 = vmatprep.subr.mxu0 %v6661
        %6669 = vmatpush1.msra.mxu0 %v6660
        %6670 = vmatprep.subr.mxu0 0.0
        %6671 = vmatpush1.msra.mxu0 0.0
        %6672 = vmatprep.subr.mxu0 0.0
        %6673 = vmatpush1.msra.mxu0 0.0
        %6674 = vmatprep.subr.mxu0 0.0
        %6675 = vmatpush1.msra.mxu0 0.0
        %6676 = vmatprep.subr.mxu0 0.0
        %6677 = vmatpush1.msra.mxu0 0.0
        %6678 = vmatprep.subr.mxu0 0.0
        %6679 = vmatpush1.msra.mxu0 0.0
        %6680 = vmatprep.subr.mxu0 0.0
        %6681 = vmatpush1.msra.mxu0 0.0
        %6682 = vmatprep.subr.mxu0 0.0
        %6683 = vmatpush1.msra.mxu0 0.0
        %6684 = vmatprep.subr.mxu0 0.0
        %6685 = vmatpush1.msra.mxu0 0.0
        %6686 = vmatprep.subr.mxu0 0.0
        %6687 = vmatpush1.msra.mxu0 0.0
        %6688 = vmatprep.subr.mxu0 0.0
        %6689 = vmatpush1.msra.mxu0 0.0
        %6690 = vmatprep.subr.mxu0 0.0
        %6691 = vmatpush1.msra.mxu0 0.0
        %6692 = vmatprep.subr.mxu0 0.0
        %6693 = vmatpush1.msra.mxu0 0.0
        %6694 = vmatprep.subr.mxu0 0.0
        %6695 = vmatpush1.msra.mxu0 0.0
        %6696 = vmatprep.subr.mxu0 0.0
        %6697 = vmatpush1.msra.mxu0 0.0
        %6698 = vmatprep.subr.mxu0 0.0
        %6699 = vmatpush1.msra.mxu0 0.0
        %6700 = vmatprep.subr.mxu0 0.0
        %6701 = vmatpush1.msra.mxu0 0.0
        %6702 = vmatprep.subr.mxu0 0.0
        %6703 = vmatpush1.msra.mxu0 0.0
        %6704 = vmatprep.subr.mxu0 0.0
        %6705 = vmatpush1.msra.mxu0 0.0
        %6706 = vmatprep.subr.mxu0 0.0
        %6707 = vmatpush1.msra.mxu0 0.0
        %6708 = vmatprep.subr.mxu0 0.0
        %6709 = vmatpush1.msra.mxu0 0.0
        %6710 = vmatprep.subr.mxu0 0.0
        %6711 = vmatpush1.msra.mxu0 0.0
        %6712 = vmatprep.subr.mxu0 0.0
        %6713 = vmatpush1.msra.mxu0 0.0
        %6714 = vmatprep.subr.mxu0 0.0
        %6715 = vmatpush1.msra.mxu0 0.0
        %6716 = vmatprep.subr.mxu0 0.0
        %6717 = vmatpush1.msra.mxu0 0.0
        %6718 = vmatprep.subr.mxu0 0.0
        %6719 = vmatpush1.msra.mxu0 0.0
        %6720 = vmatprep.subr.mxu0 0.0
        %6721 = vmatpush1.msra.mxu0 0.0
        %6722 = vmatprep.subr.mxu0 0.0
        %6723 = vmatpush1.msra.mxu0 0.0
        %6724 = vmatprep.subr.mxu0 0.0
        %6725 = vmatpush1.msra.mxu0 0.0
        %6726 = vmatprep.subr.mxu0 0.0
        %6727 = vmatpush1.msra.mxu0 0.0
        %6728 = vmatprep.subr.mxu0 0.0
        %6729 = vmatpush1.msra.mxu0 0.0
        %6730 = vmatprep.mubr.f32.mxu0 0.0
        %6731 = vmatmul.mubr.f32.gmra.mrb[0].mxu0 %v6664
        %v6732 = vpop.f32.mrb[0].mxu0
        %v6733 = vadd.f32 0.0, %v6732
        %v6734 = vpop.f32.mrb[0].mxu0
        %v6735 = vadd.f32 0.0, %v6734
        %6736 = vdwg.mxu0
        %6737 = vmatprep.subr.mxu0 %v6659
        %6738 = vmatpush1.msra.mxu0 %v6658
        %6739 = vmatprep.subr.mxu0 %v6663
        %6740 = vmatpush1.msra.mxu0 %v6662
        %6741 = vmatprep.subr.mxu0 0.0
        %6742 = vmatpush1.msra.mxu0 0.0
        %6743 = vmatprep.subr.mxu0 0.0
        %6744 = vmatpush1.msra.mxu0 0.0
        %6745 = vmatprep.subr.mxu0 0.0
        %6746 = vmatpush1.msra.mxu0 0.0
        %6747 = vmatprep.subr.mxu0 0.0
        %6748 = vmatpush1.msra.mxu0 0.0
        %6749 = vmatprep.subr.mxu0 0.0
        %6750 = vmatpush1.msra.mxu0 0.0
        %6751 = vmatprep.subr.mxu0 0.0
        %6752 = vmatpush1.msra.mxu0 0.0
        %6753 = vmatprep.subr.mxu0 0.0
        %6754 = vmatpush1.msra.mxu0 0.0
        %6755 = vmatprep.subr.mxu0 0.0
        %6756 = vmatpush1.msra.mxu0 0.0
        %6757 = vmatprep.subr.mxu0 0.0
        %6758 = vmatpush1.msra.mxu0 0.0
        %6759 = vmatprep.subr.mxu0 0.0
        %6760 = vmatpush1.msra.mxu0 0.0
        %6761 = vmatprep.subr.mxu0 0.0
        %6762 = vmatpush1.msra.mxu0 0.0
        %6763 = vmatprep.subr.mxu0 0.0
        %6764 = vmatpush1.msra.mxu0 0.0
        %6765 = vmatprep.subr.mxu0 0.0
        %6766 = vmatpush1.msra.mxu0 0.0
        %6767 = vmatprep.subr.mxu0 0.0
        %6768 = vmatpush1.msra.mxu0 0.0
        %6769 = vmatprep.subr.mxu0 0.0
        %6770 = vmatpush1.msra.mxu0 0.0
        %6771 = vmatprep.subr.mxu0 0.0
        %6772 = vmatpush1.msra.mxu0 0.0
        %6773 = vmatprep.subr.mxu0 0.0
        %6774 = vmatpush1.msra.mxu0 0.0
        %6775 = vmatprep.subr.mxu0 0.0
        %6776 = vmatpush1.msra.mxu0 0.0
        %6777 = vmatprep.subr.mxu0 0.0
        %6778 = vmatpush1.msra.mxu0 0.0
        %6779 = vmatprep.subr.mxu0 0.0
        %6780 = vmatpush1.msra.mxu0 0.0
        %6781 = vmatprep.subr.mxu0 0.0
        %6782 = vmatpush1.msra.mxu0 0.0
        %6783 = vmatprep.subr.mxu0 0.0
        %6784 = vmatpush1.msra.mxu0 0.0
        %6785 = vmatprep.subr.mxu0 0.0
        %6786 = vmatpush1.msra.mxu0 0.0
        %6787 = vmatprep.subr.mxu0 0.0
        %6788 = vmatpush1.msra.mxu0 0.0
        %6789 = vmatprep.subr.mxu0 0.0
        %6790 = vmatpush1.msra.mxu0 0.0
        %6791 = vmatprep.subr.mxu0 0.0
        %6792 = vmatpush1.msra.mxu0 0.0
        %6793 = vmatprep.subr.mxu0 0.0
        %6794 = vmatpush1.msra.mxu0 0.0
        %6795 = vmatprep.subr.mxu0 0.0
        %6796 = vmatpush1.msra.mxu0 0.0
        %6797 = vmatprep.subr.mxu0 0.0
        %6798 = vmatpush1.msra.mxu0 0.0
        %6799 = vmatprep.subr.mxu0 0.0
        %6800 = vmatpush1.msra.mxu0 0.0
        %6801 = vmatprep.mubr.f32.mxu0 0.0
        %6802 = vmatmul.mubr.f32.gmra.mrb[0].mxu0 %v6664
        %v6803 = vpop.f32.mrb[0].mxu0
        %v6804 = vadd.f32 0.0, %v6803
        %v6805 = vpop.f32.mrb[0].mxu0
        %v6806 = vadd.f32 0.0, %v6805
        %6807 = vdwg.mxu0
        %v6808 = vpack.c.bf16 %v6733, %v6733
        %v6809 = vpack.c.bf16 %v6735, %v6735
        %v6810 = vpack.c.bf16 %v6804, %v6804
        %v6811 = vpack.c.bf16 %v6806, %v6806
        %v6812 = vpack.c.bf16 %v2818, %v2818
        %v6814 = vsel %vm4312, %v6812, 0
        %6816 = vmatprep.subr.bf16.mxu0 %v5133
        %6817 = vmatpush1.bf16.msra.mxu0 %v5132
        %6818 = vmatprep.subr.bf16.mxu0 0
        %6819 = vmatpush1.bf16.msra.mxu0 0
        %6820 = vmatprep.subr.bf16.mxu0 0
        %6821 = vmatpush1.bf16.msra.mxu0 0
        %6822 = vmatprep.subr.bf16.mxu0 0
        %6823 = vmatpush1.bf16.msra.mxu0 0
        %6824 = vmatprep.subr.bf16.mxu0 0
        %6825 = vmatpush1.bf16.msra.mxu0 0
        %6826 = vmatprep.subr.bf16.mxu0 0
        %6827 = vmatpush1.bf16.msra.mxu0 0
        %6828 = vmatprep.subr.bf16.mxu0 0
        %6829 = vmatpush1.bf16.msra.mxu0 0
        %6830 = vmatprep.subr.bf16.mxu0 0
        %6831 = vmatpush1.bf16.msra.mxu0 0
        %6832 = vmatprep.subr.bf16.mxu0 0
        %6833 = vmatpush1.bf16.msra.mxu0 0
        %6834 = vmatprep.subr.bf16.mxu0 0
        %6835 = vmatpush1.bf16.msra.mxu0 0
        %6836 = vmatprep.subr.bf16.mxu0 0
        %6837 = vmatpush1.bf16.msra.mxu0 0
        %6838 = vmatprep.subr.bf16.mxu0 0
        %6839 = vmatpush1.bf16.msra.mxu0 0
        %6840 = vmatprep.subr.bf16.mxu0 0
        %6841 = vmatpush1.bf16.msra.mxu0 0
        %6842 = vmatprep.subr.bf16.mxu0 0
        %6843 = vmatpush1.bf16.msra.mxu0 0
        %6844 = vmatprep.subr.bf16.mxu0 0
        %6845 = vmatpush1.bf16.msra.mxu0 0
        %6846 = vmatprep.subr.bf16.mxu0 0
        %6847 = vmatpush1.bf16.msra.mxu0 0
        %6848 = vmatprep.mubr.bf16.mxu0 0
        %6849 = vmatmul.mubr.bf16.gmra.mrb[0].mxu0 %v6814
        %v6850 = vpop.f32.mrb[0].mxu0
        %v6851 = vadd.f32 0.0, %v6850
        %v6852 = vpop.f32.mrb[0].mxu0
        %v6853 = vadd.f32 0.0, %v6852
        %v6854 = vpop.f32.mrb[0].mxu0
        %v6855 = vpop.f32.mrb[0].mxu0
        %6856 = vdwg.mxu0
        %v6857 = vpack.c.bf16 %v6851, %v6851
        %v6858 = vpack.c.bf16 %v6853, %v6853
        %v6859 = vld [vmem:[#allocation36] sm:$0xff]
        %v6860 = vld [vmem:[#allocation36 + $0x8] sm:$0xff]
        %v6861 = vld [vmem:[#allocation36 + $0x10] sm:$0xff]
        %v6862 = vld [vmem:[#allocation36 + $0x18] sm:$0xff]
        %v6863 = vld [vmem:[#allocation36 + $0x20] sm:$0xff]
        %v6864 = vld [vmem:[#allocation36 + $0x28] sm:$0xff]
        %v6865 = vld [vmem:[#allocation36 + $0x30] sm:$0xff]
        %v6866 = vld [vmem:[#allocation36 + $0x38] sm:$0xff]
        %v6867 = vld [vmem:[#allocation36 + $0x40] sm:$0xff]
        %v6868 = vld [vmem:[#allocation36 + $0x48] sm:$0xff]
        %v6869 = vld [vmem:[#allocation36 + $0x50] sm:$0xff]
        %v6870 = vld [vmem:[#allocation36 + $0x58] sm:$0xff]
        %v6871 = vld [vmem:[#allocation36 + $0x60] sm:$0xff]
        %v6872 = vld [vmem:[#allocation36 + $0x68] sm:$0xff]
        %v6873 = vld [vmem:[#allocation36 + $0x70] sm:$0xff]
        %v6874 = vld [vmem:[#allocation36 + $0x78] sm:$0xff]
        %v6875 = vld [vmem:[#allocation36 + $0x80] sm:$0xff]
        %v6876 = vld [vmem:[#allocation36 + $0x88] sm:$0xff]
        %v6877 = vld [vmem:[#allocation36 + $0x90] sm:$0xff]
        %v6878 = vld [vmem:[#allocation36 + $0x98] sm:$0xff]
        %v6879 = vld [vmem:[#allocation36 + $0xa0] sm:$0xff]
        %v6880 = vld [vmem:[#allocation36 + $0xa8] sm:$0xff]
        %v6881 = vld [vmem:[#allocation36 + $0xb0] sm:$0xff]
        %v6882 = vld [vmem:[#allocation36 + $0xb8] sm:$0xff]
        %v6883 = vld [vmem:[#allocation36 + $0xc0] sm:$0xff]
        %v6884 = vld [vmem:[#allocation36 + $0xc8] sm:$0xff]
        %v6885 = vld [vmem:[#allocation36 + $0xd0] sm:$0xff]
        %v6886 = vld [vmem:[#allocation36 + $0xd8] sm:$0xff]
        %v6887 = vld [vmem:[#allocation36 + $0xe0] sm:$0xff]
        %v6888 = vld [vmem:[#allocation36 + $0xe8] sm:$0xff]
        %v6889 = vld [vmem:[#allocation36 + $0xf0] sm:$0xff]
        %v6890 = vld [vmem:[#allocation36 + $0xf8] sm:$0xff]
        %v6891 = vld [vmem:[#allocation36 + $0x100] sm:$0xff]
        %v6892 = vld [vmem:[#allocation36 + $0x108] sm:$0xff]
        %v6893 = vld [vmem:[#allocation36 + $0x110] sm:$0xff]
        %v6894 = vld [vmem:[#allocation36 + $0x118] sm:$0xff]
        %v6895 = vld [vmem:[#allocation36 + $0x120] sm:$0xff]
        %v6896 = vld [vmem:[#allocation36 + $0x128] sm:$0xff]
        %v6897 = vld [vmem:[#allocation36 + $0x130] sm:$0xff]
        %v6898 = vld [vmem:[#allocation36 + $0x138] sm:$0xff]
        %v6899 = vld [vmem:[#allocation36 + $0x140] sm:$0xff]
        %v6900 = vld [vmem:[#allocation36 + $0x148] sm:$0xff]
        %v6901 = vld [vmem:[#allocation36 + $0x150] sm:$0xff]
        %v6902 = vld [vmem:[#allocation36 + $0x158] sm:$0xff]
        %v6903 = vld [vmem:[#allocation36 + $0x160] sm:$0xff]
        %v6904 = vld [vmem:[#allocation36 + $0x168] sm:$0xff]
        %v6905 = vld [vmem:[#allocation36 + $0x170] sm:$0xff]
        %v6906 = vld [vmem:[#allocation36 + $0x178] sm:$0xff]
        %v6907 = vld [vmem:[#allocation36 + $0x180] sm:$0xff]
        %v6908 = vld [vmem:[#allocation36 + $0x188] sm:$0xff]
        %v6909 = vld [vmem:[#allocation36 + $0x190] sm:$0xff]
        %v6910 = vld [vmem:[#allocation36 + $0x198] sm:$0xff]
        %v6911 = vld [vmem:[#allocation36 + $0x1a0] sm:$0xff]
        %v6912 = vld [vmem:[#allocation36 + $0x1a8] sm:$0xff]
        %v6913 = vld [vmem:[#allocation36 + $0x1b0] sm:$0xff]
        %v6914 = vld [vmem:[#allocation36 + $0x1b8] sm:$0xff]
        %v6915 = vld [vmem:[#allocation36 + $0x1c0] sm:$0xff]
        %v6916 = vld [vmem:[#allocation36 + $0x1c8] sm:$0xff]
        %v6917 = vld [vmem:[#allocation36 + $0x1d0] sm:$0xff]
        %v6918 = vld [vmem:[#allocation36 + $0x1d8] sm:$0xff]
        %v6919 = vld [vmem:[#allocation36 + $0x1e0] sm:$0xff]
        %v6920 = vld [vmem:[#allocation36 + $0x1e8] sm:$0xff]
        %v6921 = vld [vmem:[#allocation36 + $0x1f0] sm:$0xff]
        %v6922 = vld [vmem:[#allocation36 + $0x1f8] sm:$0xff]
        %v6923 = vld [vmem:[#allocation37] sm:$0xf]
        %v6925 = vlaneseq
        %v6926 = vshrl.u32 %v6925, 7
        %v6927 = vsub.s32 0, %v6926
        %v6928 = vrot.slane %v6923, %v6927
        %v6929 = vlaneseq
        %v6930 = vshrl.u32 %v6929, 7
        %v6931 = vsub.s32 1, %v6930
        %v6932 = vrot.slane %v6923, %v6931
        %v6933 = vlaneseq
        %v6934 = vshrl.u32 %v6933, 7
        %v6935 = vsub.s32 2, %v6934
        %v6936 = vrot.slane %v6923, %v6935
        %v6937 = vlaneseq
        %v6938 = vshrl.u32 %v6937, 7
        %v6939 = vsub.s32 3, %v6938
        %v6940 = vrot.slane %v6923, %v6939
        %v7009 = vunpack.c.l.b16 %v6859
        %v7010 = vunpack.c.h.b16 %v6859
        %v7011 = vunpack.c.l.b16 %v6860
        %v7012 = vunpack.c.h.b16 %v6860
        %v7013 = vunpack.c.l.b16 %v6861
        %v7014 = vunpack.c.h.b16 %v6861
        %v7015 = vunpack.c.l.b16 %v6862
        %v7016 = vunpack.c.h.b16 %v6862
        %v7017 = vunpack.c.l.b16 %v6863
        %v7018 = vunpack.c.h.b16 %v6863
        %v7019 = vunpack.c.l.b16 %v6864
        %v7020 = vunpack.c.h.b16 %v6864
        %v7021 = vunpack.c.l.b16 %v6865
        %v7022 = vunpack.c.h.b16 %v6865
        %v7023 = vunpack.c.l.b16 %v6866
        %v7024 = vunpack.c.h.b16 %v6866
        %v7025 = vunpack.c.l.b16 %v6867
        %v7026 = vunpack.c.h.b16 %v6867
        %v7027 = vunpack.c.l.b16 %v6868
        %v7028 = vunpack.c.h.b16 %v6868
        %v7029 = vunpack.c.l.b16 %v6869
        %v7030 = vunpack.c.h.b16 %v6869
        %v7031 = vunpack.c.l.b16 %v6870
        %v7032 = vunpack.c.h.b16 %v6870
        %v7033 = vunpack.c.l.b16 %v6871
        %v7034 = vunpack.c.h.b16 %v6871
        %v7035 = vunpack.c.l.b16 %v6872
        %v7036 = vunpack.c.h.b16 %v6872
        %v7037 = vunpack.c.l.b16 %v6873
        %v7038 = vunpack.c.h.b16 %v6873
        %v7039 = vunpack.c.l.b16 %v6874
        %v7040 = vunpack.c.h.b16 %v6874
        %v7041 = vunpack.c.l.b16 %v6875
        %v7042 = vunpack.c.h.b16 %v6875
        %v7043 = vunpack.c.l.b16 %v6876
        %v7044 = vunpack.c.h.b16 %v6876
        %v7045 = vunpack.c.l.b16 %v6877
        %v7046 = vunpack.c.h.b16 %v6877
        %v7047 = vunpack.c.l.b16 %v6878
        %v7048 = vunpack.c.h.b16 %v6878
        %v7049 = vunpack.c.l.b16 %v6879
        %v7050 = vunpack.c.h.b16 %v6879
        %v7051 = vunpack.c.l.b16 %v6880
        %v7052 = vunpack.c.h.b16 %v6880
        %v7053 = vunpack.c.l.b16 %v6881
        %v7054 = vunpack.c.h.b16 %v6881
        %v7055 = vunpack.c.l.b16 %v6882
        %v7056 = vunpack.c.h.b16 %v6882
        %v7057 = vunpack.c.l.b16 %v6883
        %v7058 = vunpack.c.h.b16 %v6883
        %v7059 = vunpack.c.l.b16 %v6884
        %v7060 = vunpack.c.h.b16 %v6884
        %v7061 = vunpack.c.l.b16 %v6885
        %v7062 = vunpack.c.h.b16 %v6885
        %v7063 = vunpack.c.l.b16 %v6886
        %v7064 = vunpack.c.h.b16 %v6886
        %v7065 = vunpack.c.l.b16 %v6887
        %v7066 = vunpack.c.h.b16 %v6887
        %v7067 = vunpack.c.l.b16 %v6888
        %v7068 = vunpack.c.h.b16 %v6888
        %v7069 = vunpack.c.l.b16 %v6889
        %v7070 = vunpack.c.h.b16 %v6889
        %v7071 = vunpack.c.l.b16 %v6890
        %v7072 = vunpack.c.h.b16 %v6890
        %v7073 = vunpack.c.l.b16 %v6891
        %v7074 = vunpack.c.h.b16 %v6891
        %v7075 = vunpack.c.l.b16 %v6892
        %v7076 = vunpack.c.h.b16 %v6892
        %v7077 = vunpack.c.l.b16 %v6893
        %v7078 = vunpack.c.h.b16 %v6893
        %v7079 = vunpack.c.l.b16 %v6894
        %v7080 = vunpack.c.h.b16 %v6894
        %v7081 = vunpack.c.l.b16 %v6895
        %v7082 = vunpack.c.h.b16 %v6895
        %v7083 = vunpack.c.l.b16 %v6896
        %v7084 = vunpack.c.h.b16 %v6896
        %v7085 = vunpack.c.l.b16 %v6897
        %v7086 = vunpack.c.h.b16 %v6897
        %v7087 = vunpack.c.l.b16 %v6898
        %v7088 = vunpack.c.h.b16 %v6898
        %v7089 = vunpack.c.l.b16 %v6899
        %v7090 = vunpack.c.h.b16 %v6899
        %v7091 = vunpack.c.l.b16 %v6900
        %v7092 = vunpack.c.h.b16 %v6900
        %v7093 = vunpack.c.l.b16 %v6901
        %v7094 = vunpack.c.h.b16 %v6901
        %v7095 = vunpack.c.l.b16 %v6902
        %v7096 = vunpack.c.h.b16 %v6902
        %v7097 = vunpack.c.l.b16 %v6903
        %v7098 = vunpack.c.h.b16 %v6903
        %v7099 = vunpack.c.l.b16 %v6904
        %v7100 = vunpack.c.h.b16 %v6904
        %v7101 = vunpack.c.l.b16 %v6905
        %v7102 = vunpack.c.h.b16 %v6905
        %v7103 = vunpack.c.l.b16 %v6906
        %v7104 = vunpack.c.h.b16 %v6906
        %v7105 = vunpack.c.l.b16 %v6907
        %v7106 = vunpack.c.h.b16 %v6907
        %v7107 = vunpack.c.l.b16 %v6908
        %v7108 = vunpack.c.h.b16 %v6908
        %v7109 = vunpack.c.l.b16 %v6909
        %v7110 = vunpack.c.h.b16 %v6909
        %v7111 = vunpack.c.l.b16 %v6910
        %v7112 = vunpack.c.h.b16 %v6910
        %v7113 = vunpack.c.l.b16 %v6911
        %v7114 = vunpack.c.h.b16 %v6911
        %v7115 = vunpack.c.l.b16 %v6912
        %v7116 = vunpack.c.h.b16 %v6912
        %v7117 = vunpack.c.l.b16 %v6913
        %v7118 = vunpack.c.h.b16 %v6913
        %v7119 = vunpack.c.l.b16 %v6914
        %v7120 = vunpack.c.h.b16 %v6914
        %v7121 = vunpack.c.l.b16 %v6915
        %v7122 = vunpack.c.h.b16 %v6915
        %v7123 = vunpack.c.l.b16 %v6916
        %v7124 = vunpack.c.h.b16 %v6916
        %v7125 = vunpack.c.l.b16 %v6917
        %v7126 = vunpack.c.h.b16 %v6917
        %v7127 = vunpack.c.l.b16 %v6918
        %v7128 = vunpack.c.h.b16 %v6918
        %v7129 = vunpack.c.l.b16 %v6919
        %v7130 = vunpack.c.h.b16 %v6919
        %v7131 = vunpack.c.l.b16 %v6920
        %v7132 = vunpack.c.h.b16 %v6920
        %v7133 = vunpack.c.l.b16 %v6921
        %v7134 = vunpack.c.h.b16 %v6921
        %v7135 = vunpack.c.l.b16 %v6922
        %v7136 = vunpack.c.h.b16 %v6922
        %v7137 = vpack.c.b16 %v7013, %v7009
        %v7138 = vpack.c.b16 %v7014, %v7010
        %v7139 = vpack.c.b16 %v7015, %v7011
        %v7140 = vpack.c.b16 %v7016, %v7012
        %v7141 = vpack.c.b16 %v7021, %v7017
        %v7142 = vpack.c.b16 %v7022, %v7018
        %v7143 = vpack.c.b16 %v7023, %v7019
        %v7144 = vpack.c.b16 %v7024, %v7020
        %v7145 = vpack.c.b16 %v7029, %v7025
        %v7146 = vpack.c.b16 %v7030, %v7026
        %v7147 = vpack.c.b16 %v7031, %v7027
        %v7148 = vpack.c.b16 %v7032, %v7028
        %v7149 = vpack.c.b16 %v7037, %v7033
        %v7150 = vpack.c.b16 %v7038, %v7034
        %v7151 = vpack.c.b16 %v7039, %v7035
        %v7152 = vpack.c.b16 %v7040, %v7036
        %v7153 = vpack.c.b16 %v7045, %v7041
        %v7154 = vpack.c.b16 %v7046, %v7042
        %v7155 = vpack.c.b16 %v7047, %v7043
        %v7156 = vpack.c.b16 %v7048, %v7044
        %v7157 = vpack.c.b16 %v7053, %v7049
        %v7158 = vpack.c.b16 %v7054, %v7050
        %v7159 = vpack.c.b16 %v7055, %v7051
        %v7160 = vpack.c.b16 %v7056, %v7052
        %v7161 = vpack.c.b16 %v7061, %v7057
        %v7162 = vpack.c.b16 %v7062, %v7058
        %v7163 = vpack.c.b16 %v7063, %v7059
        %v7164 = vpack.c.b16 %v7064, %v7060
        %v7165 = vpack.c.b16 %v7069, %v7065
        %v7166 = vpack.c.b16 %v7070, %v7066
        %v7167 = vpack.c.b16 %v7071, %v7067
        %v7168 = vpack.c.b16 %v7072, %v7068
        %v7169 = vpack.c.b16 %v7077, %v7073
        %v7170 = vpack.c.b16 %v7078, %v7074
        %v7171 = vpack.c.b16 %v7079, %v7075
        %v7172 = vpack.c.b16 %v7080, %v7076
        %v7173 = vpack.c.b16 %v7085, %v7081
        %v7174 = vpack.c.b16 %v7086, %v7082
        %v7175 = vpack.c.b16 %v7087, %v7083
        %v7176 = vpack.c.b16 %v7088, %v7084
        %v7177 = vpack.c.b16 %v7093, %v7089
        %v7178 = vpack.c.b16 %v7094, %v7090
        %v7179 = vpack.c.b16 %v7095, %v7091
        %v7180 = vpack.c.b16 %v7096, %v7092
        %v7181 = vpack.c.b16 %v7101, %v7097
        %v7182 = vpack.c.b16 %v7102, %v7098
        %v7183 = vpack.c.b16 %v7103, %v7099
        %v7184 = vpack.c.b16 %v7104, %v7100
        %v7185 = vpack.c.b16 %v7109, %v7105
        %v7186 = vpack.c.b16 %v7110, %v7106
        %v7187 = vpack.c.b16 %v7111, %v7107
        %v7188 = vpack.c.b16 %v7112, %v7108
        %v7189 = vpack.c.b16 %v7117, %v7113
        %v7190 = vpack.c.b16 %v7118, %v7114
        %v7191 = vpack.c.b16 %v7119, %v7115
        %v7192 = vpack.c.b16 %v7120, %v7116
        %v7193 = vpack.c.b16 %v7125, %v7121
        %v7194 = vpack.c.b16 %v7126, %v7122
        %v7195 = vpack.c.b16 %v7127, %v7123
        %v7196 = vpack.c.b16 %v7128, %v7124
        %v7197 = vpack.c.b16 %v7133, %v7129
        %v7198 = vpack.c.b16 %v7134, %v7130
        %v7199 = vpack.c.b16 %v7135, %v7131
        %v7200 = vpack.c.b16 %v7136, %v7132
        %7265 = vmatprep.subr.bf16.mxu0 %v7138
        %7266 = vmatpush1.bf16.msra.mxu0 %v7137
        %7267 = vmatprep.subr.bf16.mxu0 %v7142
        %7268 = vmatpush1.bf16.msra.mxu0 %v7141
        %7269 = vmatprep.subr.bf16.mxu0 %v7146
        %7270 = vmatpush1.bf16.msra.mxu0 %v7145
        %7271 = vmatprep.subr.bf16.mxu0 %v7150
        %7272 = vmatpush1.bf16.msra.mxu0 %v7149
        %7273 = vmatprep.subr.bf16.mxu0 %v7154
        %7274 = vmatpush1.bf16.msra.mxu0 %v7153
        %7275 = vmatprep.subr.bf16.mxu0 %v7158
        %7276 = vmatpush1.bf16.msra.mxu0 %v7157
        %7277 = vmatprep.subr.bf16.mxu0 %v7162
        %7278 = vmatpush1.bf16.msra.mxu0 %v7161
        %7279 = vmatprep.subr.bf16.mxu0 %v7166
        %7280 = vmatpush1.bf16.msra.mxu0 %v7165
        %7281 = vmatprep.subr.bf16.mxu0 %v7170
        %7282 = vmatpush1.bf16.msra.mxu0 %v7169
        %7283 = vmatprep.subr.bf16.mxu0 %v7174
        %7284 = vmatpush1.bf16.msra.mxu0 %v7173
        %7285 = vmatprep.subr.bf16.mxu0 %v7178
        %7286 = vmatpush1.bf16.msra.mxu0 %v7177
        %7287 = vmatprep.subr.bf16.mxu0 %v7182
        %7288 = vmatpush1.bf16.msra.mxu0 %v7181
        %7289 = vmatprep.subr.bf16.mxu0 %v7186
        %7290 = vmatpush1.bf16.msra.mxu0 %v7185
        %7291 = vmatprep.subr.bf16.mxu0 %v7190
        %7292 = vmatpush1.bf16.msra.mxu0 %v7189
        %7293 = vmatprep.subr.bf16.mxu0 %v7194
        %7294 = vmatpush1.bf16.msra.mxu0 %v7193
        %7295 = vmatprep.subr.bf16.mxu0 %v7198
        %7296 = vmatpush1.bf16.msra.mxu0 %v7197
        %7297 = vmatprep.mubr.bf16.mxu0 %v6858
        %7298 = vmatmul.mubr.bf16.gmra.mrb[0].mxu0 %v6857
        %v7299 = vpop.f32.mrb[0].mxu0
        %v7300 = vadd.f32 %v6928, %v7299
        %v7301 = vpop.f32.mrb[0].mxu0
        %v7302 = vadd.f32 %v6932, %v7301
        %v7303 = vpop.f32.mrb[0].mxu0
        %v7304 = vpop.f32.mrb[0].mxu0
        %7305 = vdwg.mxu0
        %7306 = vmatprep.subr.bf16.mxu0 %v7140
        %7307 = vmatpush1.bf16.msra.mxu0 %v7139
        %7308 = vmatprep.subr.bf16.mxu0 %v7144
        %7309 = vmatpush1.bf16.msra.mxu0 %v7143
        %7310 = vmatprep.subr.bf16.mxu0 %v7148
        %7311 = vmatpush1.bf16.msra.mxu0 %v7147
        %7312 = vmatprep.subr.bf16.mxu0 %v7152
        %7313 = vmatpush1.bf16.msra.mxu0 %v7151
        %7314 = vmatprep.subr.bf16.mxu0 %v7156
        %7315 = vmatpush1.bf16.msra.mxu0 %v7155
        %7316 = vmatprep.subr.bf16.mxu0 %v7160
        %7317 = vmatpush1.bf16.msra.mxu0 %v7159
        %7318 = vmatprep.subr.bf16.mxu0 %v7164
        %7319 = vmatpush1.bf16.msra.mxu0 %v7163
        %7320 = vmatprep.subr.bf16.mxu0 %v7168
        %7321 = vmatpush1.bf16.msra.mxu0 %v7167
        %7322 = vmatprep.subr.bf16.mxu0 %v7172
        %7323 = vmatpush1.bf16.msra.mxu0 %v7171
        %7324 = vmatprep.subr.bf16.mxu0 %v7176
        %7325 = vmatpush1.bf16.msra.mxu0 %v7175
        %7326 = vmatprep.subr.bf16.mxu0 %v7180
        %7327 = vmatpush1.bf16.msra.mxu0 %v7179
        %7328 = vmatprep.subr.bf16.mxu0 %v7184
        %7329 = vmatpush1.bf16.msra.mxu0 %v7183
        %7330 = vmatprep.subr.bf16.mxu0 %v7188
        %7331 = vmatpush1.bf16.msra.mxu0 %v7187
        %7332 = vmatprep.subr.bf16.mxu0 %v7192
        %7333 = vmatpush1.bf16.msra.mxu0 %v7191
        %7334 = vmatprep.subr.bf16.mxu0 %v7196
        %7335 = vmatpush1.bf16.msra.mxu0 %v7195
        %7336 = vmatprep.subr.bf16.mxu0 %v7200
        %7337 = vmatpush1.bf16.msra.mxu0 %v7199
        %7338 = vmatprep.mubr.bf16.mxu0 %v6858
        %7339 = vmatmul.mubr.bf16.gmra.mrb[0].mxu0 %v6857
        %v7340 = vpop.f32.mrb[0].mxu0
        %v7341 = vadd.f32 %v6936, %v7340
        %v7342 = vpop.f32.mrb[0].mxu0
        %v7343 = vadd.f32 %v6940, %v7342
        %v7344 = vpop.f32.mrb[0].mxu0
        %v7345 = vpop.f32.mrb[0].mxu0
        %7346 = vdwg.mxu0
        %v7347 = vpack.c.bf16 %v1296, %v1296
        %v7348 = vpack.c.bf16 %v1324, %v1324
        %vm7349 = vcmask 64512
        %v7351 = vsel %vm7349, %v7347, 0
        %vm7353 = vcmask 1043456
        %v7355 = vsel %vm7353, %v6808, 0
        %v7358 = vsel %vm7353, %v6809, 0
        %v7361 = vsel %vm7353, %v6810, 0
        %v7364 = vsel %vm7353, %v6811, 0
        %7366 = vmatprep.subr.bf16.mxu0 %v7358
        %7367 = vmatpush1.bf16.msra.mxu0 %v7355
        %7368 = vmatprep.subr.bf16.mxu0 0
        %7369 = vmatpush1.bf16.msra.mxu0 0
        %7370 = vmatprep.subr.bf16.mxu0 0
        %7371 = vmatpush1.bf16.msra.mxu0 0
        %7372 = vmatprep.subr.bf16.mxu0 0
        %7373 = vmatpush1.bf16.msra.mxu0 0
        %7374 = vmatprep.subr.bf16.mxu0 0
        %7375 = vmatpush1.bf16.msra.mxu0 0
        %7376 = vmatprep.subr.bf16.mxu0 0
        %7377 = vmatpush1.bf16.msra.mxu0 0
        %7378 = vmatprep.subr.bf16.mxu0 0
        %7379 = vmatpush1.bf16.msra.mxu0 0
        %7380 = vmatprep.subr.bf16.mxu0 0
        %7381 = vmatpush1.bf16.msra.mxu0 0
        %7382 = vmatprep.subr.bf16.mxu0 0
        %7383 = vmatpush1.bf16.msra.mxu0 0
        %7384 = vmatprep.subr.bf16.mxu0 0
        %7385 = vmatpush1.bf16.msra.mxu0 0
        %7386 = vmatprep.subr.bf16.mxu0 0
        %7387 = vmatpush1.bf16.msra.mxu0 0
        %7388 = vmatprep.subr.bf16.mxu0 0
        %7389 = vmatpush1.bf16.msra.mxu0 0
        %7390 = vmatprep.subr.bf16.mxu0 0
        %7391 = vmatpush1.bf16.msra.mxu0 0
        %7392 = vmatprep.subr.bf16.mxu0 0
        %7393 = vmatpush1.bf16.msra.mxu0 0
        %7394 = vmatprep.subr.bf16.mxu0 0
        %7395 = vmatpush1.bf16.msra.mxu0 0
        %7396 = vmatprep.subr.bf16.mxu0 0
        %7397 = vmatpush1.bf16.msra.mxu0 0
        %7398 = vmatprep.mubr.bf16.mxu0 0
        %7399 = vmatmul.mubr.bf16.gmra.mrb[0].mxu0 %v7351
        %v7400 = vpop.f32.mrb[0].mxu0
        %v7401 = vadd.f32 0.0, %v7400
        %v7402 = vpop.f32.mrb[0].mxu0
        %v7403 = vadd.f32 0.0, %v7402
        %v7404 = vpop.f32.mrb[0].mxu0
        %v7405 = vpop.f32.mrb[0].mxu0
        %7406 = vdwg.mxu0
        %7407 = vmatprep.subr.bf16.mxu0 %v7364
        %7408 = vmatpush1.bf16.msra.mxu0 %v7361
        %7409 = vmatprep.subr.bf16.mxu0 0
        %7410 = vmatpush1.bf16.msra.mxu0 0
        %7411 = vmatprep.subr.bf16.mxu0 0
        %7412 = vmatpush1.bf16.msra.mxu0 0
        %7413 = vmatprep.subr.bf16.mxu0 0
        %7414 = vmatpush1.bf16.msra.mxu0 0
        %7415 = vmatprep.subr.bf16.mxu0 0
        %7416 = vmatpush1.bf16.msra.mxu0 0
        %7417 = vmatprep.subr.bf16.mxu0 0
        %7418 = vmatpush1.bf16.msra.mxu0 0
        %7419 = vmatprep.subr.bf16.mxu0 0
        %7420 = vmatpush1.bf16.msra.mxu0 0
        %7421 = vmatprep.subr.bf16.mxu0 0
        %7422 = vmatpush1.bf16.msra.mxu0 0
        %7423 = vmatprep.subr.bf16.mxu0 0
        %7424 = vmatpush1.bf16.msra.mxu0 0
        %7425 = vmatprep.subr.bf16.mxu0 0
        %7426 = vmatpush1.bf16.msra.mxu0 0
        %7427 = vmatprep.subr.bf16.mxu0 0
        %7428 = vmatpush1.bf16.msra.mxu0 0
        %7429 = vmatprep.subr.bf16.mxu0 0
        %7430 = vmatpush1.bf16.msra.mxu0 0
        %7431 = vmatprep.subr.bf16.mxu0 0
        %7432 = vmatpush1.bf16.msra.mxu0 0
        %7433 = vmatprep.subr.bf16.mxu0 0
        %7434 = vmatpush1.bf16.msra.mxu0 0
        %7435 = vmatprep.subr.bf16.mxu0 0
        %7436 = vmatpush1.bf16.msra.mxu0 0
        %7437 = vmatprep.subr.bf16.mxu0 0
        %7438 = vmatpush1.bf16.msra.mxu0 0
        %7439 = vmatprep.mubr.bf16.mxu0 0
        %7440 = vmatmul.mubr.bf16.gmra.mrb[0].mxu0 %v7351
        %v7441 = vpop.f32.mrb[0].mxu0
        %v7442 = vadd.f32 0.0, %v7441
        %v7443 = vpop.f32.mrb[0].mxu0
        %v7444 = vadd.f32 0.0, %v7443
        %v7445 = vpop.f32.mrb[0].mxu0
        %v7446 = vpop.f32.mrb[0].mxu0
        %7447 = vdwg.mxu0
        %v7448 = vpack.c.bf16 %v7401, %v7401
        %v7449 = vpack.c.bf16 %v7403, %v7403
        %v7450 = vpack.c.bf16 %v7442, %v7442
        %v7451 = vpack.c.bf16 %v7444, %v7444
        %v7453 = vsel %vm7349, %v7348, 0
        %7455 = vmatprep.subr.bf16.mxu0 %v7358
        %7456 = vmatpush1.bf16.msra.mxu0 %v7355
        %7457 = vmatprep.subr.bf16.mxu0 0
        %7458 = vmatpush1.bf16.msra.mxu0 0
        %7459 = vmatprep.subr.bf16.mxu0 0
        %7460 = vmatpush1.bf16.msra.mxu0 0
        %7461 = vmatprep.subr.bf16.mxu0 0
        %7462 = vmatpush1.bf16.msra.mxu0 0
        %7463 = vmatprep.subr.bf16.mxu0 0
        %7464 = vmatpush1.bf16.msra.mxu0 0
        %7465 = vmatprep.subr.bf16.mxu0 0
        %7466 = vmatpush1.bf16.msra.mxu0 0
        %7467 = vmatprep.subr.bf16.mxu0 0
        %7468 = vmatpush1.bf16.msra.mxu0 0
        %7469 = vmatprep.subr.bf16.mxu0 0
        %7470 = vmatpush1.bf16.msra.mxu0 0
        %7471 = vmatprep.subr.bf16.mxu0 0
        %7472 = vmatpush1.bf16.msra.mxu0 0
        %7473 = vmatprep.subr.bf16.mxu0 0
        %7474 = vmatpush1.bf16.msra.mxu0 0
        %7475 = vmatprep.subr.bf16.mxu0 0
        %7476 = vmatpush1.bf16.msra.mxu0 0
        %7477 = vmatprep.subr.bf16.mxu0 0
        %7478 = vmatpush1.bf16.msra.mxu0 0
        %7479 = vmatprep.subr.bf16.mxu0 0
        %7480 = vmatpush1.bf16.msra.mxu0 0
        %7481 = vmatprep.subr.bf16.mxu0 0
        %7482 = vmatpush1.bf16.msra.mxu0 0
        %7483 = vmatprep.subr.bf16.mxu0 0
        %7484 = vmatpush1.bf16.msra.mxu0 0
        %7485 = vmatprep.subr.bf16.mxu0 0
        %7486 = vmatpush1.bf16.msra.mxu0 0
        %7487 = vmatprep.mubr.bf16.mxu0 0
        %7488 = vmatmul.mubr.bf16.gmra.mrb[0].mxu0 %v7453
        %v7489 = vpop.f32.mrb[0].mxu0
        %v7490 = vadd.f32 0.0, %v7489
        %v7491 = vpop.f32.mrb[0].mxu0
        %v7492 = vadd.f32 0.0, %v7491
        %v7493 = vpop.f32.mrb[0].mxu0
        %v7494 = vpop.f32.mrb[0].mxu0
        %7495 = vdwg.mxu0
        %7496 = vmatprep.subr.bf16.mxu0 %v7364
        %7497 = vmatpush1.bf16.msra.mxu0 %v7361
        %7498 = vmatprep.subr.bf16.mxu0 0
        %7499 = vmatpush1.bf16.msra.mxu0 0
        %7500 = vmatprep.subr.bf16.mxu0 0
        %7501 = vmatpush1.bf16.msra.mxu0 0
        %7502 = vmatprep.subr.bf16.mxu0 0
        %7503 = vmatpush1.bf16.msra.mxu0 0
        %7504 = vmatprep.subr.bf16.mxu0 0
        %7505 = vmatpush1.bf16.msra.mxu0 0
        %7506 = vmatprep.subr.bf16.mxu0 0
        %7507 = vmatpush1.bf16.msra.mxu0 0
        %7508 = vmatprep.subr.bf16.mxu0 0
        %7509 = vmatpush1.bf16.msra.mxu0 0
        %7510 = vmatprep.subr.bf16.mxu0 0
        %7511 = vmatpush1.bf16.msra.mxu0 0
        %7512 = vmatprep.subr.bf16.mxu0 0
        %7513 = vmatpush1.bf16.msra.mxu0 0
        %7514 = vmatprep.subr.bf16.mxu0 0
        %7515 = vmatpush1.bf16.msra.mxu0 0
        %7516 = vmatprep.subr.bf16.mxu0 0
        %7517 = vmatpush1.bf16.msra.mxu0 0
        %7518 = vmatprep.subr.bf16.mxu0 0
        %7519 = vmatpush1.bf16.msra.mxu0 0
        %7520 = vmatprep.subr.bf16.mxu0 0
        %7521 = vmatpush1.bf16.msra.mxu0 0
        %7522 = vmatprep.subr.bf16.mxu0 0
        %7523 = vmatpush1.bf16.msra.mxu0 0
        %7524 = vmatprep.subr.bf16.mxu0 0
        %7525 = vmatpush1.bf16.msra.mxu0 0
        %7526 = vmatprep.subr.bf16.mxu0 0
        %7527 = vmatpush1.bf16.msra.mxu0 0
        %7528 = vmatprep.mubr.bf16.mxu0 0
        %7529 = vmatmul.mubr.bf16.gmra.mrb[0].mxu0 %v7453
        %v7530 = vpop.f32.mrb[0].mxu0
        %v7531 = vadd.f32 0.0, %v7530
        %v7532 = vpop.f32.mrb[0].mxu0
        %v7533 = vadd.f32 0.0, %v7532
        %v7534 = vpop.f32.mrb[0].mxu0
        %v7535 = vpop.f32.mrb[0].mxu0
        %7536 = vdwg.mxu0
        %v7537 = vpack.c.bf16 %v7490, %v7490
        %v7538 = vpack.c.bf16 %v7492, %v7492
        %v7539 = vpack.c.bf16 %v7531, %v7531
        %v7540 = vpack.c.bf16 %v7533, %v7533
        %v7541 = vld [vmem:[#allocation33] sm:$0xff]
        %v7542 = vld [vmem:[#allocation33 + $0x8] sm:$0xff]
        %v7543 = vld [vmem:[#allocation33 + $0x10] sm:$0xff]
        %v7544 = vld [vmem:[#allocation33 + $0x18] sm:$0xff]
        %v7545 = vld [vmem:[#allocation33 + $0x20] sm:$0xff]
        %v7546 = vld [vmem:[#allocation33 + $0x28] sm:$0xff]
        %v7547 = vld [vmem:[#allocation33 + $0x30] sm:$0xff]
        %v7548 = vld [vmem:[#allocation33 + $0x38] sm:$0xff]
        %v7549 = vld [vmem:[#allocation33 + $0x40] sm:$0xff]
        %v7550 = vld [vmem:[#allocation33 + $0x48] sm:$0xff]
        %v7551 = vld [vmem:[#allocation33 + $0x50] sm:$0xff]
        %v7552 = vld [vmem:[#allocation33 + $0x58] sm:$0xff]
        %v7553 = vld [vmem:[#allocation33 + $0x60] sm:$0xff]
        %v7554 = vld [vmem:[#allocation33 + $0x68] sm:$0xff]
        %v7555 = vld [vmem:[#allocation33 + $0x70] sm:$0xff]
        %v7556 = vld [vmem:[#allocation33 + $0x78] sm:$0xff]
        %v7557 = vld [vmem:[#allocation33 + $0x80] sm:$0xff]
        %v7558 = vld [vmem:[#allocation33 + $0x88] sm:$0xff]
        %v7559 = vld [vmem:[#allocation33 + $0x90] sm:$0xff]
        %v7560 = vld [vmem:[#allocation33 + $0x98] sm:$0xff]
        %v7561 = vld [vmem:[#allocation33 + $0xa0] sm:$0xff]
        %v7562 = vld [vmem:[#allocation33 + $0xa8] sm:$0xff]
        %v7563 = vld [vmem:[#allocation33 + $0xb0] sm:$0xff]
        %v7564 = vld [vmem:[#allocation33 + $0xb8] sm:$0xff]
        %v7565 = vld [vmem:[#allocation33 + $0xc0] sm:$0xff]
        %v7566 = vld [vmem:[#allocation33 + $0xc8] sm:$0xff]
        %v7567 = vld [vmem:[#allocation33 + $0xd0] sm:$0xff]
        %v7568 = vld [vmem:[#allocation33 + $0xd8] sm:$0xff]
        %v7569 = vld [vmem:[#allocation33 + $0xe0] sm:$0xff]
        %v7570 = vld [vmem:[#allocation33 + $0xe8] sm:$0xff]
        %v7571 = vld [vmem:[#allocation33 + $0xf0] sm:$0xff]
        %v7572 = vld [vmem:[#allocation33 + $0xf8] sm:$0xff]
        %v7573 = vld [vmem:[#allocation33 + $0x100] sm:$0xff]
        %v7574 = vld [vmem:[#allocation33 + $0x108] sm:$0xff]
        %v7575 = vld [vmem:[#allocation33 + $0x110] sm:$0xff]
        %v7576 = vld [vmem:[#allocation33 + $0x118] sm:$0xff]
        %v7577 = vld [vmem:[#allocation33 + $0x120] sm:$0xff]
        %v7578 = vld [vmem:[#allocation33 + $0x128] sm:$0xff]
        %v7579 = vld [vmem:[#allocation33 + $0x130] sm:$0xff]
        %v7580 = vld [vmem:[#allocation33 + $0x138] sm:$0xff]
        %v7581 = vld [vmem:[#allocation33 + $0x140] sm:$0xff]
        %v7582 = vld [vmem:[#allocation33 + $0x148] sm:$0xff]
        %v7583 = vld [vmem:[#allocation33 + $0x150] sm:$0xff]
        %v7584 = vld [vmem:[#allocation33 + $0x158] sm:$0xff]
        %v7585 = vld [vmem:[#allocation33 + $0x160] sm:$0xff]
        %v7586 = vld [vmem:[#allocation33 + $0x168] sm:$0xff]
        %v7587 = vld [vmem:[#allocation33 + $0x170] sm:$0xff]
        %v7588 = vld [vmem:[#allocation33 + $0x178] sm:$0xff]
        %v7589 = vld [vmem:[#allocation33 + $0x180] sm:$0xff]
        %v7590 = vld [vmem:[#allocation33 + $0x188] sm:$0xff]
        %v7591 = vld [vmem:[#allocation33 + $0x190] sm:$0xff]
        %v7592 = vld [vmem:[#allocation33 + $0x198] sm:$0xff]
        %v7593 = vld [vmem:[#allocation33 + $0x1a0] sm:$0xff]
        %v7594 = vld [vmem:[#allocation33 + $0x1a8] sm:$0xff]
        %v7595 = vld [vmem:[#allocation33 + $0x1b0] sm:$0xff]
        %v7596 = vld [vmem:[#allocation33 + $0x1b8] sm:$0xff]
        %v7597 = vld [vmem:[#allocation33 + $0x1c0] sm:$0xff]
        %v7598 = vld [vmem:[#allocation33 + $0x1c8] sm:$0xff]
        %v7599 = vld [vmem:[#allocation33 + $0x1d0] sm:$0xff]
        %v7600 = vld [vmem:[#allocation33 + $0x1d8] sm:$0xff]
        %v7601 = vld [vmem:[#allocation33 + $0x1e0] sm:$0xff]
        %v7602 = vld [vmem:[#allocation33 + $0x1e8] sm:$0xff]
        %v7603 = vld [vmem:[#allocation33 + $0x1f0] sm:$0xff]
        %v7604 = vld [vmem:[#allocation33 + $0x1f8] sm:$0xff]
        %v7605 = vld [vmem:[#allocation33 + $0x200] sm:$0xff]
        %v7606 = vld [vmem:[#allocation33 + $0x208] sm:$0xff]
        %v7607 = vld [vmem:[#allocation33 + $0x210] sm:$0xff]
        %v7608 = vld [vmem:[#allocation33 + $0x218] sm:$0xff]
        %v7609 = vld [vmem:[#allocation33 + $0x220] sm:$0xff]
        %v7610 = vld [vmem:[#allocation33 + $0x228] sm:$0xff]
        %v7611 = vld [vmem:[#allocation33 + $0x230] sm:$0xff]
        %v7612 = vld [vmem:[#allocation33 + $0x238] sm:$0xff]
        %v7613 = vld [vmem:[#allocation33 + $0x240] sm:$0xff]
        %v7614 = vld [vmem:[#allocation33 + $0x248] sm:$0xff]
        %v7615 = vld [vmem:[#allocation33 + $0x250] sm:$0xff]
        %v7616 = vld [vmem:[#allocation33 + $0x258] sm:$0xff]
        %v7617 = vld [vmem:[#allocation33 + $0x260] sm:$0xff]
        %v7618 = vld [vmem:[#allocation33 + $0x268] sm:$0xff]
        %v7619 = vld [vmem:[#allocation33 + $0x270] sm:$0xff]
        %v7620 = vld [vmem:[#allocation33 + $0x278] sm:$0xff]
        %v7621 = vld [vmem:[#allocation33 + $0x280] sm:$0xff]
        %v7622 = vld [vmem:[#allocation33 + $0x288] sm:$0xff]
        %v7623 = vld [vmem:[#allocation33 + $0x290] sm:$0xff]
        %v7624 = vld [vmem:[#allocation33 + $0x298] sm:$0xff]
        %v7625 = vld [vmem:[#allocation33 + $0x2a0] sm:$0xff]
        %v7626 = vld [vmem:[#allocation33 + $0x2a8] sm:$0xff]
        %v7627 = vld [vmem:[#allocation33 + $0x2b0] sm:$0xff]
        %v7628 = vld [vmem:[#allocation33 + $0x2b8] sm:$0xff]
        %v7629 = vld [vmem:[#allocation33 + $0x2c0] sm:$0xff]
        %v7630 = vld [vmem:[#allocation33 + $0x2c8] sm:$0xff]
        %v7631 = vld [vmem:[#allocation33 + $0x2d0] sm:$0xff]
        %v7632 = vld [vmem:[#allocation33 + $0x2d8] sm:$0xff]
        %v7633 = vld [vmem:[#allocation33 + $0x2e0] sm:$0xff]
        %v7634 = vld [vmem:[#allocation33 + $0x2e8] sm:$0xff]
        %v7635 = vld [vmem:[#allocation33 + $0x2f0] sm:$0xff]
        %v7636 = vld [vmem:[#allocation33 + $0x2f8] sm:$0xff]
        %v7637 = vld [vmem:[#allocation33 + $0x300] sm:$0xff]
        %v7638 = vld [vmem:[#allocation33 + $0x308] sm:$0xff]
        %v7639 = vld [vmem:[#allocation33 + $0x310] sm:$0xff]
        %v7640 = vld [vmem:[#allocation33 + $0x318] sm:$0xff]
        %v7641 = vld [vmem:[#allocation33 + $0x320] sm:$0xff]
        %v7642 = vld [vmem:[#allocation33 + $0x328] sm:$0xff]
        %v7643 = vld [vmem:[#allocation33 + $0x330] sm:$0xff]
        %v7644 = vld [vmem:[#allocation33 + $0x338] sm:$0xff]
        %v7645 = vld [vmem:[#allocation33 + $0x340] sm:$0xff]
        %v7646 = vld [vmem:[#allocation33 + $0x348] sm:$0xff]
        %v7647 = vld [vmem:[#allocation33 + $0x350] sm:$0xff]
        %v7648 = vld [vmem:[#allocation33 + $0x358] sm:$0xff]
        %v7649 = vld [vmem:[#allocation33 + $0x360] sm:$0xff]
        %v7650 = vld [vmem:[#allocation33 + $0x368] sm:$0xff]
        %v7651 = vld [vmem:[#allocation33 + $0x370] sm:$0xff]
        %v7652 = vld [vmem:[#allocation33 + $0x378] sm:$0xff]
        %v7653 = vld [vmem:[#allocation33 + $0x380] sm:$0xff]
        %v7654 = vld [vmem:[#allocation33 + $0x388] sm:$0xff]
        %v7655 = vld [vmem:[#allocation33 + $0x390] sm:$0xff]
        %v7656 = vld [vmem:[#allocation33 + $0x398] sm:$0xff]
        %v7657 = vld [vmem:[#allocation33 + $0x3a0] sm:$0xff]
        %v7658 = vld [vmem:[#allocation33 + $0x3a8] sm:$0xff]
        %v7659 = vld [vmem:[#allocation33 + $0x3b0] sm:$0xff]
        %v7660 = vld [vmem:[#allocation33 + $0x3b8] sm:$0xff]
        %v7661 = vld [vmem:[#allocation33 + $0x3c0] sm:$0xff]
        %v7662 = vld [vmem:[#allocation33 + $0x3c8] sm:$0xff]
        %v7663 = vld [vmem:[#allocation33 + $0x3d0] sm:$0xff]
        %v7664 = vld [vmem:[#allocation33 + $0x3d8] sm:$0xff]
        %v7665 = vld [vmem:[#allocation33 + $0x3e0] sm:$0xff]
        %v7666 = vld [vmem:[#allocation33 + $0x3e8] sm:$0xff]
        %v7667 = vld [vmem:[#allocation33 + $0x3f0] sm:$0xff]
        %v7668 = vld [vmem:[#allocation33 + $0x3f8] sm:$0xff]
        %v7669 = vld [vmem:[#allocation33 + $0x400] sm:$0xff]
        %v7670 = vld [vmem:[#allocation33 + $0x408] sm:$0xff]
        %v7671 = vld [vmem:[#allocation33 + $0x410] sm:$0xff]
        %v7672 = vld [vmem:[#allocation33 + $0x418] sm:$0xff]
        %v7673 = vld [vmem:[#allocation33 + $0x420] sm:$0xff]
        %v7674 = vld [vmem:[#allocation33 + $0x428] sm:$0xff]
        %v7675 = vld [vmem:[#allocation33 + $0x430] sm:$0xff]
        %v7676 = vld [vmem:[#allocation33 + $0x438] sm:$0xff]
        %v7677 = vld [vmem:[#allocation33 + $0x440] sm:$0xff]
        %v7678 = vld [vmem:[#allocation33 + $0x448] sm:$0xff]
        %v7679 = vld [vmem:[#allocation33 + $0x450] sm:$0xff]
        %v7680 = vld [vmem:[#allocation33 + $0x458] sm:$0xff]
        %v7681 = vld [vmem:[#allocation33 + $0x460] sm:$0xff]
        %v7682 = vld [vmem:[#allocation33 + $0x468] sm:$0xff]
        %v7683 = vld [vmem:[#allocation33 + $0x470] sm:$0xff]
        %v7684 = vld [vmem:[#allocation33 + $0x478] sm:$0xff]
        %v7685 = vld [vmem:[#allocation33 + $0x480] sm:$0xff]
        %v7686 = vld [vmem:[#allocation33 + $0x488] sm:$0xff]
        %v7687 = vld [vmem:[#allocation33 + $0x490] sm:$0xff]
        %v7688 = vld [vmem:[#allocation33 + $0x498] sm:$0xff]
        %v7689 = vld [vmem:[#allocation33 + $0x4a0] sm:$0xff]
        %v7690 = vld [vmem:[#allocation33 + $0x4a8] sm:$0xff]
        %v7691 = vld [vmem:[#allocation33 + $0x4b0] sm:$0xff]
        %v7692 = vld [vmem:[#allocation33 + $0x4b8] sm:$0xff]
        %v7693 = vld [vmem:[#allocation33 + $0x4c0] sm:$0xff]
        %v7694 = vld [vmem:[#allocation33 + $0x4c8] sm:$0xff]
        %v7695 = vld [vmem:[#allocation33 + $0x4d0] sm:$0xff]
        %v7696 = vld [vmem:[#allocation33 + $0x4d8] sm:$0xff]
        %v7697 = vld [vmem:[#allocation33 + $0x4e0] sm:$0xff]
        %v7698 = vld [vmem:[#allocation33 + $0x4e8] sm:$0xff]
        %v7699 = vld [vmem:[#allocation33 + $0x4f0] sm:$0xff]
        %v7700 = vld [vmem:[#allocation33 + $0x4f8] sm:$0xff]
        %v7701 = vld [vmem:[#allocation33 + $0x500] sm:$0xff]
        %v7702 = vld [vmem:[#allocation33 + $0x508] sm:$0xff]
        %v7703 = vld [vmem:[#allocation33 + $0x510] sm:$0xff]
        %v7704 = vld [vmem:[#allocation33 + $0x518] sm:$0xff]
        %v7705 = vld [vmem:[#allocation33 + $0x520] sm:$0xff]
        %v7706 = vld [vmem:[#allocation33 + $0x528] sm:$0xff]
        %v7707 = vld [vmem:[#allocation33 + $0x530] sm:$0xff]
        %v7708 = vld [vmem:[#allocation33 + $0x538] sm:$0xff]
        %v7709 = vld [vmem:[#allocation33 + $0x540] sm:$0xff]
        %v7710 = vld [vmem:[#allocation33 + $0x548] sm:$0xff]
        %v7711 = vld [vmem:[#allocation33 + $0x550] sm:$0xff]
        %v7712 = vld [vmem:[#allocation33 + $0x558] sm:$0xff]
        %v7713 = vld [vmem:[#allocation33 + $0x560] sm:$0xff]
        %v7714 = vld [vmem:[#allocation33 + $0x568] sm:$0xff]
        %v7715 = vld [vmem:[#allocation33 + $0x570] sm:$0xff]
        %v7716 = vld [vmem:[#allocation33 + $0x578] sm:$0xff]
        %v7717 = vld [vmem:[#allocation33 + $0x580] sm:$0xff]
        %v7718 = vld [vmem:[#allocation33 + $0x588] sm:$0xff]
        %v7719 = vld [vmem:[#allocation33 + $0x590] sm:$0xff]
        %v7720 = vld [vmem:[#allocation33 + $0x598] sm:$0xff]
        %v7721 = vld [vmem:[#allocation33 + $0x5a0] sm:$0xff]
        %v7722 = vld [vmem:[#allocation33 + $0x5a8] sm:$0xff]
        %v7723 = vld [vmem:[#allocation33 + $0x5b0] sm:$0xff]
        %v7724 = vld [vmem:[#allocation33 + $0x5b8] sm:$0xff]
        %v7725 = vld [vmem:[#allocation33 + $0x5c0] sm:$0xff]
        %v7726 = vld [vmem:[#allocation33 + $0x5c8] sm:$0xff]
        %v7727 = vld [vmem:[#allocation33 + $0x5d0] sm:$0xff]
        %v7728 = vld [vmem:[#allocation33 + $0x5d8] sm:$0xff]
        %v7729 = vld [vmem:[#allocation33 + $0x5e0] sm:$0xff]
        %v7730 = vld [vmem:[#allocation33 + $0x5e8] sm:$0xff]
        %v7731 = vld [vmem:[#allocation33 + $0x5f0] sm:$0xff]
        %v7732 = vld [vmem:[#allocation33 + $0x5f8] sm:$0xff]
        %v7733 = vld [vmem:[#allocation33 + $0x600] sm:$0xff]
        %v7734 = vld [vmem:[#allocation33 + $0x608] sm:$0xff]
        %v7735 = vld [vmem:[#allocation33 + $0x610] sm:$0xff]
        %v7736 = vld [vmem:[#allocation33 + $0x618] sm:$0xff]
        %v7737 = vld [vmem:[#allocation33 + $0x620] sm:$0xff]
        %v7738 = vld [vmem:[#allocation33 + $0x628] sm:$0xff]
        %v7739 = vld [vmem:[#allocation33 + $0x630] sm:$0xff]
        %v7740 = vld [vmem:[#allocation33 + $0x638] sm:$0xff]
        %v7741 = vld [vmem:[#allocation33 + $0x640] sm:$0xff]
        %v7742 = vld [vmem:[#allocation33 + $0x648] sm:$0xff]
        %v7743 = vld [vmem:[#allocation33 + $0x650] sm:$0xff]
        %v7744 = vld [vmem:[#allocation33 + $0x658] sm:$0xff]
        %v7745 = vld [vmem:[#allocation33 + $0x660] sm:$0xff]
        %v7746 = vld [vmem:[#allocation33 + $0x668] sm:$0xff]
        %v7747 = vld [vmem:[#allocation33 + $0x670] sm:$0xff]
        %v7748 = vld [vmem:[#allocation33 + $0x678] sm:$0xff]
        %v7749 = vld [vmem:[#allocation33 + $0x680] sm:$0xff]
        %v7750 = vld [vmem:[#allocation33 + $0x688] sm:$0xff]
        %v7751 = vld [vmem:[#allocation33 + $0x690] sm:$0xff]
        %v7752 = vld [vmem:[#allocation33 + $0x698] sm:$0xff]
        %v7753 = vld [vmem:[#allocation33 + $0x6a0] sm:$0xff]
        %v7754 = vld [vmem:[#allocation33 + $0x6a8] sm:$0xff]
        %v7755 = vld [vmem:[#allocation33 + $0x6b0] sm:$0xff]
        %v7756 = vld [vmem:[#allocation33 + $0x6b8] sm:$0xff]
        %v7757 = vld [vmem:[#allocation33 + $0x6c0] sm:$0xff]
        %v7758 = vld [vmem:[#allocation33 + $0x6c8] sm:$0xff]
        %v7759 = vld [vmem:[#allocation33 + $0x6d0] sm:$0xff]
        %v7760 = vld [vmem:[#allocation33 + $0x6d8] sm:$0xff]
        %v7761 = vld [vmem:[#allocation33 + $0x6e0] sm:$0xff]
        %v7762 = vld [vmem:[#allocation33 + $0x6e8] sm:$0xff]
        %v7763 = vld [vmem:[#allocation33 + $0x6f0] sm:$0xff]
        %v7764 = vld [vmem:[#allocation33 + $0x6f8] sm:$0xff]
        %v7765 = vld [vmem:[#allocation33 + $0x700] sm:$0xff]
        %v7766 = vld [vmem:[#allocation33 + $0x708] sm:$0xff]
        %v7767 = vld [vmem:[#allocation33 + $0x710] sm:$0xff]
        %v7768 = vld [vmem:[#allocation33 + $0x718] sm:$0xff]
        %v7769 = vld [vmem:[#allocation33 + $0x720] sm:$0xff]
        %v7770 = vld [vmem:[#allocation33 + $0x728] sm:$0xff]
        %v7771 = vld [vmem:[#allocation33 + $0x730] sm:$0xff]
        %v7772 = vld [vmem:[#allocation33 + $0x738] sm:$0xff]
        %v7773 = vld [vmem:[#allocation33 + $0x740] sm:$0xff]
        %v7774 = vld [vmem:[#allocation33 + $0x748] sm:$0xff]
        %v7775 = vld [vmem:[#allocation33 + $0x750] sm:$0xff]
        %v7776 = vld [vmem:[#allocation33 + $0x758] sm:$0xff]
        %v7777 = vld [vmem:[#allocation33 + $0x760] sm:$0xff]
        %v7778 = vld [vmem:[#allocation33 + $0x768] sm:$0xff]
        %v7779 = vld [vmem:[#allocation33 + $0x770] sm:$0xff]
        %v7780 = vld [vmem:[#allocation33 + $0x778] sm:$0xff]
        %v7781 = vld [vmem:[#allocation33 + $0x780] sm:$0xff]
        %v7782 = vld [vmem:[#allocation33 + $0x788] sm:$0xff]
        %v7783 = vld [vmem:[#allocation33 + $0x790] sm:$0xff]
        %v7784 = vld [vmem:[#allocation33 + $0x798] sm:$0xff]
        %v7785 = vld [vmem:[#allocation33 + $0x7a0] sm:$0xff]
        %v7786 = vld [vmem:[#allocation33 + $0x7a8] sm:$0xff]
        %v7787 = vld [vmem:[#allocation33 + $0x7b0] sm:$0xff]
        %v7788 = vld [vmem:[#allocation33 + $0x7b8] sm:$0xff]
        %v7789 = vld [vmem:[#allocation33 + $0x7c0] sm:$0xff]
        %v7790 = vld [vmem:[#allocation33 + $0x7c8] sm:$0xff]
        %v7791 = vld [vmem:[#allocation33 + $0x7d0] sm:$0xff]
        %v7792 = vld [vmem:[#allocation33 + $0x7d8] sm:$0xff]
        %v7793 = vld [vmem:[#allocation33 + $0x7e0] sm:$0xff]
        %v7794 = vld [vmem:[#allocation33 + $0x7e8] sm:$0xff]
        %v7795 = vld [vmem:[#allocation33 + $0x7f0] sm:$0xff]
        %v7796 = vld [vmem:[#allocation33 + $0x7f8] sm:$0xff]
        %v7797 = vld [vmem:[#allocation33 + $0x800] sm:$0xff]
        %v7798 = vld [vmem:[#allocation33 + $0x808] sm:$0xff]
        %v7799 = vld [vmem:[#allocation33 + $0x810] sm:$0xff]
        %v7800 = vld [vmem:[#allocation33 + $0x818] sm:$0xff]
        %v7801 = vld [vmem:[#allocation33 + $0x820] sm:$0xff]
        %v7802 = vld [vmem:[#allocation33 + $0x828] sm:$0xff]
        %v7803 = vld [vmem:[#allocation33 + $0x830] sm:$0xff]
        %v7804 = vld [vmem:[#allocation33 + $0x838] sm:$0xff]
        %v7805 = vld [vmem:[#allocation33 + $0x840] sm:$0xff]
        %v7806 = vld [vmem:[#allocation33 + $0x848] sm:$0xff]
        %v7807 = vld [vmem:[#allocation33 + $0x850] sm:$0xff]
        %v7808 = vld [vmem:[#allocation33 + $0x858] sm:$0xff]
        %v7809 = vld [vmem:[#allocation33 + $0x860] sm:$0xff]
        %v7810 = vld [vmem:[#allocation33 + $0x868] sm:$0xff]
        %v7811 = vld [vmem:[#allocation33 + $0x870] sm:$0xff]
        %v7812 = vld [vmem:[#allocation33 + $0x878] sm:$0xff]
        %v7813 = vld [vmem:[#allocation33 + $0x880] sm:$0xff]
        %v7814 = vld [vmem:[#allocation33 + $0x888] sm:$0xff]
        %v7815 = vld [vmem:[#allocation33 + $0x890] sm:$0xff]
        %v7816 = vld [vmem:[#allocation33 + $0x898] sm:$0xff]
        %v7817 = vld [vmem:[#allocation33 + $0x8a0] sm:$0xff]
        %v7818 = vld [vmem:[#allocation33 + $0x8a8] sm:$0xff]
        %v7819 = vld [vmem:[#allocation33 + $0x8b0] sm:$0xff]
        %v7820 = vld [vmem:[#allocation33 + $0x8b8] sm:$0xff]
        %v7821 = vld [vmem:[#allocation33 + $0x8c0] sm:$0xff]
        %v7822 = vld [vmem:[#allocation33 + $0x8c8] sm:$0xff]
        %v7823 = vld [vmem:[#allocation33 + $0x8d0] sm:$0xff]
        %v7824 = vld [vmem:[#allocation33 + $0x8d8] sm:$0xff]
        %v7825 = vld [vmem:[#allocation33 + $0x8e0] sm:$0xff]
        %v7826 = vld [vmem:[#allocation33 + $0x8e8] sm:$0xff]
        %v7827 = vld [vmem:[#allocation33 + $0x8f0] sm:$0xff]
        %v7828 = vld [vmem:[#allocation33 + $0x8f8] sm:$0xff]
        %v7829 = vld [vmem:[#allocation33 + $0x900] sm:$0xff]
        %v7830 = vld [vmem:[#allocation33 + $0x908] sm:$0xff]
        %v7831 = vld [vmem:[#allocation33 + $0x910] sm:$0xff]
        %v7832 = vld [vmem:[#allocation33 + $0x918] sm:$0xff]
        %v7833 = vld [vmem:[#allocation33 + $0x920] sm:$0xff]
        %v7834 = vld [vmem:[#allocation33 + $0x928] sm:$0xff]
        %v7835 = vld [vmem:[#allocation33 + $0x930] sm:$0xff]
        %v7836 = vld [vmem:[#allocation33 + $0x938] sm:$0xff]
        %v7837 = vld [vmem:[#allocation33 + $0x940] sm:$0xff]
        %v7838 = vld [vmem:[#allocation33 + $0x948] sm:$0xff]
        %v7839 = vld [vmem:[#allocation33 + $0x950] sm:$0xff]
        %v7840 = vld [vmem:[#allocation33 + $0x958] sm:$0xff]
        %v7841 = vld [vmem:[#allocation33 + $0x960] sm:$0xff]
        %v7842 = vld [vmem:[#allocation33 + $0x968] sm:$0xff]
        %v7843 = vld [vmem:[#allocation33 + $0x970] sm:$0xff]
        %v7844 = vld [vmem:[#allocation33 + $0x978] sm:$0xff]
        %v7845 = vld [vmem:[#allocation33 + $0x980] sm:$0xff]
        %v7846 = vld [vmem:[#allocation33 + $0x988] sm:$0xff]
        %v7847 = vld [vmem:[#allocation33 + $0x990] sm:$0xff]
        %v7848 = vld [vmem:[#allocation33 + $0x998] sm:$0xff]
        %v7849 = vld [vmem:[#allocation33 + $0x9a0] sm:$0xff]
        %v7850 = vld [vmem:[#allocation33 + $0x9a8] sm:$0xff]
        %v7851 = vld [vmem:[#allocation33 + $0x9b0] sm:$0xff]
        %v7852 = vld [vmem:[#allocation33 + $0x9b8] sm:$0xff]
        %v7853 = vld [vmem:[#allocation33 + $0x9c0] sm:$0xff]
        %v7854 = vld [vmem:[#allocation33 + $0x9c8] sm:$0xff]
        %v7855 = vld [vmem:[#allocation33 + $0x9d0] sm:$0xff]
        %v7856 = vld [vmem:[#allocation33 + $0x9d8] sm:$0xff]
        %v7857 = vld [vmem:[#allocation33 + $0x9e0] sm:$0xff]
        %v7858 = vld [vmem:[#allocation33 + $0x9e8] sm:$0xff]
        %v7859 = vld [vmem:[#allocation33 + $0x9f0] sm:$0xff]
        %v7860 = vld [vmem:[#allocation33 + $0x9f8] sm:$0xff]
        %v7861 = vld [vmem:[#allocation33 + $0xa00] sm:$0xff]
        %v7862 = vld [vmem:[#allocation33 + $0xa08] sm:$0xff]
        %v7863 = vld [vmem:[#allocation33 + $0xa10] sm:$0xff]
        %v7864 = vld [vmem:[#allocation33 + $0xa18] sm:$0xff]
        %v7865 = vld [vmem:[#allocation33 + $0xa20] sm:$0xff]
        %v7866 = vld [vmem:[#allocation33 + $0xa28] sm:$0xff]
        %v7867 = vld [vmem:[#allocation33 + $0xa30] sm:$0xff]
        %v7868 = vld [vmem:[#allocation33 + $0xa38] sm:$0xff]
        %v7869 = vld [vmem:[#allocation33 + $0xa40] sm:$0xff]
        %v7870 = vld [vmem:[#allocation33 + $0xa48] sm:$0xff]
        %v7871 = vld [vmem:[#allocation33 + $0xa50] sm:$0xff]
        %v7872 = vld [vmem:[#allocation33 + $0xa58] sm:$0xff]
        %v7873 = vld [vmem:[#allocation33 + $0xa60] sm:$0xff]
        %v7874 = vld [vmem:[#allocation33 + $0xa68] sm:$0xff]
        %v7875 = vld [vmem:[#allocation33 + $0xa70] sm:$0xff]
        %v7876 = vld [vmem:[#allocation33 + $0xa78] sm:$0xff]
        %v7877 = vld [vmem:[#allocation33 + $0xa80] sm:$0xff]
        %v7878 = vld [vmem:[#allocation33 + $0xa88] sm:$0xff]
        %v7879 = vld [vmem:[#allocation33 + $0xa90] sm:$0xff]
        %v7880 = vld [vmem:[#allocation33 + $0xa98] sm:$0xff]
        %v7881 = vld [vmem:[#allocation33 + $0xaa0] sm:$0xff]
        %v7882 = vld [vmem:[#allocation33 + $0xaa8] sm:$0xff]
        %v7883 = vld [vmem:[#allocation33 + $0xab0] sm:$0xff]
        %v7884 = vld [vmem:[#allocation33 + $0xab8] sm:$0xff]
        %v7885 = vld [vmem:[#allocation33 + $0xac0] sm:$0xff]
        %v7886 = vld [vmem:[#allocation33 + $0xac8] sm:$0xff]
        %v7887 = vld [vmem:[#allocation33 + $0xad0] sm:$0xff]
        %v7888 = vld [vmem:[#allocation33 + $0xad8] sm:$0xff]
        %v7889 = vld [vmem:[#allocation33 + $0xae0] sm:$0xff]
        %v7890 = vld [vmem:[#allocation33 + $0xae8] sm:$0xff]
        %v7891 = vld [vmem:[#allocation33 + $0xaf0] sm:$0xff]
        %v7892 = vld [vmem:[#allocation33 + $0xaf8] sm:$0xff]
        %v7893 = vld [vmem:[#allocation33 + $0xb00] sm:$0xff]
        %v7894 = vld [vmem:[#allocation33 + $0xb08] sm:$0xff]
        %v7895 = vld [vmem:[#allocation33 + $0xb10] sm:$0xff]
        %v7896 = vld [vmem:[#allocation33 + $0xb18] sm:$0xff]
        %v7897 = vld [vmem:[#allocation33 + $0xb20] sm:$0xff]
        %v7898 = vld [vmem:[#allocation33 + $0xb28] sm:$0xff]
        %v7899 = vld [vmem:[#allocation33 + $0xb30] sm:$0xff]
        %v7900 = vld [vmem:[#allocation33 + $0xb38] sm:$0xff]
        %v7901 = vld [vmem:[#allocation33 + $0xb40] sm:$0xff]
        %v7902 = vld [vmem:[#allocation33 + $0xb48] sm:$0xff]
        %v7903 = vld [vmem:[#allocation33 + $0xb50] sm:$0xff]
        %v7904 = vld [vmem:[#allocation33 + $0xb58] sm:$0xff]
        %v7905 = vld [vmem:[#allocation33 + $0xb60] sm:$0xff]
        %v7906 = vld [vmem:[#allocation33 + $0xb68] sm:$0xff]
        %v7907 = vld [vmem:[#allocation33 + $0xb70] sm:$0xff]
        %v7908 = vld [vmem:[#allocation33 + $0xb78] sm:$0xff]
        %v7909 = vld [vmem:[#allocation33 + $0xb80] sm:$0xff]
        %v7910 = vld [vmem:[#allocation33 + $0xb88] sm:$0xff]
        %v7911 = vld [vmem:[#allocation33 + $0xb90] sm:$0xff]
        %v7912 = vld [vmem:[#allocation33 + $0xb98] sm:$0xff]
        %v7913 = vld [vmem:[#allocation33 + $0xba0] sm:$0xff]
        %v7914 = vld [vmem:[#allocation33 + $0xba8] sm:$0xff]
        %v7915 = vld [vmem:[#allocation33 + $0xbb0] sm:$0xff]
        %v7916 = vld [vmem:[#allocation33 + $0xbb8] sm:$0xff]
        %v7917 = vld [vmem:[#allocation33 + $0xbc0] sm:$0xff]
        %v7918 = vld [vmem:[#allocation33 + $0xbc8] sm:$0xff]
        %v7919 = vld [vmem:[#allocation33 + $0xbd0] sm:$0xff]
        %v7920 = vld [vmem:[#allocation33 + $0xbd8] sm:$0xff]
        %v7921 = vld [vmem:[#allocation33 + $0xbe0] sm:$0xff]
        %v7922 = vld [vmem:[#allocation33 + $0xbe8] sm:$0xff]
        %v7923 = vld [vmem:[#allocation33 + $0xbf0] sm:$0xff]
        %v7924 = vld [vmem:[#allocation33 + $0xbf8] sm:$0xff]
        %v7925 = vld [vmem:[#allocation34] sm:$0xf]
        %v7927 = vlaneseq
        %v7928 = vshrl.u32 %v7927, 7
        %v7929 = vsub.s32 0, %v7928
        %v7930 = vrot.slane %v7925, %v7929
        %v7931 = vlaneseq
        %v7932 = vshrl.u32 %v7931, 7
        %v7933 = vsub.s32 1, %v7932
        %v7934 = vrot.slane %v7925, %v7933
        %v7935 = vlaneseq
        %v7936 = vshrl.u32 %v7935, 7
        %v7937 = vsub.s32 2, %v7936
        %v7938 = vrot.slane %v7925, %v7937
        %v7939 = vlaneseq
        %v7940 = vshrl.u32 %v7939, 7
        %v7941 = vsub.s32 3, %v7940
        %v7942 = vrot.slane %v7925, %v7941
        %v8331 = vunpack.c.l.b16 %v7541
        %v8332 = vunpack.c.h.b16 %v7541
        %v8333 = vunpack.c.l.b16 %v7542
        %v8334 = vunpack.c.h.b16 %v7542
        %v8335 = vunpack.c.l.b16 %v7543
        %v8336 = vunpack.c.h.b16 %v7543
        %v8337 = vunpack.c.l.b16 %v7544
        %v8338 = vunpack.c.h.b16 %v7544
        %v8339 = vunpack.c.l.b16 %v7545
        %v8340 = vunpack.c.h.b16 %v7545
        %v8341 = vunpack.c.l.b16 %v7546
        %v8342 = vunpack.c.h.b16 %v7546
        %v8343 = vunpack.c.l.b16 %v7547
        %v8344 = vunpack.c.h.b16 %v7547
        %v8345 = vunpack.c.l.b16 %v7548
        %v8346 = vunpack.c.h.b16 %v7548
        %v8347 = vunpack.c.l.b16 %v7549
        %v8348 = vunpack.c.h.b16 %v7549
        %v8349 = vunpack.c.l.b16 %v7550
        %v8350 = vunpack.c.h.b16 %v7550
        %v8351 = vunpack.c.l.b16 %v7551
        %v8352 = vunpack.c.h.b16 %v7551
        %v8353 = vunpack.c.l.b16 %v7552
        %v8354 = vunpack.c.h.b16 %v7552
        %v8355 = vunpack.c.l.b16 %v7553
        %v8356 = vunpack.c.h.b16 %v7553
        %v8357 = vunpack.c.l.b16 %v7554
        %v8358 = vunpack.c.h.b16 %v7554
        %v8359 = vunpack.c.l.b16 %v7555
        %v8360 = vunpack.c.h.b16 %v7555
        %v8361 = vunpack.c.l.b16 %v7556
        %v8362 = vunpack.c.h.b16 %v7556
        %v8363 = vunpack.c.l.b16 %v7557
        %v8364 = vunpack.c.h.b16 %v7557
        %v8365 = vunpack.c.l.b16 %v7558
        %v8366 = vunpack.c.h.b16 %v7558
        %v8367 = vunpack.c.l.b16 %v7559
        %v8368 = vunpack.c.h.b16 %v7559
        %v8369 = vunpack.c.l.b16 %v7560
        %v8370 = vunpack.c.h.b16 %v7560
        %v8371 = vunpack.c.l.b16 %v7561
        %v8372 = vunpack.c.h.b16 %v7561
        %v8373 = vunpack.c.l.b16 %v7562
        %v8374 = vunpack.c.h.b16 %v7562
        %v8375 = vunpack.c.l.b16 %v7563
        %v8376 = vunpack.c.h.b16 %v7563
        %v8377 = vunpack.c.l.b16 %v7564
        %v8378 = vunpack.c.h.b16 %v7564
        %v8379 = vunpack.c.l.b16 %v7565
        %v8380 = vunpack.c.h.b16 %v7565
        %v8381 = vunpack.c.l.b16 %v7566
        %v8382 = vunpack.c.h.b16 %v7566
        %v8383 = vunpack.c.l.b16 %v7567
        %v8384 = vunpack.c.h.b16 %v7567
        %v8385 = vunpack.c.l.b16 %v7568
        %v8386 = vunpack.c.h.b16 %v7568
        %v8387 = vunpack.c.l.b16 %v7569
        %v8388 = vunpack.c.h.b16 %v7569
        %v8389 = vunpack.c.l.b16 %v7570
        %v8390 = vunpack.c.h.b16 %v7570
        %v8391 = vunpack.c.l.b16 %v7571
        %v8392 = vunpack.c.h.b16 %v7571
        %v8393 = vunpack.c.l.b16 %v7572
        %v8394 = vunpack.c.h.b16 %v7572
        %v8395 = vunpack.c.l.b16 %v7573
        %v8396 = vunpack.c.h.b16 %v7573
        %v8397 = vunpack.c.l.b16 %v7574
        %v8398 = vunpack.c.h.b16 %v7574
        %v8399 = vunpack.c.l.b16 %v7575
        %v8400 = vunpack.c.h.b16 %v7575
        %v8401 = vunpack.c.l.b16 %v7576
        %v8402 = vunpack.c.h.b16 %v7576
        %v8403 = vunpack.c.l.b16 %v7577
        %v8404 = vunpack.c.h.b16 %v7577
        %v8405 = vunpack.c.l.b16 %v7578
        %v8406 = vunpack.c.h.b16 %v7578
        %v8407 = vunpack.c.l.b16 %v7579
        %v8408 = vunpack.c.h.b16 %v7579
        %v8409 = vunpack.c.l.b16 %v7580
        %v8410 = vunpack.c.h.b16 %v7580
        %v8411 = vunpack.c.l.b16 %v7581
        %v8412 = vunpack.c.h.b16 %v7581
        %v8413 = vunpack.c.l.b16 %v7582
        %v8414 = vunpack.c.h.b16 %v7582
        %v8415 = vunpack.c.l.b16 %v7583
        %v8416 = vunpack.c.h.b16 %v7583
        %v8417 = vunpack.c.l.b16 %v7584
        %v8418 = vunpack.c.h.b16 %v7584
        %v8419 = vunpack.c.l.b16 %v7585
        %v8420 = vunpack.c.h.b16 %v7585
        %v8421 = vunpack.c.l.b16 %v7586
        %v8422 = vunpack.c.h.b16 %v7586
        %v8423 = vunpack.c.l.b16 %v7587
        %v8424 = vunpack.c.h.b16 %v7587
        %v8425 = vunpack.c.l.b16 %v7588
        %v8426 = vunpack.c.h.b16 %v7588
        %v8427 = vunpack.c.l.b16 %v7589
        %v8428 = vunpack.c.h.b16 %v7589
        %v8429 = vunpack.c.l.b16 %v7590
        %v8430 = vunpack.c.h.b16 %v7590
        %v8431 = vunpack.c.l.b16 %v7591
        %v8432 = vunpack.c.h.b16 %v7591
        %v8433 = vunpack.c.l.b16 %v7592
        %v8434 = vunpack.c.h.b16 %v7592
        %v8435 = vunpack.c.l.b16 %v7593
        %v8436 = vunpack.c.h.b16 %v7593
        %v8437 = vunpack.c.l.b16 %v7594
        %v8438 = vunpack.c.h.b16 %v7594
        %v8439 = vunpack.c.l.b16 %v7595
        %v8440 = vunpack.c.h.b16 %v7595
        %v8441 = vunpack.c.l.b16 %v7596
        %v8442 = vunpack.c.h.b16 %v7596
        %v8443 = vunpack.c.l.b16 %v7597
        %v8444 = vunpack.c.h.b16 %v7597
        %v8445 = vunpack.c.l.b16 %v7598
        %v8446 = vunpack.c.h.b16 %v7598
        %v8447 = vunpack.c.l.b16 %v7599
        %v8448 = vunpack.c.h.b16 %v7599
        %v8449 = vunpack.c.l.b16 %v7600
        %v8450 = vunpack.c.h.b16 %v7600
        %v8451 = vunpack.c.l.b16 %v7601
        %v8452 = vunpack.c.h.b16 %v7601
        %v8453 = vunpack.c.l.b16 %v7602
        %v8454 = vunpack.c.h.b16 %v7602
        %v8455 = vunpack.c.l.b16 %v7603
        %v8456 = vunpack.c.h.b16 %v7603
        %v8457 = vunpack.c.l.b16 %v7604
        %v8458 = vunpack.c.h.b16 %v7604
        %v8459 = vunpack.c.l.b16 %v7605
        %v8460 = vunpack.c.h.b16 %v7605
        %v8461 = vunpack.c.l.b16 %v7606
        %v8462 = vunpack.c.h.b16 %v7606
        %v8463 = vunpack.c.l.b16 %v7607
        %v8464 = vunpack.c.h.b16 %v7607
        %v8465 = vunpack.c.l.b16 %v7608
        %v8466 = vunpack.c.h.b16 %v7608
        %v8467 = vunpack.c.l.b16 %v7609
        %v8468 = vunpack.c.h.b16 %v7609
        %v8469 = vunpack.c.l.b16 %v7610
        %v8470 = vunpack.c.h.b16 %v7610
        %v8471 = vunpack.c.l.b16 %v7611
        %v8472 = vunpack.c.h.b16 %v7611
        %v8473 = vunpack.c.l.b16 %v7612
        %v8474 = vunpack.c.h.b16 %v7612
        %v8475 = vunpack.c.l.b16 %v7613
        %v8476 = vunpack.c.h.b16 %v7613
        %v8477 = vunpack.c.l.b16 %v7614
        %v8478 = vunpack.c.h.b16 %v7614
        %v8479 = vunpack.c.l.b16 %v7615
        %v8480 = vunpack.c.h.b16 %v7615
        %v8481 = vunpack.c.l.b16 %v7616
        %v8482 = vunpack.c.h.b16 %v7616
        %v8483 = vunpack.c.l.b16 %v7617
        %v8484 = vunpack.c.h.b16 %v7617
        %v8485 = vunpack.c.l.b16 %v7618
        %v8486 = vunpack.c.h.b16 %v7618
        %v8487 = vunpack.c.l.b16 %v7619
        %v8488 = vunpack.c.h.b16 %v7619
        %v8489 = vunpack.c.l.b16 %v7620
        %v8490 = vunpack.c.h.b16 %v7620
        %v8491 = vunpack.c.l.b16 %v7621
        %v8492 = vunpack.c.h.b16 %v7621
        %v8493 = vunpack.c.l.b16 %v7622
        %v8494 = vunpack.c.h.b16 %v7622
        %v8495 = vunpack.c.l.b16 %v7623
        %v8496 = vunpack.c.h.b16 %v7623
        %v8497 = vunpack.c.l.b16 %v7624
        %v8498 = vunpack.c.h.b16 %v7624
        %v8499 = vunpack.c.l.b16 %v7625
        %v8500 = vunpack.c.h.b16 %v7625
        %v8501 = vunpack.c.l.b16 %v7626
        %v8502 = vunpack.c.h.b16 %v7626
        %v8503 = vunpack.c.l.b16 %v7627
        %v8504 = vunpack.c.h.b16 %v7627
        %v8505 = vunpack.c.l.b16 %v7628
        %v8506 = vunpack.c.h.b16 %v7628
        %v8507 = vunpack.c.l.b16 %v7629
        %v8508 = vunpack.c.h.b16 %v7629
        %v8509 = vunpack.c.l.b16 %v7630
        %v8510 = vunpack.c.h.b16 %v7630
        %v8511 = vunpack.c.l.b16 %v7631
        %v8512 = vunpack.c.h.b16 %v7631
        %v8513 = vunpack.c.l.b16 %v7632
        %v8514 = vunpack.c.h.b16 %v7632
        %v8515 = vunpack.c.l.b16 %v7633
        %v8516 = vunpack.c.h.b16 %v7633
        %v8517 = vunpack.c.l.b16 %v7634
        %v8518 = vunpack.c.h.b16 %v7634
        %v8519 = vunpack.c.l.b16 %v7635
        %v8520 = vunpack.c.h.b16 %v7635
        %v8521 = vunpack.c.l.b16 %v7636
        %v8522 = vunpack.c.h.b16 %v7636
        %v8523 = vunpack.c.l.b16 %v7637
        %v8524 = vunpack.c.h.b16 %v7637
        %v8525 = vunpack.c.l.b16 %v7638
        %v8526 = vunpack.c.h.b16 %v7638
        %v8527 = vunpack.c.l.b16 %v7639
        %v8528 = vunpack.c.h.b16 %v7639
        %v8529 = vunpack.c.l.b16 %v7640
        %v8530 = vunpack.c.h.b16 %v7640
        %v8531 = vunpack.c.l.b16 %v7641
        %v8532 = vunpack.c.h.b16 %v7641
        %v8533 = vunpack.c.l.b16 %v7642
        %v8534 = vunpack.c.h.b16 %v7642
        %v8535 = vunpack.c.l.b16 %v7643
        %v8536 = vunpack.c.h.b16 %v7643
        %v8537 = vunpack.c.l.b16 %v7644
        %v8538 = vunpack.c.h.b16 %v7644
        %v8539 = vunpack.c.l.b16 %v7645
        %v8540 = vunpack.c.h.b16 %v7645
        %v8541 = vunpack.c.l.b16 %v7646
        %v8542 = vunpack.c.h.b16 %v7646
        %v8543 = vunpack.c.l.b16 %v7647
        %v8544 = vunpack.c.h.b16 %v7647
        %v8545 = vunpack.c.l.b16 %v7648
        %v8546 = vunpack.c.h.b16 %v7648
        %v8547 = vunpack.c.l.b16 %v7649
        %v8548 = vunpack.c.h.b16 %v7649
        %v8549 = vunpack.c.l.b16 %v7650
        %v8550 = vunpack.c.h.b16 %v7650
        %v8551 = vunpack.c.l.b16 %v7651
        %v8552 = vunpack.c.h.b16 %v7651
        %v8553 = vunpack.c.l.b16 %v7652
        %v8554 = vunpack.c.h.b16 %v7652
        %v8555 = vunpack.c.l.b16 %v7653
        %v8556 = vunpack.c.h.b16 %v7653
        %v8557 = vunpack.c.l.b16 %v7654
        %v8558 = vunpack.c.h.b16 %v7654
        %v8559 = vunpack.c.l.b16 %v7655
        %v8560 = vunpack.c.h.b16 %v7655
        %v8561 = vunpack.c.l.b16 %v7656
        %v8562 = vunpack.c.h.b16 %v7656
        %v8563 = vunpack.c.l.b16 %v7657
        %v8564 = vunpack.c.h.b16 %v7657
        %v8565 = vunpack.c.l.b16 %v7658
        %v8566 = vunpack.c.h.b16 %v7658
        %v8567 = vunpack.c.l.b16 %v7659
        %v8568 = vunpack.c.h.b16 %v7659
        %v8569 = vunpack.c.l.b16 %v7660
        %v8570 = vunpack.c.h.b16 %v7660
        %v8571 = vunpack.c.l.b16 %v7661
        %v8572 = vunpack.c.h.b16 %v7661
        %v8573 = vunpack.c.l.b16 %v7662
        %v8574 = vunpack.c.h.b16 %v7662
        %v8575 = vunpack.c.l.b16 %v7663
        %v8576 = vunpack.c.h.b16 %v7663
        %v8577 = vunpack.c.l.b16 %v7664
        %v8578 = vunpack.c.h.b16 %v7664
        %v8579 = vunpack.c.l.b16 %v7665
        %v8580 = vunpack.c.h.b16 %v7665
        %v8581 = vunpack.c.l.b16 %v7666
        %v8582 = vunpack.c.h.b16 %v7666
        %v8583 = vunpack.c.l.b16 %v7667
        %v8584 = vunpack.c.h.b16 %v7667
        %v8585 = vunpack.c.l.b16 %v7668
        %v8586 = vunpack.c.h.b16 %v7668
        %v8587 = vunpack.c.l.b16 %v7669
        %v8588 = vunpack.c.h.b16 %v7669
        %v8589 = vunpack.c.l.b16 %v7670
        %v8590 = vunpack.c.h.b16 %v7670
        %v8591 = vunpack.c.l.b16 %v7671
        %v8592 = vunpack.c.h.b16 %v7671
        %v8593 = vunpack.c.l.b16 %v7672
        %v8594 = vunpack.c.h.b16 %v7672
        %v8595 = vunpack.c.l.b16 %v7673
        %v8596 = vunpack.c.h.b16 %v7673
        %v8597 = vunpack.c.l.b16 %v7674
        %v8598 = vunpack.c.h.b16 %v7674
        %v8599 = vunpack.c.l.b16 %v7675
        %v8600 = vunpack.c.h.b16 %v7675
        %v8601 = vunpack.c.l.b16 %v7676
        %v8602 = vunpack.c.h.b16 %v7676
        %v8603 = vunpack.c.l.b16 %v7677
        %v8604 = vunpack.c.h.b16 %v7677
        %v8605 = vunpack.c.l.b16 %v7678
        %v8606 = vunpack.c.h.b16 %v7678
        %v8607 = vunpack.c.l.b16 %v7679
        %v8608 = vunpack.c.h.b16 %v7679
        %v8609 = vunpack.c.l.b16 %v7680
        %v8610 = vunpack.c.h.b16 %v7680
        %v8611 = vunpack.c.l.b16 %v7681
        %v8612 = vunpack.c.h.b16 %v7681
        %v8613 = vunpack.c.l.b16 %v7682
        %v8614 = vunpack.c.h.b16 %v7682
        %v8615 = vunpack.c.l.b16 %v7683
        %v8616 = vunpack.c.h.b16 %v7683
        %v8617 = vunpack.c.l.b16 %v7684
        %v8618 = vunpack.c.h.b16 %v7684
        %v8619 = vunpack.c.l.b16 %v7685
        %v8620 = vunpack.c.h.b16 %v7685
        %v8621 = vunpack.c.l.b16 %v7686
        %v8622 = vunpack.c.h.b16 %v7686
        %v8623 = vunpack.c.l.b16 %v7687
        %v8624 = vunpack.c.h.b16 %v7687
        %v8625 = vunpack.c.l.b16 %v7688
        %v8626 = vunpack.c.h.b16 %v7688
        %v8627 = vunpack.c.l.b16 %v7689
        %v8628 = vunpack.c.h.b16 %v7689
        %v8629 = vunpack.c.l.b16 %v7690
        %v8630 = vunpack.c.h.b16 %v7690
        %v8631 = vunpack.c.l.b16 %v7691
        %v8632 = vunpack.c.h.b16 %v7691
        %v8633 = vunpack.c.l.b16 %v7692
        %v8634 = vunpack.c.h.b16 %v7692
        %v8635 = vunpack.c.l.b16 %v7693
        %v8636 = vunpack.c.h.b16 %v7693
        %v8637 = vunpack.c.l.b16 %v7694
        %v8638 = vunpack.c.h.b16 %v7694
        %v8639 = vunpack.c.l.b16 %v7695
        %v8640 = vunpack.c.h.b16 %v7695
        %v8641 = vunpack.c.l.b16 %v7696
        %v8642 = vunpack.c.h.b16 %v7696
        %v8643 = vunpack.c.l.b16 %v7697
        %v8644 = vunpack.c.h.b16 %v7697
        %v8645 = vunpack.c.l.b16 %v7698
        %v8646 = vunpack.c.h.b16 %v7698
        %v8647 = vunpack.c.l.b16 %v7699
        %v8648 = vunpack.c.h.b16 %v7699
        %v8649 = vunpack.c.l.b16 %v7700
        %v8650 = vunpack.c.h.b16 %v7700
        %v8651 = vunpack.c.l.b16 %v7701
        %v8652 = vunpack.c.h.b16 %v7701
        %v8653 = vunpack.c.l.b16 %v7702
        %v8654 = vunpack.c.h.b16 %v7702
        %v8655 = vunpack.c.l.b16 %v7703
        %v8656 = vunpack.c.h.b16 %v7703
        %v8657 = vunpack.c.l.b16 %v7704
        %v8658 = vunpack.c.h.b16 %v7704
        %v8659 = vunpack.c.l.b16 %v7705
        %v8660 = vunpack.c.h.b16 %v7705
        %v8661 = vunpack.c.l.b16 %v7706
        %v8662 = vunpack.c.h.b16 %v7706
        %v8663 = vunpack.c.l.b16 %v7707
        %v8664 = vunpack.c.h.b16 %v7707
        %v8665 = vunpack.c.l.b16 %v7708
        %v8666 = vunpack.c.h.b16 %v7708
        %v8667 = vunpack.c.l.b16 %v7709
        %v8668 = vunpack.c.h.b16 %v7709
        %v8669 = vunpack.c.l.b16 %v7710
        %v8670 = vunpack.c.h.b16 %v7710
        %v8671 = vunpack.c.l.b16 %v7711
        %v8672 = vunpack.c.h.b16 %v7711
        %v8673 = vunpack.c.l.b16 %v7712
        %v8674 = vunpack.c.h.b16 %v7712
        %v8675 = vunpack.c.l.b16 %v7713
        %v8676 = vunpack.c.h.b16 %v7713
        %v8677 = vunpack.c.l.b16 %v7714
        %v8678 = vunpack.c.h.b16 %v7714
        %v8679 = vunpack.c.l.b16 %v7715
        %v8680 = vunpack.c.h.b16 %v7715
        %v8681 = vunpack.c.l.b16 %v7716
        %v8682 = vunpack.c.h.b16 %v7716
        %v8683 = vunpack.c.l.b16 %v7717
        %v8684 = vunpack.c.h.b16 %v7717
        %v8685 = vunpack.c.l.b16 %v7718
        %v8686 = vunpack.c.h.b16 %v7718
        %v8687 = vunpack.c.l.b16 %v7719
        %v8688 = vunpack.c.h.b16 %v7719
        %v8689 = vunpack.c.l.b16 %v7720
        %v8690 = vunpack.c.h.b16 %v7720
        %v8691 = vunpack.c.l.b16 %v7721
        %v8692 = vunpack.c.h.b16 %v7721
        %v8693 = vunpack.c.l.b16 %v7722
        %v8694 = vunpack.c.h.b16 %v7722
        %v8695 = vunpack.c.l.b16 %v7723
        %v8696 = vunpack.c.h.b16 %v7723
        %v8697 = vunpack.c.l.b16 %v7724
        %v8698 = vunpack.c.h.b16 %v7724
        %v8699 = vunpack.c.l.b16 %v7725
        %v8700 = vunpack.c.h.b16 %v7725
        %v8701 = vunpack.c.l.b16 %v7726
        %v8702 = vunpack.c.h.b16 %v7726
        %v8703 = vunpack.c.l.b16 %v7727
        %v8704 = vunpack.c.h.b16 %v7727
        %v8705 = vunpack.c.l.b16 %v7728
        %v8706 = vunpack.c.h.b16 %v7728
        %v8707 = vunpack.c.l.b16 %v7729
        %v8708 = vunpack.c.h.b16 %v7729
        %v8709 = vunpack.c.l.b16 %v7730
        %v8710 = vunpack.c.h.b16 %v7730
        %v8711 = vunpack.c.l.b16 %v7731
        %v8712 = vunpack.c.h.b16 %v7731
        %v8713 = vunpack.c.l.b16 %v7732
        %v8714 = vunpack.c.h.b16 %v7732
        %v8715 = vunpack.c.l.b16 %v7733
        %v8716 = vunpack.c.h.b16 %v7733
        %v8717 = vunpack.c.l.b16 %v7734
        %v8718 = vunpack.c.h.b16 %v7734
        %v8719 = vunpack.c.l.b16 %v7735
        %v8720 = vunpack.c.h.b16 %v7735
        %v8721 = vunpack.c.l.b16 %v7736
        %v8722 = vunpack.c.h.b16 %v7736
        %v8723 = vunpack.c.l.b16 %v7737
        %v8724 = vunpack.c.h.b16 %v7737
        %v8725 = vunpack.c.l.b16 %v7738
        %v8726 = vunpack.c.h.b16 %v7738
        %v8727 = vunpack.c.l.b16 %v7739
        %v8728 = vunpack.c.h.b16 %v7739
        %v8729 = vunpack.c.l.b16 %v7740
        %v8730 = vunpack.c.h.b16 %v7740
        %v8731 = vunpack.c.l.b16 %v7741
        %v8732 = vunpack.c.h.b16 %v7741
        %v8733 = vunpack.c.l.b16 %v7742
        %v8734 = vunpack.c.h.b16 %v7742
        %v8735 = vunpack.c.l.b16 %v7743
        %v8736 = vunpack.c.h.b16 %v7743
        %v8737 = vunpack.c.l.b16 %v7744
        %v8738 = vunpack.c.h.b16 %v7744
        %v8739 = vunpack.c.l.b16 %v7745
        %v8740 = vunpack.c.h.b16 %v7745
        %v8741 = vunpack.c.l.b16 %v7746
        %v8742 = vunpack.c.h.b16 %v7746
        %v8743 = vunpack.c.l.b16 %v7747
        %v8744 = vunpack.c.h.b16 %v7747
        %v8745 = vunpack.c.l.b16 %v7748
        %v8746 = vunpack.c.h.b16 %v7748
        %v8747 = vunpack.c.l.b16 %v7749
        %v8748 = vunpack.c.h.b16 %v7749
        %v8749 = vunpack.c.l.b16 %v7750
        %v8750 = vunpack.c.h.b16 %v7750
        %v8751 = vunpack.c.l.b16 %v7751
        %v8752 = vunpack.c.h.b16 %v7751
        %v8753 = vunpack.c.l.b16 %v7752
        %v8754 = vunpack.c.h.b16 %v7752
        %v8755 = vunpack.c.l.b16 %v7753
        %v8756 = vunpack.c.h.b16 %v7753
        %v8757 = vunpack.c.l.b16 %v7754
        %v8758 = vunpack.c.h.b16 %v7754
        %v8759 = vunpack.c.l.b16 %v7755
        %v8760 = vunpack.c.h.b16 %v7755
        %v8761 = vunpack.c.l.b16 %v7756
        %v8762 = vunpack.c.h.b16 %v7756
        %v8763 = vunpack.c.l.b16 %v7757
        %v8764 = vunpack.c.h.b16 %v7757
        %v8765 = vunpack.c.l.b16 %v7758
        %v8766 = vunpack.c.h.b16 %v7758
        %v8767 = vunpack.c.l.b16 %v7759
        %v8768 = vunpack.c.h.b16 %v7759
        %v8769 = vunpack.c.l.b16 %v7760
        %v8770 = vunpack.c.h.b16 %v7760
        %v8771 = vunpack.c.l.b16 %v7761
        %v8772 = vunpack.c.h.b16 %v7761
        %v8773 = vunpack.c.l.b16 %v7762
        %v8774 = vunpack.c.h.b16 %v7762
        %v8775 = vunpack.c.l.b16 %v7763
        %v8776 = vunpack.c.h.b16 %v7763
        %v8777 = vunpack.c.l.b16 %v7764
        %v8778 = vunpack.c.h.b16 %v7764
        %v8779 = vunpack.c.l.b16 %v7765
        %v8780 = vunpack.c.h.b16 %v7765
        %v8781 = vunpack.c.l.b16 %v7766
        %v8782 = vunpack.c.h.b16 %v7766
        %v8783 = vunpack.c.l.b16 %v7767
        %v8784 = vunpack.c.h.b16 %v7767
        %v8785 = vunpack.c.l.b16 %v7768
        %v8786 = vunpack.c.h.b16 %v7768
        %v8787 = vunpack.c.l.b16 %v7769
        %v8788 = vunpack.c.h.b16 %v7769
        %v8789 = vunpack.c.l.b16 %v7770
        %v8790 = vunpack.c.h.b16 %v7770
        %v8791 = vunpack.c.l.b16 %v7771
        %v8792 = vunpack.c.h.b16 %v7771
        %v8793 = vunpack.c.l.b16 %v7772
        %v8794 = vunpack.c.h.b16 %v7772
        %v8795 = vunpack.c.l.b16 %v7773
        %v8796 = vunpack.c.h.b16 %v7773
        %v8797 = vunpack.c.l.b16 %v7774
        %v8798 = vunpack.c.h.b16 %v7774
        %v8799 = vunpack.c.l.b16 %v7775
        %v8800 = vunpack.c.h.b16 %v7775
        %v8801 = vunpack.c.l.b16 %v7776
        %v8802 = vunpack.c.h.b16 %v7776
        %v8803 = vunpack.c.l.b16 %v7777
        %v8804 = vunpack.c.h.b16 %v7777
        %v8805 = vunpack.c.l.b16 %v7778
        %v8806 = vunpack.c.h.b16 %v7778
        %v8807 = vunpack.c.l.b16 %v7779
        %v8808 = vunpack.c.h.b16 %v7779
        %v8809 = vunpack.c.l.b16 %v7780
        %v8810 = vunpack.c.h.b16 %v7780
        %v8811 = vunpack.c.l.b16 %v7781
        %v8812 = vunpack.c.h.b16 %v7781
        %v8813 = vunpack.c.l.b16 %v7782
        %v8814 = vunpack.c.h.b16 %v7782
        %v8815 = vunpack.c.l.b16 %v7783
        %v8816 = vunpack.c.h.b16 %v7783
        %v8817 = vunpack.c.l.b16 %v7784
        %v8818 = vunpack.c.h.b16 %v7784
        %v8819 = vunpack.c.l.b16 %v7785
        %v8820 = vunpack.c.h.b16 %v7785
        %v8821 = vunpack.c.l.b16 %v7786
        %v8822 = vunpack.c.h.b16 %v7786
        %v8823 = vunpack.c.l.b16 %v7787
        %v8824 = vunpack.c.h.b16 %v7787
        %v8825 = vunpack.c.l.b16 %v7788
        %v8826 = vunpack.c.h.b16 %v7788
        %v8827 = vunpack.c.l.b16 %v7789
        %v8828 = vunpack.c.h.b16 %v7789
        %v8829 = vunpack.c.l.b16 %v7790
        %v8830 = vunpack.c.h.b16 %v7790
        %v8831 = vunpack.c.l.b16 %v7791
        %v8832 = vunpack.c.h.b16 %v7791
        %v8833 = vunpack.c.l.b16 %v7792
        %v8834 = vunpack.c.h.b16 %v7792
        %v8835 = vunpack.c.l.b16 %v7793
        %v8836 = vunpack.c.h.b16 %v7793
        %v8837 = vunpack.c.l.b16 %v7794
        %v8838 = vunpack.c.h.b16 %v7794
        %v8839 = vunpack.c.l.b16 %v7795
        %v8840 = vunpack.c.h.b16 %v7795
        %v8841 = vunpack.c.l.b16 %v7796
        %v8842 = vunpack.c.h.b16 %v7796
        %v8843 = vunpack.c.l.b16 %v7797
        %v8844 = vunpack.c.h.b16 %v7797
        %v8845 = vunpack.c.l.b16 %v7798
        %v8846 = vunpack.c.h.b16 %v7798
        %v8847 = vunpack.c.l.b16 %v7799
        %v8848 = vunpack.c.h.b16 %v7799
        %v8849 = vunpack.c.l.b16 %v7800
        %v8850 = vunpack.c.h.b16 %v7800
        %v8851 = vunpack.c.l.b16 %v7801
        %v8852 = vunpack.c.h.b16 %v7801
        %v8853 = vunpack.c.l.b16 %v7802
        %v8854 = vunpack.c.h.b16 %v7802
        %v8855 = vunpack.c.l.b16 %v7803
        %v8856 = vunpack.c.h.b16 %v7803
        %v8857 = vunpack.c.l.b16 %v7804
        %v8858 = vunpack.c.h.b16 %v7804
        %v8859 = vunpack.c.l.b16 %v7805
        %v8860 = vunpack.c.h.b16 %v7805
        %v8861 = vunpack.c.l.b16 %v7806
        %v8862 = vunpack.c.h.b16 %v7806
        %v8863 = vunpack.c.l.b16 %v7807
        %v8864 = vunpack.c.h.b16 %v7807
        %v8865 = vunpack.c.l.b16 %v7808
        %v8866 = vunpack.c.h.b16 %v7808
        %v8867 = vunpack.c.l.b16 %v7809
        %v8868 = vunpack.c.h.b16 %v7809
        %v8869 = vunpack.c.l.b16 %v7810
        %v8870 = vunpack.c.h.b16 %v7810
        %v8871 = vunpack.c.l.b16 %v7811
        %v8872 = vunpack.c.h.b16 %v7811
        %v8873 = vunpack.c.l.b16 %v7812
        %v8874 = vunpack.c.h.b16 %v7812
        %v8875 = vunpack.c.l.b16 %v7813
        %v8876 = vunpack.c.h.b16 %v7813
        %v8877 = vunpack.c.l.b16 %v7814
        %v8878 = vunpack.c.h.b16 %v7814
        %v8879 = vunpack.c.l.b16 %v7815
        %v8880 = vunpack.c.h.b16 %v7815
        %v8881 = vunpack.c.l.b16 %v7816
        %v8882 = vunpack.c.h.b16 %v7816
        %v8883 = vunpack.c.l.b16 %v7817
        %v8884 = vunpack.c.h.b16 %v7817
        %v8885 = vunpack.c.l.b16 %v7818
        %v8886 = vunpack.c.h.b16 %v7818
        %v8887 = vunpack.c.l.b16 %v7819
        %v8888 = vunpack.c.h.b16 %v7819
        %v8889 = vunpack.c.l.b16 %v7820
        %v8890 = vunpack.c.h.b16 %v7820
        %v8891 = vunpack.c.l.b16 %v7821
        %v8892 = vunpack.c.h.b16 %v7821
        %v8893 = vunpack.c.l.b16 %v7822
        %v8894 = vunpack.c.h.b16 %v7822
        %v8895 = vunpack.c.l.b16 %v7823
        %v8896 = vunpack.c.h.b16 %v7823
        %v8897 = vunpack.c.l.b16 %v7824
        %v8898 = vunpack.c.h.b16 %v7824
        %v8899 = vunpack.c.l.b16 %v7825
        %v8900 = vunpack.c.h.b16 %v7825
        %v8901 = vunpack.c.l.b16 %v7826
        %v8902 = vunpack.c.h.b16 %v7826
        %v8903 = vunpack.c.l.b16 %v7827
        %v8904 = vunpack.c.h.b16 %v7827
        %v8905 = vunpack.c.l.b16 %v7828
        %v8906 = vunpack.c.h.b16 %v7828
        %v8907 = vunpack.c.l.b16 %v7829
        %v8908 = vunpack.c.h.b16 %v7829
        %v8909 = vunpack.c.l.b16 %v7830
        %v8910 = vunpack.c.h.b16 %v7830
        %v8911 = vunpack.c.l.b16 %v7831
        %v8912 = vunpack.c.h.b16 %v7831
        %v8913 = vunpack.c.l.b16 %v7832
        %v8914 = vunpack.c.h.b16 %v7832
        %v8915 = vunpack.c.l.b16 %v7833
        %v8916 = vunpack.c.h.b16 %v7833
        %v8917 = vunpack.c.l.b16 %v7834
        %v8918 = vunpack.c.h.b16 %v7834
        %v8919 = vunpack.c.l.b16 %v7835
        %v8920 = vunpack.c.h.b16 %v7835
        %v8921 = vunpack.c.l.b16 %v7836
        %v8922 = vunpack.c.h.b16 %v7836
        %v8923 = vunpack.c.l.b16 %v7837
        %v8924 = vunpack.c.h.b16 %v7837
        %v8925 = vunpack.c.l.b16 %v7838
        %v8926 = vunpack.c.h.b16 %v7838
        %v8927 = vunpack.c.l.b16 %v7839
        %v8928 = vunpack.c.h.b16 %v7839
        %v8929 = vunpack.c.l.b16 %v7840
        %v8930 = vunpack.c.h.b16 %v7840
        %v8931 = vunpack.c.l.b16 %v7841
        %v8932 = vunpack.c.h.b16 %v7841
        %v8933 = vunpack.c.l.b16 %v7842
        %v8934 = vunpack.c.h.b16 %v7842
        %v8935 = vunpack.c.l.b16 %v7843
        %v8936 = vunpack.c.h.b16 %v7843
        %v8937 = vunpack.c.l.b16 %v7844
        %v8938 = vunpack.c.h.b16 %v7844
        %v8939 = vunpack.c.l.b16 %v7845
        %v8940 = vunpack.c.h.b16 %v7845
        %v8941 = vunpack.c.l.b16 %v7846
        %v8942 = vunpack.c.h.b16 %v7846
        %v8943 = vunpack.c.l.b16 %v7847
        %v8944 = vunpack.c.h.b16 %v7847
        %v8945 = vunpack.c.l.b16 %v7848
        %v8946 = vunpack.c.h.b16 %v7848
        %v8947 = vunpack.c.l.b16 %v7849
        %v8948 = vunpack.c.h.b16 %v7849
        %v8949 = vunpack.c.l.b16 %v7850
        %v8950 = vunpack.c.h.b16 %v7850
        %v8951 = vunpack.c.l.b16 %v7851
        %v8952 = vunpack.c.h.b16 %v7851
        %v8953 = vunpack.c.l.b16 %v7852
        %v8954 = vunpack.c.h.b16 %v7852
        %v8955 = vunpack.c.l.b16 %v7853
        %v8956 = vunpack.c.h.b16 %v7853
        %v8957 = vunpack.c.l.b16 %v7854
        %v8958 = vunpack.c.h.b16 %v7854
        %v8959 = vunpack.c.l.b16 %v7855
        %v8960 = vunpack.c.h.b16 %v7855
        %v8961 = vunpack.c.l.b16 %v7856
        %v8962 = vunpack.c.h.b16 %v7856
        %v8963 = vunpack.c.l.b16 %v7857
        %v8964 = vunpack.c.h.b16 %v7857
        %v8965 = vunpack.c.l.b16 %v7858
        %v8966 = vunpack.c.h.b16 %v7858
        %v8967 = vunpack.c.l.b16 %v7859
        %v8968 = vunpack.c.h.b16 %v7859
        %v8969 = vunpack.c.l.b16 %v7860
        %v8970 = vunpack.c.h.b16 %v7860
        %v8971 = vunpack.c.l.b16 %v7861
        %v8972 = vunpack.c.h.b16 %v7861
        %v8973 = vunpack.c.l.b16 %v7862
        %v8974 = vunpack.c.h.b16 %v7862
        %v8975 = vunpack.c.l.b16 %v7863
        %v8976 = vunpack.c.h.b16 %v7863
        %v8977 = vunpack.c.l.b16 %v7864
        %v8978 = vunpack.c.h.b16 %v7864
        %v8979 = vunpack.c.l.b16 %v7865
        %v8980 = vunpack.c.h.b16 %v7865
        %v8981 = vunpack.c.l.b16 %v7866
        %v8982 = vunpack.c.h.b16 %v7866
        %v8983 = vunpack.c.l.b16 %v7867
        %v8984 = vunpack.c.h.b16 %v7867
        %v8985 = vunpack.c.l.b16 %v7868
        %v8986 = vunpack.c.h.b16 %v7868
        %v8987 = vunpack.c.l.b16 %v7869
        %v8988 = vunpack.c.h.b16 %v7869
        %v8989 = vunpack.c.l.b16 %v7870
        %v8990 = vunpack.c.h.b16 %v7870
        %v8991 = vunpack.c.l.b16 %v7871
        %v8992 = vunpack.c.h.b16 %v7871
        %v8993 = vunpack.c.l.b16 %v7872
        %v8994 = vunpack.c.h.b16 %v7872
        %v8995 = vunpack.c.l.b16 %v7873
        %v8996 = vunpack.c.h.b16 %v7873
        %v8997 = vunpack.c.l.b16 %v7874
        %v8998 = vunpack.c.h.b16 %v7874
        %v8999 = vunpack.c.l.b16 %v7875
        %v9000 = vunpack.c.h.b16 %v7875
        %v9001 = vunpack.c.l.b16 %v7876
        %v9002 = vunpack.c.h.b16 %v7876
        %v9003 = vunpack.c.l.b16 %v7877
        %v9004 = vunpack.c.h.b16 %v7877
        %v9005 = vunpack.c.l.b16 %v7878
        %v9006 = vunpack.c.h.b16 %v7878
        %v9007 = vunpack.c.l.b16 %v7879
        %v9008 = vunpack.c.h.b16 %v7879
        %v9009 = vunpack.c.l.b16 %v7880
        %v9010 = vunpack.c.h.b16 %v7880
        %v9011 = vunpack.c.l.b16 %v7881
        %v9012 = vunpack.c.h.b16 %v7881
        %v9013 = vunpack.c.l.b16 %v7882
        %v9014 = vunpack.c.h.b16 %v7882
        %v9015 = vunpack.c.l.b16 %v7883
        %v9016 = vunpack.c.h.b16 %v7883
        %v9017 = vunpack.c.l.b16 %v7884
        %v9018 = vunpack.c.h.b16 %v7884
        %v9019 = vunpack.c.l.b16 %v7885
        %v9020 = vunpack.c.h.b16 %v7885
        %v9021 = vunpack.c.l.b16 %v7886
        %v9022 = vunpack.c.h.b16 %v7886
        %v9023 = vunpack.c.l.b16 %v7887
        %v9024 = vunpack.c.h.b16 %v7887
        %v9025 = vunpack.c.l.b16 %v7888
        %v9026 = vunpack.c.h.b16 %v7888
        %v9027 = vunpack.c.l.b16 %v7889
        %v9028 = vunpack.c.h.b16 %v7889
        %v9029 = vunpack.c.l.b16 %v7890
        %v9030 = vunpack.c.h.b16 %v7890
        %v9031 = vunpack.c.l.b16 %v7891
        %v9032 = vunpack.c.h.b16 %v7891
        %v9033 = vunpack.c.l.b16 %v7892
        %v9034 = vunpack.c.h.b16 %v7892
        %v9035 = vunpack.c.l.b16 %v7893
        %v9036 = vunpack.c.h.b16 %v7893
        %v9037 = vunpack.c.l.b16 %v7894
        %v9038 = vunpack.c.h.b16 %v7894
        %v9039 = vunpack.c.l.b16 %v7895
        %v9040 = vunpack.c.h.b16 %v7895
        %v9041 = vunpack.c.l.b16 %v7896
        %v9042 = vunpack.c.h.b16 %v7896
        %v9043 = vunpack.c.l.b16 %v7897
        %v9044 = vunpack.c.h.b16 %v7897
        %v9045 = vunpack.c.l.b16 %v7898
        %v9046 = vunpack.c.h.b16 %v7898
        %v9047 = vunpack.c.l.b16 %v7899
        %v9048 = vunpack.c.h.b16 %v7899
        %v9049 = vunpack.c.l.b16 %v7900
        %v9050 = vunpack.c.h.b16 %v7900
        %v9051 = vunpack.c.l.b16 %v7901
        %v9052 = vunpack.c.h.b16 %v7901
        %v9053 = vunpack.c.l.b16 %v7902
        %v9054 = vunpack.c.h.b16 %v7902
        %v9055 = vunpack.c.l.b16 %v7903
        %v9056 = vunpack.c.h.b16 %v7903
        %v9057 = vunpack.c.l.b16 %v7904
        %v9058 = vunpack.c.h.b16 %v7904
        %v9059 = vunpack.c.l.b16 %v7905
        %v9060 = vunpack.c.h.b16 %v7905
        %v9061 = vunpack.c.l.b16 %v7906
        %v9062 = vunpack.c.h.b16 %v7906
        %v9063 = vunpack.c.l.b16 %v7907
        %v9064 = vunpack.c.h.b16 %v7907
        %v9065 = vunpack.c.l.b16 %v7908
        %v9066 = vunpack.c.h.b16 %v7908
        %v9067 = vunpack.c.l.b16 %v7909
        %v9068 = vunpack.c.h.b16 %v7909
        %v9069 = vunpack.c.l.b16 %v7910
        %v9070 = vunpack.c.h.b16 %v7910
        %v9071 = vunpack.c.l.b16 %v7911
        %v9072 = vunpack.c.h.b16 %v7911
        %v9073 = vunpack.c.l.b16 %v7912
        %v9074 = vunpack.c.h.b16 %v7912
        %v9075 = vunpack.c.l.b16 %v7913
        %v9076 = vunpack.c.h.b16 %v7913
        %v9077 = vunpack.c.l.b16 %v7914
        %v9078 = vunpack.c.h.b16 %v7914
        %v9079 = vunpack.c.l.b16 %v7915
        %v9080 = vunpack.c.h.b16 %v7915
        %v9081 = vunpack.c.l.b16 %v7916
        %v9082 = vunpack.c.h.b16 %v7916
        %v9083 = vunpack.c.l.b16 %v7917
        %v9084 = vunpack.c.h.b16 %v7917
        %v9085 = vunpack.c.l.b16 %v7918
        %v9086 = vunpack.c.h.b16 %v7918
        %v9087 = vunpack.c.l.b16 %v7919
        %v9088 = vunpack.c.h.b16 %v7919
        %v9089 = vunpack.c.l.b16 %v7920
        %v9090 = vunpack.c.h.b16 %v7920
        %v9091 = vunpack.c.l.b16 %v7921
        %v9092 = vunpack.c.h.b16 %v7921
        %v9093 = vunpack.c.l.b16 %v7922
        %v9094 = vunpack.c.h.b16 %v7922
        %v9095 = vunpack.c.l.b16 %v7923
        %v9096 = vunpack.c.h.b16 %v7923
        %v9097 = vunpack.c.l.b16 %v7924
        %v9098 = vunpack.c.h.b16 %v7924
        %v9099 = vpack.c.b16 %v8335, %v8331
        %v9100 = vpack.c.b16 %v8336, %v8332
        %v9101 = vpack.c.b16 %v8337, %v8333
        %v9102 = vpack.c.b16 %v8338, %v8334
        %v9103 = vpack.c.b16 %v8343, %v8339
        %v9104 = vpack.c.b16 %v8344, %v8340
        %v9105 = vpack.c.b16 %v8345, %v8341
        %v9106 = vpack.c.b16 %v8346, %v8342
        %v9107 = vpack.c.b16 %v8351, %v8347
        %v9108 = vpack.c.b16 %v8352, %v8348
        %v9109 = vpack.c.b16 %v8353, %v8349
        %v9110 = vpack.c.b16 %v8354, %v8350
        %v9111 = vpack.c.b16 %v8359, %v8355
        %v9112 = vpack.c.b16 %v8360, %v8356
        %v9113 = vpack.c.b16 %v8361, %v8357
        %v9114 = vpack.c.b16 %v8362, %v8358
        %v9115 = vpack.c.b16 %v8367, %v8363
        %v9116 = vpack.c.b16 %v8368, %v8364
        %v9117 = vpack.c.b16 %v8369, %v8365
        %v9118 = vpack.c.b16 %v8370, %v8366
        %v9119 = vpack.c.b16 %v8375, %v8371
        %v9120 = vpack.c.b16 %v8376, %v8372
        %v9121 = vpack.c.b16 %v8377, %v8373
        %v9122 = vpack.c.b16 %v8378, %v8374
        %v9123 = vpack.c.b16 %v8383, %v8379
        %v9124 = vpack.c.b16 %v8384, %v8380
        %v9125 = vpack.c.b16 %v8385, %v8381
        %v9126 = vpack.c.b16 %v8386, %v8382
        %v9127 = vpack.c.b16 %v8391, %v8387
        %v9128 = vpack.c.b16 %v8392, %v8388
        %v9129 = vpack.c.b16 %v8393, %v8389
        %v9130 = vpack.c.b16 %v8394, %v8390
        %v9131 = vpack.c.b16 %v8399, %v8395
        %v9132 = vpack.c.b16 %v8400, %v8396
        %v9133 = vpack.c.b16 %v8401, %v8397
        %v9134 = vpack.c.b16 %v8402, %v8398
        %v9135 = vpack.c.b16 %v8407, %v8403
        %v9136 = vpack.c.b16 %v8408, %v8404
        %v9137 = vpack.c.b16 %v8409, %v8405
        %v9138 = vpack.c.b16 %v8410, %v8406
        %v9139 = vpack.c.b16 %v8415, %v8411
        %v9140 = vpack.c.b16 %v8416, %v8412
        %v9141 = vpack.c.b16 %v8417, %v8413
        %v9142 = vpack.c.b16 %v8418, %v8414
        %v9143 = vpack.c.b16 %v8423, %v8419
        %v9144 = vpack.c.b16 %v8424, %v8420
        %v9145 = vpack.c.b16 %v8425, %v8421
        %v9146 = vpack.c.b16 %v8426, %v8422
        %v9147 = vpack.c.b16 %v8431, %v8427
        %v9148 = vpack.c.b16 %v8432, %v8428
        %v9149 = vpack.c.b16 %v8433, %v8429
        %v9150 = vpack.c.b16 %v8434, %v8430
        %v9151 = vpack.c.b16 %v8439, %v8435
        %v9152 = vpack.c.b16 %v8440, %v8436
        %v9153 = vpack.c.b16 %v8441, %v8437
        %v9154 = vpack.c.b16 %v8442, %v8438
        %v9155 = vpack.c.b16 %v8447, %v8443
        %v9156 = vpack.c.b16 %v8448, %v8444
        %v9157 = vpack.c.b16 %v8449, %v8445
        %v9158 = vpack.c.b16 %v8450, %v8446
        %v9159 = vpack.c.b16 %v8455, %v8451
        %v9160 = vpack.c.b16 %v8456, %v8452
        %v9161 = vpack.c.b16 %v8457, %v8453
        %v9162 = vpack.c.b16 %v8458, %v8454
        %v9163 = vpack.c.b16 %v8463, %v8459
        %v9164 = vpack.c.b16 %v8464, %v8460
        %v9165 = vpack.c.b16 %v8465, %v8461
        %v9166 = vpack.c.b16 %v8466, %v8462
        %v9167 = vpack.c.b16 %v8471, %v8467
        %v9168 = vpack.c.b16 %v8472, %v8468
        %v9169 = vpack.c.b16 %v8473, %v8469
        %v9170 = vpack.c.b16 %v8474, %v8470
        %v9171 = vpack.c.b16 %v8479, %v8475
        %v9172 = vpack.c.b16 %v8480, %v8476
        %v9173 = vpack.c.b16 %v8481, %v8477
        %v9174 = vpack.c.b16 %v8482, %v8478
        %v9175 = vpack.c.b16 %v8487, %v8483
        %v9176 = vpack.c.b16 %v8488, %v8484
        %v9177 = vpack.c.b16 %v8489, %v8485
        %v9178 = vpack.c.b16 %v8490, %v8486
        %v9179 = vpack.c.b16 %v8495, %v8491
        %v9180 = vpack.c.b16 %v8496, %v8492
        %v9181 = vpack.c.b16 %v8497, %v8493
        %v9182 = vpack.c.b16 %v8498, %v8494
        %v9183 = vpack.c.b16 %v8503, %v8499
        %v9184 = vpack.c.b16 %v8504, %v8500
        %v9185 = vpack.c.b16 %v8505, %v8501
        %v9186 = vpack.c.b16 %v8506, %v8502
        %v9187 = vpack.c.b16 %v8511, %v8507
        %v9188 = vpack.c.b16 %v8512, %v8508
        %v9189 = vpack.c.b16 %v8513, %v8509
        %v9190 = vpack.c.b16 %v8514, %v8510
        %v9191 = vpack.c.b16 %v8519, %v8515
        %v9192 = vpack.c.b16 %v8520, %v8516
        %v9193 = vpack.c.b16 %v8521, %v8517
        %v9194 = vpack.c.b16 %v8522, %v8518
        %v9195 = vpack.c.b16 %v8527, %v8523
        %v9196 = vpack.c.b16 %v8528, %v8524
        %v9197 = vpack.c.b16 %v8529, %v8525
        %v9198 = vpack.c.b16 %v8530, %v8526
        %v9199 = vpack.c.b16 %v8535, %v8531
        %v9200 = vpack.c.b16 %v8536, %v8532
        %v9201 = vpack.c.b16 %v8537, %v8533
        %v9202 = vpack.c.b16 %v8538, %v8534
        %v9203 = vpack.c.b16 %v8543, %v8539
        %v9204 = vpack.c.b16 %v8544, %v8540
        %v9205 = vpack.c.b16 %v8545, %v8541
        %v9206 = vpack.c.b16 %v8546, %v8542
        %v9207 = vpack.c.b16 %v8551, %v8547
        %v9208 = vpack.c.b16 %v8552, %v8548
        %v9209 = vpack.c.b16 %v8553, %v8549
        %v9210 = vpack.c.b16 %v8554, %v8550
        %v9211 = vpack.c.b16 %v8559, %v8555
        %v9212 = vpack.c.b16 %v8560, %v8556
        %v9213 = vpack.c.b16 %v8561, %v8557
        %v9214 = vpack.c.b16 %v8562, %v8558
        %v9215 = vpack.c.b16 %v8567, %v8563
        %v9216 = vpack.c.b16 %v8568, %v8564
        %v9217 = vpack.c.b16 %v8569, %v8565
        %v9218 = vpack.c.b16 %v8570, %v8566
        %v9219 = vpack.c.b16 %v8575, %v8571
        %v9220 = vpack.c.b16 %v8576, %v8572
        %v9221 = vpack.c.b16 %v8577, %v8573
        %v9222 = vpack.c.b16 %v8578, %v8574
        %v9223 = vpack.c.b16 %v8583, %v8579
        %v9224 = vpack.c.b16 %v8584, %v8580
        %v9225 = vpack.c.b16 %v8585, %v8581
        %v9226 = vpack.c.b16 %v8586, %v8582
        %v9227 = vpack.c.b16 %v8591, %v8587
        %v9228 = vpack.c.b16 %v8592, %v8588
        %v9229 = vpack.c.b16 %v8593, %v8589
        %v9230 = vpack.c.b16 %v8594, %v8590
        %v9231 = vpack.c.b16 %v8599, %v8595
        %v9232 = vpack.c.b16 %v8600, %v8596
        %v9233 = vpack.c.b16 %v8601, %v8597
        %v9234 = vpack.c.b16 %v8602, %v8598
        %v9235 = vpack.c.b16 %v8607, %v8603
        %v9236 = vpack.c.b16 %v8608, %v8604
        %v9237 = vpack.c.b16 %v8609, %v8605
        %v9238 = vpack.c.b16 %v8610, %v8606
        %v9239 = vpack.c.b16 %v8615, %v8611
        %v9240 = vpack.c.b16 %v8616, %v8612
        %v9241 = vpack.c.b16 %v8617, %v8613
        %v9242 = vpack.c.b16 %v8618, %v8614
        %v9243 = vpack.c.b16 %v8623, %v8619
        %v9244 = vpack.c.b16 %v8624, %v8620
        %v9245 = vpack.c.b16 %v8625, %v8621
        %v9246 = vpack.c.b16 %v8626, %v8622
        %v9247 = vpack.c.b16 %v8631, %v8627
        %v9248 = vpack.c.b16 %v8632, %v8628
        %v9249 = vpack.c.b16 %v8633, %v8629
        %v9250 = vpack.c.b16 %v8634, %v8630
        %v9251 = vpack.c.b16 %v8639, %v8635
        %v9252 = vpack.c.b16 %v8640, %v8636
        %v9253 = vpack.c.b16 %v8641, %v8637
        %v9254 = vpack.c.b16 %v8642, %v8638
        %v9255 = vpack.c.b16 %v8647, %v8643
        %v9256 = vpack.c.b16 %v8648, %v8644
        %v9257 = vpack.c.b16 %v8649, %v8645
        %v9258 = vpack.c.b16 %v8650, %v8646
        %v9259 = vpack.c.b16 %v8655, %v8651
        %v9260 = vpack.c.b16 %v8656, %v8652
        %v9261 = vpack.c.b16 %v8657, %v8653
        %v9262 = vpack.c.b16 %v8658, %v8654
        %v9263 = vpack.c.b16 %v8663, %v8659
        %v9264 = vpack.c.b16 %v8664, %v8660
        %v9265 = vpack.c.b16 %v8665, %v8661
        %v9266 = vpack.c.b16 %v8666, %v8662
        %v9267 = vpack.c.b16 %v8671, %v8667
        %v9268 = vpack.c.b16 %v8672, %v8668
        %v9269 = vpack.c.b16 %v8673, %v8669
        %v9270 = vpack.c.b16 %v8674, %v8670
        %v9271 = vpack.c.b16 %v8679, %v8675
        %v9272 = vpack.c.b16 %v8680, %v8676
        %v9273 = vpack.c.b16 %v8681, %v8677
        %v9274 = vpack.c.b16 %v8682, %v8678
        %v9275 = vpack.c.b16 %v8687, %v8683
        %v9276 = vpack.c.b16 %v8688, %v8684
        %v9277 = vpack.c.b16 %v8689, %v8685
        %v9278 = vpack.c.b16 %v8690, %v8686
        %v9279 = vpack.c.b16 %v8695, %v8691
        %v9280 = vpack.c.b16 %v8696, %v8692
        %v9281 = vpack.c.b16 %v8697, %v8693
        %v9282 = vpack.c.b16 %v8698, %v8694
        %v9283 = vpack.c.b16 %v8703, %v8699
        %v9284 = vpack.c.b16 %v8704, %v8700
        %v9285 = vpack.c.b16 %v8705, %v8701
        %v9286 = vpack.c.b16 %v8706, %v8702
        %v9287 = vpack.c.b16 %v8711, %v8707
        %v9288 = vpack.c.b16 %v8712, %v8708
        %v9289 = vpack.c.b16 %v8713, %v8709
        %v9290 = vpack.c.b16 %v8714, %v8710
        %v9291 = vpack.c.b16 %v8719, %v8715
        %v9292 = vpack.c.b16 %v8720, %v8716
        %v9293 = vpack.c.b16 %v8721, %v8717
        %v9294 = vpack.c.b16 %v8722, %v8718
        %v9295 = vpack.c.b16 %v8727, %v8723
        %v9296 = vpack.c.b16 %v8728, %v8724
        %v9297 = vpack.c.b16 %v8729, %v8725
        %v9298 = vpack.c.b16 %v8730, %v8726
        %v9299 = vpack.c.b16 %v8735, %v8731
        %v9300 = vpack.c.b16 %v8736, %v8732
        %v9301 = vpack.c.b16 %v8737, %v8733
        %v9302 = vpack.c.b16 %v8738, %v8734
        %v9303 = vpack.c.b16 %v8743, %v8739
        %v9304 = vpack.c.b16 %v8744, %v8740
        %v9305 = vpack.c.b16 %v8745, %v8741
        %v9306 = vpack.c.b16 %v8746, %v8742
        %v9307 = vpack.c.b16 %v8751, %v8747
        %v9308 = vpack.c.b16 %v8752, %v8748
        %v9309 = vpack.c.b16 %v8753, %v8749
        %v9310 = vpack.c.b16 %v8754, %v8750
        %v9311 = vpack.c.b16 %v8759, %v8755
        %v9312 = vpack.c.b16 %v8760, %v8756
        %v9313 = vpack.c.b16 %v8761, %v8757
        %v9314 = vpack.c.b16 %v8762, %v8758
        %v9315 = vpack.c.b16 %v8767, %v8763
        %v9316 = vpack.c.b16 %v8768, %v8764
        %v9317 = vpack.c.b16 %v8769, %v8765
        %v9318 = vpack.c.b16 %v8770, %v8766
        %v9319 = vpack.c.b16 %v8775, %v8771
        %v9320 = vpack.c.b16 %v8776, %v8772
        %v9321 = vpack.c.b16 %v8777, %v8773
        %v9322 = vpack.c.b16 %v8778, %v8774
        %v9323 = vpack.c.b16 %v8783, %v8779
        %v9324 = vpack.c.b16 %v8784, %v8780
        %v9325 = vpack.c.b16 %v8785, %v8781
        %v9326 = vpack.c.b16 %v8786, %v8782
        %v9327 = vpack.c.b16 %v8791, %v8787
        %v9328 = vpack.c.b16 %v8792, %v8788
        %v9329 = vpack.c.b16 %v8793, %v8789
        %v9330 = vpack.c.b16 %v8794, %v8790
        %v9331 = vpack.c.b16 %v8799, %v8795
        %v9332 = vpack.c.b16 %v8800, %v8796
        %v9333 = vpack.c.b16 %v8801, %v8797
        %v9334 = vpack.c.b16 %v8802, %v8798
        %v9335 = vpack.c.b16 %v8807, %v8803
        %v9336 = vpack.c.b16 %v8808, %v8804
        %v9337 = vpack.c.b16 %v8809, %v8805
        %v9338 = vpack.c.b16 %v8810, %v8806
        %v9339 = vpack.c.b16 %v8815, %v8811
        %v9340 = vpack.c.b16 %v8816, %v8812
        %v9341 = vpack.c.b16 %v8817, %v8813
        %v9342 = vpack.c.b16 %v8818, %v8814
        %v9343 = vpack.c.b16 %v8823, %v8819
        %v9344 = vpack.c.b16 %v8824, %v8820
        %v9345 = vpack.c.b16 %v8825, %v8821
        %v9346 = vpack.c.b16 %v8826, %v8822
        %v9347 = vpack.c.b16 %v8831, %v8827
        %v9348 = vpack.c.b16 %v8832, %v8828
        %v9349 = vpack.c.b16 %v8833, %v8829
        %v9350 = vpack.c.b16 %v8834, %v8830
        %v9351 = vpack.c.b16 %v8839, %v8835
        %v9352 = vpack.c.b16 %v8840, %v8836
        %v9353 = vpack.c.b16 %v8841, %v8837
        %v9354 = vpack.c.b16 %v8842, %v8838
        %v9355 = vpack.c.b16 %v8847, %v8843
        %v9356 = vpack.c.b16 %v8848, %v8844
        %v9357 = vpack.c.b16 %v8849, %v8845
        %v9358 = vpack.c.b16 %v8850, %v8846
        %v9359 = vpack.c.b16 %v8855, %v8851
        %v9360 = vpack.c.b16 %v8856, %v8852
        %v9361 = vpack.c.b16 %v8857, %v8853
        %v9362 = vpack.c.b16 %v8858, %v8854
        %v9363 = vpack.c.b16 %v8863, %v8859
        %v9364 = vpack.c.b16 %v8864, %v8860
        %v9365 = vpack.c.b16 %v8865, %v8861
        %v9366 = vpack.c.b16 %v8866, %v8862
        %v9367 = vpack.c.b16 %v8871, %v8867
        %v9368 = vpack.c.b16 %v8872, %v8868
        %v9369 = vpack.c.b16 %v8873, %v8869
        %v9370 = vpack.c.b16 %v8874, %v8870
        %v9371 = vpack.c.b16 %v8879, %v8875
        %v9372 = vpack.c.b16 %v8880, %v8876
        %v9373 = vpack.c.b16 %v8881, %v8877
        %v9374 = vpack.c.b16 %v8882, %v8878
        %v9375 = vpack.c.b16 %v8887, %v8883
        %v9376 = vpack.c.b16 %v8888, %v8884
        %v9377 = vpack.c.b16 %v8889, %v8885
        %v9378 = vpack.c.b16 %v8890, %v8886
        %v9379 = vpack.c.b16 %v8895, %v8891
        %v9380 = vpack.c.b16 %v8896, %v8892
        %v9381 = vpack.c.b16 %v8897, %v8893
        %v9382 = vpack.c.b16 %v8898, %v8894
        %v9383 = vpack.c.b16 %v8903, %v8899
        %v9384 = vpack.c.b16 %v8904, %v8900
        %v9385 = vpack.c.b16 %v8905, %v8901
        %v9386 = vpack.c.b16 %v8906, %v8902
        %v9387 = vpack.c.b16 %v8911, %v8907
        %v9388 = vpack.c.b16 %v8912, %v8908
        %v9389 = vpack.c.b16 %v8913, %v8909
        %v9390 = vpack.c.b16 %v8914, %v8910
        %v9391 = vpack.c.b16 %v8919, %v8915
        %v9392 = vpack.c.b16 %v8920, %v8916
        %v9393 = vpack.c.b16 %v8921, %v8917
        %v9394 = vpack.c.b16 %v8922, %v8918
        %v9395 = vpack.c.b16 %v8927, %v8923
        %v9396 = vpack.c.b16 %v8928, %v8924
        %v9397 = vpack.c.b16 %v8929, %v8925
        %v9398 = vpack.c.b16 %v8930, %v8926
        %v9399 = vpack.c.b16 %v8935, %v8931
        %v9400 = vpack.c.b16 %v8936, %v8932
        %v9401 = vpack.c.b16 %v8937, %v8933
        %v9402 = vpack.c.b16 %v8938, %v8934
        %v9403 = vpack.c.b16 %v8943, %v8939
        %v9404 = vpack.c.b16 %v8944, %v8940
        %v9405 = vpack.c.b16 %v8945, %v8941
        %v9406 = vpack.c.b16 %v8946, %v8942
        %v9407 = vpack.c.b16 %v8951, %v8947
        %v9408 = vpack.c.b16 %v8952, %v8948
        %v9409 = vpack.c.b16 %v8953, %v8949
        %v9410 = vpack.c.b16 %v8954, %v8950
        %v9411 = vpack.c.b16 %v8959, %v8955
        %v9412 = vpack.c.b16 %v8960, %v8956
        %v9413 = vpack.c.b16 %v8961, %v8957
        %v9414 = vpack.c.b16 %v8962, %v8958
        %v9415 = vpack.c.b16 %v8967, %v8963
        %v9416 = vpack.c.b16 %v8968, %v8964
        %v9417 = vpack.c.b16 %v8969, %v8965
        %v9418 = vpack.c.b16 %v8970, %v8966
        %v9419 = vpack.c.b16 %v8975, %v8971
        %v9420 = vpack.c.b16 %v8976, %v8972
        %v9421 = vpack.c.b16 %v8977, %v8973
        %v9422 = vpack.c.b16 %v8978, %v8974
        %v9423 = vpack.c.b16 %v8983, %v8979
        %v9424 = vpack.c.b16 %v8984, %v8980
        %v9425 = vpack.c.b16 %v8985, %v8981
        %v9426 = vpack.c.b16 %v8986, %v8982
        %v9427 = vpack.c.b16 %v8991, %v8987
        %v9428 = vpack.c.b16 %v8992, %v8988
        %v9429 = vpack.c.b16 %v8993, %v8989
        %v9430 = vpack.c.b16 %v8994, %v8990
        %v9431 = vpack.c.b16 %v8999, %v8995
        %v9432 = vpack.c.b16 %v9000, %v8996
        %v9433 = vpack.c.b16 %v9001, %v8997
        %v9434 = vpack.c.b16 %v9002, %v8998
        %v9435 = vpack.c.b16 %v9007, %v9003
        %v9436 = vpack.c.b16 %v9008, %v9004
        %v9437 = vpack.c.b16 %v9009, %v9005
        %v9438 = vpack.c.b16 %v9010, %v9006
        %v9439 = vpack.c.b16 %v9015, %v9011
        %v9440 = vpack.c.b16 %v9016, %v9012
        %v9441 = vpack.c.b16 %v9017, %v9013
        %v9442 = vpack.c.b16 %v9018, %v9014
        %v9443 = vpack.c.b16 %v9023, %v9019
        %v9444 = vpack.c.b16 %v9024, %v9020
        %v9445 = vpack.c.b16 %v9025, %v9021
        %v9446 = vpack.c.b16 %v9026, %v9022
        %v9447 = vpack.c.b16 %v9031, %v9027
        %v9448 = vpack.c.b16 %v9032, %v9028
        %v9449 = vpack.c.b16 %v9033, %v9029
        %v9450 = vpack.c.b16 %v9034, %v9030
        %v9451 = vpack.c.b16 %v9039, %v9035
        %v9452 = vpack.c.b16 %v9040, %v9036
        %v9453 = vpack.c.b16 %v9041, %v9037
        %v9454 = vpack.c.b16 %v9042, %v9038
        %v9455 = vpack.c.b16 %v9047, %v9043
        %v9456 = vpack.c.b16 %v9048, %v9044
        %v9457 = vpack.c.b16 %v9049, %v9045
        %v9458 = vpack.c.b16 %v9050, %v9046
        %v9459 = vpack.c.b16 %v9055, %v9051
        %v9460 = vpack.c.b16 %v9056, %v9052
        %v9461 = vpack.c.b16 %v9057, %v9053
        %v9462 = vpack.c.b16 %v9058, %v9054
        %v9463 = vpack.c.b16 %v9063, %v9059
        %v9464 = vpack.c.b16 %v9064, %v9060
        %v9465 = vpack.c.b16 %v9065, %v9061
        %v9466 = vpack.c.b16 %v9066, %v9062
        %v9467 = vpack.c.b16 %v9071, %v9067
        %v9468 = vpack.c.b16 %v9072, %v9068
        %v9469 = vpack.c.b16 %v9073, %v9069
        %v9470 = vpack.c.b16 %v9074, %v9070
        %v9471 = vpack.c.b16 %v9079, %v9075
        %v9472 = vpack.c.b16 %v9080, %v9076
        %v9473 = vpack.c.b16 %v9081, %v9077
        %v9474 = vpack.c.b16 %v9082, %v9078
        %v9475 = vpack.c.b16 %v9087, %v9083
        %v9476 = vpack.c.b16 %v9088, %v9084
        %v9477 = vpack.c.b16 %v9089, %v9085
        %v9478 = vpack.c.b16 %v9090, %v9086
        %v9479 = vpack.c.b16 %v9095, %v9091
        %v9480 = vpack.c.b16 %v9096, %v9092
        %v9481 = vpack.c.b16 %v9097, %v9093
        %v9482 = vpack.c.b16 %v9098, %v9094
        %9867 = vmatprep.subr.bf16.mxu0 %v9100
        %9868 = vmatpush1.bf16.msra.mxu0 %v9099
        %9869 = vmatprep.subr.bf16.mxu0 %v9104
        %9870 = vmatpush1.bf16.msra.mxu0 %v9103
        %9871 = vmatprep.subr.bf16.mxu0 %v9108
        %9872 = vmatpush1.bf16.msra.mxu0 %v9107
        %9873 = vmatprep.subr.bf16.mxu0 %v9112
        %9874 = vmatpush1.bf16.msra.mxu0 %v9111
        %9875 = vmatprep.subr.bf16.mxu0 %v9116
        %9876 = vmatpush1.bf16.msra.mxu0 %v9115
        %9877 = vmatprep.subr.bf16.mxu0 %v9120
        %9878 = vmatpush1.bf16.msra.mxu0 %v9119
        %9879 = vmatprep.subr.bf16.mxu0 %v9124
        %9880 = vmatpush1.bf16.msra.mxu0 %v9123
        %9881 = vmatprep.subr.bf16.mxu0 %v9128
        %9882 = vmatpush1.bf16.msra.mxu0 %v9127
        %9883 = vmatprep.subr.bf16.mxu0 %v9132
        %9884 = vmatpush1.bf16.msra.mxu0 %v9131
        %9885 = vmatprep.subr.bf16.mxu0 %v9136
        %9886 = vmatpush1.bf16.msra.mxu0 %v9135
        %9887 = vmatprep.subr.bf16.mxu0 %v9140
        %9888 = vmatpush1.bf16.msra.mxu0 %v9139
        %9889 = vmatprep.subr.bf16.mxu0 %v9144
        %9890 = vmatpush1.bf16.msra.mxu0 %v9143
        %9891 = vmatprep.subr.bf16.mxu0 %v9148
        %9892 = vmatpush1.bf16.msra.mxu0 %v9147
        %9893 = vmatprep.subr.bf16.mxu0 %v9152
        %9894 = vmatpush1.bf16.msra.mxu0 %v9151
        %9895 = vmatprep.subr.bf16.mxu0 %v9156
        %9896 = vmatpush1.bf16.msra.mxu0 %v9155
        %9897 = vmatprep.subr.bf16.mxu0 %v9160
        %9898 = vmatpush1.bf16.msra.mxu0 %v9159
        %9899 = vmatprep.mubr.bf16.mxu0 %v7449
        %9900 = vmatmul.mubr.bf16.gmra.mrb[0].mxu0 %v7448
        %v9901 = vpop.f32.mrb[0].mxu0
        %v9902 = vadd.f32 %v7930, %v9901
        %v9903 = vpop.f32.mrb[0].mxu0
        %v9904 = vadd.f32 %v7934, %v9903
        %v9905 = vpop.f32.mrb[0].mxu0
        %v9906 = vpop.f32.mrb[0].mxu0
        %9907 = vdwg.mxu0
        %9908 = vmatprep.subr.bf16.mxu0 %v9164
        %9909 = vmatpush1.bf16.msra.mxu0 %v9163
        %9910 = vmatprep.subr.bf16.mxu0 %v9168
        %9911 = vmatpush1.bf16.msra.mxu0 %v9167
        %9912 = vmatprep.subr.bf16.mxu0 %v9172
        %9913 = vmatpush1.bf16.msra.mxu0 %v9171
        %9914 = vmatprep.subr.bf16.mxu0 %v9176
        %9915 = vmatpush1.bf16.msra.mxu0 %v9175
        %9916 = vmatprep.subr.bf16.mxu0 %v9180
        %9917 = vmatpush1.bf16.msra.mxu0 %v9179
        %9918 = vmatprep.subr.bf16.mxu0 %v9184
        %9919 = vmatpush1.bf16.msra.mxu0 %v9183
        %9920 = vmatprep.subr.bf16.mxu0 %v9188
        %9921 = vmatpush1.bf16.msra.mxu0 %v9187
        %9922 = vmatprep.subr.bf16.mxu0 %v9192
        %9923 = vmatpush1.bf16.msra.mxu0 %v9191
        %9924 = vmatprep.subr.bf16.mxu0 %v9196
        %9925 = vmatpush1.bf16.msra.mxu0 %v9195
        %9926 = vmatprep.subr.bf16.mxu0 %v9200
        %9927 = vmatpush1.bf16.msra.mxu0 %v9199
        %9928 = vmatprep.subr.bf16.mxu0 %v9204
        %9929 = vmatpush1.bf16.msra.mxu0 %v9203
        %9930 = vmatprep.subr.bf16.mxu0 %v9208
        %9931 = vmatpush1.bf16.msra.mxu0 %v9207
        %9932 = vmatprep.subr.bf16.mxu0 %v9212
        %9933 = vmatpush1.bf16.msra.mxu0 %v9211
        %9934 = vmatprep.subr.bf16.mxu0 %v9216
        %9935 = vmatpush1.bf16.msra.mxu0 %v9215
        %9936 = vmatprep.subr.bf16.mxu0 %v9220
        %9937 = vmatpush1.bf16.msra.mxu0 %v9219
        %9938 = vmatprep.subr.bf16.mxu0 %v9224
        %9939 = vmatpush1.bf16.msra.mxu0 %v9223
        %9940 = vmatprep.mubr.bf16.mxu0 %v7451
        %9941 = vmatmul.mubr.bf16.gmra.mrb[0].mxu0 %v7450
        %v9942 = vpop.f32.mrb[0].mxu0
        %v9943 = vadd.f32 %v9902, %v9942
        %v9944 = vpop.f32.mrb[0].mxu0
        %v9945 = vadd.f32 %v9904, %v9944
        %v9946 = vpop.f32.mrb[0].mxu0
        %v9947 = vpop.f32.mrb[0].mxu0
        %9948 = vdwg.mxu0
        %9949 = vmatprep.subr.bf16.mxu0 %v9228
        %9950 = vmatpush1.bf16.msra.mxu0 %v9227
        %9951 = vmatprep.subr.bf16.mxu0 %v9232
        %9952 = vmatpush1.bf16.msra.mxu0 %v9231
        %9953 = vmatprep.subr.bf16.mxu0 %v9236
        %9954 = vmatpush1.bf16.msra.mxu0 %v9235
        %9955 = vmatprep.subr.bf16.mxu0 %v9240
        %9956 = vmatpush1.bf16.msra.mxu0 %v9239
        %9957 = vmatprep.subr.bf16.mxu0 %v9244
        %9958 = vmatpush1.bf16.msra.mxu0 %v9243
        %9959 = vmatprep.subr.bf16.mxu0 %v9248
        %9960 = vmatpush1.bf16.msra.mxu0 %v9247
        %9961 = vmatprep.subr.bf16.mxu0 %v9252
        %9962 = vmatpush1.bf16.msra.mxu0 %v9251
        %9963 = vmatprep.subr.bf16.mxu0 %v9256
        %9964 = vmatpush1.bf16.msra.mxu0 %v9255
        %9965 = vmatprep.subr.bf16.mxu0 %v9260
        %9966 = vmatpush1.bf16.msra.mxu0 %v9259
        %9967 = vmatprep.subr.bf16.mxu0 %v9264
        %9968 = vmatpush1.bf16.msra.mxu0 %v9263
        %9969 = vmatprep.subr.bf16.mxu0 %v9268
        %9970 = vmatpush1.bf16.msra.mxu0 %v9267
        %9971 = vmatprep.subr.bf16.mxu0 %v9272
        %9972 = vmatpush1.bf16.msra.mxu0 %v9271
        %9973 = vmatprep.subr.bf16.mxu0 %v9276
        %9974 = vmatpush1.bf16.msra.mxu0 %v9275
        %9975 = vmatprep.subr.bf16.mxu0 %v9280
        %9976 = vmatpush1.bf16.msra.mxu0 %v9279
        %9977 = vmatprep.subr.bf16.mxu0 %v9284
        %9978 = vmatpush1.bf16.msra.mxu0 %v9283
        %9979 = vmatprep.subr.bf16.mxu0 %v9288
        %9980 = vmatpush1.bf16.msra.mxu0 %v9287
        %9981 = vmatprep.mubr.bf16.mxu0 %v6809
        %9982 = vmatmul.mubr.bf16.gmra.mrb[0].mxu0 %v6808
        %v9983 = vpop.f32.mrb[0].mxu0
        %v9984 = vadd.f32 %v9943, %v9983
        %v9985 = vpop.f32.mrb[0].mxu0
        %v9986 = vadd.f32 %v9945, %v9985
        %v9987 = vpop.f32.mrb[0].mxu0
        %v9988 = vpop.f32.mrb[0].mxu0
        %9989 = vdwg.mxu0
        %9990 = vmatprep.subr.bf16.mxu0 %v9292
        %9991 = vmatpush1.bf16.msra.mxu0 %v9291
        %9992 = vmatprep.subr.bf16.mxu0 %v9296
        %9993 = vmatpush1.bf16.msra.mxu0 %v9295
        %9994 = vmatprep.subr.bf16.mxu0 %v9300
        %9995 = vmatpush1.bf16.msra.mxu0 %v9299
        %9996 = vmatprep.subr.bf16.mxu0 %v9304
        %9997 = vmatpush1.bf16.msra.mxu0 %v9303
        %9998 = vmatprep.subr.bf16.mxu0 %v9308
        %9999 = vmatpush1.bf16.msra.mxu0 %v9307
        %10000 = vmatprep.subr.bf16.mxu0 %v9312
        %10001 = vmatpush1.bf16.msra.mxu0 %v9311
        %10002 = vmatprep.subr.bf16.mxu0 %v9316
        %10003 = vmatpush1.bf16.msra.mxu0 %v9315
        %10004 = vmatprep.subr.bf16.mxu0 %v9320
        %10005 = vmatpush1.bf16.msra.mxu0 %v9319
        %10006 = vmatprep.subr.bf16.mxu0 %v9324
        %10007 = vmatpush1.bf16.msra.mxu0 %v9323
        %10008 = vmatprep.subr.bf16.mxu0 %v9328
        %10009 = vmatpush1.bf16.msra.mxu0 %v9327
        %10010 = vmatprep.subr.bf16.mxu0 %v9332
        %10011 = vmatpush1.bf16.msra.mxu0 %v9331
        %10012 = vmatprep.subr.bf16.mxu0 %v9336
        %10013 = vmatpush1.bf16.msra.mxu0 %v9335
        %10014 = vmatprep.subr.bf16.mxu0 %v9340
        %10015 = vmatpush1.bf16.msra.mxu0 %v9339
        %10016 = vmatprep.subr.bf16.mxu0 %v9344
        %10017 = vmatpush1.bf16.msra.mxu0 %v9343
        %10018 = vmatprep.subr.bf16.mxu0 %v9348
        %10019 = vmatpush1.bf16.msra.mxu0 %v9347
        %10020 = vmatprep.subr.bf16.mxu0 %v9352
        %10021 = vmatpush1.bf16.msra.mxu0 %v9351
        %10022 = vmatprep.mubr.bf16.mxu0 %v6811
        %10023 = vmatmul.mubr.bf16.gmra.mrb[0].mxu0 %v6810
        %v10024 = vpop.f32.mrb[0].mxu0
        %v10025 = vadd.f32 %v9984, %v10024
        %v10026 = vpop.f32.mrb[0].mxu0
        %v10027 = vadd.f32 %v9986, %v10026
        %v10028 = vpop.f32.mrb[0].mxu0
        %v10029 = vpop.f32.mrb[0].mxu0
        %10030 = vdwg.mxu0
        %10031 = vmatprep.subr.bf16.mxu0 %v9356
        %10032 = vmatpush1.bf16.msra.mxu0 %v9355
        %10033 = vmatprep.subr.bf16.mxu0 %v9360
        %10034 = vmatpush1.bf16.msra.mxu0 %v9359
        %10035 = vmatprep.subr.bf16.mxu0 %v9364
        %10036 = vmatpush1.bf16.msra.mxu0 %v9363
        %10037 = vmatprep.subr.bf16.mxu0 %v9368
        %10038 = vmatpush1.bf16.msra.mxu0 %v9367
        %10039 = vmatprep.subr.bf16.mxu0 %v9372
        %10040 = vmatpush1.bf16.msra.mxu0 %v9371
        %10041 = vmatprep.subr.bf16.mxu0 %v9376
        %10042 = vmatpush1.bf16.msra.mxu0 %v9375
        %10043 = vmatprep.subr.bf16.mxu0 %v9380
        %10044 = vmatpush1.bf16.msra.mxu0 %v9379
        %10045 = vmatprep.subr.bf16.mxu0 %v9384
        %10046 = vmatpush1.bf16.msra.mxu0 %v9383
        %10047 = vmatprep.subr.bf16.mxu0 %v9388
        %10048 = vmatpush1.bf16.msra.mxu0 %v9387
        %10049 = vmatprep.subr.bf16.mxu0 %v9392
        %10050 = vmatpush1.bf16.msra.mxu0 %v9391
        %10051 = vmatprep.subr.bf16.mxu0 %v9396
        %10052 = vmatpush1.bf16.msra.mxu0 %v9395
        %10053 = vmatprep.subr.bf16.mxu0 %v9400
        %10054 = vmatpush1.bf16.msra.mxu0 %v9399
        %10055 = vmatprep.subr.bf16.mxu0 %v9404
        %10056 = vmatpush1.bf16.msra.mxu0 %v9403
        %10057 = vmatprep.subr.bf16.mxu0 %v9408
        %10058 = vmatpush1.bf16.msra.mxu0 %v9407
        %10059 = vmatprep.subr.bf16.mxu0 %v9412
        %10060 = vmatpush1.bf16.msra.mxu0 %v9411
        %10061 = vmatprep.subr.bf16.mxu0 %v9416
        %10062 = vmatpush1.bf16.msra.mxu0 %v9415
        %10063 = vmatprep.mubr.bf16.mxu0 %v7538
        %10064 = vmatmul.mubr.bf16.gmra.mrb[0].mxu0 %v7537
        %v10065 = vpop.f32.mrb[0].mxu0
        %v10066 = vadd.f32 %v10025, %v10065
        %v10067 = vpop.f32.mrb[0].mxu0
        %v10068 = vadd.f32 %v10027, %v10067
        %v10069 = vpop.f32.mrb[0].mxu0
        %v10070 = vpop.f32.mrb[0].mxu0
        %10071 = vdwg.mxu0
        %10072 = vmatprep.subr.bf16.mxu0 %v9420
        %10073 = vmatpush1.bf16.msra.mxu0 %v9419
        %10074 = vmatprep.subr.bf16.mxu0 %v9424
        %10075 = vmatpush1.bf16.msra.mxu0 %v9423
        %10076 = vmatprep.subr.bf16.mxu0 %v9428
        %10077 = vmatpush1.bf16.msra.mxu0 %v9427
        %10078 = vmatprep.subr.bf16.mxu0 %v9432
        %10079 = vmatpush1.bf16.msra.mxu0 %v9431
        %10080 = vmatprep.subr.bf16.mxu0 %v9436
        %10081 = vmatpush1.bf16.msra.mxu0 %v9435
        %10082 = vmatprep.subr.bf16.mxu0 %v9440
        %10083 = vmatpush1.bf16.msra.mxu0 %v9439
        %10084 = vmatprep.subr.bf16.mxu0 %v9444
        %10085 = vmatpush1.bf16.msra.mxu0 %v9443
        %10086 = vmatprep.subr.bf16.mxu0 %v9448
        %10087 = vmatpush1.bf16.msra.mxu0 %v9447
        %10088 = vmatprep.subr.bf16.mxu0 %v9452
        %10089 = vmatpush1.bf16.msra.mxu0 %v9451
        %10090 = vmatprep.subr.bf16.mxu0 %v9456
        %10091 = vmatpush1.bf16.msra.mxu0 %v9455
        %10092 = vmatprep.subr.bf16.mxu0 %v9460
        %10093 = vmatpush1.bf16.msra.mxu0 %v9459
        %10094 = vmatprep.subr.bf16.mxu0 %v9464
        %10095 = vmatpush1.bf16.msra.mxu0 %v9463
        %10096 = vmatprep.subr.bf16.mxu0 %v9468
        %10097 = vmatpush1.bf16.msra.mxu0 %v9467
        %10098 = vmatprep.subr.bf16.mxu0 %v9472
        %10099 = vmatpush1.bf16.msra.mxu0 %v9471
        %10100 = vmatprep.subr.bf16.mxu0 %v9476
        %10101 = vmatpush1.bf16.msra.mxu0 %v9475
        %10102 = vmatprep.subr.bf16.mxu0 %v9480
        %10103 = vmatpush1.bf16.msra.mxu0 %v9479
        %10104 = vmatprep.mubr.bf16.mxu0 %v7540
        %10105 = vmatmul.mubr.bf16.gmra.mrb[0].mxu0 %v7539
        %v10106 = vpop.f32.mrb[0].mxu0
        %v10107 = vadd.f32 %v10066, %v10106
        %v10108 = vpop.f32.mrb[0].mxu0
        %v10109 = vadd.f32 %v10068, %v10108
        %v10110 = vpop.f32.mrb[0].mxu0
        %v10111 = vpop.f32.mrb[0].mxu0
        %10112 = vdwg.mxu0
        %10113 = vmatprep.subr.bf16.mxu0 %v9102
        %10114 = vmatpush1.bf16.msra.mxu0 %v9101
        %10115 = vmatprep.subr.bf16.mxu0 %v9106
        %10116 = vmatpush1.bf16.msra.mxu0 %v9105
        %10117 = vmatprep.subr.bf16.mxu0 %v9110
        %10118 = vmatpush1.bf16.msra.mxu0 %v9109
        %10119 = vmatprep.subr.bf16.mxu0 %v9114
        %10120 = vmatpush1.bf16.msra.mxu0 %v9113
        %10121 = vmatprep.subr.bf16.mxu0 %v9118
        %10122 = vmatpush1.bf16.msra.mxu0 %v9117
        %10123 = vmatprep.subr.bf16.mxu0 %v9122
        %10124 = vmatpush1.bf16.msra.mxu0 %v9121
        %10125 = vmatprep.subr.bf16.mxu0 %v9126
        %10126 = vmatpush1.bf16.msra.mxu0 %v9125
        %10127 = vmatprep.subr.bf16.mxu0 %v9130
        %10128 = vmatpush1.bf16.msra.mxu0 %v9129
        %10129 = vmatprep.subr.bf16.mxu0 %v9134
        %10130 = vmatpush1.bf16.msra.mxu0 %v9133
        %10131 = vmatprep.subr.bf16.mxu0 %v9138
        %10132 = vmatpush1.bf16.msra.mxu0 %v9137
        %10133 = vmatprep.subr.bf16.mxu0 %v9142
        %10134 = vmatpush1.bf16.msra.mxu0 %v9141
        %10135 = vmatprep.subr.bf16.mxu0 %v9146
        %10136 = vmatpush1.bf16.msra.mxu0 %v9145
        %10137 = vmatprep.subr.bf16.mxu0 %v9150
        %10138 = vmatpush1.bf16.msra.mxu0 %v9149
        %10139 = vmatprep.subr.bf16.mxu0 %v9154
        %10140 = vmatpush1.bf16.msra.mxu0 %v9153
        %10141 = vmatprep.subr.bf16.mxu0 %v9158
        %10142 = vmatpush1.bf16.msra.mxu0 %v9157
        %10143 = vmatprep.subr.bf16.mxu0 %v9162
        %10144 = vmatpush1.bf16.msra.mxu0 %v9161
        %10145 = vmatprep.mubr.bf16.mxu0 %v7449
        %10146 = vmatmul.mubr.bf16.gmra.mrb[0].mxu0 %v7448
        %v10147 = vpop.f32.mrb[0].mxu0
        %v10148 = vadd.f32 %v7938, %v10147
        %v10149 = vpop.f32.mrb[0].mxu0
        %v10150 = vadd.f32 %v7942, %v10149
        %v10151 = vpop.f32.mrb[0].mxu0
        %v10152 = vpop.f32.mrb[0].mxu0
        %10153 = vdwg.mxu0
        %10154 = vmatprep.subr.bf16.mxu0 %v9166
        %10155 = vmatpush1.bf16.msra.mxu0 %v9165
        %10156 = vmatprep.subr.bf16.mxu0 %v9170
        %10157 = vmatpush1.bf16.msra.mxu0 %v9169
        %10158 = vmatprep.subr.bf16.mxu0 %v9174
        %10159 = vmatpush1.bf16.msra.mxu0 %v9173
        %10160 = vmatprep.subr.bf16.mxu0 %v9178
        %10161 = vmatpush1.bf16.msra.mxu0 %v9177
        %10162 = vmatprep.subr.bf16.mxu0 %v9182
        %10163 = vmatpush1.bf16.msra.mxu0 %v9181
        %10164 = vmatprep.subr.bf16.mxu0 %v9186
        %10165 = vmatpush1.bf16.msra.mxu0 %v9185
        %10166 = vmatprep.subr.bf16.mxu0 %v9190
        %10167 = vmatpush1.bf16.msra.mxu0 %v9189
        %10168 = vmatprep.subr.bf16.mxu0 %v9194
        %10169 = vmatpush1.bf16.msra.mxu0 %v9193
        %10170 = vmatprep.subr.bf16.mxu0 %v9198
        %10171 = vmatpush1.bf16.msra.mxu0 %v9197
        %10172 = vmatprep.subr.bf16.mxu0 %v9202
        %10173 = vmatpush1.bf16.msra.mxu0 %v9201
        %10174 = vmatprep.subr.bf16.mxu0 %v9206
        %10175 = vmatpush1.bf16.msra.mxu0 %v9205
        %10176 = vmatprep.subr.bf16.mxu0 %v9210
        %10177 = vmatpush1.bf16.msra.mxu0 %v9209
        %10178 = vmatprep.subr.bf16.mxu0 %v9214
        %10179 = vmatpush1.bf16.msra.mxu0 %v9213
        %10180 = vmatprep.subr.bf16.mxu0 %v9218
        %10181 = vmatpush1.bf16.msra.mxu0 %v9217
        %10182 = vmatprep.subr.bf16.mxu0 %v9222
        %10183 = vmatpush1.bf16.msra.mxu0 %v9221
        %10184 = vmatprep.subr.bf16.mxu0 %v9226
        %10185 = vmatpush1.bf16.msra.mxu0 %v9225
        %10186 = vmatprep.mubr.bf16.mxu0 %v7451
        %10187 = vmatmul.mubr.bf16.gmra.mrb[0].mxu0 %v7450
        %v10188 = vpop.f32.mrb[0].mxu0
        %v10189 = vadd.f32 %v10148, %v10188
        %v10190 = vpop.f32.mrb[0].mxu0
        %v10191 = vadd.f32 %v10150, %v10190
        %v10192 = vpop.f32.mrb[0].mxu0
        %v10193 = vpop.f32.mrb[0].mxu0
        %10194 = vdwg.mxu0
        %10195 = vmatprep.subr.bf16.mxu0 %v9230
        %10196 = vmatpush1.bf16.msra.mxu0 %v9229
        %10197 = vmatprep.subr.bf16.mxu0 %v9234
        %10198 = vmatpush1.bf16.msra.mxu0 %v9233
        %10199 = vmatprep.subr.bf16.mxu0 %v9238
        %10200 = vmatpush1.bf16.msra.mxu0 %v9237
        %10201 = vmatprep.subr.bf16.mxu0 %v9242
        %10202 = vmatpush1.bf16.msra.mxu0 %v9241
        %10203 = vmatprep.subr.bf16.mxu0 %v9246
        %10204 = vmatpush1.bf16.msra.mxu0 %v9245
        %10205 = vmatprep.subr.bf16.mxu0 %v9250
        %10206 = vmatpush1.bf16.msra.mxu0 %v9249
        %10207 = vmatprep.subr.bf16.mxu0 %v9254
        %10208 = vmatpush1.bf16.msra.mxu0 %v9253
        %10209 = vmatprep.subr.bf16.mxu0 %v9258
        %10210 = vmatpush1.bf16.msra.mxu0 %v9257
        %10211 = vmatprep.subr.bf16.mxu0 %v9262
        %10212 = vmatpush1.bf16.msra.mxu0 %v9261
        %10213 = vmatprep.subr.bf16.mxu0 %v9266
        %10214 = vmatpush1.bf16.msra.mxu0 %v9265
        %10215 = vmatprep.subr.bf16.mxu0 %v9270
        %10216 = vmatpush1.bf16.msra.mxu0 %v9269
        %10217 = vmatprep.subr.bf16.mxu0 %v9274
        %10218 = vmatpush1.bf16.msra.mxu0 %v9273
        %10219 = vmatprep.subr.bf16.mxu0 %v9278
        %10220 = vmatpush1.bf16.msra.mxu0 %v9277
        %10221 = vmatprep.subr.bf16.mxu0 %v9282
        %10222 = vmatpush1.bf16.msra.mxu0 %v9281
        %10223 = vmatprep.subr.bf16.mxu0 %v9286
        %10224 = vmatpush1.bf16.msra.mxu0 %v9285
        %10225 = vmatprep.subr.bf16.mxu0 %v9290
        %10226 = vmatpush1.bf16.msra.mxu0 %v9289
        %10227 = vmatprep.mubr.bf16.mxu0 %v6809
        %10228 = vmatmul.mubr.bf16.gmra.mrb[0].mxu0 %v6808
        %v10229 = vpop.f32.mrb[0].mxu0
        %v10230 = vadd.f32 %v10189, %v10229
        %v10231 = vpop.f32.mrb[0].mxu0
        %v10232 = vadd.f32 %v10191, %v10231
        %v10233 = vpop.f32.mrb[0].mxu0
        %v10234 = vpop.f32.mrb[0].mxu0
        %10235 = vdwg.mxu0
        %10236 = vmatprep.subr.bf16.mxu0 %v9294
        %10237 = vmatpush1.bf16.msra.mxu0 %v9293
        %10238 = vmatprep.subr.bf16.mxu0 %v9298
        %10239 = vmatpush1.bf16.msra.mxu0 %v9297
        %10240 = vmatprep.subr.bf16.mxu0 %v9302
        %10241 = vmatpush1.bf16.msra.mxu0 %v9301
        %10242 = vmatprep.subr.bf16.mxu0 %v9306
        %10243 = vmatpush1.bf16.msra.mxu0 %v9305
        %10244 = vmatprep.subr.bf16.mxu0 %v9310
        %10245 = vmatpush1.bf16.msra.mxu0 %v9309
        %10246 = vmatprep.subr.bf16.mxu0 %v9314
        %10247 = vmatpush1.bf16.msra.mxu0 %v9313
        %10248 = vmatprep.subr.bf16.mxu0 %v9318
        %10249 = vmatpush1.bf16.msra.mxu0 %v9317
        %10250 = vmatprep.subr.bf16.mxu0 %v9322
        %10251 = vmatpush1.bf16.msra.mxu0 %v9321
        %10252 = vmatprep.subr.bf16.mxu0 %v9326
        %10253 = vmatpush1.bf16.msra.mxu0 %v9325
        %10254 = vmatprep.subr.bf16.mxu0 %v9330
        %10255 = vmatpush1.bf16.msra.mxu0 %v9329
        %10256 = vmatprep.subr.bf16.mxu0 %v9334
        %10257 = vmatpush1.bf16.msra.mxu0 %v9333
        %10258 = vmatprep.subr.bf16.mxu0 %v9338
        %10259 = vmatpush1.bf16.msra.mxu0 %v9337
        %10260 = vmatprep.subr.bf16.mxu0 %v9342
        %10261 = vmatpush1.bf16.msra.mxu0 %v9341
        %10262 = vmatprep.subr.bf16.mxu0 %v9346
        %10263 = vmatpush1.bf16.msra.mxu0 %v9345
        %10264 = vmatprep.subr.bf16.mxu0 %v9350
        %10265 = vmatpush1.bf16.msra.mxu0 %v9349
        %10266 = vmatprep.subr.bf16.mxu0 %v9354
        %10267 = vmatpush1.bf16.msra.mxu0 %v9353
        %10268 = vmatprep.mubr.bf16.mxu0 %v6811
        %10269 = vmatmul.mubr.bf16.gmra.mrb[0].mxu0 %v6810
        %v10270 = vpop.f32.mrb[0].mxu0
        %v10271 = vadd.f32 %v10230, %v10270
        %v10272 = vpop.f32.mrb[0].mxu0
        %v10273 = vadd.f32 %v10232, %v10272
        %v10274 = vpop.f32.mrb[0].mxu0
        %v10275 = vpop.f32.mrb[0].mxu0
        %10276 = vdwg.mxu0
        %10277 = vmatprep.subr.bf16.mxu0 %v9358
        %10278 = vmatpush1.bf16.msra.mxu0 %v9357
        %10279 = vmatprep.subr.bf16.mxu0 %v9362
        %10280 = vmatpush1.bf16.msra.mxu0 %v9361
        %10281 = vmatprep.subr.bf16.mxu0 %v9366
        %10282 = vmatpush1.bf16.msra.mxu0 %v9365
        %10283 = vmatprep.subr.bf16.mxu0 %v9370
        %10284 = vmatpush1.bf16.msra.mxu0 %v9369
        %10285 = vmatprep.subr.bf16.mxu0 %v9374
        %10286 = vmatpush1.bf16.msra.mxu0 %v9373
        %10287 = vmatprep.subr.bf16.mxu0 %v9378
        %10288 = vmatpush1.bf16.msra.mxu0 %v9377
        %10289 = vmatprep.subr.bf16.mxu0 %v9382
        %10290 = vmatpush1.bf16.msra.mxu0 %v9381
        %10291 = vmatprep.subr.bf16.mxu0 %v9386
        %10292 = vmatpush1.bf16.msra.mxu0 %v9385
        %10293 = vmatprep.subr.bf16.mxu0 %v9390
        %10294 = vmatpush1.bf16.msra.mxu0 %v9389
        %10295 = vmatprep.subr.bf16.mxu0 %v9394
        %10296 = vmatpush1.bf16.msra.mxu0 %v9393
        %10297 = vmatprep.subr.bf16.mxu0 %v9398
        %10298 = vmatpush1.bf16.msra.mxu0 %v9397
        %10299 = vmatprep.subr.bf16.mxu0 %v9402
        %10300 = vmatpush1.bf16.msra.mxu0 %v9401
        %10301 = vmatprep.subr.bf16.mxu0 %v9406
        %10302 = vmatpush1.bf16.msra.mxu0 %v9405
        %10303 = vmatprep.subr.bf16.mxu0 %v9410
        %10304 = vmatpush1.bf16.msra.mxu0 %v9409
        %10305 = vmatprep.subr.bf16.mxu0 %v9414
        %10306 = vmatpush1.bf16.msra.mxu0 %v9413
        %10307 = vmatprep.subr.bf16.mxu0 %v9418
        %10308 = vmatpush1.bf16.msra.mxu0 %v9417
        %10309 = vmatprep.mubr.bf16.mxu0 %v7538
        %10310 = vmatmul.mubr.bf16.gmra.mrb[0].mxu0 %v7537
        %v10311 = vpop.f32.mrb[0].mxu0
        %v10312 = vadd.f32 %v10271, %v10311
        %v10313 = vpop.f32.mrb[0].mxu0
        %v10314 = vadd.f32 %v10273, %v10313
        %v10315 = vpop.f32.mrb[0].mxu0
        %v10316 = vpop.f32.mrb[0].mxu0
        %10317 = vdwg.mxu0
        %10318 = vmatprep.subr.bf16.mxu0 %v9422
        %10319 = vmatpush1.bf16.msra.mxu0 %v9421
        %10320 = vmatprep.subr.bf16.mxu0 %v9426
        %10321 = vmatpush1.bf16.msra.mxu0 %v9425
        %10322 = vmatprep.subr.bf16.mxu0 %v9430
        %10323 = vmatpush1.bf16.msra.mxu0 %v9429
        %10324 = vmatprep.subr.bf16.mxu0 %v9434
        %10325 = vmatpush1.bf16.msra.mxu0 %v9433
        %10326 = vmatprep.subr.bf16.mxu0 %v9438
        %10327 = vmatpush1.bf16.msra.mxu0 %v9437
        %10328 = vmatprep.subr.bf16.mxu0 %v9442
        %10329 = vmatpush1.bf16.msra.mxu0 %v9441
        %10330 = vmatprep.subr.bf16.mxu0 %v9446
        %10331 = vmatpush1.bf16.msra.mxu0 %v9445
        %10332 = vmatprep.subr.bf16.mxu0 %v9450
        %10333 = vmatpush1.bf16.msra.mxu0 %v9449
        %10334 = vmatprep.subr.bf16.mxu0 %v9454
        %10335 = vmatpush1.bf16.msra.mxu0 %v9453
        %10336 = vmatprep.subr.bf16.mxu0 %v9458
        %10337 = vmatpush1.bf16.msra.mxu0 %v9457
        %10338 = vmatprep.subr.bf16.mxu0 %v9462
        %10339 = vmatpush1.bf16.msra.mxu0 %v9461
        %10340 = vmatprep.subr.bf16.mxu0 %v9466
        %10341 = vmatpush1.bf16.msra.mxu0 %v9465
        %10342 = vmatprep.subr.bf16.mxu0 %v9470
        %10343 = vmatpush1.bf16.msra.mxu0 %v9469
        %10344 = vmatprep.subr.bf16.mxu0 %v9474
        %10345 = vmatpush1.bf16.msra.mxu0 %v9473
        %10346 = vmatprep.subr.bf16.mxu0 %v9478
        %10347 = vmatpush1.bf16.msra.mxu0 %v9477
        %10348 = vmatprep.subr.bf16.mxu0 %v9482
        %10349 = vmatpush1.bf16.msra.mxu0 %v9481
        %10350 = vmatprep.mubr.bf16.mxu0 %v7540
        %10351 = vmatmul.mubr.bf16.gmra.mrb[0].mxu0 %v7539
        %v10352 = vpop.f32.mrb[0].mxu0
        %v10353 = vadd.f32 %v10312, %v10352
        %v10354 = vpop.f32.mrb[0].mxu0
        %v10355 = vadd.f32 %v10314, %v10354
        %v10356 = vpop.f32.mrb[0].mxu0
        %v10357 = vpop.f32.mrb[0].mxu0
        %10358 = vdwg.mxu0
        %v10359 = vadd.f32 %v10107, %v7300
        %v10360 = vadd.f32 %v10109, %v7302
        %v10361 = vadd.f32 %v10353, %v7341
        %v10362 = vadd.f32 %v10355, %v7343
        %v10363 = vmax.f32 %v10359, 0.0
        %v10364 = vmax.f32 %v10360, 0.0
        %v10365 = vmax.f32 %v10361, 0.0
        %v10366 = vmax.f32 %v10362, 0.0
        %v10367 = vrot.slane %v10363, 4
        %v10368 = vadd.f32 %v10363, %v10367
        %v10369 = vrot.slane %v10368, 2
        %v10370 = vadd.f32 %v10368, %v10369
        %v10371 = vrot.slane %v10370, 1
        %v10372 = vadd.f32 %v10370, %v10371
        %v10373 = vrot.slane %v10364, 4
        %v10374 = vadd.f32 %v10364, %v10373
        %v10375 = vrot.slane %v10374, 2
        %v10376 = vadd.f32 %v10374, %v10375
        %v10377 = vrot.slane %v10376, 1
        %v10378 = vadd.f32 %v10376, %v10377
        %v10379 = vrot.slane %v10365, 4
        %v10380 = vadd.f32 %v10365, %v10379
        %v10381 = vrot.slane %v10380, 2
        %v10382 = vadd.f32 %v10380, %v10381
        %v10383 = vrot.slane %v10382, 1
        %v10384 = vadd.f32 %v10382, %v10383
        %v10385 = vrot.slane %v10366, 4
        %v10386 = vadd.f32 %v10366, %v10385
        %v10387 = vrot.slane %v10386, 2
        %v10388 = vadd.f32 %v10386, %v10387
        %v10389 = vrot.slane %v10388, 1
        %v10390 = vadd.f32 %v10388, %v10389
        %v10391 = vmul.f32 %v10372, 0.125
        %v10392 = vmul.f32 %v10378, 0.125
        %v10393 = vmul.f32 %v10384, 0.125
        %v10394 = vmul.f32 %v10390, 0.125
        %v10399 = vcombine.low %v10391, %v10392
        %v10400 = vcombine.low %v10393, %v10394
        %v10402 = vunpack.c.l.s4 1966171168
        %v10403 = vunpack.c.0.s8 %v10402
        %v10404 = vlaneseq
        %v10405 = vshrl.u32 %v10404, 7
        %v10406 = vsub.s32 %v10403, %v10405
        %v10407 = vrot.slane %v10399, %v10406
        %v10409 = vunpack.c.l.s4 1966171168
        %v10410 = vunpack.c.0.s8 %v10409
        %v10411 = vlaneseq
        %v10412 = vshrl.u32 %v10411, 7
        %v10413 = vsub.s32 %v10410, %v10412
        %v10414 = vrot.slane %v10400, %v10413
        %v10415 = vcombine.low %v10407, %v10414
        %v10417 = vunpack.c.l.s4 1966171168
        %v10418 = vunpack.c.0.s8 %v10417
        %v10419 = vlaneseq
        %v10420 = vshrl.u32 %v10419, 7
        %v10421 = vsub.s32 %v10418, %v10420
        %v10422 = vrot.slane %v10415, %v10421
        %v10424 = vlaneseq
        %vm10425 = vcmp.ge.s32.totalorder %v10424, 0
        %vm10426 = vcmp.lt.s32.totalorder %v10424, 512
        %vm10427 = vmand %vm10425, %vm10426
        %10428 = vst.msk [vmem:[%s1087] sm:$0xf] %vm10427, %v10422
        %p10429 = scmp.lt.s32.totalorder %s49, 1
        %s10430 = scalar_select %p10429, %s49, 1
        %s10431 = smul.addr %s10430, 4
        %s10432 = scalar_lea.vmem %s25, %s10431
        // Predicated region
        $region217: #{forward.1} parent=119 // pred_check
          %p10433 = pneg %p597
        $region218: #{forward.1} parent=119 // pred_check_branch
          %10435 = sbr.rel (%p10433) target = $region220
        $region219: #{forward.1} parent=119 // pred_region
          _
        $region220: #{forward.1} parent=119 // pred_fallthru
          _
      $region120: #{forward.1} parent=5 // pred_fallthru
        _
      %p10436 = scmp.le.s32.totalorder 2, %s44
      // Predicated region
      $region221: #{forward.1} parent=5 // pred_check
        %p10437 = pneg %p10436
      $region222: #{forward.1} parent=5 // pred_check_branch
        %10439 = sbr.rel (%p10437) target = $region224
      $region223: #{forward.1} parent=5 // pred_region
        %s10440 = ssub.s32 %s44, 2
        // Predicated region
        $region225: #{forward.1} parent=223 // pred_check
          %p10441 = pneg %p603
        $region226: #{forward.1} parent=223 // pred_check_branch
          %10443 = sbr.rel (%p10441) target = $region228
        $region227: #{forward.1} parent=223 // pred_region
          %p10444 = scmp.lt.s32.totalorder %s50, 1
          %s10445 = scalar_select %p10444, %s50, 1
          %s10446 = smul.addr %s10445, 4
          %s10447 = scalar_lea.vmem %s25, %s10446
        $region228: #{forward.1} parent=223 // pred_fallthru
          _
      $region224: #{forward.1} parent=5 // pred_fallthru
        _
    $region6: #{forward.1} parent=1 // loop_footer
      %s48 = sadd.s32 1, %s44
    $region7: #{forward.1} parent=1 // loop_footer_branch
      %43 = sbr.rel target = $region3
    $region8: #{forward.1} parent=1 // loop_exit
      _
    %10448 = vsyncpa [#allocation3], 1
    %s10449 = scalar_lea.sflag [#allocation3], 1
    %10450 = vsyncpa %s10449, 1
    %10451 = vsyncpa [#allocation5], 1
    %10452 = vsyncpa [#allocation8], 1
    %10453 = vsyncpa [#allocation11], 1
    %10454 = vsyncpa [#allocation14], 1
    %10455 = vsyncpa [#allocation17], 1
    %10456 = vsyncpa [#allocation20], 1
    %10457 = vsyncpa [#allocation23], 1
    %10458 = vsyncpa [#allocation26], 1
    %10459 = vsyncpa [#allocation29], 1
    %10460 = vsyncpa [#allocation32], 1
    %10461 = vsyncpa [#allocation35], 1
    %10462 = vsyncpa [#allocation38], 1

</llo_original>
